<compile_context>
chip_gen: v5e
topology: v5e:2x2
jax: 0.10.0
libtpu: 0.0.40
codegen_flags: <defaults>
</compile_context>

<pallas_src>
import jax
import jax.numpy as jnp
from jax import lax
from jax.experimental import pallas as pl
from jax.experimental.pallas import tpu as pltpu


def _round_up(n, m):
    return ((n + m - 1) // m) * m


def _encoder_resblock_kernel(x_ref, w5_ref, b5_ref, w3_ref, b3_ref,
                             se1_ref, se2_ref, hmask_ref, o_ref, colx_ref):
    # Per grid step (Bt batch images), refs:
    #   x_ref    : (Bt, H, W, C) f32   input images (NHWC)
    #   w5_ref   : (5, 5*C, C)  bf16   5x5 conv weights (Conv1x1+BN folded), grouped by dy;
    #                                  rows within a dy block ordered (dx, cin)
    #   b5_ref   : (1, C)       f32    folded bias
    #   w3_ref   : (3, 3*C, C)  bf16   3x3 conv weights grouped by dy
    #   b3_ref   : (1, C)       f32
    #   se1_ref  : (C, C//4) f32;  se2_ref : (C//4, C) f32   SE squeeze/excite FCs
    #   hmask_ref: (HW+2P, 5*C) bf16   horizontal-validity mask, pre-broadcast per dx block
    #   colx_ref : (HW+2P, 5*C) bf16   scratch: dx-only im2col stripes (zero-haloed rows)
    Bt, H, W, C = x_ref.shape
    HW = H * W
    P = (colx_ref.shape[0] - HW) // 2          # halo rows each side; P >= 2W+16, 16-aligned
    SLO = 16                                   # stripe write range [SLO, SHI) covers every
    SHI = HW + 2 * P - 16                      # row any dy-shifted matmul slice will read

    def conv_pass(act_bf16, k, w_ref, b_ref):
        """k x k 'SAME' conv of the (HW, C) bf16 activation.
        Center stripe (column block r=k//2) = activation with zero vertical halo; the other
        k-1 stripes are its +/-dxo row-shifted, hmask'ed copies (a horizontal image shift is
        a flattened-row shift once wrap-around taps are masked).  The conv is then k
        accumulating MXU matmuls over dy, each contracting the (HW, k*C) slice of colx at
        sublane offset P+(dy-r)*W with the (k*C, C) weight block w_ref[dy]."""
        r = k // 2
        c = r                                                    # center stripe block
        # --- center stripe: zero vertical halo + interior activation ---
        colx_ref[0:P, c * C:(c + 1) * C] = jnp.zeros((P, C), jnp.bfloat16)
        colx_ref[P + HW:HW + 2 * P, c * C:(c + 1) * C] = jnp.zeros((P, C), jnp.bfloat16)
        colx_ref[P:P + HW, c * C:(c + 1) * C] = act_bf16
        # --- horizontally shifted stripes (mask kills row-wrapped taps) ---
        for dx in range(k):
            dxo = dx - r                                         # in [-2, 2], != 0 below
            if dxo == 0:
                continue
            src = colx_ref[SLO + dxo:SHI + dxo, c * C:(c + 1) * C]        # (L, C) bf16
            m = hmask_ref[SLO:SHI, (dxo + 2) * C:(dxo + 3) * C]           # (L, C) bf16
            colx_ref[SLO:SHI, dx * C:(dx + 1) * C] = src * m
        # --- dy-accumulated matmuls, K = k*C, f32 accumulation on the MXU ---
        out = None
        for dy in range(k):
            off = P + (dy - r) * W                               # static, 16-aligned if W%16==0
            part = jnp.dot(colx_ref[off:off + HW, 0:k * C], w_ref[dy],
                           preferred_element_type=jnp.float32)
            out = part if out is None else out + part
        return out + b_ref[...]

    for bi in range(Bt):
        x_img = x_ref[bi]                                        # (H, W, C) f32
        # Conv5x5 (+ folded Conv1x1 + eval BatchNorm)
        h = conv_pass(x_img.reshape(HW, C).astype(jnp.bfloat16), 5, w5_ref, b5_ref)
        # Swish
        h = h * jax.nn.sigmoid(h)
        # Conv3x3
        h3 = conv_pass(h.astype(jnp.bfloat16), 3, w3_ref, b3_ref)
        # SELayer: global avg pool -> FC -> ReLU -> FC -> sigmoid -> channel scale
        pooled = jnp.mean(h3, axis=0, keepdims=True)                          # (1, C)
        z = jnp.maximum(jnp.dot(pooled, se1_ref[...],
                                preferred_element_type=jnp.float32), 0.0)     # (1, C//4)
        s = jax.nn.sigmoid(jnp.dot(z, se2_ref[...],
                                   preferred_element_type=jnp.float32))       # (1, C)
        # residual: x + 0.1 * seq(x)   (kept in f32; lane-sparse store accepted for C=32)
        o_ref[bi] = x_img + 0.1 * (h3 * s).reshape(H, W, C)


def encoder_residual_block(x_nchw, params, *, images_per_step=1):
    """x_nchw: (B, C, H, W) float32.  Returns (B, C, H, W) = x + 0.1 * seq(x)."""
    w5, b5, w1, b1, bn_scale, bn_shift, w3, b3, se1, se2 = params
    B, C, H, W = x_nchw.shape
    HW = H * W
    Bt = images_per_step
    assert B % Bt == 0, "images_per_step must divide the batch"
    x = jnp.transpose(x_nchw, (0, 2, 3, 1)).astype(jnp.float32)          # NHWC

    # ---- fold Conv1x1 + BatchNorm (eval) into the 5x5 conv -- exact (no nonlinearity) ----
    w5_eff = jnp.einsum('hwio,om->hwim', w5, w1) * bn_scale[0]           # (5,5,C,C)
    b5_eff = (b5 @ w1 + b1) * bn_scale + bn_shift                        # (1,C)

    # Weights grouped by dy so each dy matmul slices one (k*C, C) block; rows within a
    # block are (dx, cin)-ordered, matching the dx-major stripe layout of colx.  bf16.
    w5s = w5_eff.reshape(5, 5 * C, C).astype(jnp.bfloat16)
    w3s = w3.reshape(3, 3 * C, C).astype(jnp.bfloat16)

    # Halo: >= 2W+16 so every dy-shifted slice stays inside the stripe-written range, and
    # 16-aligned so (for W % 16 == 0) all bf16 sublane offsets are aligned.
    P = _round_up(2 * W, 16) + 16

    # Horizontal validity mask on the full padded row range, periodic in W (so it is also
    # correct for rows read through a vertical (dy) offset), pre-broadcast to stripe width.
    xpos = jnp.mod(jnp.arange(HW + 2 * P, dtype=jnp.int32) - P, W)
    dxs = jnp.arange(-2, 3, dtype=jnp.int32)
    hmask = ((xpos[:, None] + dxs[None, :] >= 0) &
             (xpos[:, None] + dxs[None, :] < W))                         # (HW+2P, 5)
    hmask_full = jnp.repeat(hmask, C, axis=1).astype(jnp.bfloat16)       # (HW+2P, 5*C)

    def full_spec(shape):
        return pl.BlockSpec(shape, lambda b, _n=len(shape): (0,) * _n)

    out = pl.pallas_call(
        _encoder_resblock_kernel,
        out_shape=jax.ShapeDtypeStruct((B, H, W, C), jnp.float32),
        grid_spec=pltpu.PrefetchScalarGridSpec(
            num_scalar_prefetch=0,
            grid=(B // Bt,),
            in_specs=[
                pl.BlockSpec((Bt, H, W, C), lambda b: (b, 0, 0, 0)),
                full_spec(w5s.shape), full_spec(b5_eff.shape),
                full_spec(w3s.shape), full_spec(b3.shape),
                full_spec(se1.shape), full_spec(se2.shape),
                full_spec(hmask_full.shape),
            ],
            out_specs=pl.BlockSpec((Bt, H, W, C), lambda b: (b, 0, 0, 0)),
            scratch_shapes=[
                pltpu.VMEM((HW + 2 * P, 5 * C), jnp.bfloat16),   # dx-only im2col stripes
            ],
        ),
        compiler_params=pltpu.CompilerParams(
            dimension_semantics=("parallel",),   # batch steps independent (v7x megacore)
            # Test shape uses ~1 MiB; 48 MiB leaves headroom for larger images / Bt while
            # staying under v7x's 64 MiB physical VMEM.  Re-tune per generation for prod.
            vmem_limit_bytes=48 * 1024 * 1024,
        ),
    )(x, w5s, b5_eff, w3s, b3, se1, se2, hmask_full)

    return jnp.transpose(out, (0, 3, 1, 2))


def _ref_forward(x_nchw, params):
    """Pure-JAX reference with the same semantics (unfused, f32), for correctness check."""
    w5, b5, w1, b1, bn_scale, bn_shift, w3, b3, se1, se2 = params
    C = x_nchw.shape[1]
    x = jnp.transpose(x_nchw, (0, 2, 3, 1)).astype(jnp.float32)
    dn = ('NHWC', 'HWIO', 'NHWC')
    h = lax.conv_general_dilated(x, w5, (1, 1), 'SAME', dimension_numbers=dn) + b5[0]
    h = lax.conv_general_dilated(h, w1.reshape(1, 1, C, C), (1, 1), 'SAME',
                                 dimension_numbers=dn) + b1[0]
    h = h * bn_scale[0] + bn_shift[0]
    h = h * jax.nn.sigmoid(h)
    h = lax.conv_general_dilated(h, w3, (1, 1), 'SAME', dimension_numbers=dn) + b3[0]
    pooled = jnp.mean(h, axis=(1, 2))
    s = jax.nn.sigmoid(jnp.maximum(pooled @ se1, 0.0) @ se2)
    h = h * s[:, None, None, :]
    out = x + 0.1 * h
    return jnp.transpose(out, (0, 3, 1, 2))


def _make_params(key, dim, se_reduction=4):
    ks = jax.random.split(key, 12)
    hid = max(dim // se_reduction, 1)
    # Conv weights stored in HWIO = (kh, kw, Cin, Cout); PyTorch OIHW would be transposed.
    w5 = 0.05 * jax.random.normal(ks[0], (5, 5, dim, dim), jnp.float32)
    b5 = 0.05 * jax.random.normal(ks[1], (1, dim), jnp.float32)
    w1 = 0.05 * jax.random.normal(ks[2], (dim, dim), jnp.float32)
    b1 = 0.05 * jax.random.normal(ks[3], (1, dim), jnp.float32)
    gamma = 1.0 + 0.1 * jax.random.normal(ks[4], (1, dim), jnp.float32)
    beta = 0.1 * jax.random.normal(ks[5], (1, dim), jnp.float32)
    r_mean = 0.1 * jax.random.normal(ks[6], (1, dim), jnp.float32)
    r_var = jax.random.uniform(ks[7], (1, dim), jnp.float32, 0.5, 1.5)
    eps = 1e-5
    bn_scale = gamma / jnp.sqrt(r_var + eps)
    bn_shift = beta - r_mean * bn_scale
    w3 = 0.05 * jax.random.normal(ks[8], (3, 3, dim, dim), jnp.float32)
    b3 = 0.05 * jax.random.normal(ks[9], (1, dim), jnp.float32)
    se1 = 0.1 * jax.random.normal(ks[10], (dim, hid), jnp.float32)   # (Cin, Chid)
    se2 = 0.1 * jax.random.normal(ks[11], (hid, dim), jnp.float32)   # (Chid, Cout)
    return (w5, b5, w1, b1, bn_scale, bn_shift, w3, b3, se1, se2)


if __name__ == "__main__":
    key = jax.random.PRNGKey(0)
    kx, kp = jax.random.split(key)
    B, C, H, W = 2, 32, 16, 16
    x = jax.random.normal(kx, (B, C, H, W), jnp.float32)
    params = _make_params(kp, C)

    out = jax.block_until_ready(encoder_residual_block(x, params, images_per_step=1))
    ref = jax.block_until_ready(_ref_forward(x, params))

    assert out.shape == (B, C, H, W)
    err = jnp.max(jnp.abs(out - ref))
    # Tolerance loosened vs. the f32 version because conv matmuls now use bf16 inputs
    # (f32 accumulation); the residual path itself stays exact f32.
    assert jnp.allclose(out, ref, atol=5e-3, rtol=5e-3), f"max abs err {err}"
    print("KERNEL_OK")
</pallas_src>

<mosaic_0001>
module attributes {stable_mosaic.version = 11 : i64} {
  func.func @_encoder_resblock_kernel(%arg0: i32, %arg1: memref<1x16x16x32xf32, #tpu.memory_space<vmem>>, %arg2: memref<5x160x32xbf16, #tpu.memory_space<vmem>>, %arg3: memref<1x32xf32, #tpu.memory_space<vmem>>, %arg4: memref<3x96x32xbf16, #tpu.memory_space<vmem>>, %arg5: memref<1x32xf32, #tpu.memory_space<vmem>>, %arg6: memref<32x8xf32, #tpu.memory_space<vmem>>, %arg7: memref<8x32xf32, #tpu.memory_space<vmem>>, %arg8: memref<352x160xbf16, #tpu.memory_space<vmem>>, %arg9: memref<1x16x16x32xf32, #tpu.memory_space<vmem>>, %arg10: memref<352x160xbf16, #tpu.memory_space<vmem>>) attributes {dimension_semantics = [#tpu.dimension_semantics<parallel>], iteration_bounds = array<i64: 2>, scalar_prefetch = 0 : i64, scratch_operands = 1 : i64, tpu.core_type = #tpu.core_type<tc>, window_params = [{transform_indices = @transform_0, window_bounds = array<i64: 1, 16, 16, 32>}, {pipeline_mode = #tpu.pipeline_mode<synchronous>, transform_indices = @transform_1, window_bounds = array<i64: 5, 160, 32>}, {pipeline_mode = #tpu.pipeline_mode<synchronous>, transform_indices = @transform_2, window_bounds = array<i64: 1, 32>}, {pipeline_mode = #tpu.pipeline_mode<synchronous>, transform_indices = @transform_3, window_bounds = array<i64: 3, 96, 32>}, {pipeline_mode = #tpu.pipeline_mode<synchronous>, transform_indices = @transform_4, window_bounds = array<i64: 1, 32>}, {pipeline_mode = #tpu.pipeline_mode<synchronous>, transform_indices = @transform_5, window_bounds = array<i64: 32, 8>}, {pipeline_mode = #tpu.pipeline_mode<synchronous>, transform_indices = @transform_6, window_bounds = array<i64: 8, 32>}, {pipeline_mode = #tpu.pipeline_mode<synchronous>, transform_indices = @transform_7, window_bounds = array<i64: 352, 160>}, {transform_indices = @transform_8, window_bounds = array<i64: 1, 16, 16, 32>}]} {
    %c0 = arith.constant 0 : index
    %c0_0 = arith.constant 0 : index
    %c0_1 = arith.constant 0 : index
    %c0_2 = arith.constant 0 : index
    %0 = vector.load %arg1[%c0, %c0_0, %c0_1, %c0_2] : memref<1x16x16x32xf32, #tpu.memory_space<vmem>>, vector<1x16x16x32xf32>
    %1 = vector.shape_cast %0 : vector<1x16x16x32xf32> to vector<16x16x32xf32>
    %2 = vector.shape_cast %1 : vector<16x16x32xf32> to vector<256x32xf32>
    %3 = arith.truncf %2 : vector<256x32xf32> to vector<256x32xbf16>
    %cst = arith.constant 0.000000e+00 : bf16
    %4 = vector.broadcast %cst : bf16 to vector<48x32xbf16>
    %c0_3 = arith.constant 0 : index
    %c64 = arith.constant 64 : index
    %5 = vector.load %arg10[%c0_3, %c64] : memref<352x160xbf16, #tpu.memory_space<vmem>>, vector<48x32xbf16>
    tpu.vector_store %arg10[%c0_3, %c64], %4 {strides = array<i32>} : memref<352x160xbf16, #tpu.memory_space<vmem>>, vector<48x32xbf16>,
    %cst_4 = arith.constant 0.000000e+00 : bf16
    %6 = vector.broadcast %cst_4 : bf16 to vector<48x32xbf16>
    %c304 = arith.constant 304 : index
    %c64_5 = arith.constant 64 : index
    %7 = vector.load %arg10[%c304, %c64_5] : memref<352x160xbf16, #tpu.memory_space<vmem>>, vector<48x32xbf16>
    tpu.vector_store %arg10[%c304, %c64_5], %6 {strides = array<i32>} : memref<352x160xbf16, #tpu.memory_space<vmem>>, vector<48x32xbf16>,
    %c48 = arith.constant 48 : index
    %c64_6 = arith.constant 64 : index
    %8 = vector.load %arg10[%c48, %c64_6] : memref<352x160xbf16, #tpu.memory_space<vmem>>, vector<256x32xbf16>
    tpu.vector_store %arg10[%c48, %c64_6], %3 {strides = array<i32>} : memref<352x160xbf16, #tpu.memory_space<vmem>>, vector<256x32xbf16>,
    %c14 = arith.constant 14 : index
    %c64_7 = arith.constant 64 : index
    %9 = vector.load %arg10[%c14, %c64_7] : memref<352x160xbf16, #tpu.memory_space<vmem>>, vector<320x32xbf16>
    %c16 = arith.constant 16 : index
    %c0_8 = arith.constant 0 : index
    %10 = vector.load %arg8[%c16, %c0_8] : memref<352x160xbf16, #tpu.memory_space<vmem>>, vector<320x32xbf16>
    %11 = arith.mulf %9, %10 : vector<320x32xbf16>
    %c16_9 = arith.constant 16 : index
    %c0_10 = arith.constant 0 : index
    %12 = vector.load %arg10[%c16_9, %c0_10] : memref<352x160xbf16, #tpu.memory_space<vmem>>, vector<320x32xbf16>
    tpu.vector_store %arg10[%c16_9, %c0_10], %11 {strides = array<i32>} : memref<352x160xbf16, #tpu.memory_space<vmem>>, vector<320x32xbf16>,
    %c15 = arith.constant 15 : index
    %c64_11 = arith.constant 64 : index
    %13 = vector.load %arg10[%c15, %c64_11] : memref<352x160xbf16, #tpu.memory_space<vmem>>, vector<320x32xbf16>
    %c16_12 = arith.constant 16 : index
    %c32 = arith.constant 32 : index
    %14 = vector.load %arg8[%c16_12, %c32] : memref<352x160xbf16, #tpu.memory_space<vmem>>, vector<320x32xbf16>
    %15 = arith.mulf %13, %14 : vector<320x32xbf16>
    %c16_13 = arith.constant 16 : index
    %c32_14 = arith.constant 32 : index
    %16 = vector.load %arg10[%c16_13, %c32_14] : memref<352x160xbf16, #tpu.memory_space<vmem>>, vector<320x32xbf16>
    tpu.vector_store %arg10[%c16_13, %c32_14], %15 {strides = array<i32>} : memref<352x160xbf16, #tpu.memory_space<vmem>>, vector<320x32xbf16>,
    %c17 = arith.constant 17 : index
    %c64_15 = arith.constant 64 : index
    %17 = vector.load %arg10[%c17, %c64_15] : memref<352x160xbf16, #tpu.memory_space<vmem>>, vector<320x32xbf16>
    %c16_16 = arith.constant 16 : index
    %c96 = arith.constant 96 : index
    %18 = vector.load %arg8[%c16_16, %c96] : memref<352x160xbf16, #tpu.memory_space<vmem>>, vector<320x32xbf16>
    %19 = arith.mulf %17, %18 : vector<320x32xbf16>
    %c16_17 = arith.constant 16 : index
    %c96_18 = arith.constant 96 : index
    %20 = vector.load %arg10[%c16_17, %c96_18] : memref<352x160xbf16, #tpu.memory_space<vmem>>, vector<320x32xbf16>
    tpu.vector_store %arg10[%c16_17, %c96_18], %19 {strides = array<i32>} : memref<352x160xbf16, #tpu.memory_space<vmem>>, vector<320x32xbf16>,
    %c18 = arith.constant 18 : index
    %c64_19 = arith.constant 64 : index
    %21 = vector.load %arg10[%c18, %c64_19] : memref<352x160xbf16, #tpu.memory_space<vmem>>, vector<320x32xbf16>
    %c16_20 = arith.constant 16 : index
    %c128 = arith.constant 128 : index
    %22 = vector.load %arg8[%c16_20, %c128] : memref<352x160xbf16, #tpu.memory_space<vmem>>, vector<320x32xbf16>
    %23 = arith.mulf %21, %22 : vector<320x32xbf16>
    %c16_21 = arith.constant 16 : index
    %c128_22 = arith.constant 128 : index
    %24 = vector.load %arg10[%c16_21, %c128_22] : memref<352x160xbf16, #tpu.memory_space<vmem>>, vector<320x32xbf16>
    tpu.vector_store %arg10[%c16_21, %c128_22], %23 {strides = array<i32>} : memref<352x160xbf16, #tpu.memory_space<vmem>>, vector<320x32xbf16>,
    %c16_23 = arith.constant 16 : index
    %c0_24 = arith.constant 0 : index
    %25 = vector.load %arg10[%c16_23, %c0_24] : memref<352x160xbf16, #tpu.memory_space<vmem>>, vector<256x160xbf16>
    %c0_25 = arith.constant 0 : index
    %c0_26 = arith.constant 0 : index
    %c0_27 = arith.constant 0 : index
    %26 = vector.load %arg2[%c0_25, %c0_26, %c0_27] : memref<5x160x32xbf16, #tpu.memory_space<vmem>>, vector<1x160x32xbf16>
    %27 = vector.shape_cast %26 : vector<1x160x32xbf16> to vector<160x32xbf16>
    %cst_28 = arith.constant dense<0.000000e+00> : vector<256x32xf32>
    %28 = tpu.matmul %25, %27, %cst_28 {dimension_numbers = #tpu.dot_dimension_numbers<[1], [0], [0], [1], [0, 0, 1, 1], [], []>} : vector<256x160xbf16>, vector<160x32xbf16>, vector<256x32xf32> -> vector<256x32xf32>
    %c32_29 = arith.constant 32 : index
    %c0_30 = arith.constant 0 : index
    %29 = vector.load %arg10[%c32_29, %c0_30] : memref<352x160xbf16, #tpu.memory_space<vmem>>, vector<256x160xbf16>
    %c1 = arith.constant 1 : index
    %c0_31 = arith.constant 0 : index
    %c0_32 = arith.constant 0 : index
    %30 = vector.load %arg2[%c1, %c0_31, %c0_32] : memref<5x160x32xbf16, #tpu.memory_space<vmem>>, vector<1x160x32xbf16>
    %31 = vector.shape_cast %30 : vector<1x160x32xbf16> to vector<160x32xbf16>
    %cst_33 = arith.constant dense<0.000000e+00> : vector<256x32xf32>
    %32 = tpu.matmul %29, %31, %cst_33 {dimension_numbers = #tpu.dot_dimension_numbers<[1], [0], [0], [1], [0, 0, 1, 1], [], []>} : vector<256x160xbf16>, vector<160x32xbf16>, vector<256x32xf32> -> vector<256x32xf32>
    %33 = arith.addf %28, %32 : vector<256x32xf32>
    %c48_34 = arith.constant 48 : index
    %c0_35 = arith.constant 0 : index
    %34 = vector.load %arg10[%c48_34, %c0_35] : memref<352x160xbf16, #tpu.memory_space<vmem>>, vector<256x160xbf16>
    %c2 = arith.constant 2 : index
    %c0_36 = arith.constant 0 : index
    %c0_37 = arith.constant 0 : index
    %35 = vector.load %arg2[%c2, %c0_36, %c0_37] : memref<5x160x32xbf16, #tpu.memory_space<vmem>>, vector<1x160x32xbf16>
    %36 = vector.shape_cast %35 : vector<1x160x32xbf16> to vector<160x32xbf16>
    %cst_38 = arith.constant dense<0.000000e+00> : vector<256x32xf32>
    %37 = tpu.matmul %34, %36, %cst_38 {dimension_numbers = #tpu.dot_dimension_numbers<[1], [0], [0], [1], [0, 0, 1, 1], [], []>} : vector<256x160xbf16>, vector<160x32xbf16>, vector<256x32xf32> -> vector<256x32xf32>
    %38 = arith.addf %33, %37 : vector<256x32xf32>
    %c64_39 = arith.constant 64 : index
    %c0_40 = arith.constant 0 : index
    %39 = vector.load %arg10[%c64_39, %c0_40] : memref<352x160xbf16, #tpu.memory_space<vmem>>, vector<256x160xbf16>
    %c3 = arith.constant 3 : index
    %c0_41 = arith.constant 0 : index
    %c0_42 = arith.constant 0 : index
    %40 = vector.load %arg2[%c3, %c0_41, %c0_42] : memref<5x160x32xbf16, #tpu.memory_space<vmem>>, vector<1x160x32xbf16>
    %41 = vector.shape_cast %40 : vector<1x160x32xbf16> to vector<160x32xbf16>
    %cst_43 = arith.constant dense<0.000000e+00> : vector<256x32xf32>
    %42 = tpu.matmul %39, %41, %cst_43 {dimension_numbers = #tpu.dot_dimension_numbers<[1], [0], [0], [1], [0, 0, 1, 1], [], []>} : vector<256x160xbf16>, vector<160x32xbf16>, vector<256x32xf32> -> vector<256x32xf32>
    %43 = arith.addf %38, %42 : vector<256x32xf32>
    %c80 = arith.constant 80 : index
    %c0_44 = arith.constant 0 : index
    %44 = vector.load %arg10[%c80, %c0_44] : memref<352x160xbf16, #tpu.memory_space<vmem>>, vector<256x160xbf16>
    %c4 = arith.constant 4 : index
    %c0_45 = arith.constant 0 : index
    %c0_46 = arith.constant 0 : index
    %45 = vector.load %arg2[%c4, %c0_45, %c0_46] : memref<5x160x32xbf16, #tpu.memory_space<vmem>>, vector<1x160x32xbf16>
    %46 = vector.shape_cast %45 : vector<1x160x32xbf16> to vector<160x32xbf16>
    %cst_47 = arith.constant dense<0.000000e+00> : vector<256x32xf32>
    %47 = tpu.matmul %44, %46, %cst_47 {dimension_numbers = #tpu.dot_dimension_numbers<[1], [0], [0], [1], [0, 0, 1, 1], [], []>} : vector<256x160xbf16>, vector<160x32xbf16>, vector<256x32xf32> -> vector<256x32xf32>
    %48 = arith.addf %43, %47 : vector<256x32xf32>
    %c0_48 = arith.constant 0 : index
    %c0_49 = arith.constant 0 : index
    %49 = vector.load %arg3[%c0_48, %c0_49] : memref<1x32xf32, #tpu.memory_space<vmem>>, vector<1x32xf32>
    %50 = vector.broadcast %49 : vector<1x32xf32> to vector<256x32xf32>
    %51 = arith.addf %48, %50 : vector<256x32xf32>
    %52 = arith.negf %51 : vector<256x32xf32>
    %53 = math.exp %52 : vector<256x32xf32>
    %cst_50 = arith.constant 1.000000e+00 : f32
    %54 = vector.broadcast %cst_50 : f32 to vector<256x32xf32>
    %55 = arith.addf %54, %53 : vector<256x32xf32>
    %56 = arith.divf %54, %55 : vector<256x32xf32>
    %57 = arith.mulf %51, %56 : vector<256x32xf32>
    %58 = arith.truncf %57 : vector<256x32xf32> to vector<256x32xbf16>
    %cst_51 = arith.constant 0.000000e+00 : bf16
    %59 = vector.broadcast %cst_51 : bf16 to vector<48x32xbf16>
    %c0_52 = arith.constant 0 : index
    %c32_53 = arith.constant 32 : index
    %60 = vector.load %arg10[%c0_52, %c32_53] : memref<352x160xbf16, #tpu.memory_space<vmem>>, vector<48x32xbf16>
    tpu.vector_store %arg10[%c0_52, %c32_53], %59 {strides = array<i32>} : memref<352x160xbf16, #tpu.memory_space<vmem>>, vector<48x32xbf16>,
    %cst_54 = arith.constant 0.000000e+00 : bf16
    %61 = vector.broadcast %cst_54 : bf16 to vector<48x32xbf16>
    %c304_55 = arith.constant 304 : index
    %c32_56 = arith.constant 32 : index
    %62 = vector.load %arg10[%c304_55, %c32_56] : memref<352x160xbf16, #tpu.memory_space<vmem>>, vector<48x32xbf16>
    tpu.vector_store %arg10[%c304_55, %c32_56], %61 {strides = array<i32>} : memref<352x160xbf16, #tpu.memory_space<vmem>>, vector<48x32xbf16>,
    %c48_57 = arith.constant 48 : index
    %c32_58 = arith.constant 32 : index
    %63 = vector.load %arg10[%c48_57, %c32_58] : memref<352x160xbf16, #tpu.memory_space<vmem>>, vector<256x32xbf16>
    tpu.vector_store %arg10[%c48_57, %c32_58], %58 {strides = array<i32>} : memref<352x160xbf16, #tpu.memory_space<vmem>>, vector<256x32xbf16>,
    %c15_59 = arith.constant 15 : index
    %c32_60 = arith.constant 32 : index
    %64 = vector.load %arg10[%c15_59, %c32_60] : memref<352x160xbf16, #tpu.memory_space<vmem>>, vector<320x32xbf16>
    %c16_61 = arith.constant 16 : index
    %c32_62 = arith.constant 32 : index
    %65 = vector.load %arg8[%c16_61, %c32_62] : memref<352x160xbf16, #tpu.memory_space<vmem>>, vector<320x32xbf16>
    %66 = arith.mulf %64, %65 : vector<320x32xbf16>
    %c16_63 = arith.constant 16 : index
    %c0_64 = arith.constant 0 : index
    %67 = vector.load %arg10[%c16_63, %c0_64] : memref<352x160xbf16, #tpu.memory_space<vmem>>, vector<320x32xbf16>
    tpu.vector_store %arg10[%c16_63, %c0_64], %66 {strides = array<i32>} : memref<352x160xbf16, #tpu.memory_space<vmem>>, vector<320x32xbf16>,
    %c17_65 = arith.constant 17 : index
    %c32_66 = arith.constant 32 : index
    %68 = vector.load %arg10[%c17_65, %c32_66] : memref<352x160xbf16, #tpu.memory_space<vmem>>, vector<320x32xbf16>
    %c16_67 = arith.constant 16 : index
    %c96_68 = arith.constant 96 : index
    %69 = vector.load %arg8[%c16_67, %c96_68] : memref<352x160xbf16, #tpu.memory_space<vmem>>, vector<320x32xbf16>
    %70 = arith.mulf %68, %69 : vector<320x32xbf16>
    %c16_69 = arith.constant 16 : index
    %c64_70 = arith.constant 64 : index
    %71 = vector.load %arg10[%c16_69, %c64_70] : memref<352x160xbf16, #tpu.memory_space<vmem>>, vector<320x32xbf16>
    tpu.vector_store %arg10[%c16_69, %c64_70], %70 {strides = array<i32>} : memref<352x160xbf16, #tpu.memory_space<vmem>>, vector<320x32xbf16>,
    %c32_71 = arith.constant 32 : index
    %c0_72 = arith.constant 0 : index
    %72 = vector.load %arg10[%c32_71, %c0_72] : memref<352x160xbf16, #tpu.memory_space<vmem>>, vector<256x96xbf16>
    %c0_73 = arith.constant 0 : index
    %c0_74 = arith.constant 0 : index
    %c0_75 = arith.constant 0 : index
    %73 = vector.load %arg4[%c0_73, %c0_74, %c0_75] : memref<3x96x32xbf16, #tpu.memory_space<vmem>>, vector<1x96x32xbf16>
    %74 = vector.shape_cast %73 : vector<1x96x32xbf16> to vector<96x32xbf16>
    %cst_76 = arith.constant dense<0.000000e+00> : vector<256x32xf32>
    %75 = tpu.matmul %72, %74, %cst_76 {dimension_numbers = #tpu.dot_dimension_numbers<[1], [0], [0], [1], [0, 0, 1, 1], [], []>} : vector<256x96xbf16>, vector<96x32xbf16>, vector<256x32xf32> -> vector<256x32xf32>
    %c48_77 = arith.constant 48 : index
    %c0_78 = arith.constant 0 : index
    %76 = vector.load %arg10[%c48_77, %c0_78] : memref<352x160xbf16, #tpu.memory_space<vmem>>, vector<256x96xbf16>
    %c1_79 = arith.constant 1 : index
    %c0_80 = arith.constant 0 : index
    %c0_81 = arith.constant 0 : index
    %77 = vector.load %arg4[%c1_79, %c0_80, %c0_81] : memref<3x96x32xbf16, #tpu.memory_space<vmem>>, vector<1x96x32xbf16>
    %78 = vector.shape_cast %77 : vector<1x96x32xbf16> to vector<96x32xbf16>
    %cst_82 = arith.constant dense<0.000000e+00> : vector<256x32xf32>
    %79 = tpu.matmul %76, %78, %cst_82 {dimension_numbers = #tpu.dot_dimension_numbers<[1], [0], [0], [1], [0, 0, 1, 1], [], []>} : vector<256x96xbf16>, vector<96x32xbf16>, vector<256x32xf32> -> vector<256x32xf32>
    %80 = arith.addf %75, %79 : vector<256x32xf32>
    %c64_83 = arith.constant 64 : index
    %c0_84 = arith.constant 0 : index
    %81 = vector.load %arg10[%c64_83, %c0_84] : memref<352x160xbf16, #tpu.memory_space<vmem>>, vector<256x96xbf16>
    %c2_85 = arith.constant 2 : index
    %c0_86 = arith.constant 0 : index
    %c0_87 = arith.constant 0 : index
    %82 = vector.load %arg4[%c2_85, %c0_86, %c0_87] : memref<3x96x32xbf16, #tpu.memory_space<vmem>>, vector<1x96x32xbf16>
    %83 = vector.shape_cast %82 : vector<1x96x32xbf16> to vector<96x32xbf16>
    %cst_88 = arith.constant dense<0.000000e+00> : vector<256x32xf32>
    %84 = tpu.matmul %81, %83, %cst_88 {dimension_numbers = #tpu.dot_dimension_numbers<[1], [0], [0], [1], [0, 0, 1, 1], [], []>} : vector<256x96xbf16>, vector<96x32xbf16>, vector<256x32xf32> -> vector<256x32xf32>
    %85 = arith.addf %80, %84 : vector<256x32xf32>
    %c0_89 = arith.constant 0 : index
    %c0_90 = arith.constant 0 : index
    %86 = vector.load %arg5[%c0_89, %c0_90] : memref<1x32xf32, #tpu.memory_space<vmem>>, vector<1x32xf32>
    %87 = vector.broadcast %86 : vector<1x32xf32> to vector<256x32xf32>
    %88 = arith.addf %85, %87 : vector<256x32xf32>
    %cst_91 = arith.constant dense<0.000000e+00> : vector<32xf32>
    %89 = vector.multi_reduction <add>, %88, %cst_91 [0] : vector<256x32xf32> to vector<32xf32>
    %90 = vector.shape_cast %89 : vector<32xf32> to vector<1x32xf32>
    %cst_92 = arith.constant 2.560000e+02 : f32
    %91 = vector.broadcast %cst_92 : f32 to vector<1x32xf32>
    %92 = arith.divf %90, %91 : vector<1x32xf32>
    %c0_93 = arith.constant 0 : index
    %c0_94 = arith.constant 0 : index
    %93 = vector.load %arg6[%c0_93, %c0_94] : memref<32x8xf32, #tpu.memory_space<vmem>>, vector<32x8xf32>
    %cst_95 = arith.constant dense<0.000000e+00> : vector<1x8xf32>
    %94 = tpu.matmul %92, %93, %cst_95 {dimension_numbers = #tpu.dot_dimension_numbers<[1], [0], [0], [1], [0, 0, 1, 1], [], []>} : vector<1x32xf32>, vector<32x8xf32>, vector<1x8xf32> -> vector<1x8xf32>
    %cst_96 = arith.constant 0.000000e+00 : f32
    %95 = vector.broadcast %cst_96 : f32 to vector<1x8xf32>
    %96 = arith.maximumf %94, %95 : vector<1x8xf32>
    %c0_97 = arith.constant 0 : index
    %c0_98 = arith.constant 0 : index
    %97 = vector.load %arg7[%c0_97, %c0_98] : memref<8x32xf32, #tpu.memory_space<vmem>>, vector<8x32xf32>
    %cst_99 = arith.constant dense<0.000000e+00> : vector<1x32xf32>
    %98 = tpu.matmul %96, %97, %cst_99 {dimension_numbers = #tpu.dot_dimension_numbers<[1], [0], [0], [1], [0, 0, 1, 1], [], []>} : vector<1x8xf32>, vector<8x32xf32>, vector<1x32xf32> -> vector<1x32xf32>
    %99 = arith.negf %98 : vector<1x32xf32>
    %100 = math.exp %99 : vector<1x32xf32>
    %cst_100 = arith.constant 1.000000e+00 : f32
    %101 = vector.broadcast %cst_100 : f32 to vector<1x32xf32>
    %102 = arith.addf %101, %100 : vector<1x32xf32>
    %103 = arith.divf %101, %102 : vector<1x32xf32>
    %104 = vector.broadcast %103 : vector<1x32xf32> to vector<256x32xf32>
    %105 = arith.mulf %88, %104 : vector<256x32xf32>
    %106 = vector.shape_cast %105 : vector<256x32xf32> to vector<16x16x32xf32>
    %cst_101 = arith.constant 1.000000e-01 : f32
    %107 = vector.broadcast %cst_101 : f32 to vector<16x16x32xf32>
    %108 = arith.mulf %107, %106 : vector<16x16x32xf32>
    %109 = arith.addf %1, %108 : vector<16x16x32xf32>
    %c0_102 = arith.constant 0 : index
    %c0_103 = arith.constant 0 : index
    %c0_104 = arith.constant 0 : index
    %c0_105 = arith.constant 0 : index
    %110 = vector.load %arg9[%c0_102, %c0_103, %c0_104, %c0_105] : memref<1x16x16x32xf32, #tpu.memory_space<vmem>>, vector<1x16x16x32xf32>
    %111 = vector.shape_cast %110 : vector<1x16x16x32xf32> to vector<16x16x32xf32>
    %112 = vector.shape_cast %109 : vector<16x16x32xf32> to vector<1x16x16x32xf32>
    tpu.vector_store %arg9[%c0_102, %c0_103, %c0_104, %c0_105], %112 {strides = array<i32>} : memref<1x16x16x32xf32, #tpu.memory_space<vmem>>, vector<1x16x16x32xf32>,
    return
  }
  func.func @transform_0(%arg0: i32) -> (i32, i32, i32, i32) {
    %c0_i32 = arith.constant 0 : i32
    %c0_i32_0 = arith.constant 0 : i32
    %c0_i32_1 = arith.constant 0 : i32
    %c0_i32_2 = arith.constant 0 : i32
    return %arg0, %c0_i32, %c0_i32_0, %c0_i32_1 : i32, i32, i32, i32
  }
  func.func @transform_1(%arg0: i32) -> (i32, i32, i32) {
    %c0_i32 = arith.constant 0 : i32
    %c0_i32_0 = arith.constant 0 : i32
    %c0_i32_1 = arith.constant 0 : i32
    %c0_i32_2 = arith.constant 0 : i32
    return %c0_i32, %c0_i32_0, %c0_i32_1 : i32, i32, i32
  }
  func.func @transform_2(%arg0: i32) -> (i32, i32) {
    %c0_i32 = arith.constant 0 : i32
    %c0_i32_0 = arith.constant 0 : i32
    %c0_i32_1 = arith.constant 0 : i32
    return %c0_i32, %c0_i32_0 : i32, i32
  }
  func.func @transform_3(%arg0: i32) -> (i32, i32, i32) {
    %c0_i32 = arith.constant 0 : i32
    %c0_i32_0 = arith.constant 0 : i32
    %c0_i32_1 = arith.constant 0 : i32
    %c0_i32_2 = arith.constant 0 : i32
    return %c0_i32, %c0_i32_0, %c0_i32_1 : i32, i32, i32
  }
  func.func @transform_4(%arg0: i32) -> (i32, i32) {
    %c0_i32 = arith.constant 0 : i32
    %c0_i32_0 = arith.constant 0 : i32
    %c0_i32_1 = arith.constant 0 : i32
    return %c0_i32, %c0_i32_0 : i32, i32
  }
  func.func @transform_5(%arg0: i32) -> (i32, i32) {
    %c0_i32 = arith.constant 0 : i32
    %c0_i32_0 = arith.constant 0 : i32
    %c0_i32_1 = arith.constant 0 : i32
    return %c0_i32, %c0_i32_0 : i32, i32
  }
  func.func @transform_6(%arg0: i32) -> (i32, i32) {
    %c0_i32 = arith.constant 0 : i32
    %c0_i32_0 = arith.constant 0 : i32
    %c0_i32_1 = arith.constant 0 : i32
    return %c0_i32, %c0_i32_0 : i32, i32
  }
  func.func @transform_7(%arg0: i32) -> (i32, i32) {
    %c0_i32 = arith.constant 0 : i32
    %c0_i32_0 = arith.constant 0 : i32
    %c0_i32_1 = arith.constant 0 : i32
    return %c0_i32, %c0_i32_0 : i32, i32
  }
  func.func @transform_8(%arg0: i32) -> (i32, i32, i32, i32) {
    %c0_i32 = arith.constant 0 : i32
    %c0_i32_0 = arith.constant 0 : i32
    %c0_i32_1 = arith.constant 0 : i32
    %c0_i32_2 = arith.constant 0 : i32
    return %arg0, %c0_i32, %c0_i32_0, %c0_i32_1 : i32, i32, i32, i32
  }
}

</mosaic_0001>

<llo_original>
// kernel: tpu_custom_call.1
$region0: #{tpu_custom_call.1}
  #allocation0 [shape = 'u32[]', space=smem, size = 0x4, offset = 0x4, fixed_abs, tag = 'smem constant byte address 0x4 - core index']
  #allocation1 [shape = 'u32[72,128]{1,0:T(1,128)}', space=vmem, size = 0x9000, scoped, tag = 'internal scratch']
  #allocation2 [shape = 'bf16[352,160]{1,0:T(8,128)(2,1)}', space=vmem, size = 0x2c000, scoped, tag = 'scratch operand']
  %s0 = inlined_call_operand.vmem [shape: f32[2,16,16,32], index: 0, kind: input, shape index: {}]
  %s1 = inlined_call_operand.vmem [shape: bf16[5,160,32], index: 1, kind: input, shape index: {}]
  %s2 = inlined_call_operand.vmem [shape: f32[1,32], index: 2, kind: input, shape index: {}]
  %s3 = inlined_call_operand.vmem [shape: bf16[3,96,32], index: 3, kind: input, shape index: {}]
  %s4 = inlined_call_operand.vmem [shape: f32[1,32], index: 4, kind: input, shape index: {}]
  %s5 = inlined_call_operand.vmem [shape: f32[32,8], index: 5, kind: input, shape index: {}]
  %s6 = inlined_call_operand.vmem [shape: f32[8,32], index: 6, kind: input, shape index: {}]
  %s7 = inlined_call_operand.vmem [shape: bf16[352,160], index: 7, kind: input, shape index: {}]
  %s8 = inlined_call_operand.hbm [shape: f32[2,16,16,32], index: 8, kind: output, shape index: {}]
  %s9 = sld [smem:[#allocation0]]
  $region65: #{tpu_custom_call.1} parent=0
    _
  %s11 = ssub.s32 1, %s9
  %s12 = scalar_select 0, %s11, %s9
  $region1: #{tpu_custom_call.1} parent=0
    #allocation3 [shape = 'u8[262144]{0}', space=vmem, size = 0x40000, scoped, tag = 'output window, operand 0']
    #allocation4 [shape = 's32[2]{0}', space=sflag, size = 0x8, scoped, tag = 'scoped memory for tpu_custom_call.1']
    %13 = vsyncpa [#allocation4], 0
    %s14 = scalar_lea.sflag [#allocation4], 1
    %15 = vsyncpa %s14, 0
    loop: start=0, step=1, limit=4
    $region2: #{tpu_custom_call.1} parent=1 // loop_pre_header
      _
    $region3: #{tpu_custom_call.1} parent=1 // loop_header
      %s17 = sphi 0, %s21
      %p18 = scmp.ge.s32.totalorder %s17, 4
      %s27 = sphi 0, %s29
      %s30 = sphi 0, %s27
      %s31 = sphi 0, %s30
      %s47 = sphi 0, %s31
      %s51 = sphi 0, %s51
      %s53 = sphi 0, %s51
      %s54 = sphi 0, %s53
      %s68 = sphi 0, %s54
      %s72 = sphi 0, %s72
      %s74 = sphi 0, %s72
      %s75 = sphi 0, %s74
      %s89 = sphi 0, %s75
      %s93 = sphi 0, %s93
      %s95 = sphi 0, %s93
      %s96 = sphi 0, %s95
      %s110 = sphi 0, %s96
      %s114 = sphi 0, %s114
      %s116 = sphi 0, %s114
      %s117 = sphi 0, %s116
      %s131 = sphi 0, %s117
      %s135 = sphi 0, %s135
      %s137 = sphi 0, %s135
      %s138 = sphi 0, %s137
      %s152 = sphi 0, %s138
      %s156 = sphi 0, %s156
      %s158 = sphi 0, %s156
      %s159 = sphi 0, %s158
      %s173 = sphi 0, %s159
      %s177 = sphi 0, %s177
      %s179 = sphi 0, %s177
      %s180 = sphi 0, %s179
      %s194 = sphi 0, %s180
      %s200 = sphi 0, %s202
      %s203 = sphi 0, %s200
      %s204 = sphi 0, %s203
      %s220 = sphi 0, %s204
    $region4: #{tpu_custom_call.1} parent=1 // loop_header_branch
      %20 = sbr.rel (%p18) target = $region8
    $region5: #{tpu_custom_call.1} parent=1 // loop_body
      %s22 = ssub.s32 %s17, 1
      %s23 = ssub.s32 %s17, 2
      %s24 = sadd.s32 %s17, 1
      %s25 = ssub.s32 %s17, %s24
      %p26 = scmp.eq.s32.totalorder %s25, 0
      %s28 = sadd.s32 %s27, 1
      %s29 = scalar_select %p26, %s27, %s28
      %p32 = pneg %p26
      %p33 = scmp.eq.s32.totalorder %s17, 1
      %p34 = por %p32, %p33
      %p35 = scmp.ne.s32.totalorder %s27, %s30
      %p36 = scmp.eq.s32.totalorder %s17, 0
      %p37 = por %p35, %p36
      %p38 = scmp.ne.s32.totalorder %s27, %s30
      %p39 = scmp.eq.s32.totalorder %s22, 1
      %p40 = por %p38, %p39
      %p41 = scmp.ne.s32.totalorder %s30, %s31
      %p42 = scmp.eq.s32.totalorder %s22, 0
      %p43 = por %p41, %p42
      %p44 = scmp.ne.s32.totalorder %s30, %s31
      %p45 = scmp.eq.s32.totalorder %s23, 1
      %p46 = por %p44, %p45
      %p48 = scmp.ne.s32.totalorder %s31, %s47
      %p49 = scmp.eq.s32.totalorder %s23, 0
      %p50 = por %p48, %p49
      %s52 = sadd.s32 %s51, 1
      %p55 = scmp.eq.s32.totalorder %s17, 1
      %p56 = scmp.ne.s32.totalorder %s51, %s53
      %p57 = scmp.eq.s32.totalorder %s17, 0
      %p58 = por %p56, %p57
      %p59 = scmp.ne.s32.totalorder %s51, %s53
      %p60 = scmp.eq.s32.totalorder %s22, 1
      %p61 = por %p59, %p60
      %p62 = scmp.ne.s32.totalorder %s53, %s54
      %p63 = scmp.eq.s32.totalorder %s22, 0
      %p64 = por %p62, %p63
      %p65 = scmp.ne.s32.totalorder %s53, %s54
      %p66 = scmp.eq.s32.totalorder %s23, 1
      %p67 = por %p65, %p66
      %p69 = scmp.ne.s32.totalorder %s54, %s68
      %p70 = scmp.eq.s32.totalorder %s23, 0
      %p71 = por %p69, %p70
      %s73 = sadd.s32 %s72, 1
      %p76 = scmp.eq.s32.totalorder %s17, 1
      %p77 = scmp.ne.s32.totalorder %s72, %s74
      %p78 = scmp.eq.s32.totalorder %s17, 0
      %p79 = por %p77, %p78
      %p80 = scmp.ne.s32.totalorder %s72, %s74
      %p81 = scmp.eq.s32.totalorder %s22, 1
      %p82 = por %p80, %p81
      %p83 = scmp.ne.s32.totalorder %s74, %s75
      %p84 = scmp.eq.s32.totalorder %s22, 0
      %p85 = por %p83, %p84
      %p86 = scmp.ne.s32.totalorder %s74, %s75
      %p87 = scmp.eq.s32.totalorder %s23, 1
      %p88 = por %p86, %p87
      %p90 = scmp.ne.s32.totalorder %s75, %s89
      %p91 = scmp.eq.s32.totalorder %s23, 0
      %p92 = por %p90, %p91
      %s94 = sadd.s32 %s93, 1
      %p97 = scmp.eq.s32.totalorder %s17, 1
      %p98 = scmp.ne.s32.totalorder %s93, %s95
      %p99 = scmp.eq.s32.totalorder %s17, 0
      %p100 = por %p98, %p99
      %p101 = scmp.ne.s32.totalorder %s93, %s95
      %p102 = scmp.eq.s32.totalorder %s22, 1
      %p103 = por %p101, %p102
      %p104 = scmp.ne.s32.totalorder %s95, %s96
      %p105 = scmp.eq.s32.totalorder %s22, 0
      %p106 = por %p104, %p105
      %p107 = scmp.ne.s32.totalorder %s95, %s96
      %p108 = scmp.eq.s32.totalorder %s23, 1
      %p109 = por %p107, %p108
      %p111 = scmp.ne.s32.totalorder %s96, %s110
      %p112 = scmp.eq.s32.totalorder %s23, 0
      %p113 = por %p111, %p112
      %s115 = sadd.s32 %s114, 1
      %p118 = scmp.eq.s32.totalorder %s17, 1
      %p119 = scmp.ne.s32.totalorder %s114, %s116
      %p120 = scmp.eq.s32.totalorder %s17, 0
      %p121 = por %p119, %p120
      %p122 = scmp.ne.s32.totalorder %s114, %s116
      %p123 = scmp.eq.s32.totalorder %s22, 1
      %p124 = por %p122, %p123
      %p125 = scmp.ne.s32.totalorder %s116, %s117
      %p126 = scmp.eq.s32.totalorder %s22, 0
      %p127 = por %p125, %p126
      %p128 = scmp.ne.s32.totalorder %s116, %s117
      %p129 = scmp.eq.s32.totalorder %s23, 1
      %p130 = por %p128, %p129
      %p132 = scmp.ne.s32.totalorder %s117, %s131
      %p133 = scmp.eq.s32.totalorder %s23, 0
      %p134 = por %p132, %p133
      %s136 = sadd.s32 %s135, 1
      %p139 = scmp.eq.s32.totalorder %s17, 1
      %p140 = scmp.ne.s32.totalorder %s135, %s137
      %p141 = scmp.eq.s32.totalorder %s17, 0
      %p142 = por %p140, %p141
      %p143 = scmp.ne.s32.totalorder %s135, %s137
      %p144 = scmp.eq.s32.totalorder %s22, 1
      %p145 = por %p143, %p144
      %p146 = scmp.ne.s32.totalorder %s137, %s138
      %p147 = scmp.eq.s32.totalorder %s22, 0
      %p148 = por %p146, %p147
      %p149 = scmp.ne.s32.totalorder %s137, %s138
      %p150 = scmp.eq.s32.totalorder %s23, 1
      %p151 = por %p149, %p150
      %p153 = scmp.ne.s32.totalorder %s138, %s152
      %p154 = scmp.eq.s32.totalorder %s23, 0
      %p155 = por %p153, %p154
      %s157 = sadd.s32 %s156, 1
      %p160 = scmp.eq.s32.totalorder %s17, 1
      %p161 = scmp.ne.s32.totalorder %s156, %s158
      %p162 = scmp.eq.s32.totalorder %s17, 0
      %p163 = por %p161, %p162
      %p164 = scmp.ne.s32.totalorder %s156, %s158
      %p165 = scmp.eq.s32.totalorder %s22, 1
      %p166 = por %p164, %p165
      %p167 = scmp.ne.s32.totalorder %s158, %s159
      %p168 = scmp.eq.s32.totalorder %s22, 0
      %p169 = por %p167, %p168
      %p170 = scmp.ne.s32.totalorder %s158, %s159
      %p171 = scmp.eq.s32.totalorder %s23, 1
      %p172 = por %p170, %p171
      %p174 = scmp.ne.s32.totalorder %s159, %s173
      %p175 = scmp.eq.s32.totalorder %s23, 0
      %p176 = por %p174, %p175
      %s178 = sadd.s32 %s177, 1
      %p181 = scmp.eq.s32.totalorder %s17, 1
      %p182 = scmp.ne.s32.totalorder %s177, %s179
      %p183 = scmp.eq.s32.totalorder %s17, 0
      %p184 = por %p182, %p183
      %p185 = scmp.ne.s32.totalorder %s177, %s179
      %p186 = scmp.eq.s32.totalorder %s22, 1
      %p187 = por %p185, %p186
      %p188 = scmp.ne.s32.totalorder %s179, %s180
      %p189 = scmp.eq.s32.totalorder %s22, 0
      %p190 = por %p188, %p189
      %p191 = scmp.ne.s32.totalorder %s179, %s180
      %p192 = scmp.eq.s32.totalorder %s23, 1
      %p193 = por %p191, %p192
      %p195 = scmp.ne.s32.totalorder %s180, %s194
      %p196 = scmp.eq.s32.totalorder %s23, 0
      %p197 = por %p195, %p196
      %s198 = ssub.s32 %s17, %s24
      %p199 = scmp.eq.s32.totalorder %s198, 0
      %s201 = sadd.s32 %s200, 1
      %s202 = scalar_select %p199, %s200, %s201
      %p205 = pneg %p199
      %p206 = scmp.eq.s32.totalorder %s17, 1
      %p207 = por %p205, %p206
      %p208 = scmp.ne.s32.totalorder %s200, %s203
      %p209 = scmp.eq.s32.totalorder %s17, 0
      %p210 = por %p208, %p209
      %p211 = scmp.ne.s32.totalorder %s200, %s203
      %p212 = scmp.eq.s32.totalorder %s22, 1
      %p213 = por %p211, %p212
      %p214 = scmp.ne.s32.totalorder %s203, %s204
      %p215 = scmp.eq.s32.totalorder %s22, 0
      %p216 = por %p214, %p215
      %p217 = scmp.ne.s32.totalorder %s203, %s204
      %p218 = scmp.eq.s32.totalorder %s23, 1
      %p219 = por %p217, %p218
      %p221 = scmp.ne.s32.totalorder %s204, %s220
      %p222 = scmp.eq.s32.totalorder %s23, 0
      %p223 = por %p221, %p222
      %p224 = scmp.le.s32.totalorder 1, %s17
      %p225 = scmp.lt.s32.totalorder %s17, 3
      %p226 = pnand %p224, %p225
      %p227 = pneg %p226
      // Predicated region
      $region9: #{tpu_custom_call.1} parent=5 // pred_check
        _
      $region10: #{tpu_custom_call.1} parent=5 // pred_check_branch
        %229 = sbr.rel (%p226) target = $region12
      $region11: #{tpu_custom_call.1} parent=5 // pred_region
        %s230 = ssub.s32 %s17, 1
        // Predicated region
        $region13: #{tpu_custom_call.1} parent=11 // pred_check
          %p231 = pneg %p64
        $region14: #{tpu_custom_call.1} parent=11 // pred_check_branch
          %233 = sbr.rel (%p231) target = $region16
        $region15: #{tpu_custom_call.1} parent=11 // pred_region
          _
        $region16: #{tpu_custom_call.1} parent=11 // pred_fallthru
          _
        // Predicated region
        $region17: #{tpu_custom_call.1} parent=11 // pred_check
          %p234 = pneg %p85
        $region18: #{tpu_custom_call.1} parent=11 // pred_check_branch
          %236 = sbr.rel (%p234) target = $region20
        $region19: #{tpu_custom_call.1} parent=11 // pred_region
          _
        $region20: #{tpu_custom_call.1} parent=11 // pred_fallthru
          _
        // Predicated region
        $region21: #{tpu_custom_call.1} parent=11 // pred_check
          %p237 = pneg %p106
        $region22: #{tpu_custom_call.1} parent=11 // pred_check_branch
          %239 = sbr.rel (%p237) target = $region24
        $region23: #{tpu_custom_call.1} parent=11 // pred_region
          _
        $region24: #{tpu_custom_call.1} parent=11 // pred_fallthru
          _
        // Predicated region
        $region25: #{tpu_custom_call.1} parent=11 // pred_check
          %p240 = pneg %p127
        $region26: #{tpu_custom_call.1} parent=11 // pred_check_branch
          %242 = sbr.rel (%p240) target = $region28
        $region27: #{tpu_custom_call.1} parent=11 // pred_region
          _
        $region28: #{tpu_custom_call.1} parent=11 // pred_fallthru
          _
        // Predicated region
        $region29: #{tpu_custom_call.1} parent=11 // pred_check
          %p243 = pneg %p148
        $region30: #{tpu_custom_call.1} parent=11 // pred_check_branch
          %245 = sbr.rel (%p243) target = $region32
        $region31: #{tpu_custom_call.1} parent=11 // pred_region
          _
        $region32: #{tpu_custom_call.1} parent=11 // pred_fallthru
          _
        // Predicated region
        $region33: #{tpu_custom_call.1} parent=11 // pred_check
          %p246 = pneg %p169
        $region34: #{tpu_custom_call.1} parent=11 // pred_check_branch
          %248 = sbr.rel (%p246) target = $region36
        $region35: #{tpu_custom_call.1} parent=11 // pred_region
          _
        $region36: #{tpu_custom_call.1} parent=11 // pred_fallthru
          _
        // Predicated region
        $region37: #{tpu_custom_call.1} parent=11 // pred_check
          %p249 = pneg %p190
        $region38: #{tpu_custom_call.1} parent=11 // pred_check_branch
          %251 = sbr.rel (%p249) target = $region40
        $region39: #{tpu_custom_call.1} parent=11 // pred_region
          _
        $region40: #{tpu_custom_call.1} parent=11 // pred_fallthru
          _
      $region12: #{tpu_custom_call.1} parent=5 // pred_fallthru
        _
      %p252 = scmp.lt.s32.totalorder %s17, 2
      // Predicated region
      $region41: #{tpu_custom_call.1} parent=5 // pred_check
        %p253 = pneg %p252
      $region42: #{tpu_custom_call.1} parent=5 // pred_check_branch
        %255 = sbr.rel (%p253) target = $region44
      $region43: #{tpu_custom_call.1} parent=5 // pred_region
        // Predicated region
        $region45: #{tpu_custom_call.1} parent=43 // pred_check
          %p256 = pneg %p37
        $region46: #{tpu_custom_call.1} parent=43 // pred_check_branch
          %258 = sbr.rel (%p256) target = $region48
        $region47: #{tpu_custom_call.1} parent=43 // pred_region
          %p259 = scmp.lt.s32.totalorder %s17, 1
          %s260 = scalar_select %p259, %s17, 1
          %s261 = smul.addr %s260, 32
          %s262 = smul.addr %s261, 8
          %s263 = scalar_lea.vmem %s0, %s262
        $region48: #{tpu_custom_call.1} parent=43 // pred_fallthru
          _
      $region44: #{tpu_custom_call.1} parent=5 // pred_fallthru
        _
      %p264 = scmp.le.s32.totalorder 1, %s17
      %p265 = scmp.lt.s32.totalorder %s17, 3
      %p266 = pnand %p264, %p265
      %p267 = pneg %p266
      // Predicated region
      $region49: #{tpu_custom_call.1} parent=5 // pred_check
        _
      $region50: #{tpu_custom_call.1} parent=5 // pred_check_branch
        %269 = sbr.rel (%p266) target = $region52
      $region51: #{tpu_custom_call.1} parent=5 // pred_region
        %s270 = ssub.s32 %s17, 1
        %p271 = scmp.lt.s32.totalorder %s22, 1
        %s272 = scalar_select %p271, %s22, 1
        %s273 = smul.addr %s272, 32
        %s274 = smul.addr %s273, 8
        %s275 = scalar_lea.vmem %s0, %s274
        %p276 = pneg %p43
        %p277 = pneg %p40
        %p278 = pneg %p64
        %p279 = pneg %p61
        %p280 = pneg %p85
        %p281 = pneg %p82
        %p282 = pneg %p106
        %p283 = pneg %p103
        %p284 = pneg %p127
        %p285 = pneg %p124
        %p286 = pneg %p148
        %p287 = pneg %p145
        %p288 = pneg %p169
        %p289 = pneg %p166
        %p290 = pneg %p190
        %p291 = pneg %p187
        %p292 = pneg %p216
        %p293 = pneg %p213
        %s294 = sand.u32 %s203, 1
        %s295 = scalar_lea.sflag [#allocation4], %s294
        %s296 = sand.u32 %s203, 1
        %s297 = smul.addr %s296, 256
        %s298 = scalar_lea.vmem [#allocation3], %s297
        %p299 = scmp.lt.s32.totalorder %s22, 1
        %s300 = scalar_select %p299, %s22, 1
        %s301 = smul.addr %s300, 32
        %s302 = smul.addr %s301, 8
        %s303 = scalar_lea.vmem %s0, %s302
        %v305 = vld [vmem:[%s303] sm:$0xff]
        %v306 = vld [vmem:[%s303 + $0x8] sm:$0xff]
        %v307 = vld [vmem:[%s303 + $0x10] sm:$0xff]
        %v308 = vld [vmem:[%s303 + $0x18] sm:$0xff]
        %v309 = vld [vmem:[%s303 + $0x20] sm:$0xff]
        %v310 = vld [vmem:[%s303 + $0x28] sm:$0xff]
        %v311 = vld [vmem:[%s303 + $0x30] sm:$0xff]
        %v312 = vld [vmem:[%s303 + $0x38] sm:$0xff]
        %v313 = vld [vmem:[%s303 + $0x40] sm:$0xff]
        %v314 = vld [vmem:[%s303 + $0x48] sm:$0xff]
        %v315 = vld [vmem:[%s303 + $0x50] sm:$0xff]
        %v316 = vld [vmem:[%s303 + $0x58] sm:$0xff]
        %v317 = vld [vmem:[%s303 + $0x60] sm:$0xff]
        %v318 = vld [vmem:[%s303 + $0x68] sm:$0xff]
        %v319 = vld [vmem:[%s303 + $0x70] sm:$0xff]
        %v320 = vld [vmem:[%s303 + $0x78] sm:$0xff]
        %v321 = vld [vmem:[%s303 + $0x80] sm:$0xff]
        %v322 = vld [vmem:[%s303 + $0x88] sm:$0xff]
        %v323 = vld [vmem:[%s303 + $0x90] sm:$0xff]
        %v324 = vld [vmem:[%s303 + $0x98] sm:$0xff]
        %v325 = vld [vmem:[%s303 + $0xa0] sm:$0xff]
        %v326 = vld [vmem:[%s303 + $0xa8] sm:$0xff]
        %v327 = vld [vmem:[%s303 + $0xb0] sm:$0xff]
        %v328 = vld [vmem:[%s303 + $0xb8] sm:$0xff]
        %v329 = vld [vmem:[%s303 + $0xc0] sm:$0xff]
        %v330 = vld [vmem:[%s303 + $0xc8] sm:$0xff]
        %v331 = vld [vmem:[%s303 + $0xd0] sm:$0xff]
        %v332 = vld [vmem:[%s303 + $0xd8] sm:$0xff]
        %v333 = vld [vmem:[%s303 + $0xe0] sm:$0xff]
        %v334 = vld [vmem:[%s303 + $0xe8] sm:$0xff]
        %v335 = vld [vmem:[%s303 + $0xf0] sm:$0xff]
        %v336 = vld [vmem:[%s303 + $0xf8] sm:$0xff]
        %v337 = vpack.c.bf16 %v305, %v305
        %v338 = vpack.c.bf16 %v306, %v306
        %v339 = vpack.c.bf16 %v307, %v307
        %v340 = vpack.c.bf16 %v308, %v308
        %v341 = vpack.c.bf16 %v309, %v309
        %v342 = vpack.c.bf16 %v310, %v310
        %v343 = vpack.c.bf16 %v311, %v311
        %v344 = vpack.c.bf16 %v312, %v312
        %v345 = vpack.c.bf16 %v313, %v313
        %v346 = vpack.c.bf16 %v314, %v314
        %v347 = vpack.c.bf16 %v315, %v315
        %v348 = vpack.c.bf16 %v316, %v316
        %v349 = vpack.c.bf16 %v317, %v317
        %v350 = vpack.c.bf16 %v318, %v318
        %v351 = vpack.c.bf16 %v319, %v319
        %v352 = vpack.c.bf16 %v320, %v320
        %v353 = vpack.c.bf16 %v321, %v321
        %v354 = vpack.c.bf16 %v322, %v322
        %v355 = vpack.c.bf16 %v323, %v323
        %v356 = vpack.c.bf16 %v324, %v324
        %v357 = vpack.c.bf16 %v325, %v325
        %v358 = vpack.c.bf16 %v326, %v326
        %v359 = vpack.c.bf16 %v327, %v327
        %v360 = vpack.c.bf16 %v328, %v328
        %v361 = vpack.c.bf16 %v329, %v329
        %v362 = vpack.c.bf16 %v330, %v330
        %v363 = vpack.c.bf16 %v331, %v331
        %v364 = vpack.c.bf16 %v332, %v332
        %v365 = vpack.c.bf16 %v333, %v333
        %v366 = vpack.c.bf16 %v334, %v334
        %v367 = vpack.c.bf16 %v335, %v335
        %v368 = vpack.c.bf16 %v336, %v336
        %vm369 = vcmask 781824
        %370 = vst.msk [vmem:[#allocation2] sm:$0xf] %vm369, 0
        %371 = vst.msk [vmem:[#allocation2 + $0x8] sm:$0xf] %vm369, 0
        %372 = vst.msk [vmem:[#allocation2 + $0x10] sm:$0xf] %vm369, 0
        %373 = vst.msk [vmem:[#allocation2 + $0x18] sm:$0xf] %vm369, 0
        %374 = vst.msk [vmem:[#allocation2 + $0x20] sm:$0xf] %vm369, 0
        %375 = vst.msk [vmem:[#allocation2 + $0x28] sm:$0xf] %vm369, 0
        %376 = vst.msk [vmem:[#allocation2 + $0x130] sm:$0xf] %vm369, 0
        %377 = vst.msk [vmem:[#allocation2 + $0x138] sm:$0xf] %vm369, 0
        %378 = vst.msk [vmem:[#allocation2 + $0x140] sm:$0xf] %vm369, 0
        %379 = vst.msk [vmem:[#allocation2 + $0x148] sm:$0xf] %vm369, 0
        %380 = vst.msk [vmem:[#allocation2 + $0x150] sm:$0xf] %vm369, 0
        %381 = vst.msk [vmem:[#allocation2 + $0x158] sm:$0xf] %vm369, 0
        %414 = vrot.lane.b32.xlu0 %v337, 64
        %v415 = vpop.permute.xlu0 %414
        %416 = vrot.lane.b32.xlu0 %v338, 64
        %v417 = vpop.permute.xlu0 %416
        %418 = vrot.lane.b32.xlu0 %v339, 64
        %v419 = vpop.permute.xlu0 %418
        %420 = vrot.lane.b32.xlu0 %v340, 64
        %v421 = vpop.permute.xlu0 %420
        %422 = vrot.lane.b32.xlu0 %v341, 64
        %v423 = vpop.permute.xlu0 %422
        %424 = vrot.lane.b32.xlu0 %v342, 64
        %v425 = vpop.permute.xlu0 %424
        %426 = vrot.lane.b32.xlu0 %v343, 64
        %v427 = vpop.permute.xlu0 %426
        %428 = vrot.lane.b32.xlu0 %v344, 64
        %v429 = vpop.permute.xlu0 %428
        %430 = vrot.lane.b32.xlu0 %v345, 64
        %v431 = vpop.permute.xlu0 %430
        %432 = vrot.lane.b32.xlu0 %v346, 64
        %v433 = vpop.permute.xlu0 %432
        %434 = vrot.lane.b32.xlu0 %v347, 64
        %v435 = vpop.permute.xlu0 %434
        %436 = vrot.lane.b32.xlu0 %v348, 64
        %v437 = vpop.permute.xlu0 %436
        %438 = vrot.lane.b32.xlu0 %v349, 64
        %v439 = vpop.permute.xlu0 %438
        %440 = vrot.lane.b32.xlu0 %v350, 64
        %v441 = vpop.permute.xlu0 %440
        %442 = vrot.lane.b32.xlu0 %v351, 64
        %v443 = vpop.permute.xlu0 %442
        %444 = vrot.lane.b32.xlu0 %v352, 64
        %v445 = vpop.permute.xlu0 %444
        %446 = vrot.lane.b32.xlu0 %v353, 64
        %v447 = vpop.permute.xlu0 %446
        %448 = vrot.lane.b32.xlu0 %v354, 64
        %v449 = vpop.permute.xlu0 %448
        %450 = vrot.lane.b32.xlu0 %v355, 64
        %v451 = vpop.permute.xlu0 %450
        %452 = vrot.lane.b32.xlu0 %v356, 64
        %v453 = vpop.permute.xlu0 %452
        %454 = vrot.lane.b32.xlu0 %v357, 64
        %v455 = vpop.permute.xlu0 %454
        %456 = vrot.lane.b32.xlu0 %v358, 64
        %v457 = vpop.permute.xlu0 %456
        %458 = vrot.lane.b32.xlu0 %v359, 64
        %v459 = vpop.permute.xlu0 %458
        %460 = vrot.lane.b32.xlu0 %v360, 64
        %v461 = vpop.permute.xlu0 %460
        %462 = vrot.lane.b32.xlu0 %v361, 64
        %v463 = vpop.permute.xlu0 %462
        %464 = vrot.lane.b32.xlu0 %v362, 64
        %v465 = vpop.permute.xlu0 %464
        %466 = vrot.lane.b32.xlu0 %v363, 64
        %v467 = vpop.permute.xlu0 %466
        %468 = vrot.lane.b32.xlu0 %v364, 64
        %v469 = vpop.permute.xlu0 %468
        %470 = vrot.lane.b32.xlu0 %v365, 64
        %v471 = vpop.permute.xlu0 %470
        %472 = vrot.lane.b32.xlu0 %v366, 64
        %v473 = vpop.permute.xlu0 %472
        %474 = vrot.lane.b32.xlu0 %v367, 64
        %v475 = vpop.permute.xlu0 %474
        %476 = vrot.lane.b32.xlu0 %v368, 64
        %v477 = vpop.permute.xlu0 %476
        %510 = vst.msk [vmem:[#allocation2 + $0x30] sm:$0xf] %vm369, %v415
        %511 = vst.msk [vmem:[#allocation2 + $0x38] sm:$0xf] %vm369, %v417
        %512 = vst.msk [vmem:[#allocation2 + $0x40] sm:$0xf] %vm369, %v419
        %513 = vst.msk [vmem:[#allocation2 + $0x48] sm:$0xf] %vm369, %v421
        %514 = vst.msk [vmem:[#allocation2 + $0x50] sm:$0xf] %vm369, %v423
        %515 = vst.msk [vmem:[#allocation2 + $0x58] sm:$0xf] %vm369, %v425
        %516 = vst.msk [vmem:[#allocation2 + $0x60] sm:$0xf] %vm369, %v427
        %517 = vst.msk [vmem:[#allocation2 + $0x68] sm:$0xf] %vm369, %v429
        %518 = vst.msk [vmem:[#allocation2 + $0x70] sm:$0xf] %vm369, %v431
        %519 = vst.msk [vmem:[#allocation2 + $0x78] sm:$0xf] %vm369, %v433
        %520 = vst.msk [vmem:[#allocation2 + $0x80] sm:$0xf] %vm369, %v435
        %521 = vst.msk [vmem:[#allocation2 + $0x88] sm:$0xf] %vm369, %v437
        %522 = vst.msk [vmem:[#allocation2 + $0x90] sm:$0xf] %vm369, %v439
        %523 = vst.msk [vmem:[#allocation2 + $0x98] sm:$0xf] %vm369, %v441
        %524 = vst.msk [vmem:[#allocation2 + $0xa0] sm:$0xf] %vm369, %v443
        %525 = vst.msk [vmem:[#allocation2 + $0xa8] sm:$0xf] %vm369, %v445
        %526 = vst.msk [vmem:[#allocation2 + $0xb0] sm:$0xf] %vm369, %v447
        %527 = vst.msk [vmem:[#allocation2 + $0xb8] sm:$0xf] %vm369, %v449
        %528 = vst.msk [vmem:[#allocation2 + $0xc0] sm:$0xf] %vm369, %v451
        %529 = vst.msk [vmem:[#allocation2 + $0xc8] sm:$0xf] %vm369, %v453
        %530 = vst.msk [vmem:[#allocation2 + $0xd0] sm:$0xf] %vm369, %v455
        %531 = vst.msk [vmem:[#allocation2 + $0xd8] sm:$0xf] %vm369, %v457
        %532 = vst.msk [vmem:[#allocation2 + $0xe0] sm:$0xf] %vm369, %v459
        %533 = vst.msk [vmem:[#allocation2 + $0xe8] sm:$0xf] %vm369, %v461
        %534 = vst.msk [vmem:[#allocation2 + $0xf0] sm:$0xf] %vm369, %v463
        %535 = vst.msk [vmem:[#allocation2 + $0xf8] sm:$0xf] %vm369, %v465
        %536 = vst.msk [vmem:[#allocation2 + $0x100] sm:$0xf] %vm369, %v467
        %537 = vst.msk [vmem:[#allocation2 + $0x108] sm:$0xf] %vm369, %v469
        %538 = vst.msk [vmem:[#allocation2 + $0x110] sm:$0xf] %vm369, %v471
        %539 = vst.msk [vmem:[#allocation2 + $0x118] sm:$0xf] %vm369, %v473
        %540 = vst.msk [vmem:[#allocation2 + $0x120] sm:$0xf] %vm369, %v475
        %541 = vst.msk [vmem:[#allocation2 + $0x128] sm:$0xf] %vm369, %v477
        %v542 = vld [vmem:[#allocation2 + $0x8] sm:$0x8]
        %v543 = vld [vmem:[#allocation2 + $0x10] sm:$0xf]
        %v544 = vld [vmem:[#allocation2 + $0x18] sm:$0xf]
        %v545 = vld [vmem:[#allocation2 + $0x20] sm:$0xf]
        %v546 = vld [vmem:[#allocation2 + $0x28] sm:$0xf]
        %v547 = vld [vmem:[#allocation2 + $0x30] sm:$0xf]
        %v548 = vld [vmem:[#allocation2 + $0x38] sm:$0xf]
        %v549 = vld [vmem:[#allocation2 + $0x40] sm:$0xf]
        %v550 = vld [vmem:[#allocation2 + $0x48] sm:$0xf]
        %v551 = vld [vmem:[#allocation2 + $0x50] sm:$0xf]
        %v552 = vld [vmem:[#allocation2 + $0x58] sm:$0xf]
        %v553 = vld [vmem:[#allocation2 + $0x60] sm:$0xf]
        %v554 = vld [vmem:[#allocation2 + $0x68] sm:$0xf]
        %v555 = vld [vmem:[#allocation2 + $0x70] sm:$0xf]
        %v556 = vld [vmem:[#allocation2 + $0x78] sm:$0xf]
        %v557 = vld [vmem:[#allocation2 + $0x80] sm:$0xf]
        %v558 = vld [vmem:[#allocation2 + $0x88] sm:$0xf]
        %v559 = vld [vmem:[#allocation2 + $0x90] sm:$0xf]
        %v560 = vld [vmem:[#allocation2 + $0x98] sm:$0xf]
        %v561 = vld [vmem:[#allocation2 + $0xa0] sm:$0xf]
        %v562 = vld [vmem:[#allocation2 + $0xa8] sm:$0xf]
        %v563 = vld [vmem:[#allocation2 + $0xb0] sm:$0xf]
        %v564 = vld [vmem:[#allocation2 + $0xb8] sm:$0xf]
        %v565 = vld [vmem:[#allocation2 + $0xc0] sm:$0xf]
        %v566 = vld [vmem:[#allocation2 + $0xc8] sm:$0xf]
        %v567 = vld [vmem:[#allocation2 + $0xd0] sm:$0xf]
        %v568 = vld [vmem:[#allocation2 + $0xd8] sm:$0xf]
        %v569 = vld [vmem:[#allocation2 + $0xe0] sm:$0xf]
        %v570 = vld [vmem:[#allocation2 + $0xe8] sm:$0xf]
        %v571 = vld [vmem:[#allocation2 + $0xf0] sm:$0xf]
        %v572 = vld [vmem:[#allocation2 + $0xf8] sm:$0xf]
        %v573 = vld [vmem:[#allocation2 + $0x100] sm:$0xf]
        %v574 = vld [vmem:[#allocation2 + $0x108] sm:$0xf]
        %v575 = vld [vmem:[#allocation2 + $0x110] sm:$0xf]
        %v576 = vld [vmem:[#allocation2 + $0x118] sm:$0xf]
        %v577 = vld [vmem:[#allocation2 + $0x120] sm:$0xf]
        %v578 = vld [vmem:[#allocation2 + $0x128] sm:$0xf]
        %v579 = vld [vmem:[#allocation2 + $0x130] sm:$0xf]
        %v580 = vld [vmem:[#allocation2 + $0x138] sm:$0xf]
        %v581 = vld [vmem:[#allocation2 + $0x140] sm:$0xf]
        %v582 = vld [vmem:[#allocation2 + $0x148] sm:$0x7]
        %v583 = vld [vmem:[%s7 + $0x10] sm:$0xf]
        %v584 = vld [vmem:[%s7 + $0x18] sm:$0xf]
        %v585 = vld [vmem:[%s7 + $0x20] sm:$0xf]
        %v586 = vld [vmem:[%s7 + $0x28] sm:$0xf]
        %v587 = vld [vmem:[%s7 + $0x30] sm:$0xf]
        %v588 = vld [vmem:[%s7 + $0x38] sm:$0xf]
        %v589 = vld [vmem:[%s7 + $0x40] sm:$0xf]
        %v590 = vld [vmem:[%s7 + $0x48] sm:$0xf]
        %v591 = vld [vmem:[%s7 + $0x50] sm:$0xf]
        %v592 = vld [vmem:[%s7 + $0x58] sm:$0xf]
        %v593 = vld [vmem:[%s7 + $0x60] sm:$0xf]
        %v594 = vld [vmem:[%s7 + $0x68] sm:$0xf]
        %v595 = vld [vmem:[%s7 + $0x70] sm:$0xf]
        %v596 = vld [vmem:[%s7 + $0x78] sm:$0xf]
        %v597 = vld [vmem:[%s7 + $0x80] sm:$0xf]
        %v598 = vld [vmem:[%s7 + $0x88] sm:$0xf]
        %v599 = vld [vmem:[%s7 + $0x90] sm:$0xf]
        %v600 = vld [vmem:[%s7 + $0x98] sm:$0xf]
        %v601 = vld [vmem:[%s7 + $0xa0] sm:$0xf]
        %v602 = vld [vmem:[%s7 + $0xa8] sm:$0xf]
        %v603 = vld [vmem:[%s7 + $0xb0] sm:$0xf]
        %v604 = vld [vmem:[%s7 + $0xb8] sm:$0xf]
        %v605 = vld [vmem:[%s7 + $0xc0] sm:$0xf]
        %v606 = vld [vmem:[%s7 + $0xc8] sm:$0xf]
        %v607 = vld [vmem:[%s7 + $0xd0] sm:$0xf]
        %v608 = vld [vmem:[%s7 + $0xd8] sm:$0xf]
        %v609 = vld [vmem:[%s7 + $0xe0] sm:$0xf]
        %v610 = vld [vmem:[%s7 + $0xe8] sm:$0xf]
        %v611 = vld [vmem:[%s7 + $0xf0] sm:$0xf]
        %v612 = vld [vmem:[%s7 + $0xf8] sm:$0xf]
        %v613 = vld [vmem:[%s7 + $0x100] sm:$0xf]
        %v614 = vld [vmem:[%s7 + $0x108] sm:$0xf]
        %v615 = vld [vmem:[%s7 + $0x110] sm:$0xf]
        %v616 = vld [vmem:[%s7 + $0x118] sm:$0xf]
        %v617 = vld [vmem:[%s7 + $0x120] sm:$0xf]
        %v618 = vld [vmem:[%s7 + $0x128] sm:$0xf]
        %v619 = vld [vmem:[%s7 + $0x130] sm:$0xf]
        %v620 = vld [vmem:[%s7 + $0x138] sm:$0xf]
        %v621 = vld [vmem:[%s7 + $0x140] sm:$0xf]
        %v622 = vld [vmem:[%s7 + $0x148] sm:$0xf]
        %v623 = vunpack.c.l.bf16 %v542
        %v624 = vunpack.c.l.bf16 %v543
        %v625 = vunpack.c.l.bf16 %v544
        %v626 = vunpack.c.l.bf16 %v545
        %v627 = vunpack.c.l.bf16 %v546
        %v628 = vunpack.c.l.bf16 %v547
        %v629 = vunpack.c.l.bf16 %v548
        %v630 = vunpack.c.l.bf16 %v549
        %v631 = vunpack.c.l.bf16 %v550
        %v632 = vunpack.c.l.bf16 %v551
        %v633 = vunpack.c.l.bf16 %v552
        %v634 = vunpack.c.l.bf16 %v553
        %v635 = vunpack.c.l.bf16 %v554
        %v636 = vunpack.c.l.bf16 %v555
        %v637 = vunpack.c.l.bf16 %v556
        %v638 = vunpack.c.l.bf16 %v557
        %v639 = vunpack.c.l.bf16 %v558
        %v640 = vunpack.c.l.bf16 %v559
        %v641 = vunpack.c.l.bf16 %v560
        %v642 = vunpack.c.l.bf16 %v561
        %v643 = vunpack.c.l.bf16 %v562
        %v644 = vunpack.c.l.bf16 %v563
        %v645 = vunpack.c.l.bf16 %v564
        %v646 = vunpack.c.l.bf16 %v565
        %v647 = vunpack.c.l.bf16 %v566
        %v648 = vunpack.c.l.bf16 %v567
        %v649 = vunpack.c.l.bf16 %v568
        %v650 = vunpack.c.l.bf16 %v569
        %v651 = vunpack.c.l.bf16 %v570
        %v652 = vunpack.c.l.bf16 %v571
        %v653 = vunpack.c.l.bf16 %v572
        %v654 = vunpack.c.l.bf16 %v573
        %v655 = vunpack.c.l.bf16 %v574
        %v656 = vunpack.c.l.bf16 %v575
        %v657 = vunpack.c.l.bf16 %v576
        %v658 = vunpack.c.l.bf16 %v577
        %v659 = vunpack.c.l.bf16 %v578
        %v660 = vunpack.c.l.bf16 %v579
        %v661 = vunpack.c.l.bf16 %v580
        %v662 = vunpack.c.l.bf16 %v581
        %v663 = vunpack.c.l.bf16 %v582
        %v664 = vunpack.c.l.bf16 %v583
        %v665 = vunpack.c.l.bf16 %v584
        %v666 = vunpack.c.l.bf16 %v585
        %v667 = vunpack.c.l.bf16 %v586
        %v668 = vunpack.c.l.bf16 %v587
        %v669 = vunpack.c.l.bf16 %v588
        %v670 = vunpack.c.l.bf16 %v589
        %v671 = vunpack.c.l.bf16 %v590
        %v672 = vunpack.c.l.bf16 %v591
        %v673 = vunpack.c.l.bf16 %v592
        %v674 = vunpack.c.l.bf16 %v593
        %v675 = vunpack.c.l.bf16 %v594
        %v676 = vunpack.c.l.bf16 %v595
        %v677 = vunpack.c.l.bf16 %v596
        %v678 = vunpack.c.l.bf16 %v597
        %v679 = vunpack.c.l.bf16 %v598
        %v680 = vunpack.c.l.bf16 %v599
        %v681 = vunpack.c.l.bf16 %v600
        %v682 = vunpack.c.l.bf16 %v601
        %v683 = vunpack.c.l.bf16 %v602
        %v684 = vunpack.c.l.bf16 %v603
        %v685 = vunpack.c.l.bf16 %v604
        %v686 = vunpack.c.l.bf16 %v605
        %v687 = vunpack.c.l.bf16 %v606
        %v688 = vunpack.c.l.bf16 %v607
        %v689 = vunpack.c.l.bf16 %v608
        %v690 = vunpack.c.l.bf16 %v609
        %v691 = vunpack.c.l.bf16 %v610
        %v692 = vunpack.c.l.bf16 %v611
        %v693 = vunpack.c.l.bf16 %v612
        %v694 = vunpack.c.l.bf16 %v613
        %v695 = vunpack.c.l.bf16 %v614
        %v696 = vunpack.c.l.bf16 %v615
        %v697 = vunpack.c.l.bf16 %v616
        %v698 = vunpack.c.l.bf16 %v617
        %v699 = vunpack.c.l.bf16 %v618
        %v700 = vunpack.c.l.bf16 %v619
        %v701 = vunpack.c.l.bf16 %v620
        %v702 = vunpack.c.l.bf16 %v621
        %v703 = vunpack.c.l.bf16 %v622
        %vm744 = vcmask 1045504
        %v745 = vrot.slane %v664, 2
        %v746 = vrot.slane %v665, 2
        %v747 = vsel %vm744, %v745, %v746
        %v748 = vrot.slane %v666, 2
        %v749 = vsel %vm744, %v746, %v748
        %v750 = vrot.slane %v667, 2
        %v751 = vsel %vm744, %v748, %v750
        %v752 = vrot.slane %v668, 2
        %v753 = vsel %vm744, %v750, %v752
        %v754 = vrot.slane %v669, 2
        %v755 = vsel %vm744, %v752, %v754
        %v756 = vrot.slane %v670, 2
        %v757 = vsel %vm744, %v754, %v756
        %v758 = vrot.slane %v671, 2
        %v759 = vsel %vm744, %v756, %v758
        %v760 = vrot.slane %v672, 2
        %v761 = vsel %vm744, %v758, %v760
        %v762 = vrot.slane %v673, 2
        %v763 = vsel %vm744, %v760, %v762
        %v764 = vrot.slane %v674, 2
        %v765 = vsel %vm744, %v762, %v764
        %v766 = vrot.slane %v675, 2
        %v767 = vsel %vm744, %v764, %v766
        %v768 = vrot.slane %v676, 2
        %v769 = vsel %vm744, %v766, %v768
        %v770 = vrot.slane %v677, 2
        %v771 = vsel %vm744, %v768, %v770
        %v772 = vrot.slane %v678, 2
        %v773 = vsel %vm744, %v770, %v772
        %v774 = vrot.slane %v679, 2
        %v775 = vsel %vm744, %v772, %v774
        %v776 = vrot.slane %v680, 2
        %v777 = vsel %vm744, %v774, %v776
        %v778 = vrot.slane %v681, 2
        %v779 = vsel %vm744, %v776, %v778
        %v780 = vrot.slane %v682, 2
        %v781 = vsel %vm744, %v778, %v780
        %v782 = vrot.slane %v683, 2
        %v783 = vsel %vm744, %v780, %v782
        %v784 = vrot.slane %v684, 2
        %v785 = vsel %vm744, %v782, %v784
        %v786 = vrot.slane %v685, 2
        %v787 = vsel %vm744, %v784, %v786
        %v788 = vrot.slane %v686, 2
        %v789 = vsel %vm744, %v786, %v788
        %v790 = vrot.slane %v687, 2
        %v791 = vsel %vm744, %v788, %v790
        %v792 = vrot.slane %v688, 2
        %v793 = vsel %vm744, %v790, %v792
        %v794 = vrot.slane %v689, 2
        %v795 = vsel %vm744, %v792, %v794
        %v796 = vrot.slane %v690, 2
        %v797 = vsel %vm744, %v794, %v796
        %v798 = vrot.slane %v691, 2
        %v799 = vsel %vm744, %v796, %v798
        %v800 = vrot.slane %v692, 2
        %v801 = vsel %vm744, %v798, %v800
        %v802 = vrot.slane %v693, 2
        %v803 = vsel %vm744, %v800, %v802
        %v804 = vrot.slane %v694, 2
        %v805 = vsel %vm744, %v802, %v804
        %v806 = vrot.slane %v695, 2
        %v807 = vsel %vm744, %v804, %v806
        %v808 = vrot.slane %v696, 2
        %v809 = vsel %vm744, %v806, %v808
        %v810 = vrot.slane %v697, 2
        %v811 = vsel %vm744, %v808, %v810
        %v812 = vrot.slane %v698, 2
        %v813 = vsel %vm744, %v810, %v812
        %v814 = vrot.slane %v699, 2
        %v815 = vsel %vm744, %v812, %v814
        %v816 = vrot.slane %v700, 2
        %v817 = vsel %vm744, %v814, %v816
        %v818 = vrot.slane %v701, 2
        %v819 = vsel %vm744, %v816, %v818
        %v820 = vrot.slane %v702, 2
        %v821 = vsel %vm744, %v818, %v820
        %v822 = vrot.slane %v703, 2
        %v823 = vsel %vm744, %v820, %v822
        %824 = vrot.lane.b32.xlu0 %v745, 64
        %v825 = vpop.permute.xlu0 %824
        %826 = vrot.lane.b32.xlu0 %v747, 64
        %v827 = vpop.permute.xlu0 %826
        %828 = vrot.lane.b32.xlu0 %v749, 64
        %v829 = vpop.permute.xlu0 %828
        %830 = vrot.lane.b32.xlu0 %v751, 64
        %v831 = vpop.permute.xlu0 %830
        %832 = vrot.lane.b32.xlu0 %v753, 64
        %v833 = vpop.permute.xlu0 %832
        %834 = vrot.lane.b32.xlu0 %v755, 64
        %v835 = vpop.permute.xlu0 %834
        %836 = vrot.lane.b32.xlu0 %v757, 64
        %v837 = vpop.permute.xlu0 %836
        %838 = vrot.lane.b32.xlu0 %v759, 64
        %v839 = vpop.permute.xlu0 %838
        %840 = vrot.lane.b32.xlu0 %v761, 64
        %v841 = vpop.permute.xlu0 %840
        %842 = vrot.lane.b32.xlu0 %v763, 64
        %v843 = vpop.permute.xlu0 %842
        %844 = vrot.lane.b32.xlu0 %v765, 64
        %v845 = vpop.permute.xlu0 %844
        %846 = vrot.lane.b32.xlu0 %v767, 64
        %v847 = vpop.permute.xlu0 %846
        %848 = vrot.lane.b32.xlu0 %v769, 64
        %v849 = vpop.permute.xlu0 %848
        %850 = vrot.lane.b32.xlu0 %v771, 64
        %v851 = vpop.permute.xlu0 %850
        %852 = vrot.lane.b32.xlu0 %v773, 64
        %v853 = vpop.permute.xlu0 %852
        %854 = vrot.lane.b32.xlu0 %v775, 64
        %v855 = vpop.permute.xlu0 %854
        %856 = vrot.lane.b32.xlu0 %v777, 64
        %v857 = vpop.permute.xlu0 %856
        %858 = vrot.lane.b32.xlu0 %v779, 64
        %v859 = vpop.permute.xlu0 %858
        %860 = vrot.lane.b32.xlu0 %v781, 64
        %v861 = vpop.permute.xlu0 %860
        %862 = vrot.lane.b32.xlu0 %v783, 64
        %v863 = vpop.permute.xlu0 %862
        %864 = vrot.lane.b32.xlu0 %v785, 64
        %v865 = vpop.permute.xlu0 %864
        %866 = vrot.lane.b32.xlu0 %v787, 64
        %v867 = vpop.permute.xlu0 %866
        %868 = vrot.lane.b32.xlu0 %v789, 64
        %v869 = vpop.permute.xlu0 %868
        %870 = vrot.lane.b32.xlu0 %v791, 64
        %v871 = vpop.permute.xlu0 %870
        %872 = vrot.lane.b32.xlu0 %v793, 64
        %v873 = vpop.permute.xlu0 %872
        %874 = vrot.lane.b32.xlu0 %v795, 64
        %v875 = vpop.permute.xlu0 %874
        %876 = vrot.lane.b32.xlu0 %v797, 64
        %v877 = vpop.permute.xlu0 %876
        %878 = vrot.lane.b32.xlu0 %v799, 64
        %v879 = vpop.permute.xlu0 %878
        %880 = vrot.lane.b32.xlu0 %v801, 64
        %v881 = vpop.permute.xlu0 %880
        %882 = vrot.lane.b32.xlu0 %v803, 64
        %v883 = vpop.permute.xlu0 %882
        %884 = vrot.lane.b32.xlu0 %v805, 64
        %v885 = vpop.permute.xlu0 %884
        %886 = vrot.lane.b32.xlu0 %v807, 64
        %v887 = vpop.permute.xlu0 %886
        %888 = vrot.lane.b32.xlu0 %v809, 64
        %v889 = vpop.permute.xlu0 %888
        %890 = vrot.lane.b32.xlu0 %v811, 64
        %v891 = vpop.permute.xlu0 %890
        %892 = vrot.lane.b32.xlu0 %v813, 64
        %v893 = vpop.permute.xlu0 %892
        %894 = vrot.lane.b32.xlu0 %v815, 64
        %v895 = vpop.permute.xlu0 %894
        %896 = vrot.lane.b32.xlu0 %v817, 64
        %v897 = vpop.permute.xlu0 %896
        %898 = vrot.lane.b32.xlu0 %v819, 64
        %v899 = vpop.permute.xlu0 %898
        %900 = vrot.lane.b32.xlu0 %v821, 64
        %v901 = vpop.permute.xlu0 %900
        %902 = vrot.lane.b32.xlu0 %v823, 64
        %v903 = vpop.permute.xlu0 %902
        %904 = vrot.lane.b32.xlu0 %v822, 64
        %v905 = vpop.permute.xlu0 %904
        %v947 = vmul.f32 %v623, %v825
        %v948 = vmul.f32 %v624, %v827
        %v949 = vmul.f32 %v625, %v829
        %v950 = vmul.f32 %v626, %v831
        %v951 = vmul.f32 %v627, %v833
        %v952 = vmul.f32 %v628, %v835
        %v953 = vmul.f32 %v629, %v837
        %v954 = vmul.f32 %v630, %v839
        %v955 = vmul.f32 %v631, %v841
        %v956 = vmul.f32 %v632, %v843
        %v957 = vmul.f32 %v633, %v845
        %v958 = vmul.f32 %v634, %v847
        %v959 = vmul.f32 %v635, %v849
        %v960 = vmul.f32 %v636, %v851
        %v961 = vmul.f32 %v637, %v853
        %v962 = vmul.f32 %v638, %v855
        %v963 = vmul.f32 %v639, %v857
        %v964 = vmul.f32 %v640, %v859
        %v965 = vmul.f32 %v641, %v861
        %v966 = vmul.f32 %v642, %v863
        %v967 = vmul.f32 %v643, %v865
        %v968 = vmul.f32 %v644, %v867
        %v969 = vmul.f32 %v645, %v869
        %v970 = vmul.f32 %v646, %v871
        %v971 = vmul.f32 %v647, %v873
        %v972 = vmul.f32 %v648, %v875
        %v973 = vmul.f32 %v649, %v877
        %v974 = vmul.f32 %v650, %v879
        %v975 = vmul.f32 %v651, %v881
        %v976 = vmul.f32 %v652, %v883
        %v977 = vmul.f32 %v653, %v885
        %v978 = vmul.f32 %v654, %v887
        %v979 = vmul.f32 %v655, %v889
        %v980 = vmul.f32 %v656, %v891
        %v981 = vmul.f32 %v657, %v893
        %v982 = vmul.f32 %v658, %v895
        %v983 = vmul.f32 %v659, %v897
        %v984 = vmul.f32 %v660, %v899
        %v985 = vmul.f32 %v661, %v901
        %v986 = vmul.f32 %v662, %v903
        %v987 = vmul.f32 %v663, %v905
        %v988 = vpack.c.bf16 %v947, %v947
        %v989 = vpack.c.bf16 %v948, %v948
        %v990 = vpack.c.bf16 %v949, %v949
        %v991 = vpack.c.bf16 %v950, %v950
        %v992 = vpack.c.bf16 %v951, %v951
        %v993 = vpack.c.bf16 %v952, %v952
        %v994 = vpack.c.bf16 %v953, %v953
        %v995 = vpack.c.bf16 %v954, %v954
        %v996 = vpack.c.bf16 %v955, %v955
        %v997 = vpack.c.bf16 %v956, %v956
        %v998 = vpack.c.bf16 %v957, %v957
        %v999 = vpack.c.bf16 %v958, %v958
        %v1000 = vpack.c.bf16 %v959, %v959
        %v1001 = vpack.c.bf16 %v960, %v960
        %v1002 = vpack.c.bf16 %v961, %v961
        %v1003 = vpack.c.bf16 %v962, %v962
        %v1004 = vpack.c.bf16 %v963, %v963
        %v1005 = vpack.c.bf16 %v964, %v964
        %v1006 = vpack.c.bf16 %v965, %v965
        %v1007 = vpack.c.bf16 %v966, %v966
        %v1008 = vpack.c.bf16 %v967, %v967
        %v1009 = vpack.c.bf16 %v968, %v968
        %v1010 = vpack.c.bf16 %v969, %v969
        %v1011 = vpack.c.bf16 %v970, %v970
        %v1012 = vpack.c.bf16 %v971, %v971
        %v1013 = vpack.c.bf16 %v972, %v972
        %v1014 = vpack.c.bf16 %v973, %v973
        %v1015 = vpack.c.bf16 %v974, %v974
        %v1016 = vpack.c.bf16 %v975, %v975
        %v1017 = vpack.c.bf16 %v976, %v976
        %v1018 = vpack.c.bf16 %v977, %v977
        %v1019 = vpack.c.bf16 %v978, %v978
        %v1020 = vpack.c.bf16 %v979, %v979
        %v1021 = vpack.c.bf16 %v980, %v980
        %v1022 = vpack.c.bf16 %v981, %v981
        %v1023 = vpack.c.bf16 %v982, %v982
        %v1024 = vpack.c.bf16 %v983, %v983
        %v1025 = vpack.c.bf16 %v984, %v984
        %v1026 = vpack.c.bf16 %v985, %v985
        %v1027 = vpack.c.bf16 %v986, %v986
        %v1028 = vpack.c.bf16 %v987, %v987
        %vm1070 = vcmask 1040384
        %vm1071 = vcmask 1044484
        %vm1072 = vmor %vm1070, %vm1071
        %v1073 = vrot.slane %v988, 7
        %v1074 = vrot.slane %v1073, 4
        %v1075 = vrot.slane %v989, 7
        %v1076 = vsel %vm1072, %v1074, %v1075
        %v1077 = vrot.slane %v1075, 4
        %v1078 = vrot.slane %v990, 7
        %v1079 = vsel %vm1072, %v1077, %v1078
        %v1080 = vrot.slane %v1078, 4
        %v1081 = vrot.slane %v991, 7
        %v1082 = vsel %vm1072, %v1080, %v1081
        %v1083 = vrot.slane %v1081, 4
        %v1084 = vrot.slane %v992, 7
        %v1085 = vsel %vm1072, %v1083, %v1084
        %v1086 = vrot.slane %v1084, 4
        %v1087 = vrot.slane %v993, 7
        %v1088 = vsel %vm1072, %v1086, %v1087
        %v1089 = vrot.slane %v1087, 4
        %v1090 = vrot.slane %v994, 7
        %v1091 = vsel %vm1072, %v1089, %v1090
        %v1092 = vrot.slane %v1090, 4
        %v1093 = vrot.slane %v995, 7
        %v1094 = vsel %vm1072, %v1092, %v1093
        %v1095 = vrot.slane %v1093, 4
        %v1096 = vrot.slane %v996, 7
        %v1097 = vsel %vm1072, %v1095, %v1096
        %v1098 = vrot.slane %v1096, 4
        %v1099 = vrot.slane %v997, 7
        %v1100 = vsel %vm1072, %v1098, %v1099
        %v1101 = vrot.slane %v1099, 4
        %v1102 = vrot.slane %v998, 7
        %v1103 = vsel %vm1072, %v1101, %v1102
        %v1104 = vrot.slane %v1102, 4
        %v1105 = vrot.slane %v999, 7
        %v1106 = vsel %vm1072, %v1104, %v1105
        %v1107 = vrot.slane %v1105, 4
        %v1108 = vrot.slane %v1000, 7
        %v1109 = vsel %vm1072, %v1107, %v1108
        %v1110 = vrot.slane %v1108, 4
        %v1111 = vrot.slane %v1001, 7
        %v1112 = vsel %vm1072, %v1110, %v1111
        %v1113 = vrot.slane %v1111, 4
        %v1114 = vrot.slane %v1002, 7
        %v1115 = vsel %vm1072, %v1113, %v1114
        %v1116 = vrot.slane %v1114, 4
        %v1117 = vrot.slane %v1003, 7
        %v1118 = vsel %vm1072, %v1116, %v1117
        %v1119 = vrot.slane %v1117, 4
        %v1120 = vrot.slane %v1004, 7
        %v1121 = vsel %vm1072, %v1119, %v1120
        %v1122 = vrot.slane %v1120, 4
        %v1123 = vrot.slane %v1005, 7
        %v1124 = vsel %vm1072, %v1122, %v1123
        %v1125 = vrot.slane %v1123, 4
        %v1126 = vrot.slane %v1006, 7
        %v1127 = vsel %vm1072, %v1125, %v1126
        %v1128 = vrot.slane %v1126, 4
        %v1129 = vrot.slane %v1007, 7
        %v1130 = vsel %vm1072, %v1128, %v1129
        %v1131 = vrot.slane %v1129, 4
        %v1132 = vrot.slane %v1008, 7
        %v1133 = vsel %vm1072, %v1131, %v1132
        %v1134 = vrot.slane %v1132, 4
        %v1135 = vrot.slane %v1009, 7
        %v1136 = vsel %vm1072, %v1134, %v1135
        %v1137 = vrot.slane %v1135, 4
        %v1138 = vrot.slane %v1010, 7
        %v1139 = vsel %vm1072, %v1137, %v1138
        %v1140 = vrot.slane %v1138, 4
        %v1141 = vrot.slane %v1011, 7
        %v1142 = vsel %vm1072, %v1140, %v1141
        %v1143 = vrot.slane %v1141, 4
        %v1144 = vrot.slane %v1012, 7
        %v1145 = vsel %vm1072, %v1143, %v1144
        %v1146 = vrot.slane %v1144, 4
        %v1147 = vrot.slane %v1013, 7
        %v1148 = vsel %vm1072, %v1146, %v1147
        %v1149 = vrot.slane %v1147, 4
        %v1150 = vrot.slane %v1014, 7
        %v1151 = vsel %vm1072, %v1149, %v1150
        %v1152 = vrot.slane %v1150, 4
        %v1153 = vrot.slane %v1015, 7
        %v1154 = vsel %vm1072, %v1152, %v1153
        %v1155 = vrot.slane %v1153, 4
        %v1156 = vrot.slane %v1016, 7
        %v1157 = vsel %vm1072, %v1155, %v1156
        %v1158 = vrot.slane %v1156, 4
        %v1159 = vrot.slane %v1017, 7
        %v1160 = vsel %vm1072, %v1158, %v1159
        %v1161 = vrot.slane %v1159, 4
        %v1162 = vrot.slane %v1018, 7
        %v1163 = vsel %vm1072, %v1161, %v1162
        %v1164 = vrot.slane %v1162, 4
        %v1165 = vrot.slane %v1019, 7
        %v1166 = vsel %vm1072, %v1164, %v1165
        %v1167 = vrot.slane %v1165, 4
        %v1168 = vrot.slane %v1020, 7
        %v1169 = vsel %vm1072, %v1167, %v1168
        %v1170 = vrot.slane %v1168, 4
        %v1171 = vrot.slane %v1021, 7
        %v1172 = vsel %vm1072, %v1170, %v1171
        %v1173 = vrot.slane %v1171, 4
        %v1174 = vrot.slane %v1022, 7
        %v1175 = vsel %vm1072, %v1173, %v1174
        %v1176 = vrot.slane %v1174, 4
        %v1177 = vrot.slane %v1023, 7
        %v1178 = vsel %vm1072, %v1176, %v1177
        %v1179 = vrot.slane %v1177, 4
        %v1180 = vrot.slane %v1024, 7
        %v1181 = vsel %vm1072, %v1179, %v1180
        %v1182 = vrot.slane %v1180, 4
        %v1183 = vrot.slane %v1025, 7
        %v1184 = vsel %vm1072, %v1182, %v1183
        %v1185 = vrot.slane %v1183, 4
        %v1186 = vrot.slane %v1026, 7
        %v1187 = vsel %vm1072, %v1185, %v1186
        %v1188 = vrot.slane %v1186, 4
        %v1189 = vrot.slane %v1027, 7
        %v1190 = vsel %vm1072, %v1188, %v1189
        %v1191 = vrot.slane %v1189, 4
        %v1192 = vrot.slane %v1028, 7
        %v1193 = vsel %vm1072, %v1191, %v1192
        %1194 = vrot.lane.b32.xlu0 %v1076, 64
        %v1195 = vpop.permute.xlu0 %1194
        %1196 = vrot.lane.b32.xlu0 %v1079, 64
        %v1197 = vpop.permute.xlu0 %1196
        %1198 = vrot.lane.b32.xlu0 %v1082, 64
        %v1199 = vpop.permute.xlu0 %1198
        %1200 = vrot.lane.b32.xlu0 %v1085, 64
        %v1201 = vpop.permute.xlu0 %1200
        %1202 = vrot.lane.b32.xlu0 %v1088, 64
        %v1203 = vpop.permute.xlu0 %1202
        %1204 = vrot.lane.b32.xlu0 %v1091, 64
        %v1205 = vpop.permute.xlu0 %1204
        %1206 = vrot.lane.b32.xlu0 %v1094, 64
        %v1207 = vpop.permute.xlu0 %1206
        %1208 = vrot.lane.b32.xlu0 %v1097, 64
        %v1209 = vpop.permute.xlu0 %1208
        %1210 = vrot.lane.b32.xlu0 %v1100, 64
        %v1211 = vpop.permute.xlu0 %1210
        %1212 = vrot.lane.b32.xlu0 %v1103, 64
        %v1213 = vpop.permute.xlu0 %1212
        %1214 = vrot.lane.b32.xlu0 %v1106, 64
        %v1215 = vpop.permute.xlu0 %1214
        %1216 = vrot.lane.b32.xlu0 %v1109, 64
        %v1217 = vpop.permute.xlu0 %1216
        %1218 = vrot.lane.b32.xlu0 %v1112, 64
        %v1219 = vpop.permute.xlu0 %1218
        %1220 = vrot.lane.b32.xlu0 %v1115, 64
        %v1221 = vpop.permute.xlu0 %1220
        %1222 = vrot.lane.b32.xlu0 %v1118, 64
        %v1223 = vpop.permute.xlu0 %1222
        %1224 = vrot.lane.b32.xlu0 %v1121, 64
        %v1225 = vpop.permute.xlu0 %1224
        %1226 = vrot.lane.b32.xlu0 %v1124, 64
        %v1227 = vpop.permute.xlu0 %1226
        %1228 = vrot.lane.b32.xlu0 %v1127, 64
        %v1229 = vpop.permute.xlu0 %1228
        %1230 = vrot.lane.b32.xlu0 %v1130, 64
        %v1231 = vpop.permute.xlu0 %1230
        %1232 = vrot.lane.b32.xlu0 %v1133, 64
        %v1233 = vpop.permute.xlu0 %1232
        %1234 = vrot.lane.b32.xlu0 %v1136, 64
        %v1235 = vpop.permute.xlu0 %1234
        %1236 = vrot.lane.b32.xlu0 %v1139, 64
        %v1237 = vpop.permute.xlu0 %1236
        %1238 = vrot.lane.b32.xlu0 %v1142, 64
        %v1239 = vpop.permute.xlu0 %1238
        %1240 = vrot.lane.b32.xlu0 %v1145, 64
        %v1241 = vpop.permute.xlu0 %1240
        %1242 = vrot.lane.b32.xlu0 %v1148, 64
        %v1243 = vpop.permute.xlu0 %1242
        %1244 = vrot.lane.b32.xlu0 %v1151, 64
        %v1245 = vpop.permute.xlu0 %1244
        %1246 = vrot.lane.b32.xlu0 %v1154, 64
        %v1247 = vpop.permute.xlu0 %1246
        %1248 = vrot.lane.b32.xlu0 %v1157, 64
        %v1249 = vpop.permute.xlu0 %1248
        %1250 = vrot.lane.b32.xlu0 %v1160, 64
        %v1251 = vpop.permute.xlu0 %1250
        %1252 = vrot.lane.b32.xlu0 %v1163, 64
        %v1253 = vpop.permute.xlu0 %1252
        %1254 = vrot.lane.b32.xlu0 %v1166, 64
        %v1255 = vpop.permute.xlu0 %1254
        %1256 = vrot.lane.b32.xlu0 %v1169, 64
        %v1257 = vpop.permute.xlu0 %1256
        %1258 = vrot.lane.b32.xlu0 %v1172, 64
        %v1259 = vpop.permute.xlu0 %1258
        %1260 = vrot.lane.b32.xlu0 %v1175, 64
        %v1261 = vpop.permute.xlu0 %1260
        %1262 = vrot.lane.b32.xlu0 %v1178, 64
        %v1263 = vpop.permute.xlu0 %1262
        %1264 = vrot.lane.b32.xlu0 %v1181, 64
        %v1265 = vpop.permute.xlu0 %1264
        %1266 = vrot.lane.b32.xlu0 %v1184, 64
        %v1267 = vpop.permute.xlu0 %1266
        %1268 = vrot.lane.b32.xlu0 %v1187, 64
        %v1269 = vpop.permute.xlu0 %1268
        %1270 = vrot.lane.b32.xlu0 %v1190, 64
        %v1271 = vpop.permute.xlu0 %1270
        %1272 = vrot.lane.b32.xlu0 %v1193, 64
        %v1273 = vpop.permute.xlu0 %1272
        %vm1314 = vcmask 257024
        %1315 = vst.msk [vmem:[#allocation2 + $0x10] sm:$0xf] %vm1314, %v1195
        %1316 = vst.msk [vmem:[#allocation2 + $0x18] sm:$0xf] %vm1314, %v1197
        %1317 = vst.msk [vmem:[#allocation2 + $0x20] sm:$0xf] %vm1314, %v1199
        %1318 = vst.msk [vmem:[#allocation2 + $0x28] sm:$0xf] %vm1314, %v1201
        %1319 = vst.msk [vmem:[#allocation2 + $0x30] sm:$0xf] %vm1314, %v1203
        %1320 = vst.msk [vmem:[#allocation2 + $0x38] sm:$0xf] %vm1314, %v1205
        %1321 = vst.msk [vmem:[#allocation2 + $0x40] sm:$0xf] %vm1314, %v1207
        %1322 = vst.msk [vmem:[#allocation2 + $0x48] sm:$0xf] %vm1314, %v1209
        %1323 = vst.msk [vmem:[#allocation2 + $0x50] sm:$0xf] %vm1314, %v1211
        %1324 = vst.msk [vmem:[#allocation2 + $0x58] sm:$0xf] %vm1314, %v1213
        %1325 = vst.msk [vmem:[#allocation2 + $0x60] sm:$0xf] %vm1314, %v1215
        %1326 = vst.msk [vmem:[#allocation2 + $0x68] sm:$0xf] %vm1314, %v1217
        %1327 = vst.msk [vmem:[#allocation2 + $0x70] sm:$0xf] %vm1314, %v1219
        %1328 = vst.msk [vmem:[#allocation2 + $0x78] sm:$0xf] %vm1314, %v1221
        %1329 = vst.msk [vmem:[#allocation2 + $0x80] sm:$0xf] %vm1314, %v1223
        %1330 = vst.msk [vmem:[#allocation2 + $0x88] sm:$0xf] %vm1314, %v1225
        %1331 = vst.msk [vmem:[#allocation2 + $0x90] sm:$0xf] %vm1314, %v1227
        %1332 = vst.msk [vmem:[#allocation2 + $0x98] sm:$0xf] %vm1314, %v1229
        %1333 = vst.msk [vmem:[#allocation2 + $0xa0] sm:$0xf] %vm1314, %v1231
        %1334 = vst.msk [vmem:[#allocation2 + $0xa8] sm:$0xf] %vm1314, %v1233
        %1335 = vst.msk [vmem:[#allocation2 + $0xb0] sm:$0xf] %vm1314, %v1235
        %1336 = vst.msk [vmem:[#allocation2 + $0xb8] sm:$0xf] %vm1314, %v1237
        %1337 = vst.msk [vmem:[#allocation2 + $0xc0] sm:$0xf] %vm1314, %v1239
        %1338 = vst.msk [vmem:[#allocation2 + $0xc8] sm:$0xf] %vm1314, %v1241
        %1339 = vst.msk [vmem:[#allocation2 + $0xd0] sm:$0xf] %vm1314, %v1243
        %1340 = vst.msk [vmem:[#allocation2 + $0xd8] sm:$0xf] %vm1314, %v1245
        %1341 = vst.msk [vmem:[#allocation2 + $0xe0] sm:$0xf] %vm1314, %v1247
        %1342 = vst.msk [vmem:[#allocation2 + $0xe8] sm:$0xf] %vm1314, %v1249
        %1343 = vst.msk [vmem:[#allocation2 + $0xf0] sm:$0xf] %vm1314, %v1251
        %1344 = vst.msk [vmem:[#allocation2 + $0xf8] sm:$0xf] %vm1314, %v1253
        %1345 = vst.msk [vmem:[#allocation2 + $0x100] sm:$0xf] %vm1314, %v1255
        %1346 = vst.msk [vmem:[#allocation2 + $0x108] sm:$0xf] %vm1314, %v1257
        %1347 = vst.msk [vmem:[#allocation2 + $0x110] sm:$0xf] %vm1314, %v1259
        %1348 = vst.msk [vmem:[#allocation2 + $0x118] sm:$0xf] %vm1314, %v1261
        %1349 = vst.msk [vmem:[#allocation2 + $0x120] sm:$0xf] %vm1314, %v1263
        %1350 = vst.msk [vmem:[#allocation2 + $0x128] sm:$0xf] %vm1314, %v1265
        %1351 = vst.msk [vmem:[#allocation2 + $0x130] sm:$0xf] %vm1314, %v1267
        %1352 = vst.msk [vmem:[#allocation2 + $0x138] sm:$0xf] %vm1314, %v1269
        %1353 = vst.msk [vmem:[#allocation2 + $0x140] sm:$0xf] %vm1314, %v1271
        %1354 = vst.msk [vmem:[#allocation2 + $0x148] sm:$0xf] %vm1314, %v1273
        %v1355 = vld [vmem:[#allocation2 + $0x8] sm:$0x8]
        %v1356 = vld [vmem:[#allocation2 + $0x10] sm:$0xf]
        %v1357 = vld [vmem:[#allocation2 + $0x18] sm:$0xf]
        %v1358 = vld [vmem:[#allocation2 + $0x20] sm:$0xf]
        %v1359 = vld [vmem:[#allocation2 + $0x28] sm:$0xf]
        %v1360 = vld [vmem:[#allocation2 + $0x30] sm:$0xf]
        %v1361 = vld [vmem:[#allocation2 + $0x38] sm:$0xf]
        %v1362 = vld [vmem:[#allocation2 + $0x40] sm:$0xf]
        %v1363 = vld [vmem:[#allocation2 + $0x48] sm:$0xf]
        %v1364 = vld [vmem:[#allocation2 + $0x50] sm:$0xf]
        %v1365 = vld [vmem:[#allocation2 + $0x58] sm:$0xf]
        %v1366 = vld [vmem:[#allocation2 + $0x60] sm:$0xf]
        %v1367 = vld [vmem:[#allocation2 + $0x68] sm:$0xf]
        %v1368 = vld [vmem:[#allocation2 + $0x70] sm:$0xf]
        %v1369 = vld [vmem:[#allocation2 + $0x78] sm:$0xf]
        %v1370 = vld [vmem:[#allocation2 + $0x80] sm:$0xf]
        %v1371 = vld [vmem:[#allocation2 + $0x88] sm:$0xf]
        %v1372 = vld [vmem:[#allocation2 + $0x90] sm:$0xf]
        %v1373 = vld [vmem:[#allocation2 + $0x98] sm:$0xf]
        %v1374 = vld [vmem:[#allocation2 + $0xa0] sm:$0xf]
        %v1375 = vld [vmem:[#allocation2 + $0xa8] sm:$0xf]
        %v1376 = vld [vmem:[#allocation2 + $0xb0] sm:$0xf]
        %v1377 = vld [vmem:[#allocation2 + $0xb8] sm:$0xf]
        %v1378 = vld [vmem:[#allocation2 + $0xc0] sm:$0xf]
        %v1379 = vld [vmem:[#allocation2 + $0xc8] sm:$0xf]
        %v1380 = vld [vmem:[#allocation2 + $0xd0] sm:$0xf]
        %v1381 = vld [vmem:[#allocation2 + $0xd8] sm:$0xf]
        %v1382 = vld [vmem:[#allocation2 + $0xe0] sm:$0xf]
        %v1383 = vld [vmem:[#allocation2 + $0xe8] sm:$0xf]
        %v1384 = vld [vmem:[#allocation2 + $0xf0] sm:$0xf]
        %v1385 = vld [vmem:[#allocation2 + $0xf8] sm:$0xf]
        %v1386 = vld [vmem:[#allocation2 + $0x100] sm:$0xf]
        %v1387 = vld [vmem:[#allocation2 + $0x108] sm:$0xf]
        %v1388 = vld [vmem:[#allocation2 + $0x110] sm:$0xf]
        %v1389 = vld [vmem:[#allocation2 + $0x118] sm:$0xf]
        %v1390 = vld [vmem:[#allocation2 + $0x120] sm:$0xf]
        %v1391 = vld [vmem:[#allocation2 + $0x128] sm:$0xf]
        %v1392 = vld [vmem:[#allocation2 + $0x130] sm:$0xf]
        %v1393 = vld [vmem:[#allocation2 + $0x138] sm:$0xf]
        %v1394 = vld [vmem:[#allocation2 + $0x140] sm:$0xf]
        %v1395 = vld [vmem:[#allocation2 + $0x148] sm:$0xf]
        %v1396 = vld [vmem:[%s7 + $0x10] sm:$0xf]
        %v1397 = vld [vmem:[%s7 + $0x18] sm:$0xf]
        %v1398 = vld [vmem:[%s7 + $0x20] sm:$0xf]
        %v1399 = vld [vmem:[%s7 + $0x28] sm:$0xf]
        %v1400 = vld [vmem:[%s7 + $0x30] sm:$0xf]
        %v1401 = vld [vmem:[%s7 + $0x38] sm:$0xf]
        %v1402 = vld [vmem:[%s7 + $0x40] sm:$0xf]
        %v1403 = vld [vmem:[%s7 + $0x48] sm:$0xf]
        %v1404 = vld [vmem:[%s7 + $0x50] sm:$0xf]
        %v1405 = vld [vmem:[%s7 + $0x58] sm:$0xf]
        %v1406 = vld [vmem:[%s7 + $0x60] sm:$0xf]
        %v1407 = vld [vmem:[%s7 + $0x68] sm:$0xf]
        %v1408 = vld [vmem:[%s7 + $0x70] sm:$0xf]
        %v1409 = vld [vmem:[%s7 + $0x78] sm:$0xf]
        %v1410 = vld [vmem:[%s7 + $0x80] sm:$0xf]
        %v1411 = vld [vmem:[%s7 + $0x88] sm:$0xf]
        %v1412 = vld [vmem:[%s7 + $0x90] sm:$0xf]
        %v1413 = vld [vmem:[%s7 + $0x98] sm:$0xf]
        %v1414 = vld [vmem:[%s7 + $0xa0] sm:$0xf]
        %v1415 = vld [vmem:[%s7 + $0xa8] sm:$0xf]
        %v1416 = vld [vmem:[%s7 + $0xb0] sm:$0xf]
        %v1417 = vld [vmem:[%s7 + $0xb8] sm:$0xf]
        %v1418 = vld [vmem:[%s7 + $0xc0] sm:$0xf]
        %v1419 = vld [vmem:[%s7 + $0xc8] sm:$0xf]
        %v1420 = vld [vmem:[%s7 + $0xd0] sm:$0xf]
        %v1421 = vld [vmem:[%s7 + $0xd8] sm:$0xf]
        %v1422 = vld [vmem:[%s7 + $0xe0] sm:$0xf]
        %v1423 = vld [vmem:[%s7 + $0xe8] sm:$0xf]
        %v1424 = vld [vmem:[%s7 + $0xf0] sm:$0xf]
        %v1425 = vld [vmem:[%s7 + $0xf8] sm:$0xf]
        %v1426 = vld [vmem:[%s7 + $0x100] sm:$0xf]
        %v1427 = vld [vmem:[%s7 + $0x108] sm:$0xf]
        %v1428 = vld [vmem:[%s7 + $0x110] sm:$0xf]
        %v1429 = vld [vmem:[%s7 + $0x118] sm:$0xf]
        %v1430 = vld [vmem:[%s7 + $0x120] sm:$0xf]
        %v1431 = vld [vmem:[%s7 + $0x128] sm:$0xf]
        %v1432 = vld [vmem:[%s7 + $0x130] sm:$0xf]
        %v1433 = vld [vmem:[%s7 + $0x138] sm:$0xf]
        %v1434 = vld [vmem:[%s7 + $0x140] sm:$0xf]
        %v1435 = vld [vmem:[%s7 + $0x148] sm:$0xf]
        %v1436 = vunpack.c.l.bf16 %v1355
        %v1437 = vunpack.c.l.bf16 %v1356
        %v1438 = vunpack.c.l.bf16 %v1357
        %v1439 = vunpack.c.l.bf16 %v1358
        %v1440 = vunpack.c.l.bf16 %v1359
        %v1441 = vunpack.c.l.bf16 %v1360
        %v1442 = vunpack.c.l.bf16 %v1361
        %v1443 = vunpack.c.l.bf16 %v1362
        %v1444 = vunpack.c.l.bf16 %v1363
        %v1445 = vunpack.c.l.bf16 %v1364
        %v1446 = vunpack.c.l.bf16 %v1365
        %v1447 = vunpack.c.l.bf16 %v1366
        %v1448 = vunpack.c.l.bf16 %v1367
        %v1449 = vunpack.c.l.bf16 %v1368
        %v1450 = vunpack.c.l.bf16 %v1369
        %v1451 = vunpack.c.l.bf16 %v1370
        %v1452 = vunpack.c.l.bf16 %v1371
        %v1453 = vunpack.c.l.bf16 %v1372
        %v1454 = vunpack.c.l.bf16 %v1373
        %v1455 = vunpack.c.l.bf16 %v1374
        %v1456 = vunpack.c.l.bf16 %v1375
        %v1457 = vunpack.c.l.bf16 %v1376
        %v1458 = vunpack.c.l.bf16 %v1377
        %v1459 = vunpack.c.l.bf16 %v1378
        %v1460 = vunpack.c.l.bf16 %v1379
        %v1461 = vunpack.c.l.bf16 %v1380
        %v1462 = vunpack.c.l.bf16 %v1381
        %v1463 = vunpack.c.l.bf16 %v1382
        %v1464 = vunpack.c.l.bf16 %v1383
        %v1465 = vunpack.c.l.bf16 %v1384
        %v1466 = vunpack.c.l.bf16 %v1385
        %v1467 = vunpack.c.l.bf16 %v1386
        %v1468 = vunpack.c.l.bf16 %v1387
        %v1469 = vunpack.c.l.bf16 %v1388
        %v1470 = vunpack.c.l.bf16 %v1389
        %v1471 = vunpack.c.l.bf16 %v1390
        %v1472 = vunpack.c.l.bf16 %v1391
        %v1473 = vunpack.c.l.bf16 %v1392
        %v1474 = vunpack.c.l.bf16 %v1393
        %v1475 = vunpack.c.l.bf16 %v1394
        %v1476 = vunpack.c.l.bf16 %v1395
        %v1477 = vunpack.c.l.bf16 %v1396
        %v1478 = vunpack.c.l.bf16 %v1397
        %v1479 = vunpack.c.l.bf16 %v1398
        %v1480 = vunpack.c.l.bf16 %v1399
        %v1481 = vunpack.c.l.bf16 %v1400
        %v1482 = vunpack.c.l.bf16 %v1401
        %v1483 = vunpack.c.l.bf16 %v1402
        %v1484 = vunpack.c.l.bf16 %v1403
        %v1485 = vunpack.c.l.bf16 %v1404
        %v1486 = vunpack.c.l.bf16 %v1405
        %v1487 = vunpack.c.l.bf16 %v1406
        %v1488 = vunpack.c.l.bf16 %v1407
        %v1489 = vunpack.c.l.bf16 %v1408
        %v1490 = vunpack.c.l.bf16 %v1409
        %v1491 = vunpack.c.l.bf16 %v1410
        %v1492 = vunpack.c.l.bf16 %v1411
        %v1493 = vunpack.c.l.bf16 %v1412
        %v1494 = vunpack.c.l.bf16 %v1413
        %v1495 = vunpack.c.l.bf16 %v1414
        %v1496 = vunpack.c.l.bf16 %v1415
        %v1497 = vunpack.c.l.bf16 %v1416
        %v1498 = vunpack.c.l.bf16 %v1417
        %v1499 = vunpack.c.l.bf16 %v1418
        %v1500 = vunpack.c.l.bf16 %v1419
        %v1501 = vunpack.c.l.bf16 %v1420
        %v1502 = vunpack.c.l.bf16 %v1421
        %v1503 = vunpack.c.l.bf16 %v1422
        %v1504 = vunpack.c.l.bf16 %v1423
        %v1505 = vunpack.c.l.bf16 %v1424
        %v1506 = vunpack.c.l.bf16 %v1425
        %v1507 = vunpack.c.l.bf16 %v1426
        %v1508 = vunpack.c.l.bf16 %v1427
        %v1509 = vunpack.c.l.bf16 %v1428
        %v1510 = vunpack.c.l.bf16 %v1429
        %v1511 = vunpack.c.l.bf16 %v1430
        %v1512 = vunpack.c.l.bf16 %v1431
        %v1513 = vunpack.c.l.bf16 %v1432
        %v1514 = vunpack.c.l.bf16 %v1433
        %v1515 = vunpack.c.l.bf16 %v1434
        %v1516 = vunpack.c.l.bf16 %v1435
        %vm1557 = vcmask 1046528
        %v1558 = vrot.slane %v1477, 1
        %v1559 = vrot.slane %v1478, 1
        %v1560 = vsel %vm1557, %v1558, %v1559
        %v1561 = vrot.slane %v1479, 1
        %v1562 = vsel %vm1557, %v1559, %v1561
        %v1563 = vrot.slane %v1480, 1
        %v1564 = vsel %vm1557, %v1561, %v1563
        %v1565 = vrot.slane %v1481, 1
        %v1566 = vsel %vm1557, %v1563, %v1565
        %v1567 = vrot.slane %v1482, 1
        %v1568 = vsel %vm1557, %v1565, %v1567
        %v1569 = vrot.slane %v1483, 1
        %v1570 = vsel %vm1557, %v1567, %v1569
        %v1571 = vrot.slane %v1484, 1
        %v1572 = vsel %vm1557, %v1569, %v1571
        %v1573 = vrot.slane %v1485, 1
        %v1574 = vsel %vm1557, %v1571, %v1573
        %v1575 = vrot.slane %v1486, 1
        %v1576 = vsel %vm1557, %v1573, %v1575
        %v1577 = vrot.slane %v1487, 1
        %v1578 = vsel %vm1557, %v1575, %v1577
        %v1579 = vrot.slane %v1488, 1
        %v1580 = vsel %vm1557, %v1577, %v1579
        %v1581 = vrot.slane %v1489, 1
        %v1582 = vsel %vm1557, %v1579, %v1581
        %v1583 = vrot.slane %v1490, 1
        %v1584 = vsel %vm1557, %v1581, %v1583
        %v1585 = vrot.slane %v1491, 1
        %v1586 = vsel %vm1557, %v1583, %v1585
        %v1587 = vrot.slane %v1492, 1
        %v1588 = vsel %vm1557, %v1585, %v1587
        %v1589 = vrot.slane %v1493, 1
        %v1590 = vsel %vm1557, %v1587, %v1589
        %v1591 = vrot.slane %v1494, 1
        %v1592 = vsel %vm1557, %v1589, %v1591
        %v1593 = vrot.slane %v1495, 1
        %v1594 = vsel %vm1557, %v1591, %v1593
        %v1595 = vrot.slane %v1496, 1
        %v1596 = vsel %vm1557, %v1593, %v1595
        %v1597 = vrot.slane %v1497, 1
        %v1598 = vsel %vm1557, %v1595, %v1597
        %v1599 = vrot.slane %v1498, 1
        %v1600 = vsel %vm1557, %v1597, %v1599
        %v1601 = vrot.slane %v1499, 1
        %v1602 = vsel %vm1557, %v1599, %v1601
        %v1603 = vrot.slane %v1500, 1
        %v1604 = vsel %vm1557, %v1601, %v1603
        %v1605 = vrot.slane %v1501, 1
        %v1606 = vsel %vm1557, %v1603, %v1605
        %v1607 = vrot.slane %v1502, 1
        %v1608 = vsel %vm1557, %v1605, %v1607
        %v1609 = vrot.slane %v1503, 1
        %v1610 = vsel %vm1557, %v1607, %v1609
        %v1611 = vrot.slane %v1504, 1
        %v1612 = vsel %vm1557, %v1609, %v1611
        %v1613 = vrot.slane %v1505, 1
        %v1614 = vsel %vm1557, %v1611, %v1613
        %v1615 = vrot.slane %v1506, 1
        %v1616 = vsel %vm1557, %v1613, %v1615
        %v1617 = vrot.slane %v1507, 1
        %v1618 = vsel %vm1557, %v1615, %v1617
        %v1619 = vrot.slane %v1508, 1
        %v1620 = vsel %vm1557, %v1617, %v1619
        %v1621 = vrot.slane %v1509, 1
        %v1622 = vsel %vm1557, %v1619, %v1621
        %v1623 = vrot.slane %v1510, 1
        %v1624 = vsel %vm1557, %v1621, %v1623
        %v1625 = vrot.slane %v1511, 1
        %v1626 = vsel %vm1557, %v1623, %v1625
        %v1627 = vrot.slane %v1512, 1
        %v1628 = vsel %vm1557, %v1625, %v1627
        %v1629 = vrot.slane %v1513, 1
        %v1630 = vsel %vm1557, %v1627, %v1629
        %v1631 = vrot.slane %v1514, 1
        %v1632 = vsel %vm1557, %v1629, %v1631
        %v1633 = vrot.slane %v1515, 1
        %v1634 = vsel %vm1557, %v1631, %v1633
        %v1635 = vrot.slane %v1516, 1
        %v1636 = vsel %vm1557, %v1633, %v1635
        %1637 = vrot.lane.b32.xlu0 %v1558, 32
        %v1638 = vpop.permute.xlu0 %1637
        %1639 = vrot.lane.b32.xlu0 %v1560, 32
        %v1640 = vpop.permute.xlu0 %1639
        %1641 = vrot.lane.b32.xlu0 %v1562, 32
        %v1642 = vpop.permute.xlu0 %1641
        %1643 = vrot.lane.b32.xlu0 %v1564, 32
        %v1644 = vpop.permute.xlu0 %1643
        %1645 = vrot.lane.b32.xlu0 %v1566, 32
        %v1646 = vpop.permute.xlu0 %1645
        %1647 = vrot.lane.b32.xlu0 %v1568, 32
        %v1648 = vpop.permute.xlu0 %1647
        %1649 = vrot.lane.b32.xlu0 %v1570, 32
        %v1650 = vpop.permute.xlu0 %1649
        %1651 = vrot.lane.b32.xlu0 %v1572, 32
        %v1652 = vpop.permute.xlu0 %1651
        %1653 = vrot.lane.b32.xlu0 %v1574, 32
        %v1654 = vpop.permute.xlu0 %1653
        %1655 = vrot.lane.b32.xlu0 %v1576, 32
        %v1656 = vpop.permute.xlu0 %1655
        %1657 = vrot.lane.b32.xlu0 %v1578, 32
        %v1658 = vpop.permute.xlu0 %1657
        %1659 = vrot.lane.b32.xlu0 %v1580, 32
        %v1660 = vpop.permute.xlu0 %1659
        %1661 = vrot.lane.b32.xlu0 %v1582, 32
        %v1662 = vpop.permute.xlu0 %1661
        %1663 = vrot.lane.b32.xlu0 %v1584, 32
        %v1664 = vpop.permute.xlu0 %1663
        %1665 = vrot.lane.b32.xlu0 %v1586, 32
        %v1666 = vpop.permute.xlu0 %1665
        %1667 = vrot.lane.b32.xlu0 %v1588, 32
        %v1668 = vpop.permute.xlu0 %1667
        %1669 = vrot.lane.b32.xlu0 %v1590, 32
        %v1670 = vpop.permute.xlu0 %1669
        %1671 = vrot.lane.b32.xlu0 %v1592, 32
        %v1672 = vpop.permute.xlu0 %1671
        %1673 = vrot.lane.b32.xlu0 %v1594, 32
        %v1674 = vpop.permute.xlu0 %1673
        %1675 = vrot.lane.b32.xlu0 %v1596, 32
        %v1676 = vpop.permute.xlu0 %1675
        %1677 = vrot.lane.b32.xlu0 %v1598, 32
        %v1678 = vpop.permute.xlu0 %1677
        %1679 = vrot.lane.b32.xlu0 %v1600, 32
        %v1680 = vpop.permute.xlu0 %1679
        %1681 = vrot.lane.b32.xlu0 %v1602, 32
        %v1682 = vpop.permute.xlu0 %1681
        %1683 = vrot.lane.b32.xlu0 %v1604, 32
        %v1684 = vpop.permute.xlu0 %1683
        %1685 = vrot.lane.b32.xlu0 %v1606, 32
        %v1686 = vpop.permute.xlu0 %1685
        %1687 = vrot.lane.b32.xlu0 %v1608, 32
        %v1688 = vpop.permute.xlu0 %1687
        %1689 = vrot.lane.b32.xlu0 %v1610, 32
        %v1690 = vpop.permute.xlu0 %1689
        %1691 = vrot.lane.b32.xlu0 %v1612, 32
        %v1692 = vpop.permute.xlu0 %1691
        %1693 = vrot.lane.b32.xlu0 %v1614, 32
        %v1694 = vpop.permute.xlu0 %1693
        %1695 = vrot.lane.b32.xlu0 %v1616, 32
        %v1696 = vpop.permute.xlu0 %1695
        %1697 = vrot.lane.b32.xlu0 %v1618, 32
        %v1698 = vpop.permute.xlu0 %1697
        %1699 = vrot.lane.b32.xlu0 %v1620, 32
        %v1700 = vpop.permute.xlu0 %1699
        %1701 = vrot.lane.b32.xlu0 %v1622, 32
        %v1702 = vpop.permute.xlu0 %1701
        %1703 = vrot.lane.b32.xlu0 %v1624, 32
        %v1704 = vpop.permute.xlu0 %1703
        %1705 = vrot.lane.b32.xlu0 %v1626, 32
        %v1706 = vpop.permute.xlu0 %1705
        %1707 = vrot.lane.b32.xlu0 %v1628, 32
        %v1708 = vpop.permute.xlu0 %1707
        %1709 = vrot.lane.b32.xlu0 %v1630, 32
        %v1710 = vpop.permute.xlu0 %1709
        %1711 = vrot.lane.b32.xlu0 %v1632, 32
        %v1712 = vpop.permute.xlu0 %1711
        %1713 = vrot.lane.b32.xlu0 %v1634, 32
        %v1714 = vpop.permute.xlu0 %1713
        %1715 = vrot.lane.b32.xlu0 %v1636, 32
        %v1716 = vpop.permute.xlu0 %1715
        %1717 = vrot.lane.b32.xlu0 %v1635, 32
        %v1718 = vpop.permute.xlu0 %1717
        %v1760 = vmul.f32 %v1436, %v1638
        %v1761 = vmul.f32 %v1437, %v1640
        %v1762 = vmul.f32 %v1438, %v1642
        %v1763 = vmul.f32 %v1439, %v1644
        %v1764 = vmul.f32 %v1440, %v1646
        %v1765 = vmul.f32 %v1441, %v1648
        %v1766 = vmul.f32 %v1442, %v1650
        %v1767 = vmul.f32 %v1443, %v1652
        %v1768 = vmul.f32 %v1444, %v1654
        %v1769 = vmul.f32 %v1445, %v1656
        %v1770 = vmul.f32 %v1446, %v1658
        %v1771 = vmul.f32 %v1447, %v1660
        %v1772 = vmul.f32 %v1448, %v1662
        %v1773 = vmul.f32 %v1449, %v1664
        %v1774 = vmul.f32 %v1450, %v1666
        %v1775 = vmul.f32 %v1451, %v1668
        %v1776 = vmul.f32 %v1452, %v1670
        %v1777 = vmul.f32 %v1453, %v1672
        %v1778 = vmul.f32 %v1454, %v1674
        %v1779 = vmul.f32 %v1455, %v1676
        %v1780 = vmul.f32 %v1456, %v1678
        %v1781 = vmul.f32 %v1457, %v1680
        %v1782 = vmul.f32 %v1458, %v1682
        %v1783 = vmul.f32 %v1459, %v1684
        %v1784 = vmul.f32 %v1460, %v1686
        %v1785 = vmul.f32 %v1461, %v1688
        %v1786 = vmul.f32 %v1462, %v1690
        %v1787 = vmul.f32 %v1463, %v1692
        %v1788 = vmul.f32 %v1464, %v1694
        %v1789 = vmul.f32 %v1465, %v1696
        %v1790 = vmul.f32 %v1466, %v1698
        %v1791 = vmul.f32 %v1467, %v1700
        %v1792 = vmul.f32 %v1468, %v1702
        %v1793 = vmul.f32 %v1469, %v1704
        %v1794 = vmul.f32 %v1470, %v1706
        %v1795 = vmul.f32 %v1471, %v1708
        %v1796 = vmul.f32 %v1472, %v1710
        %v1797 = vmul.f32 %v1473, %v1712
        %v1798 = vmul.f32 %v1474, %v1714
        %v1799 = vmul.f32 %v1475, %v1716
        %v1800 = vmul.f32 %v1476, %v1718
        %v1801 = vpack.c.bf16 %v1760, %v1760
        %v1802 = vpack.c.bf16 %v1761, %v1761
        %v1803 = vpack.c.bf16 %v1762, %v1762
        %v1804 = vpack.c.bf16 %v1763, %v1763
        %v1805 = vpack.c.bf16 %v1764, %v1764
        %v1806 = vpack.c.bf16 %v1765, %v1765
        %v1807 = vpack.c.bf16 %v1766, %v1766
        %v1808 = vpack.c.bf16 %v1767, %v1767
        %v1809 = vpack.c.bf16 %v1768, %v1768
        %v1810 = vpack.c.bf16 %v1769, %v1769
        %v1811 = vpack.c.bf16 %v1770, %v1770
        %v1812 = vpack.c.bf16 %v1771, %v1771
        %v1813 = vpack.c.bf16 %v1772, %v1772
        %v1814 = vpack.c.bf16 %v1773, %v1773
        %v1815 = vpack.c.bf16 %v1774, %v1774
        %v1816 = vpack.c.bf16 %v1775, %v1775
        %v1817 = vpack.c.bf16 %v1776, %v1776
        %v1818 = vpack.c.bf16 %v1777, %v1777
        %v1819 = vpack.c.bf16 %v1778, %v1778
        %v1820 = vpack.c.bf16 %v1779, %v1779
        %v1821 = vpack.c.bf16 %v1780, %v1780
        %v1822 = vpack.c.bf16 %v1781, %v1781
        %v1823 = vpack.c.bf16 %v1782, %v1782
        %v1824 = vpack.c.bf16 %v1783, %v1783
        %v1825 = vpack.c.bf16 %v1784, %v1784
        %v1826 = vpack.c.bf16 %v1785, %v1785
        %v1827 = vpack.c.bf16 %v1786, %v1786
        %v1828 = vpack.c.bf16 %v1787, %v1787
        %v1829 = vpack.c.bf16 %v1788, %v1788
        %v1830 = vpack.c.bf16 %v1789, %v1789
        %v1831 = vpack.c.bf16 %v1790, %v1790
        %v1832 = vpack.c.bf16 %v1791, %v1791
        %v1833 = vpack.c.bf16 %v1792, %v1792
        %v1834 = vpack.c.bf16 %v1793, %v1793
        %v1835 = vpack.c.bf16 %v1794, %v1794
        %v1836 = vpack.c.bf16 %v1795, %v1795
        %v1837 = vpack.c.bf16 %v1796, %v1796
        %v1838 = vpack.c.bf16 %v1797, %v1797
        %v1839 = vpack.c.bf16 %v1798, %v1798
        %v1840 = vpack.c.bf16 %v1799, %v1799
        %v1841 = vpack.c.bf16 %v1800, %v1800
        %vm1842 = vsmask.f32 256
        %vm1843 = vsmask.f32 4368
        %vm1844 = vmor %vm1842, %vm1843
        %v1846 = vshrl.u32 %v1801, 16
        %v1848 = vrot.slane %v1846, 7
        %v1849 = vrot.slane %v1848, 4
        %v1851 = vshrl.u32 %v1802, 16
        %v1853 = vrot.slane %v1851, 7
        %v1854 = vshll.u32 %v1802, 16
        %v1856 = vor.u32 %v1853, %v1854
        %v1857 = vsel %vm1844, %v1849, %v1856
        %v1858 = vrot.slane %v1853, 4
        %v1860 = vshrl.u32 %v1803, 16
        %v1862 = vrot.slane %v1860, 7
        %v1863 = vshll.u32 %v1803, 16
        %v1865 = vor.u32 %v1862, %v1863
        %v1866 = vsel %vm1844, %v1858, %v1865
        %v1867 = vrot.slane %v1862, 4
        %v1869 = vshrl.u32 %v1804, 16
        %v1871 = vrot.slane %v1869, 7
        %v1872 = vshll.u32 %v1804, 16
        %v1874 = vor.u32 %v1871, %v1872
        %v1875 = vsel %vm1844, %v1867, %v1874
        %v1876 = vrot.slane %v1871, 4
        %v1878 = vshrl.u32 %v1805, 16
        %v1880 = vrot.slane %v1878, 7
        %v1881 = vshll.u32 %v1805, 16
        %v1883 = vor.u32 %v1880, %v1881
        %v1884 = vsel %vm1844, %v1876, %v1883
        %v1885 = vrot.slane %v1880, 4
        %v1887 = vshrl.u32 %v1806, 16
        %v1889 = vrot.slane %v1887, 7
        %v1890 = vshll.u32 %v1806, 16
        %v1892 = vor.u32 %v1889, %v1890
        %v1893 = vsel %vm1844, %v1885, %v1892
        %v1894 = vrot.slane %v1889, 4
        %v1896 = vshrl.u32 %v1807, 16
        %v1898 = vrot.slane %v1896, 7
        %v1899 = vshll.u32 %v1807, 16
        %v1901 = vor.u32 %v1898, %v1899
        %v1902 = vsel %vm1844, %v1894, %v1901
        %v1903 = vrot.slane %v1898, 4
        %v1905 = vshrl.u32 %v1808, 16
        %v1907 = vrot.slane %v1905, 7
        %v1908 = vshll.u32 %v1808, 16
        %v1910 = vor.u32 %v1907, %v1908
        %v1911 = vsel %vm1844, %v1903, %v1910
        %v1912 = vrot.slane %v1907, 4
        %v1914 = vshrl.u32 %v1809, 16
        %v1916 = vrot.slane %v1914, 7
        %v1917 = vshll.u32 %v1809, 16
        %v1919 = vor.u32 %v1916, %v1917
        %v1920 = vsel %vm1844, %v1912, %v1919
        %v1921 = vrot.slane %v1916, 4
        %v1923 = vshrl.u32 %v1810, 16
        %v1925 = vrot.slane %v1923, 7
        %v1926 = vshll.u32 %v1810, 16
        %v1928 = vor.u32 %v1925, %v1926
        %v1929 = vsel %vm1844, %v1921, %v1928
        %v1930 = vrot.slane %v1925, 4
        %v1932 = vshrl.u32 %v1811, 16
        %v1934 = vrot.slane %v1932, 7
        %v1935 = vshll.u32 %v1811, 16
        %v1937 = vor.u32 %v1934, %v1935
        %v1938 = vsel %vm1844, %v1930, %v1937
        %v1939 = vrot.slane %v1934, 4
        %v1941 = vshrl.u32 %v1812, 16
        %v1943 = vrot.slane %v1941, 7
        %v1944 = vshll.u32 %v1812, 16
        %v1946 = vor.u32 %v1943, %v1944
        %v1947 = vsel %vm1844, %v1939, %v1946
        %v1948 = vrot.slane %v1943, 4
        %v1950 = vshrl.u32 %v1813, 16
        %v1952 = vrot.slane %v1950, 7
        %v1953 = vshll.u32 %v1813, 16
        %v1955 = vor.u32 %v1952, %v1953
        %v1956 = vsel %vm1844, %v1948, %v1955
        %v1957 = vrot.slane %v1952, 4
        %v1959 = vshrl.u32 %v1814, 16
        %v1961 = vrot.slane %v1959, 7
        %v1962 = vshll.u32 %v1814, 16
        %v1964 = vor.u32 %v1961, %v1962
        %v1965 = vsel %vm1844, %v1957, %v1964
        %v1966 = vrot.slane %v1961, 4
        %v1968 = vshrl.u32 %v1815, 16
        %v1970 = vrot.slane %v1968, 7
        %v1971 = vshll.u32 %v1815, 16
        %v1973 = vor.u32 %v1970, %v1971
        %v1974 = vsel %vm1844, %v1966, %v1973
        %v1975 = vrot.slane %v1970, 4
        %v1977 = vshrl.u32 %v1816, 16
        %v1979 = vrot.slane %v1977, 7
        %v1980 = vshll.u32 %v1816, 16
        %v1982 = vor.u32 %v1979, %v1980
        %v1983 = vsel %vm1844, %v1975, %v1982
        %v1984 = vrot.slane %v1979, 4
        %v1986 = vshrl.u32 %v1817, 16
        %v1988 = vrot.slane %v1986, 7
        %v1989 = vshll.u32 %v1817, 16
        %v1991 = vor.u32 %v1988, %v1989
        %v1992 = vsel %vm1844, %v1984, %v1991
        %v1993 = vrot.slane %v1988, 4
        %v1995 = vshrl.u32 %v1818, 16
        %v1997 = vrot.slane %v1995, 7
        %v1998 = vshll.u32 %v1818, 16
        %v2000 = vor.u32 %v1997, %v1998
        %v2001 = vsel %vm1844, %v1993, %v2000
        %v2002 = vrot.slane %v1997, 4
        %v2004 = vshrl.u32 %v1819, 16
        %v2006 = vrot.slane %v2004, 7
        %v2007 = vshll.u32 %v1819, 16
        %v2009 = vor.u32 %v2006, %v2007
        %v2010 = vsel %vm1844, %v2002, %v2009
        %v2011 = vrot.slane %v2006, 4
        %v2013 = vshrl.u32 %v1820, 16
        %v2015 = vrot.slane %v2013, 7
        %v2016 = vshll.u32 %v1820, 16
        %v2018 = vor.u32 %v2015, %v2016
        %v2019 = vsel %vm1844, %v2011, %v2018
        %v2020 = vrot.slane %v2015, 4
        %v2022 = vshrl.u32 %v1821, 16
        %v2024 = vrot.slane %v2022, 7
        %v2025 = vshll.u32 %v1821, 16
        %v2027 = vor.u32 %v2024, %v2025
        %v2028 = vsel %vm1844, %v2020, %v2027
        %v2029 = vrot.slane %v2024, 4
        %v2031 = vshrl.u32 %v1822, 16
        %v2033 = vrot.slane %v2031, 7
        %v2034 = vshll.u32 %v1822, 16
        %v2036 = vor.u32 %v2033, %v2034
        %v2037 = vsel %vm1844, %v2029, %v2036
        %v2038 = vrot.slane %v2033, 4
        %v2040 = vshrl.u32 %v1823, 16
        %v2042 = vrot.slane %v2040, 7
        %v2043 = vshll.u32 %v1823, 16
        %v2045 = vor.u32 %v2042, %v2043
        %v2046 = vsel %vm1844, %v2038, %v2045
        %v2047 = vrot.slane %v2042, 4
        %v2049 = vshrl.u32 %v1824, 16
        %v2051 = vrot.slane %v2049, 7
        %v2052 = vshll.u32 %v1824, 16
        %v2054 = vor.u32 %v2051, %v2052
        %v2055 = vsel %vm1844, %v2047, %v2054
        %v2056 = vrot.slane %v2051, 4
        %v2058 = vshrl.u32 %v1825, 16
        %v2060 = vrot.slane %v2058, 7
        %v2061 = vshll.u32 %v1825, 16
        %v2063 = vor.u32 %v2060, %v2061
        %v2064 = vsel %vm1844, %v2056, %v2063
        %v2065 = vrot.slane %v2060, 4
        %v2067 = vshrl.u32 %v1826, 16
        %v2069 = vrot.slane %v2067, 7
        %v2070 = vshll.u32 %v1826, 16
        %v2072 = vor.u32 %v2069, %v2070
        %v2073 = vsel %vm1844, %v2065, %v2072
        %v2074 = vrot.slane %v2069, 4
        %v2076 = vshrl.u32 %v1827, 16
        %v2078 = vrot.slane %v2076, 7
        %v2079 = vshll.u32 %v1827, 16
        %v2081 = vor.u32 %v2078, %v2079
        %v2082 = vsel %vm1844, %v2074, %v2081
        %v2083 = vrot.slane %v2078, 4
        %v2085 = vshrl.u32 %v1828, 16
        %v2087 = vrot.slane %v2085, 7
        %v2088 = vshll.u32 %v1828, 16
        %v2090 = vor.u32 %v2087, %v2088
        %v2091 = vsel %vm1844, %v2083, %v2090
        %v2092 = vrot.slane %v2087, 4
        %v2094 = vshrl.u32 %v1829, 16
        %v2096 = vrot.slane %v2094, 7
        %v2097 = vshll.u32 %v1829, 16
        %v2099 = vor.u32 %v2096, %v2097
        %v2100 = vsel %vm1844, %v2092, %v2099
        %v2101 = vrot.slane %v2096, 4
        %v2103 = vshrl.u32 %v1830, 16
        %v2105 = vrot.slane %v2103, 7
        %v2106 = vshll.u32 %v1830, 16
        %v2108 = vor.u32 %v2105, %v2106
        %v2109 = vsel %vm1844, %v2101, %v2108
        %v2110 = vrot.slane %v2105, 4
        %v2112 = vshrl.u32 %v1831, 16
        %v2114 = vrot.slane %v2112, 7
        %v2115 = vshll.u32 %v1831, 16
        %v2117 = vor.u32 %v2114, %v2115
        %v2118 = vsel %vm1844, %v2110, %v2117
        %v2119 = vrot.slane %v2114, 4
        %v2121 = vshrl.u32 %v1832, 16
        %v2123 = vrot.slane %v2121, 7
        %v2124 = vshll.u32 %v1832, 16
        %v2126 = vor.u32 %v2123, %v2124
        %v2127 = vsel %vm1844, %v2119, %v2126
        %v2128 = vrot.slane %v2123, 4
        %v2130 = vshrl.u32 %v1833, 16
        %v2132 = vrot.slane %v2130, 7
        %v2133 = vshll.u32 %v1833, 16
        %v2135 = vor.u32 %v2132, %v2133
        %v2136 = vsel %vm1844, %v2128, %v2135
        %v2137 = vrot.slane %v2132, 4
        %v2139 = vshrl.u32 %v1834, 16
        %v2141 = vrot.slane %v2139, 7
        %v2142 = vshll.u32 %v1834, 16
        %v2144 = vor.u32 %v2141, %v2142
        %v2145 = vsel %vm1844, %v2137, %v2144
        %v2146 = vrot.slane %v2141, 4
        %v2148 = vshrl.u32 %v1835, 16
        %v2150 = vrot.slane %v2148, 7
        %v2151 = vshll.u32 %v1835, 16
        %v2153 = vor.u32 %v2150, %v2151
        %v2154 = vsel %vm1844, %v2146, %v2153
        %v2155 = vrot.slane %v2150, 4
        %v2157 = vshrl.u32 %v1836, 16
        %v2159 = vrot.slane %v2157, 7
        %v2160 = vshll.u32 %v1836, 16
        %v2162 = vor.u32 %v2159, %v2160
        %v2163 = vsel %vm1844, %v2155, %v2162
        %v2164 = vrot.slane %v2159, 4
        %v2166 = vshrl.u32 %v1837, 16
        %v2168 = vrot.slane %v2166, 7
        %v2169 = vshll.u32 %v1837, 16
        %v2171 = vor.u32 %v2168, %v2169
        %v2172 = vsel %vm1844, %v2164, %v2171
        %v2173 = vrot.slane %v2168, 4
        %v2175 = vshrl.u32 %v1838, 16
        %v2177 = vrot.slane %v2175, 7
        %v2178 = vshll.u32 %v1838, 16
        %v2180 = vor.u32 %v2177, %v2178
        %v2181 = vsel %vm1844, %v2173, %v2180
        %v2182 = vrot.slane %v2177, 4
        %v2184 = vshrl.u32 %v1839, 16
        %v2186 = vrot.slane %v2184, 7
        %v2187 = vshll.u32 %v1839, 16
        %v2189 = vor.u32 %v2186, %v2187
        %v2190 = vsel %vm1844, %v2182, %v2189
        %v2191 = vrot.slane %v2186, 4
        %v2193 = vshrl.u32 %v1840, 16
        %v2195 = vrot.slane %v2193, 7
        %v2196 = vshll.u32 %v1840, 16
        %v2198 = vor.u32 %v2195, %v2196
        %v2199 = vsel %vm1844, %v2191, %v2198
        %v2200 = vrot.slane %v2195, 4
        %v2202 = vshrl.u32 %v1841, 16
        %v2204 = vrot.slane %v2202, 7
        %v2205 = vshll.u32 %v1841, 16
        %v2207 = vor.u32 %v2204, %v2205
        %v2208 = vsel %vm1844, %v2200, %v2207
        %2209 = vrot.lane.b32.xlu0 %v1857, 96
        %v2210 = vpop.permute.xlu0 %2209
        %2211 = vrot.lane.b32.xlu0 %v1866, 96
        %v2212 = vpop.permute.xlu0 %2211
        %2213 = vrot.lane.b32.xlu0 %v1875, 96
        %v2214 = vpop.permute.xlu0 %2213
        %2215 = vrot.lane.b32.xlu0 %v1884, 96
        %v2216 = vpop.permute.xlu0 %2215
        %2217 = vrot.lane.b32.xlu0 %v1893, 96
        %v2218 = vpop.permute.xlu0 %2217
        %2219 = vrot.lane.b32.xlu0 %v1902, 96
        %v2220 = vpop.permute.xlu0 %2219
        %2221 = vrot.lane.b32.xlu0 %v1911, 96
        %v2222 = vpop.permute.xlu0 %2221
        %2223 = vrot.lane.b32.xlu0 %v1920, 96
        %v2224 = vpop.permute.xlu0 %2223
        %2225 = vrot.lane.b32.xlu0 %v1929, 96
        %v2226 = vpop.permute.xlu0 %2225
        %2227 = vrot.lane.b32.xlu0 %v1938, 96
        %v2228 = vpop.permute.xlu0 %2227
        %2229 = vrot.lane.b32.xlu0 %v1947, 96
        %v2230 = vpop.permute.xlu0 %2229
        %2231 = vrot.lane.b32.xlu0 %v1956, 96
        %v2232 = vpop.permute.xlu0 %2231
        %2233 = vrot.lane.b32.xlu0 %v1965, 96
        %v2234 = vpop.permute.xlu0 %2233
        %2235 = vrot.lane.b32.xlu0 %v1974, 96
        %v2236 = vpop.permute.xlu0 %2235
        %2237 = vrot.lane.b32.xlu0 %v1983, 96
        %v2238 = vpop.permute.xlu0 %2237
        %2239 = vrot.lane.b32.xlu0 %v1992, 96
        %v2240 = vpop.permute.xlu0 %2239
        %2241 = vrot.lane.b32.xlu0 %v2001, 96
        %v2242 = vpop.permute.xlu0 %2241
        %2243 = vrot.lane.b32.xlu0 %v2010, 96
        %v2244 = vpop.permute.xlu0 %2243
        %2245 = vrot.lane.b32.xlu0 %v2019, 96
        %v2246 = vpop.permute.xlu0 %2245
        %2247 = vrot.lane.b32.xlu0 %v2028, 96
        %v2248 = vpop.permute.xlu0 %2247
        %2249 = vrot.lane.b32.xlu0 %v2037, 96
        %v2250 = vpop.permute.xlu0 %2249
        %2251 = vrot.lane.b32.xlu0 %v2046, 96
        %v2252 = vpop.permute.xlu0 %2251
        %2253 = vrot.lane.b32.xlu0 %v2055, 96
        %v2254 = vpop.permute.xlu0 %2253
        %2255 = vrot.lane.b32.xlu0 %v2064, 96
        %v2256 = vpop.permute.xlu0 %2255
        %2257 = vrot.lane.b32.xlu0 %v2073, 96
        %v2258 = vpop.permute.xlu0 %2257
        %2259 = vrot.lane.b32.xlu0 %v2082, 96
        %v2260 = vpop.permute.xlu0 %2259
        %2261 = vrot.lane.b32.xlu0 %v2091, 96
        %v2262 = vpop.permute.xlu0 %2261
        %2263 = vrot.lane.b32.xlu0 %v2100, 96
        %v2264 = vpop.permute.xlu0 %2263
        %2265 = vrot.lane.b32.xlu0 %v2109, 96
        %v2266 = vpop.permute.xlu0 %2265
        %2267 = vrot.lane.b32.xlu0 %v2118, 96
        %v2268 = vpop.permute.xlu0 %2267
        %2269 = vrot.lane.b32.xlu0 %v2127, 96
        %v2270 = vpop.permute.xlu0 %2269
        %2271 = vrot.lane.b32.xlu0 %v2136, 96
        %v2272 = vpop.permute.xlu0 %2271
        %2273 = vrot.lane.b32.xlu0 %v2145, 96
        %v2274 = vpop.permute.xlu0 %2273
        %2275 = vrot.lane.b32.xlu0 %v2154, 96
        %v2276 = vpop.permute.xlu0 %2275
        %2277 = vrot.lane.b32.xlu0 %v2163, 96
        %v2278 = vpop.permute.xlu0 %2277
        %2279 = vrot.lane.b32.xlu0 %v2172, 96
        %v2280 = vpop.permute.xlu0 %2279
        %2281 = vrot.lane.b32.xlu0 %v2181, 96
        %v2282 = vpop.permute.xlu0 %2281
        %2283 = vrot.lane.b32.xlu0 %v2190, 96
        %v2284 = vpop.permute.xlu0 %2283
        %2285 = vrot.lane.b32.xlu0 %v2199, 96
        %v2286 = vpop.permute.xlu0 %2285
        %2287 = vrot.lane.b32.xlu0 %v2208, 96
        %v2288 = vpop.permute.xlu0 %2287
        %vm2329 = vcmask 519424
        %2330 = vst.msk [vmem:[#allocation2 + $0x10] sm:$0xf] %vm2329, %v2210
        %2331 = vst.msk [vmem:[#allocation2 + $0x18] sm:$0xf] %vm2329, %v2212
        %2332 = vst.msk [vmem:[#allocation2 + $0x20] sm:$0xf] %vm2329, %v2214
        %2333 = vst.msk [vmem:[#allocation2 + $0x28] sm:$0xf] %vm2329, %v2216
        %2334 = vst.msk [vmem:[#allocation2 + $0x30] sm:$0xf] %vm2329, %v2218
        %2335 = vst.msk [vmem:[#allocation2 + $0x38] sm:$0xf] %vm2329, %v2220
        %2336 = vst.msk [vmem:[#allocation2 + $0x40] sm:$0xf] %vm2329, %v2222
        %2337 = vst.msk [vmem:[#allocation2 + $0x48] sm:$0xf] %vm2329, %v2224
        %2338 = vst.msk [vmem:[#allocation2 + $0x50] sm:$0xf] %vm2329, %v2226
        %2339 = vst.msk [vmem:[#allocation2 + $0x58] sm:$0xf] %vm2329, %v2228
        %2340 = vst.msk [vmem:[#allocation2 + $0x60] sm:$0xf] %vm2329, %v2230
        %2341 = vst.msk [vmem:[#allocation2 + $0x68] sm:$0xf] %vm2329, %v2232
        %2342 = vst.msk [vmem:[#allocation2 + $0x70] sm:$0xf] %vm2329, %v2234
        %2343 = vst.msk [vmem:[#allocation2 + $0x78] sm:$0xf] %vm2329, %v2236
        %2344 = vst.msk [vmem:[#allocation2 + $0x80] sm:$0xf] %vm2329, %v2238
        %2345 = vst.msk [vmem:[#allocation2 + $0x88] sm:$0xf] %vm2329, %v2240
        %2346 = vst.msk [vmem:[#allocation2 + $0x90] sm:$0xf] %vm2329, %v2242
        %2347 = vst.msk [vmem:[#allocation2 + $0x98] sm:$0xf] %vm2329, %v2244
        %2348 = vst.msk [vmem:[#allocation2 + $0xa0] sm:$0xf] %vm2329, %v2246
        %2349 = vst.msk [vmem:[#allocation2 + $0xa8] sm:$0xf] %vm2329, %v2248
        %2350 = vst.msk [vmem:[#allocation2 + $0xb0] sm:$0xf] %vm2329, %v2250
        %2351 = vst.msk [vmem:[#allocation2 + $0xb8] sm:$0xf] %vm2329, %v2252
        %2352 = vst.msk [vmem:[#allocation2 + $0xc0] sm:$0xf] %vm2329, %v2254
        %2353 = vst.msk [vmem:[#allocation2 + $0xc8] sm:$0xf] %vm2329, %v2256
        %2354 = vst.msk [vmem:[#allocation2 + $0xd0] sm:$0xf] %vm2329, %v2258
        %2355 = vst.msk [vmem:[#allocation2 + $0xd8] sm:$0xf] %vm2329, %v2260
        %2356 = vst.msk [vmem:[#allocation2 + $0xe0] sm:$0xf] %vm2329, %v2262
        %2357 = vst.msk [vmem:[#allocation2 + $0xe8] sm:$0xf] %vm2329, %v2264
        %2358 = vst.msk [vmem:[#allocation2 + $0xf0] sm:$0xf] %vm2329, %v2266
        %2359 = vst.msk [vmem:[#allocation2 + $0xf8] sm:$0xf] %vm2329, %v2268
        %2360 = vst.msk [vmem:[#allocation2 + $0x100] sm:$0xf] %vm2329, %v2270
        %2361 = vst.msk [vmem:[#allocation2 + $0x108] sm:$0xf] %vm2329, %v2272
        %2362 = vst.msk [vmem:[#allocation2 + $0x110] sm:$0xf] %vm2329, %v2274
        %2363 = vst.msk [vmem:[#allocation2 + $0x118] sm:$0xf] %vm2329, %v2276
        %2364 = vst.msk [vmem:[#allocation2 + $0x120] sm:$0xf] %vm2329, %v2278
        %2365 = vst.msk [vmem:[#allocation2 + $0x128] sm:$0xf] %vm2329, %v2280
        %2366 = vst.msk [vmem:[#allocation2 + $0x130] sm:$0xf] %vm2329, %v2282
        %2367 = vst.msk [vmem:[#allocation2 + $0x138] sm:$0xf] %vm2329, %v2284
        %2368 = vst.msk [vmem:[#allocation2 + $0x140] sm:$0xf] %vm2329, %v2286
        %2369 = vst.msk [vmem:[#allocation2 + $0x148] sm:$0xf] %vm2329, %v2288
        %v2370 = vld [vmem:[#allocation2 + $0x10] sm:$0xf]
        %v2371 = vld [vmem:[#allocation2 + $0x18] sm:$0xf]
        %v2372 = vld [vmem:[#allocation2 + $0x20] sm:$0xf]
        %v2373 = vld [vmem:[#allocation2 + $0x28] sm:$0xf]
        %v2374 = vld [vmem:[#allocation2 + $0x30] sm:$0xf]
        %v2375 = vld [vmem:[#allocation2 + $0x38] sm:$0xf]
        %v2376 = vld [vmem:[#allocation2 + $0x40] sm:$0xf]
        %v2377 = vld [vmem:[#allocation2 + $0x48] sm:$0xf]
        %v2378 = vld [vmem:[#allocation2 + $0x50] sm:$0xf]
        %v2379 = vld [vmem:[#allocation2 + $0x58] sm:$0xf]
        %v2380 = vld [vmem:[#allocation2 + $0x60] sm:$0xf]
        %v2381 = vld [vmem:[#allocation2 + $0x68] sm:$0xf]
        %v2382 = vld [vmem:[#allocation2 + $0x70] sm:$0xf]
        %v2383 = vld [vmem:[#allocation2 + $0x78] sm:$0xf]
        %v2384 = vld [vmem:[#allocation2 + $0x80] sm:$0xf]
        %v2385 = vld [vmem:[#allocation2 + $0x88] sm:$0xf]
        %v2386 = vld [vmem:[#allocation2 + $0x90] sm:$0xf]
        %v2387 = vld [vmem:[#allocation2 + $0x98] sm:$0xf]
        %v2388 = vld [vmem:[#allocation2 + $0xa0] sm:$0xf]
        %v2389 = vld [vmem:[#allocation2 + $0xa8] sm:$0xf]
        %v2390 = vld [vmem:[#allocation2 + $0xb0] sm:$0xf]
        %v2391 = vld [vmem:[#allocation2 + $0xb8] sm:$0xf]
        %v2392 = vld [vmem:[#allocation2 + $0xc0] sm:$0xf]
        %v2393 = vld [vmem:[#allocation2 + $0xc8] sm:$0xf]
        %v2394 = vld [vmem:[#allocation2 + $0xd0] sm:$0xf]
        %v2395 = vld [vmem:[#allocation2 + $0xd8] sm:$0xf]
        %v2396 = vld [vmem:[#allocation2 + $0xe0] sm:$0xf]
        %v2397 = vld [vmem:[#allocation2 + $0xe8] sm:$0xf]
        %v2398 = vld [vmem:[#allocation2 + $0xf0] sm:$0xf]
        %v2399 = vld [vmem:[#allocation2 + $0xf8] sm:$0xf]
        %v2400 = vld [vmem:[#allocation2 + $0x100] sm:$0xf]
        %v2401 = vld [vmem:[#allocation2 + $0x108] sm:$0xf]
        %v2402 = vld [vmem:[#allocation2 + $0x110] sm:$0xf]
        %v2403 = vld [vmem:[#allocation2 + $0x118] sm:$0xf]
        %v2404 = vld [vmem:[#allocation2 + $0x120] sm:$0xf]
        %v2405 = vld [vmem:[#allocation2 + $0x128] sm:$0xf]
        %v2406 = vld [vmem:[#allocation2 + $0x130] sm:$0xf]
        %v2407 = vld [vmem:[#allocation2 + $0x138] sm:$0xf]
        %v2408 = vld [vmem:[#allocation2 + $0x140] sm:$0xf]
        %v2409 = vld [vmem:[#allocation2 + $0x148] sm:$0xf]
        %v2410 = vld [vmem:[#allocation2 + $0x150] sm:$0x1]
        %v2411 = vld [vmem:[%s7 + $0x10] sm:$0xf]
        %v2412 = vld [vmem:[%s7 + $0x18] sm:$0xf]
        %v2413 = vld [vmem:[%s7 + $0x20] sm:$0xf]
        %v2414 = vld [vmem:[%s7 + $0x28] sm:$0xf]
        %v2415 = vld [vmem:[%s7 + $0x30] sm:$0xf]
        %v2416 = vld [vmem:[%s7 + $0x38] sm:$0xf]
        %v2417 = vld [vmem:[%s7 + $0x40] sm:$0xf]
        %v2418 = vld [vmem:[%s7 + $0x48] sm:$0xf]
        %v2419 = vld [vmem:[%s7 + $0x50] sm:$0xf]
        %v2420 = vld [vmem:[%s7 + $0x58] sm:$0xf]
        %v2421 = vld [vmem:[%s7 + $0x60] sm:$0xf]
        %v2422 = vld [vmem:[%s7 + $0x68] sm:$0xf]
        %v2423 = vld [vmem:[%s7 + $0x70] sm:$0xf]
        %v2424 = vld [vmem:[%s7 + $0x78] sm:$0xf]
        %v2425 = vld [vmem:[%s7 + $0x80] sm:$0xf]
        %v2426 = vld [vmem:[%s7 + $0x88] sm:$0xf]
        %v2427 = vld [vmem:[%s7 + $0x90] sm:$0xf]
        %v2428 = vld [vmem:[%s7 + $0x98] sm:$0xf]
        %v2429 = vld [vmem:[%s7 + $0xa0] sm:$0xf]
        %v2430 = vld [vmem:[%s7 + $0xa8] sm:$0xf]
        %v2431 = vld [vmem:[%s7 + $0xb0] sm:$0xf]
        %v2432 = vld [vmem:[%s7 + $0xb8] sm:$0xf]
        %v2433 = vld [vmem:[%s7 + $0xc0] sm:$0xf]
        %v2434 = vld [vmem:[%s7 + $0xc8] sm:$0xf]
        %v2435 = vld [vmem:[%s7 + $0xd0] sm:$0xf]
        %v2436 = vld [vmem:[%s7 + $0xd8] sm:$0xf]
        %v2437 = vld [vmem:[%s7 + $0xe0] sm:$0xf]
        %v2438 = vld [vmem:[%s7 + $0xe8] sm:$0xf]
        %v2439 = vld [vmem:[%s7 + $0xf0] sm:$0xf]
        %v2440 = vld [vmem:[%s7 + $0xf8] sm:$0xf]
        %v2441 = vld [vmem:[%s7 + $0x100] sm:$0xf]
        %v2442 = vld [vmem:[%s7 + $0x108] sm:$0xf]
        %v2443 = vld [vmem:[%s7 + $0x110] sm:$0xf]
        %v2444 = vld [vmem:[%s7 + $0x118] sm:$0xf]
        %v2445 = vld [vmem:[%s7 + $0x120] sm:$0xf]
        %v2446 = vld [vmem:[%s7 + $0x128] sm:$0xf]
        %v2447 = vld [vmem:[%s7 + $0x130] sm:$0xf]
        %v2448 = vld [vmem:[%s7 + $0x138] sm:$0xf]
        %v2449 = vld [vmem:[%s7 + $0x140] sm:$0xf]
        %v2450 = vld [vmem:[%s7 + $0x148] sm:$0xf]
        %v2451 = vunpack.c.l.bf16 %v2370
        %v2452 = vunpack.c.l.bf16 %v2371
        %v2453 = vunpack.c.l.bf16 %v2372
        %v2454 = vunpack.c.l.bf16 %v2373
        %v2455 = vunpack.c.l.bf16 %v2374
        %v2456 = vunpack.c.l.bf16 %v2375
        %v2457 = vunpack.c.l.bf16 %v2376
        %v2458 = vunpack.c.l.bf16 %v2377
        %v2459 = vunpack.c.l.bf16 %v2378
        %v2460 = vunpack.c.l.bf16 %v2379
        %v2461 = vunpack.c.l.bf16 %v2380
        %v2462 = vunpack.c.l.bf16 %v2381
        %v2463 = vunpack.c.l.bf16 %v2382
        %v2464 = vunpack.c.l.bf16 %v2383
        %v2465 = vunpack.c.l.bf16 %v2384
        %v2466 = vunpack.c.l.bf16 %v2385
        %v2467 = vunpack.c.l.bf16 %v2386
        %v2468 = vunpack.c.l.bf16 %v2387
        %v2469 = vunpack.c.l.bf16 %v2388
        %v2470 = vunpack.c.l.bf16 %v2389
        %v2471 = vunpack.c.l.bf16 %v2390
        %v2472 = vunpack.c.l.bf16 %v2391
        %v2473 = vunpack.c.l.bf16 %v2392
        %v2474 = vunpack.c.l.bf16 %v2393
        %v2475 = vunpack.c.l.bf16 %v2394
        %v2476 = vunpack.c.l.bf16 %v2395
        %v2477 = vunpack.c.l.bf16 %v2396
        %v2478 = vunpack.c.l.bf16 %v2397
        %v2479 = vunpack.c.l.bf16 %v2398
        %v2480 = vunpack.c.l.bf16 %v2399
        %v2481 = vunpack.c.l.bf16 %v2400
        %v2482 = vunpack.c.l.bf16 %v2401
        %v2483 = vunpack.c.l.bf16 %v2402
        %v2484 = vunpack.c.l.bf16 %v2403
        %v2485 = vunpack.c.l.bf16 %v2404
        %v2486 = vunpack.c.l.bf16 %v2405
        %v2487 = vunpack.c.l.bf16 %v2406
        %v2488 = vunpack.c.l.bf16 %v2407
        %v2489 = vunpack.c.l.bf16 %v2408
        %v2490 = vunpack.c.l.bf16 %v2409
        %v2491 = vunpack.c.l.bf16 %v2410
        %v2492 = vunpack.c.l.bf16 %v2411
        %v2493 = vunpack.c.l.bf16 %v2412
        %v2494 = vunpack.c.l.bf16 %v2413
        %v2495 = vunpack.c.l.bf16 %v2414
        %v2496 = vunpack.c.l.bf16 %v2415
        %v2497 = vunpack.c.l.bf16 %v2416
        %v2498 = vunpack.c.l.bf16 %v2417
        %v2499 = vunpack.c.l.bf16 %v2418
        %v2500 = vunpack.c.l.bf16 %v2419
        %v2501 = vunpack.c.l.bf16 %v2420
        %v2502 = vunpack.c.l.bf16 %v2421
        %v2503 = vunpack.c.l.bf16 %v2422
        %v2504 = vunpack.c.l.bf16 %v2423
        %v2505 = vunpack.c.l.bf16 %v2424
        %v2506 = vunpack.c.l.bf16 %v2425
        %v2507 = vunpack.c.l.bf16 %v2426
        %v2508 = vunpack.c.l.bf16 %v2427
        %v2509 = vunpack.c.l.bf16 %v2428
        %v2510 = vunpack.c.l.bf16 %v2429
        %v2511 = vunpack.c.l.bf16 %v2430
        %v2512 = vunpack.c.l.bf16 %v2431
        %v2513 = vunpack.c.l.bf16 %v2432
        %v2514 = vunpack.c.l.bf16 %v2433
        %v2515 = vunpack.c.l.bf16 %v2434
        %v2516 = vunpack.c.l.bf16 %v2435
        %v2517 = vunpack.c.l.bf16 %v2436
        %v2518 = vunpack.c.l.bf16 %v2437
        %v2519 = vunpack.c.l.bf16 %v2438
        %v2520 = vunpack.c.l.bf16 %v2439
        %v2521 = vunpack.c.l.bf16 %v2440
        %v2522 = vunpack.c.l.bf16 %v2441
        %v2523 = vunpack.c.l.bf16 %v2442
        %v2524 = vunpack.c.l.bf16 %v2443
        %v2525 = vunpack.c.l.bf16 %v2444
        %v2526 = vunpack.c.l.bf16 %v2445
        %v2527 = vunpack.c.l.bf16 %v2446
        %v2528 = vunpack.c.l.bf16 %v2447
        %v2529 = vunpack.c.l.bf16 %v2448
        %v2530 = vunpack.c.l.bf16 %v2449
        %v2531 = vunpack.c.l.bf16 %v2450
        %vm2572 = vcmask 1040384
        %v2573 = vrot.slane %v2492, 7
        %v2574 = vrot.slane %v2493, 7
        %v2575 = vsel %vm2572, %v2573, %v2574
        %v2576 = vrot.slane %v2494, 7
        %v2577 = vsel %vm2572, %v2574, %v2576
        %v2578 = vrot.slane %v2495, 7
        %v2579 = vsel %vm2572, %v2576, %v2578
        %v2580 = vrot.slane %v2496, 7
        %v2581 = vsel %vm2572, %v2578, %v2580
        %v2582 = vrot.slane %v2497, 7
        %v2583 = vsel %vm2572, %v2580, %v2582
        %v2584 = vrot.slane %v2498, 7
        %v2585 = vsel %vm2572, %v2582, %v2584
        %v2586 = vrot.slane %v2499, 7
        %v2587 = vsel %vm2572, %v2584, %v2586
        %v2588 = vrot.slane %v2500, 7
        %v2589 = vsel %vm2572, %v2586, %v2588
        %v2590 = vrot.slane %v2501, 7
        %v2591 = vsel %vm2572, %v2588, %v2590
        %v2592 = vrot.slane %v2502, 7
        %v2593 = vsel %vm2572, %v2590, %v2592
        %v2594 = vrot.slane %v2503, 7
        %v2595 = vsel %vm2572, %v2592, %v2594
        %v2596 = vrot.slane %v2504, 7
        %v2597 = vsel %vm2572, %v2594, %v2596
        %v2598 = vrot.slane %v2505, 7
        %v2599 = vsel %vm2572, %v2596, %v2598
        %v2600 = vrot.slane %v2506, 7
        %v2601 = vsel %vm2572, %v2598, %v2600
        %v2602 = vrot.slane %v2507, 7
        %v2603 = vsel %vm2572, %v2600, %v2602
        %v2604 = vrot.slane %v2508, 7
        %v2605 = vsel %vm2572, %v2602, %v2604
        %v2606 = vrot.slane %v2509, 7
        %v2607 = vsel %vm2572, %v2604, %v2606
        %v2608 = vrot.slane %v2510, 7
        %v2609 = vsel %vm2572, %v2606, %v2608
        %v2610 = vrot.slane %v2511, 7
        %v2611 = vsel %vm2572, %v2608, %v2610
        %v2612 = vrot.slane %v2512, 7
        %v2613 = vsel %vm2572, %v2610, %v2612
        %v2614 = vrot.slane %v2513, 7
        %v2615 = vsel %vm2572, %v2612, %v2614
        %v2616 = vrot.slane %v2514, 7
        %v2617 = vsel %vm2572, %v2614, %v2616
        %v2618 = vrot.slane %v2515, 7
        %v2619 = vsel %vm2572, %v2616, %v2618
        %v2620 = vrot.slane %v2516, 7
        %v2621 = vsel %vm2572, %v2618, %v2620
        %v2622 = vrot.slane %v2517, 7
        %v2623 = vsel %vm2572, %v2620, %v2622
        %v2624 = vrot.slane %v2518, 7
        %v2625 = vsel %vm2572, %v2622, %v2624
        %v2626 = vrot.slane %v2519, 7
        %v2627 = vsel %vm2572, %v2624, %v2626
        %v2628 = vrot.slane %v2520, 7
        %v2629 = vsel %vm2572, %v2626, %v2628
        %v2630 = vrot.slane %v2521, 7
        %v2631 = vsel %vm2572, %v2628, %v2630
        %v2632 = vrot.slane %v2522, 7
        %v2633 = vsel %vm2572, %v2630, %v2632
        %v2634 = vrot.slane %v2523, 7
        %v2635 = vsel %vm2572, %v2632, %v2634
        %v2636 = vrot.slane %v2524, 7
        %v2637 = vsel %vm2572, %v2634, %v2636
        %v2638 = vrot.slane %v2525, 7
        %v2639 = vsel %vm2572, %v2636, %v2638
        %v2640 = vrot.slane %v2526, 7
        %v2641 = vsel %vm2572, %v2638, %v2640
        %v2642 = vrot.slane %v2527, 7
        %v2643 = vsel %vm2572, %v2640, %v2642
        %v2644 = vrot.slane %v2528, 7
        %v2645 = vsel %vm2572, %v2642, %v2644
        %v2646 = vrot.slane %v2529, 7
        %v2647 = vsel %vm2572, %v2644, %v2646
        %v2648 = vrot.slane %v2530, 7
        %v2649 = vsel %vm2572, %v2646, %v2648
        %v2650 = vrot.slane %v2531, 7
        %v2651 = vsel %vm2572, %v2648, %v2650
        %2652 = vrot.lane.b32.xlu0 %v2573, 96
        %v2653 = vpop.permute.xlu0 %2652
        %2654 = vrot.lane.b32.xlu0 %v2575, 96
        %v2655 = vpop.permute.xlu0 %2654
        %2656 = vrot.lane.b32.xlu0 %v2577, 96
        %v2657 = vpop.permute.xlu0 %2656
        %2658 = vrot.lane.b32.xlu0 %v2579, 96
        %v2659 = vpop.permute.xlu0 %2658
        %2660 = vrot.lane.b32.xlu0 %v2581, 96
        %v2661 = vpop.permute.xlu0 %2660
        %2662 = vrot.lane.b32.xlu0 %v2583, 96
        %v2663 = vpop.permute.xlu0 %2662
        %2664 = vrot.lane.b32.xlu0 %v2585, 96
        %v2665 = vpop.permute.xlu0 %2664
        %2666 = vrot.lane.b32.xlu0 %v2587, 96
        %v2667 = vpop.permute.xlu0 %2666
        %2668 = vrot.lane.b32.xlu0 %v2589, 96
        %v2669 = vpop.permute.xlu0 %2668
        %2670 = vrot.lane.b32.xlu0 %v2591, 96
        %v2671 = vpop.permute.xlu0 %2670
        %2672 = vrot.lane.b32.xlu0 %v2593, 96
        %v2673 = vpop.permute.xlu0 %2672
        %2674 = vrot.lane.b32.xlu0 %v2595, 96
        %v2675 = vpop.permute.xlu0 %2674
        %2676 = vrot.lane.b32.xlu0 %v2597, 96
        %v2677 = vpop.permute.xlu0 %2676
        %2678 = vrot.lane.b32.xlu0 %v2599, 96
        %v2679 = vpop.permute.xlu0 %2678
        %2680 = vrot.lane.b32.xlu0 %v2601, 96
        %v2681 = vpop.permute.xlu0 %2680
        %2682 = vrot.lane.b32.xlu0 %v2603, 96
        %v2683 = vpop.permute.xlu0 %2682
        %2684 = vrot.lane.b32.xlu0 %v2605, 96
        %v2685 = vpop.permute.xlu0 %2684
        %2686 = vrot.lane.b32.xlu0 %v2607, 96
        %v2687 = vpop.permute.xlu0 %2686
        %2688 = vrot.lane.b32.xlu0 %v2609, 96
        %v2689 = vpop.permute.xlu0 %2688
        %2690 = vrot.lane.b32.xlu0 %v2611, 96
        %v2691 = vpop.permute.xlu0 %2690
        %2692 = vrot.lane.b32.xlu0 %v2613, 96
        %v2693 = vpop.permute.xlu0 %2692
        %2694 = vrot.lane.b32.xlu0 %v2615, 96
        %v2695 = vpop.permute.xlu0 %2694
        %2696 = vrot.lane.b32.xlu0 %v2617, 96
        %v2697 = vpop.permute.xlu0 %2696
        %2698 = vrot.lane.b32.xlu0 %v2619, 96
        %v2699 = vpop.permute.xlu0 %2698
        %2700 = vrot.lane.b32.xlu0 %v2621, 96
        %v2701 = vpop.permute.xlu0 %2700
        %2702 = vrot.lane.b32.xlu0 %v2623, 96
        %v2703 = vpop.permute.xlu0 %2702
        %2704 = vrot.lane.b32.xlu0 %v2625, 96
        %v2705 = vpop.permute.xlu0 %2704
        %2706 = vrot.lane.b32.xlu0 %v2627, 96
        %v2707 = vpop.permute.xlu0 %2706
        %2708 = vrot.lane.b32.xlu0 %v2629, 96
        %v2709 = vpop.permute.xlu0 %2708
        %2710 = vrot.lane.b32.xlu0 %v2631, 96
        %v2711 = vpop.permute.xlu0 %2710
        %2712 = vrot.lane.b32.xlu0 %v2633, 96
        %v2713 = vpop.permute.xlu0 %2712
        %2714 = vrot.lane.b32.xlu0 %v2635, 96
        %v2715 = vpop.permute.xlu0 %2714
        %2716 = vrot.lane.b32.xlu0 %v2637, 96
        %v2717 = vpop.permute.xlu0 %2716
        %2718 = vrot.lane.b32.xlu0 %v2639, 96
        %v2719 = vpop.permute.xlu0 %2718
        %2720 = vrot.lane.b32.xlu0 %v2641, 96
        %v2721 = vpop.permute.xlu0 %2720
        %2722 = vrot.lane.b32.xlu0 %v2643, 96
        %v2723 = vpop.permute.xlu0 %2722
        %2724 = vrot.lane.b32.xlu0 %v2645, 96
        %v2725 = vpop.permute.xlu0 %2724
        %2726 = vrot.lane.b32.xlu0 %v2647, 96
        %v2727 = vpop.permute.xlu0 %2726
        %2728 = vrot.lane.b32.xlu0 %v2649, 96
        %v2729 = vpop.permute.xlu0 %2728
        %2730 = vrot.lane.b32.xlu0 %v2651, 96
        %v2731 = vpop.permute.xlu0 %2730
        %2732 = vrot.lane.b32.xlu0 %v2650, 96
        %v2733 = vpop.permute.xlu0 %2732
        %v2775 = vmul.f32 %v2451, %v2653
        %v2776 = vmul.f32 %v2452, %v2655
        %v2777 = vmul.f32 %v2453, %v2657
        %v2778 = vmul.f32 %v2454, %v2659
        %v2779 = vmul.f32 %v2455, %v2661
        %v2780 = vmul.f32 %v2456, %v2663
        %v2781 = vmul.f32 %v2457, %v2665
        %v2782 = vmul.f32 %v2458, %v2667
        %v2783 = vmul.f32 %v2459, %v2669
        %v2784 = vmul.f32 %v2460, %v2671
        %v2785 = vmul.f32 %v2461, %v2673
        %v2786 = vmul.f32 %v2462, %v2675
        %v2787 = vmul.f32 %v2463, %v2677
        %v2788 = vmul.f32 %v2464, %v2679
        %v2789 = vmul.f32 %v2465, %v2681
        %v2790 = vmul.f32 %v2466, %v2683
        %v2791 = vmul.f32 %v2467, %v2685
        %v2792 = vmul.f32 %v2468, %v2687
        %v2793 = vmul.f32 %v2469, %v2689
        %v2794 = vmul.f32 %v2470, %v2691
        %v2795 = vmul.f32 %v2471, %v2693
        %v2796 = vmul.f32 %v2472, %v2695
        %v2797 = vmul.f32 %v2473, %v2697
        %v2798 = vmul.f32 %v2474, %v2699
        %v2799 = vmul.f32 %v2475, %v2701
        %v2800 = vmul.f32 %v2476, %v2703
        %v2801 = vmul.f32 %v2477, %v2705
        %v2802 = vmul.f32 %v2478, %v2707
        %v2803 = vmul.f32 %v2479, %v2709
        %v2804 = vmul.f32 %v2480, %v2711
        %v2805 = vmul.f32 %v2481, %v2713
        %v2806 = vmul.f32 %v2482, %v2715
        %v2807 = vmul.f32 %v2483, %v2717
        %v2808 = vmul.f32 %v2484, %v2719
        %v2809 = vmul.f32 %v2485, %v2721
        %v2810 = vmul.f32 %v2486, %v2723
        %v2811 = vmul.f32 %v2487, %v2725
        %v2812 = vmul.f32 %v2488, %v2727
        %v2813 = vmul.f32 %v2489, %v2729
        %v2814 = vmul.f32 %v2490, %v2731
        %v2815 = vmul.f32 %v2491, %v2733
        %v2816 = vpack.c.bf16 %v2775, %v2775
        %v2817 = vpack.c.bf16 %v2776, %v2776
        %v2818 = vpack.c.bf16 %v2777, %v2777
        %v2819 = vpack.c.bf16 %v2778, %v2778
        %v2820 = vpack.c.bf16 %v2779, %v2779
        %v2821 = vpack.c.bf16 %v2780, %v2780
        %v2822 = vpack.c.bf16 %v2781, %v2781
        %v2823 = vpack.c.bf16 %v2782, %v2782
        %v2824 = vpack.c.bf16 %v2783, %v2783
        %v2825 = vpack.c.bf16 %v2784, %v2784
        %v2826 = vpack.c.bf16 %v2785, %v2785
        %v2827 = vpack.c.bf16 %v2786, %v2786
        %v2828 = vpack.c.bf16 %v2787, %v2787
        %v2829 = vpack.c.bf16 %v2788, %v2788
        %v2830 = vpack.c.bf16 %v2789, %v2789
        %v2831 = vpack.c.bf16 %v2790, %v2790
        %v2832 = vpack.c.bf16 %v2791, %v2791
        %v2833 = vpack.c.bf16 %v2792, %v2792
        %v2834 = vpack.c.bf16 %v2793, %v2793
        %v2835 = vpack.c.bf16 %v2794, %v2794
        %v2836 = vpack.c.bf16 %v2795, %v2795
        %v2837 = vpack.c.bf16 %v2796, %v2796
        %v2838 = vpack.c.bf16 %v2797, %v2797
        %v2839 = vpack.c.bf16 %v2798, %v2798
        %v2840 = vpack.c.bf16 %v2799, %v2799
        %v2841 = vpack.c.bf16 %v2800, %v2800
        %v2842 = vpack.c.bf16 %v2801, %v2801
        %v2843 = vpack.c.bf16 %v2802, %v2802
        %v2844 = vpack.c.bf16 %v2803, %v2803
        %v2845 = vpack.c.bf16 %v2804, %v2804
        %v2846 = vpack.c.bf16 %v2805, %v2805
        %v2847 = vpack.c.bf16 %v2806, %v2806
        %v2848 = vpack.c.bf16 %v2807, %v2807
        %v2849 = vpack.c.bf16 %v2808, %v2808
        %v2850 = vpack.c.bf16 %v2809, %v2809
        %v2851 = vpack.c.bf16 %v2810, %v2810
        %v2852 = vpack.c.bf16 %v2811, %v2811
        %v2853 = vpack.c.bf16 %v2812, %v2812
        %v2854 = vpack.c.bf16 %v2813, %v2813
        %v2855 = vpack.c.bf16 %v2814, %v2814
        %v2856 = vpack.c.bf16 %v2815, %v2815
        %vm2857 = vsmask.f32 3328
        %vm2858 = vsmask.f32 7440
        %vm2859 = vmor %vm2857, %vm2858
        %v2861 = vshrl.u32 %v2816, 16
        %v2863 = vrot.slane %v2861, 4
        %v2864 = vshll.u32 %v2816, 16
        %v2866 = vrot.slane %v2864, 5
        %v2867 = vor.u32 %v2863, %v2866
        %v2868 = vrot.slane %v2867, 4
        %v2870 = vshll.u32 %v2817, 16
        %v2872 = vrot.slane %v2870, 5
        %v2873 = vsel %vm2859, %v2868, %v2872
        %v2874 = vshrl.u32 %v2817, 16
        %v2876 = vrot.slane %v2874, 4
        %v2877 = vor.u32 %v2876, %v2872
        %v2878 = vrot.slane %v2877, 4
        %v2880 = vshll.u32 %v2818, 16
        %v2882 = vrot.slane %v2880, 5
        %v2883 = vsel %vm2859, %v2878, %v2882
        %v2884 = vshrl.u32 %v2818, 16
        %v2886 = vrot.slane %v2884, 4
        %v2887 = vor.u32 %v2886, %v2882
        %v2888 = vrot.slane %v2887, 4
        %v2890 = vshll.u32 %v2819, 16
        %v2892 = vrot.slane %v2890, 5
        %v2893 = vsel %vm2859, %v2888, %v2892
        %v2894 = vshrl.u32 %v2819, 16
        %v2896 = vrot.slane %v2894, 4
        %v2897 = vor.u32 %v2896, %v2892
        %v2898 = vrot.slane %v2897, 4
        %v2900 = vshll.u32 %v2820, 16
        %v2902 = vrot.slane %v2900, 5
        %v2903 = vsel %vm2859, %v2898, %v2902
        %v2904 = vshrl.u32 %v2820, 16
        %v2906 = vrot.slane %v2904, 4
        %v2907 = vor.u32 %v2906, %v2902
        %v2908 = vrot.slane %v2907, 4
        %v2910 = vshll.u32 %v2821, 16
        %v2912 = vrot.slane %v2910, 5
        %v2913 = vsel %vm2859, %v2908, %v2912
        %v2914 = vshrl.u32 %v2821, 16
        %v2916 = vrot.slane %v2914, 4
        %v2917 = vor.u32 %v2916, %v2912
        %v2918 = vrot.slane %v2917, 4
        %v2920 = vshll.u32 %v2822, 16
        %v2922 = vrot.slane %v2920, 5
        %v2923 = vsel %vm2859, %v2918, %v2922
        %v2924 = vshrl.u32 %v2822, 16
        %v2926 = vrot.slane %v2924, 4
        %v2927 = vor.u32 %v2926, %v2922
        %v2928 = vrot.slane %v2927, 4
        %v2930 = vshll.u32 %v2823, 16
        %v2932 = vrot.slane %v2930, 5
        %v2933 = vsel %vm2859, %v2928, %v2932
        %v2934 = vshrl.u32 %v2823, 16
        %v2936 = vrot.slane %v2934, 4
        %v2937 = vor.u32 %v2936, %v2932
        %v2938 = vrot.slane %v2937, 4
        %v2940 = vshll.u32 %v2824, 16
        %v2942 = vrot.slane %v2940, 5
        %v2943 = vsel %vm2859, %v2938, %v2942
        %v2944 = vshrl.u32 %v2824, 16
        %v2946 = vrot.slane %v2944, 4
        %v2947 = vor.u32 %v2946, %v2942
        %v2948 = vrot.slane %v2947, 4
        %v2950 = vshll.u32 %v2825, 16
        %v2952 = vrot.slane %v2950, 5
        %v2953 = vsel %vm2859, %v2948, %v2952
        %v2954 = vshrl.u32 %v2825, 16
        %v2956 = vrot.slane %v2954, 4
        %v2957 = vor.u32 %v2956, %v2952
        %v2958 = vrot.slane %v2957, 4
        %v2960 = vshll.u32 %v2826, 16
        %v2962 = vrot.slane %v2960, 5
        %v2963 = vsel %vm2859, %v2958, %v2962
        %v2964 = vshrl.u32 %v2826, 16
        %v2966 = vrot.slane %v2964, 4
        %v2967 = vor.u32 %v2966, %v2962
        %v2968 = vrot.slane %v2967, 4
        %v2970 = vshll.u32 %v2827, 16
        %v2972 = vrot.slane %v2970, 5
        %v2973 = vsel %vm2859, %v2968, %v2972
        %v2974 = vshrl.u32 %v2827, 16
        %v2976 = vrot.slane %v2974, 4
        %v2977 = vor.u32 %v2976, %v2972
        %v2978 = vrot.slane %v2977, 4
        %v2980 = vshll.u32 %v2828, 16
        %v2982 = vrot.slane %v2980, 5
        %v2983 = vsel %vm2859, %v2978, %v2982
        %v2984 = vshrl.u32 %v2828, 16
        %v2986 = vrot.slane %v2984, 4
        %v2987 = vor.u32 %v2986, %v2982
        %v2988 = vrot.slane %v2987, 4
        %v2990 = vshll.u32 %v2829, 16
        %v2992 = vrot.slane %v2990, 5
        %v2993 = vsel %vm2859, %v2988, %v2992
        %v2994 = vshrl.u32 %v2829, 16
        %v2996 = vrot.slane %v2994, 4
        %v2997 = vor.u32 %v2996, %v2992
        %v2998 = vrot.slane %v2997, 4
        %v3000 = vshll.u32 %v2830, 16
        %v3002 = vrot.slane %v3000, 5
        %v3003 = vsel %vm2859, %v2998, %v3002
        %v3004 = vshrl.u32 %v2830, 16
        %v3006 = vrot.slane %v3004, 4
        %v3007 = vor.u32 %v3006, %v3002
        %v3008 = vrot.slane %v3007, 4
        %v3010 = vshll.u32 %v2831, 16
        %v3012 = vrot.slane %v3010, 5
        %v3013 = vsel %vm2859, %v3008, %v3012
        %v3014 = vshrl.u32 %v2831, 16
        %v3016 = vrot.slane %v3014, 4
        %v3017 = vor.u32 %v3016, %v3012
        %v3018 = vrot.slane %v3017, 4
        %v3020 = vshll.u32 %v2832, 16
        %v3022 = vrot.slane %v3020, 5
        %v3023 = vsel %vm2859, %v3018, %v3022
        %v3024 = vshrl.u32 %v2832, 16
        %v3026 = vrot.slane %v3024, 4
        %v3027 = vor.u32 %v3026, %v3022
        %v3028 = vrot.slane %v3027, 4
        %v3030 = vshll.u32 %v2833, 16
        %v3032 = vrot.slane %v3030, 5
        %v3033 = vsel %vm2859, %v3028, %v3032
        %v3034 = vshrl.u32 %v2833, 16
        %v3036 = vrot.slane %v3034, 4
        %v3037 = vor.u32 %v3036, %v3032
        %v3038 = vrot.slane %v3037, 4
        %v3040 = vshll.u32 %v2834, 16
        %v3042 = vrot.slane %v3040, 5
        %v3043 = vsel %vm2859, %v3038, %v3042
        %v3044 = vshrl.u32 %v2834, 16
        %v3046 = vrot.slane %v3044, 4
        %v3047 = vor.u32 %v3046, %v3042
        %v3048 = vrot.slane %v3047, 4
        %v3050 = vshll.u32 %v2835, 16
        %v3052 = vrot.slane %v3050, 5
        %v3053 = vsel %vm2859, %v3048, %v3052
        %v3054 = vshrl.u32 %v2835, 16
        %v3056 = vrot.slane %v3054, 4
        %v3057 = vor.u32 %v3056, %v3052
        %v3058 = vrot.slane %v3057, 4
        %v3060 = vshll.u32 %v2836, 16
        %v3062 = vrot.slane %v3060, 5
        %v3063 = vsel %vm2859, %v3058, %v3062
        %v3064 = vshrl.u32 %v2836, 16
        %v3066 = vrot.slane %v3064, 4
        %v3067 = vor.u32 %v3066, %v3062
        %v3068 = vrot.slane %v3067, 4
        %v3070 = vshll.u32 %v2837, 16
        %v3072 = vrot.slane %v3070, 5
        %v3073 = vsel %vm2859, %v3068, %v3072
        %v3074 = vshrl.u32 %v2837, 16
        %v3076 = vrot.slane %v3074, 4
        %v3077 = vor.u32 %v3076, %v3072
        %v3078 = vrot.slane %v3077, 4
        %v3080 = vshll.u32 %v2838, 16
        %v3082 = vrot.slane %v3080, 5
        %v3083 = vsel %vm2859, %v3078, %v3082
        %v3084 = vshrl.u32 %v2838, 16
        %v3086 = vrot.slane %v3084, 4
        %v3087 = vor.u32 %v3086, %v3082
        %v3088 = vrot.slane %v3087, 4
        %v3090 = vshll.u32 %v2839, 16
        %v3092 = vrot.slane %v3090, 5
        %v3093 = vsel %vm2859, %v3088, %v3092
        %v3094 = vshrl.u32 %v2839, 16
        %v3096 = vrot.slane %v3094, 4
        %v3097 = vor.u32 %v3096, %v3092
        %v3098 = vrot.slane %v3097, 4
        %v3100 = vshll.u32 %v2840, 16
        %v3102 = vrot.slane %v3100, 5
        %v3103 = vsel %vm2859, %v3098, %v3102
        %v3104 = vshrl.u32 %v2840, 16
        %v3106 = vrot.slane %v3104, 4
        %v3107 = vor.u32 %v3106, %v3102
        %v3108 = vrot.slane %v3107, 4
        %v3110 = vshll.u32 %v2841, 16
        %v3112 = vrot.slane %v3110, 5
        %v3113 = vsel %vm2859, %v3108, %v3112
        %v3114 = vshrl.u32 %v2841, 16
        %v3116 = vrot.slane %v3114, 4
        %v3117 = vor.u32 %v3116, %v3112
        %v3118 = vrot.slane %v3117, 4
        %v3120 = vshll.u32 %v2842, 16
        %v3122 = vrot.slane %v3120, 5
        %v3123 = vsel %vm2859, %v3118, %v3122
        %v3124 = vshrl.u32 %v2842, 16
        %v3126 = vrot.slane %v3124, 4
        %v3127 = vor.u32 %v3126, %v3122
        %v3128 = vrot.slane %v3127, 4
        %v3130 = vshll.u32 %v2843, 16
        %v3132 = vrot.slane %v3130, 5
        %v3133 = vsel %vm2859, %v3128, %v3132
        %v3134 = vshrl.u32 %v2843, 16
        %v3136 = vrot.slane %v3134, 4
        %v3137 = vor.u32 %v3136, %v3132
        %v3138 = vrot.slane %v3137, 4
        %v3140 = vshll.u32 %v2844, 16
        %v3142 = vrot.slane %v3140, 5
        %v3143 = vsel %vm2859, %v3138, %v3142
        %v3144 = vshrl.u32 %v2844, 16
        %v3146 = vrot.slane %v3144, 4
        %v3147 = vor.u32 %v3146, %v3142
        %v3148 = vrot.slane %v3147, 4
        %v3150 = vshll.u32 %v2845, 16
        %v3152 = vrot.slane %v3150, 5
        %v3153 = vsel %vm2859, %v3148, %v3152
        %v3154 = vshrl.u32 %v2845, 16
        %v3156 = vrot.slane %v3154, 4
        %v3157 = vor.u32 %v3156, %v3152
        %v3158 = vrot.slane %v3157, 4
        %v3160 = vshll.u32 %v2846, 16
        %v3162 = vrot.slane %v3160, 5
        %v3163 = vsel %vm2859, %v3158, %v3162
        %v3164 = vshrl.u32 %v2846, 16
        %v3166 = vrot.slane %v3164, 4
        %v3167 = vor.u32 %v3166, %v3162
        %v3168 = vrot.slane %v3167, 4
        %v3170 = vshll.u32 %v2847, 16
        %v3172 = vrot.slane %v3170, 5
        %v3173 = vsel %vm2859, %v3168, %v3172
        %v3174 = vshrl.u32 %v2847, 16
        %v3176 = vrot.slane %v3174, 4
        %v3177 = vor.u32 %v3176, %v3172
        %v3178 = vrot.slane %v3177, 4
        %v3180 = vshll.u32 %v2848, 16
        %v3182 = vrot.slane %v3180, 5
        %v3183 = vsel %vm2859, %v3178, %v3182
        %v3184 = vshrl.u32 %v2848, 16
        %v3186 = vrot.slane %v3184, 4
        %v3187 = vor.u32 %v3186, %v3182
        %v3188 = vrot.slane %v3187, 4
        %v3190 = vshll.u32 %v2849, 16
        %v3192 = vrot.slane %v3190, 5
        %v3193 = vsel %vm2859, %v3188, %v3192
        %v3194 = vshrl.u32 %v2849, 16
        %v3196 = vrot.slane %v3194, 4
        %v3197 = vor.u32 %v3196, %v3192
        %v3198 = vrot.slane %v3197, 4
        %v3200 = vshll.u32 %v2850, 16
        %v3202 = vrot.slane %v3200, 5
        %v3203 = vsel %vm2859, %v3198, %v3202
        %v3204 = vshrl.u32 %v2850, 16
        %v3206 = vrot.slane %v3204, 4
        %v3207 = vor.u32 %v3206, %v3202
        %v3208 = vrot.slane %v3207, 4
        %v3210 = vshll.u32 %v2851, 16
        %v3212 = vrot.slane %v3210, 5
        %v3213 = vsel %vm2859, %v3208, %v3212
        %v3214 = vshrl.u32 %v2851, 16
        %v3216 = vrot.slane %v3214, 4
        %v3217 = vor.u32 %v3216, %v3212
        %v3218 = vrot.slane %v3217, 4
        %v3220 = vshll.u32 %v2852, 16
        %v3222 = vrot.slane %v3220, 5
        %v3223 = vsel %vm2859, %v3218, %v3222
        %v3224 = vshrl.u32 %v2852, 16
        %v3226 = vrot.slane %v3224, 4
        %v3227 = vor.u32 %v3226, %v3222
        %v3228 = vrot.slane %v3227, 4
        %v3230 = vshll.u32 %v2853, 16
        %v3232 = vrot.slane %v3230, 5
        %v3233 = vsel %vm2859, %v3228, %v3232
        %v3234 = vshrl.u32 %v2853, 16
        %v3236 = vrot.slane %v3234, 4
        %v3237 = vor.u32 %v3236, %v3232
        %v3238 = vrot.slane %v3237, 4
        %v3240 = vshll.u32 %v2854, 16
        %v3242 = vrot.slane %v3240, 5
        %v3243 = vsel %vm2859, %v3238, %v3242
        %v3244 = vshrl.u32 %v2854, 16
        %v3246 = vrot.slane %v3244, 4
        %v3247 = vor.u32 %v3246, %v3242
        %v3248 = vrot.slane %v3247, 4
        %v3250 = vshll.u32 %v2855, 16
        %v3252 = vrot.slane %v3250, 5
        %v3253 = vsel %vm2859, %v3248, %v3252
        %v3254 = vshrl.u32 %v2855, 16
        %v3256 = vrot.slane %v3254, 4
        %v3257 = vor.u32 %v3256, %v3252
        %v3258 = vrot.slane %v3257, 4
        %v3260 = vshll.u32 %v2856, 16
        %v3262 = vrot.slane %v3260, 5
        %v3263 = vsel %vm2859, %v3258, %v3262
        %3264 = vrot.lane.b32.xlu0 %v2873, 32
        %v3265 = vpop.permute.xlu0 %3264
        %3266 = vrot.lane.b32.xlu0 %v2883, 32
        %v3267 = vpop.permute.xlu0 %3266
        %3268 = vrot.lane.b32.xlu0 %v2893, 32
        %v3269 = vpop.permute.xlu0 %3268
        %3270 = vrot.lane.b32.xlu0 %v2903, 32
        %v3271 = vpop.permute.xlu0 %3270
        %3272 = vrot.lane.b32.xlu0 %v2913, 32
        %v3273 = vpop.permute.xlu0 %3272
        %3274 = vrot.lane.b32.xlu0 %v2923, 32
        %v3275 = vpop.permute.xlu0 %3274
        %3276 = vrot.lane.b32.xlu0 %v2933, 32
        %v3277 = vpop.permute.xlu0 %3276
        %3278 = vrot.lane.b32.xlu0 %v2943, 32
        %v3279 = vpop.permute.xlu0 %3278
        %3280 = vrot.lane.b32.xlu0 %v2953, 32
        %v3281 = vpop.permute.xlu0 %3280
        %3282 = vrot.lane.b32.xlu0 %v2963, 32
        %v3283 = vpop.permute.xlu0 %3282
        %3284 = vrot.lane.b32.xlu0 %v2973, 32
        %v3285 = vpop.permute.xlu0 %3284
        %3286 = vrot.lane.b32.xlu0 %v2983, 32
        %v3287 = vpop.permute.xlu0 %3286
        %3288 = vrot.lane.b32.xlu0 %v2993, 32
        %v3289 = vpop.permute.xlu0 %3288
        %3290 = vrot.lane.b32.xlu0 %v3003, 32
        %v3291 = vpop.permute.xlu0 %3290
        %3292 = vrot.lane.b32.xlu0 %v3013, 32
        %v3293 = vpop.permute.xlu0 %3292
        %3294 = vrot.lane.b32.xlu0 %v3023, 32
        %v3295 = vpop.permute.xlu0 %3294
        %3296 = vrot.lane.b32.xlu0 %v3033, 32
        %v3297 = vpop.permute.xlu0 %3296
        %3298 = vrot.lane.b32.xlu0 %v3043, 32
        %v3299 = vpop.permute.xlu0 %3298
        %3300 = vrot.lane.b32.xlu0 %v3053, 32
        %v3301 = vpop.permute.xlu0 %3300
        %3302 = vrot.lane.b32.xlu0 %v3063, 32
        %v3303 = vpop.permute.xlu0 %3302
        %3304 = vrot.lane.b32.xlu0 %v3073, 32
        %v3305 = vpop.permute.xlu0 %3304
        %3306 = vrot.lane.b32.xlu0 %v3083, 32
        %v3307 = vpop.permute.xlu0 %3306
        %3308 = vrot.lane.b32.xlu0 %v3093, 32
        %v3309 = vpop.permute.xlu0 %3308
        %3310 = vrot.lane.b32.xlu0 %v3103, 32
        %v3311 = vpop.permute.xlu0 %3310
        %3312 = vrot.lane.b32.xlu0 %v3113, 32
        %v3313 = vpop.permute.xlu0 %3312
        %3314 = vrot.lane.b32.xlu0 %v3123, 32
        %v3315 = vpop.permute.xlu0 %3314
        %3316 = vrot.lane.b32.xlu0 %v3133, 32
        %v3317 = vpop.permute.xlu0 %3316
        %3318 = vrot.lane.b32.xlu0 %v3143, 32
        %v3319 = vpop.permute.xlu0 %3318
        %3320 = vrot.lane.b32.xlu0 %v3153, 32
        %v3321 = vpop.permute.xlu0 %3320
        %3322 = vrot.lane.b32.xlu0 %v3163, 32
        %v3323 = vpop.permute.xlu0 %3322
        %3324 = vrot.lane.b32.xlu0 %v3173, 32
        %v3325 = vpop.permute.xlu0 %3324
        %3326 = vrot.lane.b32.xlu0 %v3183, 32
        %v3327 = vpop.permute.xlu0 %3326
        %3328 = vrot.lane.b32.xlu0 %v3193, 32
        %v3329 = vpop.permute.xlu0 %3328
        %3330 = vrot.lane.b32.xlu0 %v3203, 32
        %v3331 = vpop.permute.xlu0 %3330
        %3332 = vrot.lane.b32.xlu0 %v3213, 32
        %v3333 = vpop.permute.xlu0 %3332
        %3334 = vrot.lane.b32.xlu0 %v3223, 32
        %v3335 = vpop.permute.xlu0 %3334
        %3336 = vrot.lane.b32.xlu0 %v3233, 32
        %v3337 = vpop.permute.xlu0 %3336
        %3338 = vrot.lane.b32.xlu0 %v3243, 32
        %v3339 = vpop.permute.xlu0 %3338
        %3340 = vrot.lane.b32.xlu0 %v3253, 32
        %v3341 = vpop.permute.xlu0 %3340
        %3342 = vrot.lane.b32.xlu0 %v3263, 32
        %v3343 = vpop.permute.xlu0 %3342
        %vm3384 = vcmask 1044224
        %3385 = vst.msk [vmem:[#allocation2 + $0x10] sm:$0xf] %vm3384, %v3265
        %3386 = vst.msk [vmem:[#allocation2 + $0x18] sm:$0xf] %vm3384, %v3267
        %3387 = vst.msk [vmem:[#allocation2 + $0x20] sm:$0xf] %vm3384, %v3269
        %3388 = vst.msk [vmem:[#allocation2 + $0x28] sm:$0xf] %vm3384, %v3271
        %3389 = vst.msk [vmem:[#allocation2 + $0x30] sm:$0xf] %vm3384, %v3273
        %3390 = vst.msk [vmem:[#allocation2 + $0x38] sm:$0xf] %vm3384, %v3275
        %3391 = vst.msk [vmem:[#allocation2 + $0x40] sm:$0xf] %vm3384, %v3277
        %3392 = vst.msk [vmem:[#allocation2 + $0x48] sm:$0xf] %vm3384, %v3279
        %3393 = vst.msk [vmem:[#allocation2 + $0x50] sm:$0xf] %vm3384, %v3281
        %3394 = vst.msk [vmem:[#allocation2 + $0x58] sm:$0xf] %vm3384, %v3283
        %3395 = vst.msk [vmem:[#allocation2 + $0x60] sm:$0xf] %vm3384, %v3285
        %3396 = vst.msk [vmem:[#allocation2 + $0x68] sm:$0xf] %vm3384, %v3287
        %3397 = vst.msk [vmem:[#allocation2 + $0x70] sm:$0xf] %vm3384, %v3289
        %3398 = vst.msk [vmem:[#allocation2 + $0x78] sm:$0xf] %vm3384, %v3291
        %3399 = vst.msk [vmem:[#allocation2 + $0x80] sm:$0xf] %vm3384, %v3293
        %3400 = vst.msk [vmem:[#allocation2 + $0x88] sm:$0xf] %vm3384, %v3295
        %3401 = vst.msk [vmem:[#allocation2 + $0x90] sm:$0xf] %vm3384, %v3297
        %3402 = vst.msk [vmem:[#allocation2 + $0x98] sm:$0xf] %vm3384, %v3299
        %3403 = vst.msk [vmem:[#allocation2 + $0xa0] sm:$0xf] %vm3384, %v3301
        %3404 = vst.msk [vmem:[#allocation2 + $0xa8] sm:$0xf] %vm3384, %v3303
        %3405 = vst.msk [vmem:[#allocation2 + $0xb0] sm:$0xf] %vm3384, %v3305
        %3406 = vst.msk [vmem:[#allocation2 + $0xb8] sm:$0xf] %vm3384, %v3307
        %3407 = vst.msk [vmem:[#allocation2 + $0xc0] sm:$0xf] %vm3384, %v3309
        %3408 = vst.msk [vmem:[#allocation2 + $0xc8] sm:$0xf] %vm3384, %v3311
        %3409 = vst.msk [vmem:[#allocation2 + $0xd0] sm:$0xf] %vm3384, %v3313
        %3410 = vst.msk [vmem:[#allocation2 + $0xd8] sm:$0xf] %vm3384, %v3315
        %3411 = vst.msk [vmem:[#allocation2 + $0xe0] sm:$0xf] %vm3384, %v3317
        %3412 = vst.msk [vmem:[#allocation2 + $0xe8] sm:$0xf] %vm3384, %v3319
        %3413 = vst.msk [vmem:[#allocation2 + $0xf0] sm:$0xf] %vm3384, %v3321
        %3414 = vst.msk [vmem:[#allocation2 + $0xf8] sm:$0xf] %vm3384, %v3323
        %3415 = vst.msk [vmem:[#allocation2 + $0x100] sm:$0xf] %vm3384, %v3325
        %3416 = vst.msk [vmem:[#allocation2 + $0x108] sm:$0xf] %vm3384, %v3327
        %3417 = vst.msk [vmem:[#allocation2 + $0x110] sm:$0xf] %vm3384, %v3329
        %3418 = vst.msk [vmem:[#allocation2 + $0x118] sm:$0xf] %vm3384, %v3331
        %3419 = vst.msk [vmem:[#allocation2 + $0x120] sm:$0xf] %vm3384, %v3333
        %3420 = vst.msk [vmem:[#allocation2 + $0x128] sm:$0xf] %vm3384, %v3335
        %3421 = vst.msk [vmem:[#allocation2 + $0x130] sm:$0xf] %vm3384, %v3337
        %3422 = vst.msk [vmem:[#allocation2 + $0x138] sm:$0xf] %vm3384, %v3339
        %3423 = vst.msk [vmem:[#allocation2 + $0x140] sm:$0xf] %vm3384, %v3341
        %3424 = vst.msk [vmem:[#allocation2 + $0x148] sm:$0xf] %vm3384, %v3343
        %v3425 = vld [vmem:[#allocation2 + $0x10] sm:$0xe]
        %v3426 = vld [vmem:[#allocation2 + $0x18] sm:$0xf]
        %v3427 = vld [vmem:[#allocation2 + $0x20] sm:$0xf]
        %v3428 = vld [vmem:[#allocation2 + $0x28] sm:$0xf]
        %v3429 = vld [vmem:[#allocation2 + $0x30] sm:$0xf]
        %v3430 = vld [vmem:[#allocation2 + $0x38] sm:$0xf]
        %v3431 = vld [vmem:[#allocation2 + $0x40] sm:$0xf]
        %v3432 = vld [vmem:[#allocation2 + $0x48] sm:$0xf]
        %v3433 = vld [vmem:[#allocation2 + $0x50] sm:$0xf]
        %v3434 = vld [vmem:[#allocation2 + $0x58] sm:$0xf]
        %v3435 = vld [vmem:[#allocation2 + $0x60] sm:$0xf]
        %v3436 = vld [vmem:[#allocation2 + $0x68] sm:$0xf]
        %v3437 = vld [vmem:[#allocation2 + $0x70] sm:$0xf]
        %v3438 = vld [vmem:[#allocation2 + $0x78] sm:$0xf]
        %v3439 = vld [vmem:[#allocation2 + $0x80] sm:$0xf]
        %v3440 = vld [vmem:[#allocation2 + $0x88] sm:$0xf]
        %v3441 = vld [vmem:[#allocation2 + $0x90] sm:$0xf]
        %v3442 = vld [vmem:[#allocation2 + $0x98] sm:$0xf]
        %v3443 = vld [vmem:[#allocation2 + $0xa0] sm:$0xf]
        %v3444 = vld [vmem:[#allocation2 + $0xa8] sm:$0xf]
        %v3445 = vld [vmem:[#allocation2 + $0xb0] sm:$0xf]
        %v3446 = vld [vmem:[#allocation2 + $0xb8] sm:$0xf]
        %v3447 = vld [vmem:[#allocation2 + $0xc0] sm:$0xf]
        %v3448 = vld [vmem:[#allocation2 + $0xc8] sm:$0xf]
        %v3449 = vld [vmem:[#allocation2 + $0xd0] sm:$0xf]
        %v3450 = vld [vmem:[#allocation2 + $0xd8] sm:$0xf]
        %v3451 = vld [vmem:[#allocation2 + $0xe0] sm:$0xf]
        %v3452 = vld [vmem:[#allocation2 + $0xe8] sm:$0xf]
        %v3453 = vld [vmem:[#allocation2 + $0xf0] sm:$0xf]
        %v3454 = vld [vmem:[#allocation2 + $0xf8] sm:$0xf]
        %v3455 = vld [vmem:[#allocation2 + $0x100] sm:$0xf]
        %v3456 = vld [vmem:[#allocation2 + $0x108] sm:$0xf]
        %v3457 = vld [vmem:[#allocation2 + $0x110] sm:$0xf]
        %v3458 = vld [vmem:[#allocation2 + $0x118] sm:$0xf]
        %v3459 = vld [vmem:[#allocation2 + $0x120] sm:$0xf]
        %v3460 = vld [vmem:[#allocation2 + $0x128] sm:$0xf]
        %v3461 = vld [vmem:[#allocation2 + $0x130] sm:$0xf]
        %v3462 = vld [vmem:[#allocation2 + $0x138] sm:$0xf]
        %v3463 = vld [vmem:[#allocation2 + $0x140] sm:$0xf]
        %v3464 = vld [vmem:[#allocation2 + $0x148] sm:$0xf]
        %v3465 = vld [vmem:[#allocation2 + $0x150] sm:$0x1]
        %v3466 = vld [vmem:[%s7 + $0x14] sm:$0xf]
        %v3467 = vld [vmem:[%s7 + $0x1c] sm:$0xf]
        %v3468 = vld [vmem:[%s7 + $0x24] sm:$0xf]
        %v3469 = vld [vmem:[%s7 + $0x2c] sm:$0xf]
        %v3470 = vld [vmem:[%s7 + $0x34] sm:$0xf]
        %v3471 = vld [vmem:[%s7 + $0x3c] sm:$0xf]
        %v3472 = vld [vmem:[%s7 + $0x44] sm:$0xf]
        %v3473 = vld [vmem:[%s7 + $0x4c] sm:$0xf]
        %v3474 = vld [vmem:[%s7 + $0x54] sm:$0xf]
        %v3475 = vld [vmem:[%s7 + $0x5c] sm:$0xf]
        %v3476 = vld [vmem:[%s7 + $0x64] sm:$0xf]
        %v3477 = vld [vmem:[%s7 + $0x6c] sm:$0xf]
        %v3478 = vld [vmem:[%s7 + $0x74] sm:$0xf]
        %v3479 = vld [vmem:[%s7 + $0x7c] sm:$0xf]
        %v3480 = vld [vmem:[%s7 + $0x84] sm:$0xf]
        %v3481 = vld [vmem:[%s7 + $0x8c] sm:$0xf]
        %v3482 = vld [vmem:[%s7 + $0x94] sm:$0xf]
        %v3483 = vld [vmem:[%s7 + $0x9c] sm:$0xf]
        %v3484 = vld [vmem:[%s7 + $0xa4] sm:$0xf]
        %v3485 = vld [vmem:[%s7 + $0xac] sm:$0xf]
        %v3486 = vld [vmem:[%s7 + $0xb4] sm:$0xf]
        %v3487 = vld [vmem:[%s7 + $0xbc] sm:$0xf]
        %v3488 = vld [vmem:[%s7 + $0xc4] sm:$0xf]
        %v3489 = vld [vmem:[%s7 + $0xcc] sm:$0xf]
        %v3490 = vld [vmem:[%s7 + $0xd4] sm:$0xf]
        %v3491 = vld [vmem:[%s7 + $0xdc] sm:$0xf]
        %v3492 = vld [vmem:[%s7 + $0xe4] sm:$0xf]
        %v3493 = vld [vmem:[%s7 + $0xec] sm:$0xf]
        %v3494 = vld [vmem:[%s7 + $0xf4] sm:$0xf]
        %v3495 = vld [vmem:[%s7 + $0xfc] sm:$0xf]
        %v3496 = vld [vmem:[%s7 + $0x104] sm:$0xf]
        %v3497 = vld [vmem:[%s7 + $0x10c] sm:$0xf]
        %v3498 = vld [vmem:[%s7 + $0x114] sm:$0xf]
        %v3499 = vld [vmem:[%s7 + $0x11c] sm:$0xf]
        %v3500 = vld [vmem:[%s7 + $0x124] sm:$0xf]
        %v3501 = vld [vmem:[%s7 + $0x12c] sm:$0xf]
        %v3502 = vld [vmem:[%s7 + $0x134] sm:$0xf]
        %v3503 = vld [vmem:[%s7 + $0x13c] sm:$0xf]
        %v3504 = vld [vmem:[%s7 + $0x144] sm:$0xf]
        %v3505 = vld [vmem:[%s7 + $0x14c] sm:$0xf]
        %v3506 = vunpack.c.l.bf16 %v3425
        %v3507 = vunpack.c.l.bf16 %v3426
        %v3508 = vunpack.c.l.bf16 %v3427
        %v3509 = vunpack.c.l.bf16 %v3428
        %v3510 = vunpack.c.l.bf16 %v3429
        %v3511 = vunpack.c.l.bf16 %v3430
        %v3512 = vunpack.c.l.bf16 %v3431
        %v3513 = vunpack.c.l.bf16 %v3432
        %v3514 = vunpack.c.l.bf16 %v3433
        %v3515 = vunpack.c.l.bf16 %v3434
        %v3516 = vunpack.c.l.bf16 %v3435
        %v3517 = vunpack.c.l.bf16 %v3436
        %v3518 = vunpack.c.l.bf16 %v3437
        %v3519 = vunpack.c.l.bf16 %v3438
        %v3520 = vunpack.c.l.bf16 %v3439
        %v3521 = vunpack.c.l.bf16 %v3440
        %v3522 = vunpack.c.l.bf16 %v3441
        %v3523 = vunpack.c.l.bf16 %v3442
        %v3524 = vunpack.c.l.bf16 %v3443
        %v3525 = vunpack.c.l.bf16 %v3444
        %v3526 = vunpack.c.l.bf16 %v3445
        %v3527 = vunpack.c.l.bf16 %v3446
        %v3528 = vunpack.c.l.bf16 %v3447
        %v3529 = vunpack.c.l.bf16 %v3448
        %v3530 = vunpack.c.l.bf16 %v3449
        %v3531 = vunpack.c.l.bf16 %v3450
        %v3532 = vunpack.c.l.bf16 %v3451
        %v3533 = vunpack.c.l.bf16 %v3452
        %v3534 = vunpack.c.l.bf16 %v3453
        %v3535 = vunpack.c.l.bf16 %v3454
        %v3536 = vunpack.c.l.bf16 %v3455
        %v3537 = vunpack.c.l.bf16 %v3456
        %v3538 = vunpack.c.l.bf16 %v3457
        %v3539 = vunpack.c.l.bf16 %v3458
        %v3540 = vunpack.c.l.bf16 %v3459
        %v3541 = vunpack.c.l.bf16 %v3460
        %v3542 = vunpack.c.l.bf16 %v3461
        %v3543 = vunpack.c.l.bf16 %v3462
        %v3544 = vunpack.c.l.bf16 %v3463
        %v3545 = vunpack.c.l.bf16 %v3464
        %v3546 = vunpack.c.l.bf16 %v3465
        %v3547 = vunpack.c.l.bf16 %v3466
        %v3548 = vunpack.c.l.bf16 %v3467
        %v3549 = vunpack.c.l.bf16 %v3468
        %v3550 = vunpack.c.l.bf16 %v3469
        %v3551 = vunpack.c.l.bf16 %v3470
        %v3552 = vunpack.c.l.bf16 %v3471
        %v3553 = vunpack.c.l.bf16 %v3472
        %v3554 = vunpack.c.l.bf16 %v3473
        %v3555 = vunpack.c.l.bf16 %v3474
        %v3556 = vunpack.c.l.bf16 %v3475
        %v3557 = vunpack.c.l.bf16 %v3476
        %v3558 = vunpack.c.l.bf16 %v3477
        %v3559 = vunpack.c.l.bf16 %v3478
        %v3560 = vunpack.c.l.bf16 %v3479
        %v3561 = vunpack.c.l.bf16 %v3480
        %v3562 = vunpack.c.l.bf16 %v3481
        %v3563 = vunpack.c.l.bf16 %v3482
        %v3564 = vunpack.c.l.bf16 %v3483
        %v3565 = vunpack.c.l.bf16 %v3484
        %v3566 = vunpack.c.l.bf16 %v3485
        %v3567 = vunpack.c.l.bf16 %v3486
        %v3568 = vunpack.c.l.bf16 %v3487
        %v3569 = vunpack.c.l.bf16 %v3488
        %v3570 = vunpack.c.l.bf16 %v3489
        %v3571 = vunpack.c.l.bf16 %v3490
        %v3572 = vunpack.c.l.bf16 %v3491
        %v3573 = vunpack.c.l.bf16 %v3492
        %v3574 = vunpack.c.l.bf16 %v3493
        %v3575 = vunpack.c.l.bf16 %v3494
        %v3576 = vunpack.c.l.bf16 %v3495
        %v3577 = vunpack.c.l.bf16 %v3496
        %v3578 = vunpack.c.l.bf16 %v3497
        %v3579 = vunpack.c.l.bf16 %v3498
        %v3580 = vunpack.c.l.bf16 %v3499
        %v3581 = vunpack.c.l.bf16 %v3500
        %v3582 = vunpack.c.l.bf16 %v3501
        %v3583 = vunpack.c.l.bf16 %v3502
        %v3584 = vunpack.c.l.bf16 %v3503
        %v3585 = vunpack.c.l.bf16 %v3504
        %v3586 = vunpack.c.l.bf16 %v3505
        %vm3627 = vcmask 1041408
        %v3628 = vrot.slane %v3547, 6
        %v3629 = vrot.slane %v3548, 6
        %v3630 = vsel %vm3627, %v3628, %v3629
        %v3631 = vrot.slane %v3549, 6
        %v3632 = vsel %vm3627, %v3629, %v3631
        %v3633 = vrot.slane %v3550, 6
        %v3634 = vsel %vm3627, %v3631, %v3633
        %v3635 = vrot.slane %v3551, 6
        %v3636 = vsel %vm3627, %v3633, %v3635
        %v3637 = vrot.slane %v3552, 6
        %v3638 = vsel %vm3627, %v3635, %v3637
        %v3639 = vrot.slane %v3553, 6
        %v3640 = vsel %vm3627, %v3637, %v3639
        %v3641 = vrot.slane %v3554, 6
        %v3642 = vsel %vm3627, %v3639, %v3641
        %v3643 = vrot.slane %v3555, 6
        %v3644 = vsel %vm3627, %v3641, %v3643
        %v3645 = vrot.slane %v3556, 6
        %v3646 = vsel %vm3627, %v3643, %v3645
        %v3647 = vrot.slane %v3557, 6
        %v3648 = vsel %vm3627, %v3645, %v3647
        %v3649 = vrot.slane %v3558, 6
        %v3650 = vsel %vm3627, %v3647, %v3649
        %v3651 = vrot.slane %v3559, 6
        %v3652 = vsel %vm3627, %v3649, %v3651
        %v3653 = vrot.slane %v3560, 6
        %v3654 = vsel %vm3627, %v3651, %v3653
        %v3655 = vrot.slane %v3561, 6
        %v3656 = vsel %vm3627, %v3653, %v3655
        %v3657 = vrot.slane %v3562, 6
        %v3658 = vsel %vm3627, %v3655, %v3657
        %v3659 = vrot.slane %v3563, 6
        %v3660 = vsel %vm3627, %v3657, %v3659
        %v3661 = vrot.slane %v3564, 6
        %v3662 = vsel %vm3627, %v3659, %v3661
        %v3663 = vrot.slane %v3565, 6
        %v3664 = vsel %vm3627, %v3661, %v3663
        %v3665 = vrot.slane %v3566, 6
        %v3666 = vsel %vm3627, %v3663, %v3665
        %v3667 = vrot.slane %v3567, 6
        %v3668 = vsel %vm3627, %v3665, %v3667
        %v3669 = vrot.slane %v3568, 6
        %v3670 = vsel %vm3627, %v3667, %v3669
        %v3671 = vrot.slane %v3569, 6
        %v3672 = vsel %vm3627, %v3669, %v3671
        %v3673 = vrot.slane %v3570, 6
        %v3674 = vsel %vm3627, %v3671, %v3673
        %v3675 = vrot.slane %v3571, 6
        %v3676 = vsel %vm3627, %v3673, %v3675
        %v3677 = vrot.slane %v3572, 6
        %v3678 = vsel %vm3627, %v3675, %v3677
        %v3679 = vrot.slane %v3573, 6
        %v3680 = vsel %vm3627, %v3677, %v3679
        %v3681 = vrot.slane %v3574, 6
        %v3682 = vsel %vm3627, %v3679, %v3681
        %v3683 = vrot.slane %v3575, 6
        %v3684 = vsel %vm3627, %v3681, %v3683
        %v3685 = vrot.slane %v3576, 6
        %v3686 = vsel %vm3627, %v3683, %v3685
        %v3687 = vrot.slane %v3577, 6
        %v3688 = vsel %vm3627, %v3685, %v3687
        %v3689 = vrot.slane %v3578, 6
        %v3690 = vsel %vm3627, %v3687, %v3689
        %v3691 = vrot.slane %v3579, 6
        %v3692 = vsel %vm3627, %v3689, %v3691
        %v3693 = vrot.slane %v3580, 6
        %v3694 = vsel %vm3627, %v3691, %v3693
        %v3695 = vrot.slane %v3581, 6
        %v3696 = vsel %vm3627, %v3693, %v3695
        %v3697 = vrot.slane %v3582, 6
        %v3698 = vsel %vm3627, %v3695, %v3697
        %v3699 = vrot.slane %v3583, 6
        %v3700 = vsel %vm3627, %v3697, %v3699
        %v3701 = vrot.slane %v3584, 6
        %v3702 = vsel %vm3627, %v3699, %v3701
        %v3703 = vrot.slane %v3585, 6
        %v3704 = vsel %vm3627, %v3701, %v3703
        %v3705 = vrot.slane %v3586, 6
        %v3706 = vsel %vm3627, %v3703, %v3705
        %3707 = vrot.lane.b32.xlu0 %v3628, 64
        %v3708 = vpop.permute.xlu0 %3707
        %3709 = vrot.lane.b32.xlu0 %v3630, 64
        %v3710 = vpop.permute.xlu0 %3709
        %3711 = vrot.lane.b32.xlu0 %v3632, 64
        %v3712 = vpop.permute.xlu0 %3711
        %3713 = vrot.lane.b32.xlu0 %v3634, 64
        %v3714 = vpop.permute.xlu0 %3713
        %3715 = vrot.lane.b32.xlu0 %v3636, 64
        %v3716 = vpop.permute.xlu0 %3715
        %3717 = vrot.lane.b32.xlu0 %v3638, 64
        %v3718 = vpop.permute.xlu0 %3717
        %3719 = vrot.lane.b32.xlu0 %v3640, 64
        %v3720 = vpop.permute.xlu0 %3719
        %3721 = vrot.lane.b32.xlu0 %v3642, 64
        %v3722 = vpop.permute.xlu0 %3721
        %3723 = vrot.lane.b32.xlu0 %v3644, 64
        %v3724 = vpop.permute.xlu0 %3723
        %3725 = vrot.lane.b32.xlu0 %v3646, 64
        %v3726 = vpop.permute.xlu0 %3725
        %3727 = vrot.lane.b32.xlu0 %v3648, 64
        %v3728 = vpop.permute.xlu0 %3727
        %3729 = vrot.lane.b32.xlu0 %v3650, 64
        %v3730 = vpop.permute.xlu0 %3729
        %3731 = vrot.lane.b32.xlu0 %v3652, 64
        %v3732 = vpop.permute.xlu0 %3731
        %3733 = vrot.lane.b32.xlu0 %v3654, 64
        %v3734 = vpop.permute.xlu0 %3733
        %3735 = vrot.lane.b32.xlu0 %v3656, 64
        %v3736 = vpop.permute.xlu0 %3735
        %3737 = vrot.lane.b32.xlu0 %v3658, 64
        %v3738 = vpop.permute.xlu0 %3737
        %3739 = vrot.lane.b32.xlu0 %v3660, 64
        %v3740 = vpop.permute.xlu0 %3739
        %3741 = vrot.lane.b32.xlu0 %v3662, 64
        %v3742 = vpop.permute.xlu0 %3741
        %3743 = vrot.lane.b32.xlu0 %v3664, 64
        %v3744 = vpop.permute.xlu0 %3743
        %3745 = vrot.lane.b32.xlu0 %v3666, 64
        %v3746 = vpop.permute.xlu0 %3745
        %3747 = vrot.lane.b32.xlu0 %v3668, 64
        %v3748 = vpop.permute.xlu0 %3747
        %3749 = vrot.lane.b32.xlu0 %v3670, 64
        %v3750 = vpop.permute.xlu0 %3749
        %3751 = vrot.lane.b32.xlu0 %v3672, 64
        %v3752 = vpop.permute.xlu0 %3751
        %3753 = vrot.lane.b32.xlu0 %v3674, 64
        %v3754 = vpop.permute.xlu0 %3753
        %3755 = vrot.lane.b32.xlu0 %v3676, 64
        %v3756 = vpop.permute.xlu0 %3755
        %3757 = vrot.lane.b32.xlu0 %v3678, 64
        %v3758 = vpop.permute.xlu0 %3757
        %3759 = vrot.lane.b32.xlu0 %v3680, 64
        %v3760 = vpop.permute.xlu0 %3759
        %3761 = vrot.lane.b32.xlu0 %v3682, 64
        %v3762 = vpop.permute.xlu0 %3761
        %3763 = vrot.lane.b32.xlu0 %v3684, 64
        %v3764 = vpop.permute.xlu0 %3763
        %3765 = vrot.lane.b32.xlu0 %v3686, 64
        %v3766 = vpop.permute.xlu0 %3765
        %3767 = vrot.lane.b32.xlu0 %v3688, 64
        %v3768 = vpop.permute.xlu0 %3767
        %3769 = vrot.lane.b32.xlu0 %v3690, 64
        %v3770 = vpop.permute.xlu0 %3769
        %3771 = vrot.lane.b32.xlu0 %v3692, 64
        %v3772 = vpop.permute.xlu0 %3771
        %3773 = vrot.lane.b32.xlu0 %v3694, 64
        %v3774 = vpop.permute.xlu0 %3773
        %3775 = vrot.lane.b32.xlu0 %v3696, 64
        %v3776 = vpop.permute.xlu0 %3775
        %3777 = vrot.lane.b32.xlu0 %v3698, 64
        %v3778 = vpop.permute.xlu0 %3777
        %3779 = vrot.lane.b32.xlu0 %v3700, 64
        %v3780 = vpop.permute.xlu0 %3779
        %3781 = vrot.lane.b32.xlu0 %v3702, 64
        %v3782 = vpop.permute.xlu0 %3781
        %3783 = vrot.lane.b32.xlu0 %v3704, 64
        %v3784 = vpop.permute.xlu0 %3783
        %3785 = vrot.lane.b32.xlu0 %v3706, 64
        %v3786 = vpop.permute.xlu0 %3785
        %3787 = vrot.lane.b32.xlu0 %v3705, 64
        %v3788 = vpop.permute.xlu0 %3787
        %v3830 = vmul.f32 %v3506, %v3708
        %v3831 = vmul.f32 %v3507, %v3710
        %v3832 = vmul.f32 %v3508, %v3712
        %v3833 = vmul.f32 %v3509, %v3714
        %v3834 = vmul.f32 %v3510, %v3716
        %v3835 = vmul.f32 %v3511, %v3718
        %v3836 = vmul.f32 %v3512, %v3720
        %v3837 = vmul.f32 %v3513, %v3722
        %v3838 = vmul.f32 %v3514, %v3724
        %v3839 = vmul.f32 %v3515, %v3726
        %v3840 = vmul.f32 %v3516, %v3728
        %v3841 = vmul.f32 %v3517, %v3730
        %v3842 = vmul.f32 %v3518, %v3732
        %v3843 = vmul.f32 %v3519, %v3734
        %v3844 = vmul.f32 %v3520, %v3736
        %v3845 = vmul.f32 %v3521, %v3738
        %v3846 = vmul.f32 %v3522, %v3740
        %v3847 = vmul.f32 %v3523, %v3742
        %v3848 = vmul.f32 %v3524, %v3744
        %v3849 = vmul.f32 %v3525, %v3746
        %v3850 = vmul.f32 %v3526, %v3748
        %v3851 = vmul.f32 %v3527, %v3750
        %v3852 = vmul.f32 %v3528, %v3752
        %v3853 = vmul.f32 %v3529, %v3754
        %v3854 = vmul.f32 %v3530, %v3756
        %v3855 = vmul.f32 %v3531, %v3758
        %v3856 = vmul.f32 %v3532, %v3760
        %v3857 = vmul.f32 %v3533, %v3762
        %v3858 = vmul.f32 %v3534, %v3764
        %v3859 = vmul.f32 %v3535, %v3766
        %v3860 = vmul.f32 %v3536, %v3768
        %v3861 = vmul.f32 %v3537, %v3770
        %v3862 = vmul.f32 %v3538, %v3772
        %v3863 = vmul.f32 %v3539, %v3774
        %v3864 = vmul.f32 %v3540, %v3776
        %v3865 = vmul.f32 %v3541, %v3778
        %v3866 = vmul.f32 %v3542, %v3780
        %v3867 = vmul.f32 %v3543, %v3782
        %v3868 = vmul.f32 %v3544, %v3784
        %v3869 = vmul.f32 %v3545, %v3786
        %v3870 = vmul.f32 %v3546, %v3788
        %v3871 = vpack.c.bf16 %v3830, %v3830
        %v3872 = vpack.c.bf16 %v3831, %v3831
        %v3873 = vpack.c.bf16 %v3832, %v3832
        %v3874 = vpack.c.bf16 %v3833, %v3833
        %v3875 = vpack.c.bf16 %v3834, %v3834
        %v3876 = vpack.c.bf16 %v3835, %v3835
        %v3877 = vpack.c.bf16 %v3836, %v3836
        %v3878 = vpack.c.bf16 %v3837, %v3837
        %v3879 = vpack.c.bf16 %v3838, %v3838
        %v3880 = vpack.c.bf16 %v3839, %v3839
        %v3881 = vpack.c.bf16 %v3840, %v3840
        %v3882 = vpack.c.bf16 %v3841, %v3841
        %v3883 = vpack.c.bf16 %v3842, %v3842
        %v3884 = vpack.c.bf16 %v3843, %v3843
        %v3885 = vpack.c.bf16 %v3844, %v3844
        %v3886 = vpack.c.bf16 %v3845, %v3845
        %v3887 = vpack.c.bf16 %v3846, %v3846
        %v3888 = vpack.c.bf16 %v3847, %v3847
        %v3889 = vpack.c.bf16 %v3848, %v3848
        %v3890 = vpack.c.bf16 %v3849, %v3849
        %v3891 = vpack.c.bf16 %v3850, %v3850
        %v3892 = vpack.c.bf16 %v3851, %v3851
        %v3893 = vpack.c.bf16 %v3852, %v3852
        %v3894 = vpack.c.bf16 %v3853, %v3853
        %v3895 = vpack.c.bf16 %v3854, %v3854
        %v3896 = vpack.c.bf16 %v3855, %v3855
        %v3897 = vpack.c.bf16 %v3856, %v3856
        %v3898 = vpack.c.bf16 %v3857, %v3857
        %v3899 = vpack.c.bf16 %v3858, %v3858
        %v3900 = vpack.c.bf16 %v3859, %v3859
        %v3901 = vpack.c.bf16 %v3860, %v3860
        %v3902 = vpack.c.bf16 %v3861, %v3861
        %v3903 = vpack.c.bf16 %v3862, %v3862
        %v3904 = vpack.c.bf16 %v3863, %v3863
        %v3905 = vpack.c.bf16 %v3864, %v3864
        %v3906 = vpack.c.bf16 %v3865, %v3865
        %v3907 = vpack.c.bf16 %v3866, %v3866
        %v3908 = vpack.c.bf16 %v3867, %v3867
        %v3909 = vpack.c.bf16 %v3868, %v3868
        %v3910 = vpack.c.bf16 %v3869, %v3869
        %v3911 = vpack.c.bf16 %v3870, %v3870
        %vm3953 = vcmask 1042432
        %vm3954 = vcmask 1046532
        %vm3955 = vmor %vm3953, %vm3954
        %v3956 = vrot.slane %v3871, 5
        %v3957 = vrot.slane %v3956, 4
        %v3958 = vrot.slane %v3872, 5
        %v3959 = vsel %vm3955, %v3957, %v3958
        %v3960 = vrot.slane %v3958, 4
        %v3961 = vrot.slane %v3873, 5
        %v3962 = vsel %vm3955, %v3960, %v3961
        %v3963 = vrot.slane %v3961, 4
        %v3964 = vrot.slane %v3874, 5
        %v3965 = vsel %vm3955, %v3963, %v3964
        %v3966 = vrot.slane %v3964, 4
        %v3967 = vrot.slane %v3875, 5
        %v3968 = vsel %vm3955, %v3966, %v3967
        %v3969 = vrot.slane %v3967, 4
        %v3970 = vrot.slane %v3876, 5
        %v3971 = vsel %vm3955, %v3969, %v3970
        %v3972 = vrot.slane %v3970, 4
        %v3973 = vrot.slane %v3877, 5
        %v3974 = vsel %vm3955, %v3972, %v3973
        %v3975 = vrot.slane %v3973, 4
        %v3976 = vrot.slane %v3878, 5
        %v3977 = vsel %vm3955, %v3975, %v3976
        %v3978 = vrot.slane %v3976, 4
        %v3979 = vrot.slane %v3879, 5
        %v3980 = vsel %vm3955, %v3978, %v3979
        %v3981 = vrot.slane %v3979, 4
        %v3982 = vrot.slane %v3880, 5
        %v3983 = vsel %vm3955, %v3981, %v3982
        %v3984 = vrot.slane %v3982, 4
        %v3985 = vrot.slane %v3881, 5
        %v3986 = vsel %vm3955, %v3984, %v3985
        %v3987 = vrot.slane %v3985, 4
        %v3988 = vrot.slane %v3882, 5
        %v3989 = vsel %vm3955, %v3987, %v3988
        %v3990 = vrot.slane %v3988, 4
        %v3991 = vrot.slane %v3883, 5
        %v3992 = vsel %vm3955, %v3990, %v3991
        %v3993 = vrot.slane %v3991, 4
        %v3994 = vrot.slane %v3884, 5
        %v3995 = vsel %vm3955, %v3993, %v3994
        %v3996 = vrot.slane %v3994, 4
        %v3997 = vrot.slane %v3885, 5
        %v3998 = vsel %vm3955, %v3996, %v3997
        %v3999 = vrot.slane %v3997, 4
        %v4000 = vrot.slane %v3886, 5
        %v4001 = vsel %vm3955, %v3999, %v4000
        %v4002 = vrot.slane %v4000, 4
        %v4003 = vrot.slane %v3887, 5
        %v4004 = vsel %vm3955, %v4002, %v4003
        %v4005 = vrot.slane %v4003, 4
        %v4006 = vrot.slane %v3888, 5
        %v4007 = vsel %vm3955, %v4005, %v4006
        %v4008 = vrot.slane %v4006, 4
        %v4009 = vrot.slane %v3889, 5
        %v4010 = vsel %vm3955, %v4008, %v4009
        %v4011 = vrot.slane %v4009, 4
        %v4012 = vrot.slane %v3890, 5
        %v4013 = vsel %vm3955, %v4011, %v4012
        %v4014 = vrot.slane %v4012, 4
        %v4015 = vrot.slane %v3891, 5
        %v4016 = vsel %vm3955, %v4014, %v4015
        %v4017 = vrot.slane %v4015, 4
        %v4018 = vrot.slane %v3892, 5
        %v4019 = vsel %vm3955, %v4017, %v4018
        %v4020 = vrot.slane %v4018, 4
        %v4021 = vrot.slane %v3893, 5
        %v4022 = vsel %vm3955, %v4020, %v4021
        %v4023 = vrot.slane %v4021, 4
        %v4024 = vrot.slane %v3894, 5
        %v4025 = vsel %vm3955, %v4023, %v4024
        %v4026 = vrot.slane %v4024, 4
        %v4027 = vrot.slane %v3895, 5
        %v4028 = vsel %vm3955, %v4026, %v4027
        %v4029 = vrot.slane %v4027, 4
        %v4030 = vrot.slane %v3896, 5
        %v4031 = vsel %vm3955, %v4029, %v4030
        %v4032 = vrot.slane %v4030, 4
        %v4033 = vrot.slane %v3897, 5
        %v4034 = vsel %vm3955, %v4032, %v4033
        %v4035 = vrot.slane %v4033, 4
        %v4036 = vrot.slane %v3898, 5
        %v4037 = vsel %vm3955, %v4035, %v4036
        %v4038 = vrot.slane %v4036, 4
        %v4039 = vrot.slane %v3899, 5
        %v4040 = vsel %vm3955, %v4038, %v4039
        %v4041 = vrot.slane %v4039, 4
        %v4042 = vrot.slane %v3900, 5
        %v4043 = vsel %vm3955, %v4041, %v4042
        %v4044 = vrot.slane %v4042, 4
        %v4045 = vrot.slane %v3901, 5
        %v4046 = vsel %vm3955, %v4044, %v4045
        %v4047 = vrot.slane %v4045, 4
        %v4048 = vrot.slane %v3902, 5
        %v4049 = vsel %vm3955, %v4047, %v4048
        %v4050 = vrot.slane %v4048, 4
        %v4051 = vrot.slane %v3903, 5
        %v4052 = vsel %vm3955, %v4050, %v4051
        %v4053 = vrot.slane %v4051, 4
        %v4054 = vrot.slane %v3904, 5
        %v4055 = vsel %vm3955, %v4053, %v4054
        %v4056 = vrot.slane %v4054, 4
        %v4057 = vrot.slane %v3905, 5
        %v4058 = vsel %vm3955, %v4056, %v4057
        %v4059 = vrot.slane %v4057, 4
        %v4060 = vrot.slane %v3906, 5
        %v4061 = vsel %vm3955, %v4059, %v4060
        %v4062 = vrot.slane %v4060, 4
        %v4063 = vrot.slane %v3907, 5
        %v4064 = vsel %vm3955, %v4062, %v4063
        %v4065 = vrot.slane %v4063, 4
        %v4066 = vrot.slane %v3908, 5
        %v4067 = vsel %vm3955, %v4065, %v4066
        %v4068 = vrot.slane %v4066, 4
        %v4069 = vrot.slane %v3909, 5
        %v4070 = vsel %vm3955, %v4068, %v4069
        %v4071 = vrot.slane %v4069, 4
        %v4072 = vrot.slane %v3910, 5
        %v4073 = vsel %vm3955, %v4071, %v4072
        %v4074 = vrot.slane %v4072, 4
        %v4075 = vrot.slane %v3911, 5
        %v4076 = vsel %vm3955, %v4074, %v4075
        %4077 = vrot.lane.b32.xlu0 %v3959, 64
        %v4078 = vpop.permute.xlu0 %4077
        %4079 = vrot.lane.b32.xlu0 %v3962, 64
        %v4080 = vpop.permute.xlu0 %4079
        %4081 = vrot.lane.b32.xlu0 %v3965, 64
        %v4082 = vpop.permute.xlu0 %4081
        %4083 = vrot.lane.b32.xlu0 %v3968, 64
        %v4084 = vpop.permute.xlu0 %4083
        %4085 = vrot.lane.b32.xlu0 %v3971, 64
        %v4086 = vpop.permute.xlu0 %4085
        %4087 = vrot.lane.b32.xlu0 %v3974, 64
        %v4088 = vpop.permute.xlu0 %4087
        %4089 = vrot.lane.b32.xlu0 %v3977, 64
        %v4090 = vpop.permute.xlu0 %4089
        %4091 = vrot.lane.b32.xlu0 %v3980, 64
        %v4092 = vpop.permute.xlu0 %4091
        %4093 = vrot.lane.b32.xlu0 %v3983, 64
        %v4094 = vpop.permute.xlu0 %4093
        %4095 = vrot.lane.b32.xlu0 %v3986, 64
        %v4096 = vpop.permute.xlu0 %4095
        %4097 = vrot.lane.b32.xlu0 %v3989, 64
        %v4098 = vpop.permute.xlu0 %4097
        %4099 = vrot.lane.b32.xlu0 %v3992, 64
        %v4100 = vpop.permute.xlu0 %4099
        %4101 = vrot.lane.b32.xlu0 %v3995, 64
        %v4102 = vpop.permute.xlu0 %4101
        %4103 = vrot.lane.b32.xlu0 %v3998, 64
        %v4104 = vpop.permute.xlu0 %4103
        %4105 = vrot.lane.b32.xlu0 %v4001, 64
        %v4106 = vpop.permute.xlu0 %4105
        %4107 = vrot.lane.b32.xlu0 %v4004, 64
        %v4108 = vpop.permute.xlu0 %4107
        %4109 = vrot.lane.b32.xlu0 %v4007, 64
        %v4110 = vpop.permute.xlu0 %4109
        %4111 = vrot.lane.b32.xlu0 %v4010, 64
        %v4112 = vpop.permute.xlu0 %4111
        %4113 = vrot.lane.b32.xlu0 %v4013, 64
        %v4114 = vpop.permute.xlu0 %4113
        %4115 = vrot.lane.b32.xlu0 %v4016, 64
        %v4116 = vpop.permute.xlu0 %4115
        %4117 = vrot.lane.b32.xlu0 %v4019, 64
        %v4118 = vpop.permute.xlu0 %4117
        %4119 = vrot.lane.b32.xlu0 %v4022, 64
        %v4120 = vpop.permute.xlu0 %4119
        %4121 = vrot.lane.b32.xlu0 %v4025, 64
        %v4122 = vpop.permute.xlu0 %4121
        %4123 = vrot.lane.b32.xlu0 %v4028, 64
        %v4124 = vpop.permute.xlu0 %4123
        %4125 = vrot.lane.b32.xlu0 %v4031, 64
        %v4126 = vpop.permute.xlu0 %4125
        %4127 = vrot.lane.b32.xlu0 %v4034, 64
        %v4128 = vpop.permute.xlu0 %4127
        %4129 = vrot.lane.b32.xlu0 %v4037, 64
        %v4130 = vpop.permute.xlu0 %4129
        %4131 = vrot.lane.b32.xlu0 %v4040, 64
        %v4132 = vpop.permute.xlu0 %4131
        %4133 = vrot.lane.b32.xlu0 %v4043, 64
        %v4134 = vpop.permute.xlu0 %4133
        %4135 = vrot.lane.b32.xlu0 %v4046, 64
        %v4136 = vpop.permute.xlu0 %4135
        %4137 = vrot.lane.b32.xlu0 %v4049, 64
        %v4138 = vpop.permute.xlu0 %4137
        %4139 = vrot.lane.b32.xlu0 %v4052, 64
        %v4140 = vpop.permute.xlu0 %4139
        %4141 = vrot.lane.b32.xlu0 %v4055, 64
        %v4142 = vpop.permute.xlu0 %4141
        %4143 = vrot.lane.b32.xlu0 %v4058, 64
        %v4144 = vpop.permute.xlu0 %4143
        %4145 = vrot.lane.b32.xlu0 %v4061, 64
        %v4146 = vpop.permute.xlu0 %4145
        %4147 = vrot.lane.b32.xlu0 %v4064, 64
        %v4148 = vpop.permute.xlu0 %4147
        %4149 = vrot.lane.b32.xlu0 %v4067, 64
        %v4150 = vpop.permute.xlu0 %4149
        %4151 = vrot.lane.b32.xlu0 %v4070, 64
        %v4152 = vpop.permute.xlu0 %4151
        %4153 = vrot.lane.b32.xlu0 %v4073, 64
        %v4154 = vpop.permute.xlu0 %4153
        %4155 = vrot.lane.b32.xlu0 %v4076, 64
        %v4156 = vpop.permute.xlu0 %4155
        %4197 = vst.msk [vmem:[#allocation2 + $0x14] sm:$0xf] %vm1314, %v4078
        %4198 = vst.msk [vmem:[#allocation2 + $0x1c] sm:$0xf] %vm1314, %v4080
        %4199 = vst.msk [vmem:[#allocation2 + $0x24] sm:$0xf] %vm1314, %v4082
        %4200 = vst.msk [vmem:[#allocation2 + $0x2c] sm:$0xf] %vm1314, %v4084
        %4201 = vst.msk [vmem:[#allocation2 + $0x34] sm:$0xf] %vm1314, %v4086
        %4202 = vst.msk [vmem:[#allocation2 + $0x3c] sm:$0xf] %vm1314, %v4088
        %4203 = vst.msk [vmem:[#allocation2 + $0x44] sm:$0xf] %vm1314, %v4090
        %4204 = vst.msk [vmem:[#allocation2 + $0x4c] sm:$0xf] %vm1314, %v4092
        %4205 = vst.msk [vmem:[#allocation2 + $0x54] sm:$0xf] %vm1314, %v4094
        %4206 = vst.msk [vmem:[#allocation2 + $0x5c] sm:$0xf] %vm1314, %v4096
        %4207 = vst.msk [vmem:[#allocation2 + $0x64] sm:$0xf] %vm1314, %v4098
        %4208 = vst.msk [vmem:[#allocation2 + $0x6c] sm:$0xf] %vm1314, %v4100
        %4209 = vst.msk [vmem:[#allocation2 + $0x74] sm:$0xf] %vm1314, %v4102
        %4210 = vst.msk [vmem:[#allocation2 + $0x7c] sm:$0xf] %vm1314, %v4104
        %4211 = vst.msk [vmem:[#allocation2 + $0x84] sm:$0xf] %vm1314, %v4106
        %4212 = vst.msk [vmem:[#allocation2 + $0x8c] sm:$0xf] %vm1314, %v4108
        %4213 = vst.msk [vmem:[#allocation2 + $0x94] sm:$0xf] %vm1314, %v4110
        %4214 = vst.msk [vmem:[#allocation2 + $0x9c] sm:$0xf] %vm1314, %v4112
        %4215 = vst.msk [vmem:[#allocation2 + $0xa4] sm:$0xf] %vm1314, %v4114
        %4216 = vst.msk [vmem:[#allocation2 + $0xac] sm:$0xf] %vm1314, %v4116
        %4217 = vst.msk [vmem:[#allocation2 + $0xb4] sm:$0xf] %vm1314, %v4118
        %4218 = vst.msk [vmem:[#allocation2 + $0xbc] sm:$0xf] %vm1314, %v4120
        %4219 = vst.msk [vmem:[#allocation2 + $0xc4] sm:$0xf] %vm1314, %v4122
        %4220 = vst.msk [vmem:[#allocation2 + $0xcc] sm:$0xf] %vm1314, %v4124
        %4221 = vst.msk [vmem:[#allocation2 + $0xd4] sm:$0xf] %vm1314, %v4126
        %4222 = vst.msk [vmem:[#allocation2 + $0xdc] sm:$0xf] %vm1314, %v4128
        %4223 = vst.msk [vmem:[#allocation2 + $0xe4] sm:$0xf] %vm1314, %v4130
        %4224 = vst.msk [vmem:[#allocation2 + $0xec] sm:$0xf] %vm1314, %v4132
        %4225 = vst.msk [vmem:[#allocation2 + $0xf4] sm:$0xf] %vm1314, %v4134
        %4226 = vst.msk [vmem:[#allocation2 + $0xfc] sm:$0xf] %vm1314, %v4136
        %4227 = vst.msk [vmem:[#allocation2 + $0x104] sm:$0xf] %vm1314, %v4138
        %4228 = vst.msk [vmem:[#allocation2 + $0x10c] sm:$0xf] %vm1314, %v4140
        %4229 = vst.msk [vmem:[#allocation2 + $0x114] sm:$0xf] %vm1314, %v4142
        %4230 = vst.msk [vmem:[#allocation2 + $0x11c] sm:$0xf] %vm1314, %v4144
        %4231 = vst.msk [vmem:[#allocation2 + $0x124] sm:$0xf] %vm1314, %v4146
        %4232 = vst.msk [vmem:[#allocation2 + $0x12c] sm:$0xf] %vm1314, %v4148
        %4233 = vst.msk [vmem:[#allocation2 + $0x134] sm:$0xf] %vm1314, %v4150
        %4234 = vst.msk [vmem:[#allocation2 + $0x13c] sm:$0xf] %vm1314, %v4152
        %4235 = vst.msk [vmem:[#allocation2 + $0x144] sm:$0xf] %vm1314, %v4154
        %4236 = vst.msk [vmem:[#allocation2 + $0x14c] sm:$0xf] %vm1314, %v4156
        %v4237 = vld [vmem:[#allocation2 + $0x10] sm:$0xff]
        %v4238 = vld [vmem:[#allocation2 + $0x18] sm:$0xff]
        %v4239 = vld [vmem:[#allocation2 + $0x20] sm:$0xff]
        %v4240 = vld [vmem:[#allocation2 + $0x28] sm:$0xff]
        %v4241 = vld [vmem:[#allocation2 + $0x30] sm:$0xff]
        %v4242 = vld [vmem:[#allocation2 + $0x38] sm:$0xff]
        %v4243 = vld [vmem:[#allocation2 + $0x40] sm:$0xff]
        %v4244 = vld [vmem:[#allocation2 + $0x48] sm:$0xff]
        %v4245 = vld [vmem:[#allocation2 + $0x50] sm:$0xff]
        %v4246 = vld [vmem:[#allocation2 + $0x58] sm:$0xff]
        %v4247 = vld [vmem:[#allocation2 + $0x60] sm:$0xff]
        %v4248 = vld [vmem:[#allocation2 + $0x68] sm:$0xff]
        %v4249 = vld [vmem:[#allocation2 + $0x70] sm:$0xff]
        %v4250 = vld [vmem:[#allocation2 + $0x78] sm:$0xff]
        %v4251 = vld [vmem:[#allocation2 + $0x80] sm:$0xff]
        %v4252 = vld [vmem:[#allocation2 + $0x88] sm:$0xff]
        %v4253 = vld [vmem:[#allocation2 + $0x90] sm:$0xff]
        %v4254 = vld [vmem:[#allocation2 + $0x98] sm:$0xff]
        %v4255 = vld [vmem:[#allocation2 + $0xa0] sm:$0xff]
        %v4256 = vld [vmem:[#allocation2 + $0xa8] sm:$0xff]
        %v4257 = vld [vmem:[#allocation2 + $0xb0] sm:$0xff]
        %v4258 = vld [vmem:[#allocation2 + $0xb8] sm:$0xff]
        %v4259 = vld [vmem:[#allocation2 + $0xc0] sm:$0xff]
        %v4260 = vld [vmem:[#allocation2 + $0xc8] sm:$0xff]
        %v4261 = vld [vmem:[#allocation2 + $0xd0] sm:$0xff]
        %v4262 = vld [vmem:[#allocation2 + $0xd8] sm:$0xff]
        %v4263 = vld [vmem:[#allocation2 + $0xe0] sm:$0xff]
        %v4264 = vld [vmem:[#allocation2 + $0xe8] sm:$0xff]
        %v4265 = vld [vmem:[#allocation2 + $0xf0] sm:$0xff]
        %v4266 = vld [vmem:[#allocation2 + $0xf8] sm:$0xff]
        %v4267 = vld [vmem:[#allocation2 + $0x100] sm:$0xff]
        %v4268 = vld [vmem:[#allocation2 + $0x108] sm:$0xff]
        %v4269 = vld [vmem:[%s1] sm:$0xf]
        %v4270 = vld [vmem:[%s1 + $0x4] sm:$0xf]
        %v4271 = vld [vmem:[%s1 + $0x8] sm:$0xf]
        %v4272 = vld [vmem:[%s1 + $0xc] sm:$0xf]
        %v4273 = vld [vmem:[%s1 + $0x10] sm:$0xf]
        %v4274 = vld [vmem:[%s1 + $0x14] sm:$0xf]
        %v4275 = vld [vmem:[%s1 + $0x18] sm:$0xf]
        %v4276 = vld [vmem:[%s1 + $0x1c] sm:$0xf]
        %v4277 = vld [vmem:[%s1 + $0x20] sm:$0xf]
        %v4278 = vld [vmem:[%s1 + $0x24] sm:$0xf]
        %v4279 = vld [vmem:[%s1 + $0x28] sm:$0xf]
        %v4280 = vld [vmem:[%s1 + $0x2c] sm:$0xf]
        %v4281 = vld [vmem:[%s1 + $0x30] sm:$0xf]
        %v4282 = vld [vmem:[%s1 + $0x34] sm:$0xf]
        %v4283 = vld [vmem:[%s1 + $0x38] sm:$0xf]
        %v4284 = vld [vmem:[%s1 + $0x3c] sm:$0xf]
        %v4285 = vld [vmem:[%s1 + $0x40] sm:$0xf]
        %v4286 = vld [vmem:[%s1 + $0x44] sm:$0xf]
        %v4287 = vld [vmem:[%s1 + $0x48] sm:$0xf]
        %v4288 = vld [vmem:[%s1 + $0x4c] sm:$0xf]
        %v4289 = vld [vmem:[#allocation2 + $0x110] sm:$0xff]
        %v4290 = vld [vmem:[#allocation2 + $0x118] sm:$0xff]
        %s4291 = scalar_lea.vmem %s1, 80
        %v4292 = vld [vmem:[%s4291] sm:$0xf]
        %v4293 = vld [vmem:[%s4291 + $0x4] sm:$0xf]
        %v4294 = vld [vmem:[%s4291 + $0x8] sm:$0xf]
        %v4295 = vld [vmem:[%s4291 + $0xc] sm:$0xf]
        %v4296 = vld [vmem:[%s4291 + $0x10] sm:$0xf]
        %v4297 = vld [vmem:[%s4291 + $0x14] sm:$0xf]
        %v4298 = vld [vmem:[%s4291 + $0x18] sm:$0xf]
        %v4299 = vld [vmem:[%s4291 + $0x1c] sm:$0xf]
        %v4300 = vld [vmem:[%s4291 + $0x20] sm:$0xf]
        %v4301 = vld [vmem:[%s4291 + $0x24] sm:$0xf]
        %v4302 = vld [vmem:[%s4291 + $0x28] sm:$0xf]
        %v4303 = vld [vmem:[%s4291 + $0x2c] sm:$0xf]
        %v4304 = vld [vmem:[%s4291 + $0x30] sm:$0xf]
        %v4305 = vld [vmem:[%s4291 + $0x34] sm:$0xf]
        %v4306 = vld [vmem:[%s4291 + $0x38] sm:$0xf]
        %v4307 = vld [vmem:[%s4291 + $0x3c] sm:$0xf]
        %v4308 = vld [vmem:[%s4291 + $0x40] sm:$0xf]
        %v4309 = vld [vmem:[%s4291 + $0x44] sm:$0xf]
        %v4310 = vld [vmem:[%s4291 + $0x48] sm:$0xf]
        %v4311 = vld [vmem:[%s4291 + $0x4c] sm:$0xf]
        %v4344 = vunpack.c.l.b16 %v4239
        %v4345 = vunpack.c.h.b16 %v4239
        %v4346 = vunpack.c.l.b16 %v4240
        %v4347 = vunpack.c.h.b16 %v4240
        %v4348 = vunpack.c.l.b16 %v4241
        %v4349 = vunpack.c.h.b16 %v4241
        %v4350 = vunpack.c.l.b16 %v4242
        %v4351 = vunpack.c.h.b16 %v4242
        %v4352 = vunpack.c.l.b16 %v4243
        %v4353 = vunpack.c.h.b16 %v4243
        %v4354 = vunpack.c.l.b16 %v4244
        %v4355 = vunpack.c.h.b16 %v4244
        %v4356 = vunpack.c.l.b16 %v4245
        %v4357 = vunpack.c.h.b16 %v4245
        %v4358 = vunpack.c.l.b16 %v4246
        %v4359 = vunpack.c.h.b16 %v4246
        %v4360 = vunpack.c.l.b16 %v4247
        %v4361 = vunpack.c.h.b16 %v4247
        %v4362 = vunpack.c.l.b16 %v4248
        %v4363 = vunpack.c.h.b16 %v4248
        %v4364 = vunpack.c.l.b16 %v4249
        %v4365 = vunpack.c.h.b16 %v4249
        %v4366 = vunpack.c.l.b16 %v4250
        %v4367 = vunpack.c.h.b16 %v4250
        %v4368 = vunpack.c.l.b16 %v4251
        %v4369 = vunpack.c.h.b16 %v4251
        %v4370 = vunpack.c.l.b16 %v4252
        %v4371 = vunpack.c.h.b16 %v4252
        %v4372 = vunpack.c.l.b16 %v4253
        %v4373 = vunpack.c.h.b16 %v4253
        %v4374 = vunpack.c.l.b16 %v4254
        %v4375 = vunpack.c.h.b16 %v4254
        %v4376 = vunpack.c.l.b16 %v4255
        %v4377 = vunpack.c.h.b16 %v4255
        %v4378 = vunpack.c.l.b16 %v4256
        %v4379 = vunpack.c.h.b16 %v4256
        %v4380 = vunpack.c.l.b16 %v4257
        %v4381 = vunpack.c.h.b16 %v4257
        %v4382 = vunpack.c.l.b16 %v4258
        %v4383 = vunpack.c.h.b16 %v4258
        %v4384 = vunpack.c.l.b16 %v4259
        %v4385 = vunpack.c.h.b16 %v4259
        %v4386 = vunpack.c.l.b16 %v4260
        %v4387 = vunpack.c.h.b16 %v4260
        %v4388 = vunpack.c.l.b16 %v4261
        %v4389 = vunpack.c.h.b16 %v4261
        %v4390 = vunpack.c.l.b16 %v4262
        %v4391 = vunpack.c.h.b16 %v4262
        %v4392 = vunpack.c.l.b16 %v4263
        %v4393 = vunpack.c.h.b16 %v4263
        %v4394 = vunpack.c.l.b16 %v4264
        %v4395 = vunpack.c.h.b16 %v4264
        %v4396 = vunpack.c.l.b16 %v4265
        %v4397 = vunpack.c.h.b16 %v4265
        %v4398 = vunpack.c.l.b16 %v4266
        %v4399 = vunpack.c.h.b16 %v4266
        %v4400 = vunpack.c.l.b16 %v4267
        %v4401 = vunpack.c.h.b16 %v4267
        %v4402 = vunpack.c.l.b16 %v4268
        %v4403 = vunpack.c.h.b16 %v4268
        %v4404 = vunpack.c.l.b16 %v4289
        %v4405 = vunpack.c.h.b16 %v4289
        %v4406 = vunpack.c.l.b16 %v4290
        %v4407 = vunpack.c.h.b16 %v4290
        %v4408 = vpack.c.b16 %v4346, %v4344
        %v4409 = vpack.c.b16 %v4347, %v4345
        %v4410 = vpack.c.b16 %v4350, %v4348
        %v4411 = vpack.c.b16 %v4351, %v4349
        %v4412 = vpack.c.b16 %v4354, %v4352
        %v4413 = vpack.c.b16 %v4355, %v4353
        %v4414 = vpack.c.b16 %v4358, %v4356
        %v4415 = vpack.c.b16 %v4359, %v4357
        %v4416 = vpack.c.b16 %v4362, %v4360
        %v4417 = vpack.c.b16 %v4363, %v4361
        %v4418 = vpack.c.b16 %v4366, %v4364
        %v4419 = vpack.c.b16 %v4367, %v4365
        %v4420 = vpack.c.b16 %v4370, %v4368
        %v4421 = vpack.c.b16 %v4371, %v4369
        %v4422 = vpack.c.b16 %v4374, %v4372
        %v4423 = vpack.c.b16 %v4375, %v4373
        %v4424 = vpack.c.b16 %v4378, %v4376
        %v4425 = vpack.c.b16 %v4379, %v4377
        %v4426 = vpack.c.b16 %v4382, %v4380
        %v4427 = vpack.c.b16 %v4383, %v4381
        %v4428 = vpack.c.b16 %v4386, %v4384
        %v4429 = vpack.c.b16 %v4387, %v4385
        %v4430 = vpack.c.b16 %v4390, %v4388
        %v4431 = vpack.c.b16 %v4391, %v4389
        %v4432 = vpack.c.b16 %v4394, %v4392
        %v4433 = vpack.c.b16 %v4395, %v4393
        %v4434 = vpack.c.b16 %v4398, %v4396
        %v4435 = vpack.c.b16 %v4399, %v4397
        %v4436 = vpack.c.b16 %v4402, %v4400
        %v4437 = vpack.c.b16 %v4403, %v4401
        %v4438 = vpack.c.b16 %v4406, %v4404
        %v4439 = vpack.c.b16 %v4407, %v4405
        %v4476 = vunpack.c.l.b16 %v4292
        %v4477 = vunpack.c.l.b16 %v4293
        %v4478 = vunpack.c.l.b16 %v4294
        %v4479 = vunpack.c.l.b16 %v4295
        %v4480 = vunpack.c.l.b16 %v4296
        %v4481 = vunpack.c.l.b16 %v4297
        %v4482 = vunpack.c.l.b16 %v4298
        %v4483 = vunpack.c.l.b16 %v4299
        %v4484 = vunpack.c.l.b16 %v4300
        %v4485 = vunpack.c.l.b16 %v4301
        %v4486 = vunpack.c.l.b16 %v4302
        %v4487 = vunpack.c.l.b16 %v4303
        %v4488 = vunpack.c.l.b16 %v4304
        %v4489 = vunpack.c.l.b16 %v4305
        %v4490 = vunpack.c.l.b16 %v4306
        %v4491 = vunpack.c.l.b16 %v4307
        %v4492 = vunpack.c.l.b16 %v4308
        %v4493 = vunpack.c.l.b16 %v4309
        %v4494 = vunpack.c.l.b16 %v4310
        %v4495 = vunpack.c.l.b16 %v4311
        %v4496 = vpack.c.b16 %v4477, %v4476
        %v4497 = vpack.c.b16 %v4479, %v4478
        %v4498 = vpack.c.b16 %v4481, %v4480
        %v4499 = vpack.c.b16 %v4483, %v4482
        %v4500 = vpack.c.b16 %v4485, %v4484
        %v4501 = vpack.c.b16 %v4487, %v4486
        %v4502 = vpack.c.b16 %v4489, %v4488
        %v4503 = vpack.c.b16 %v4491, %v4490
        %v4504 = vpack.c.b16 %v4493, %v4492
        %v4505 = vpack.c.b16 %v4495, %v4494
        %vm4516 = vcmask 261120
        %v4518 = vsel %vm4516, %v4409, 0
        %v4521 = vsel %vm4516, %v4411, 0
        %v4524 = vsel %vm4516, %v4413, 0
        %v4527 = vsel %vm4516, %v4415, 0
        %v4530 = vsel %vm4516, %v4417, 0
        %v4533 = vsel %vm4516, %v4419, 0
        %v4536 = vsel %vm4516, %v4421, 0
        %v4539 = vsel %vm4516, %v4423, 0
        %v4542 = vsel %vm4516, %v4425, 0
        %v4545 = vsel %vm4516, %v4427, 0
        %v4548 = vsel %vm4516, %v4429, 0
        %v4551 = vsel %vm4516, %v4431, 0
        %v4554 = vsel %vm4516, %v4433, 0
        %v4557 = vsel %vm4516, %v4435, 0
        %v4560 = vsel %vm4516, %v4437, 0
        %v4563 = vsel %vm4516, %v4439, 0
        %4565 = vmatpush.bf16.msra.mxu0 %v4503
        %4566 = vmatpush.bf16.msra.mxu0 %v4502
        %4567 = vmatpush.bf16.msra.mxu0 %v4501
        %4568 = vmatpush.bf16.msra.mxu0 %v4500
        %4569 = vmatpush.bf16.msra.mxu0 %v4499
        %4570 = vmatpush.bf16.msra.mxu0 %v4498
        %4571 = vmatpush.bf16.msra.mxu0 %v4497
        %4572 = vmatpush.bf16.msra.mxu0 %v4496
        %4573 = vmatmul.bf16.gmra.mxu0 %v4408
        %v4574 = vpop.f32.mrf.mxu0
        %v4575 = vadd.f32 0.0, %v4574
        %v4576 = vpop.f32.mrf.mxu0
        %v4577 = vadd.f32 0.0, %v4576
        %4578 = vmatmul.bf16.gmra.mxu0 %v4410
        %v4579 = vpop.f32.mrf.mxu0
        %v4580 = vadd.f32 0.0, %v4579
        %v4581 = vpop.f32.mrf.mxu0
        %v4582 = vadd.f32 0.0, %v4581
        %4583 = vmatmul.bf16.gmra.mxu0 %v4412
        %v4584 = vpop.f32.mrf.mxu0
        %v4585 = vadd.f32 0.0, %v4584
        %v4586 = vpop.f32.mrf.mxu0
        %v4587 = vadd.f32 0.0, %v4586
        %4588 = vmatmul.bf16.gmra.mxu0 %v4414
        %v4589 = vpop.f32.mrf.mxu0
        %v4590 = vadd.f32 0.0, %v4589
        %v4591 = vpop.f32.mrf.mxu0
        %v4592 = vadd.f32 0.0, %v4591
        %4593 = vmatmul.bf16.gmra.mxu0 %v4416
        %v4594 = vpop.f32.mrf.mxu0
        %v4595 = vadd.f32 0.0, %v4594
        %v4596 = vpop.f32.mrf.mxu0
        %v4597 = vadd.f32 0.0, %v4596
        %4598 = vmatmul.bf16.gmra.mxu0 %v4418
        %v4599 = vpop.f32.mrf.mxu0
        %v4600 = vadd.f32 0.0, %v4599
        %v4601 = vpop.f32.mrf.mxu0
        %v4602 = vadd.f32 0.0, %v4601
        %4603 = vmatmul.bf16.gmra.mxu0 %v4420
        %v4604 = vpop.f32.mrf.mxu0
        %v4605 = vadd.f32 0.0, %v4604
        %v4606 = vpop.f32.mrf.mxu0
        %v4607 = vadd.f32 0.0, %v4606
        %4608 = vmatmul.bf16.gmra.mxu0 %v4422
        %v4609 = vpop.f32.mrf.mxu0
        %v4610 = vadd.f32 0.0, %v4609
        %v4611 = vpop.f32.mrf.mxu0
        %v4612 = vadd.f32 0.0, %v4611
        %4613 = vmatmul.bf16.gmra.mxu0 %v4424
        %v4614 = vpop.f32.mrf.mxu0
        %v4615 = vadd.f32 0.0, %v4614
        %v4616 = vpop.f32.mrf.mxu0
        %v4617 = vadd.f32 0.0, %v4616
        %4618 = vmatmul.bf16.gmra.mxu0 %v4426
        %v4619 = vpop.f32.mrf.mxu0
        %v4620 = vadd.f32 0.0, %v4619
        %v4621 = vpop.f32.mrf.mxu0
        %v4622 = vadd.f32 0.0, %v4621
        %4623 = vmatmul.bf16.gmra.mxu0 %v4428
        %v4624 = vpop.f32.mrf.mxu0
        %v4625 = vadd.f32 0.0, %v4624
        %v4626 = vpop.f32.mrf.mxu0
        %v4627 = vadd.f32 0.0, %v4626
        %4628 = vmatmul.bf16.gmra.mxu0 %v4430
        %v4629 = vpop.f32.mrf.mxu0
        %v4630 = vadd.f32 0.0, %v4629
        %v4631 = vpop.f32.mrf.mxu0
        %v4632 = vadd.f32 0.0, %v4631
        %4633 = vmatmul.bf16.gmra.mxu0 %v4432
        %v4634 = vpop.f32.mrf.mxu0
        %v4635 = vadd.f32 0.0, %v4634
        %v4636 = vpop.f32.mrf.mxu0
        %v4637 = vadd.f32 0.0, %v4636
        %4638 = vmatmul.bf16.gmra.mxu0 %v4434
        %v4639 = vpop.f32.mrf.mxu0
        %v4640 = vadd.f32 0.0, %v4639
        %v4641 = vpop.f32.mrf.mxu0
        %v4642 = vadd.f32 0.0, %v4641
        %4643 = vmatmul.bf16.gmra.mxu0 %v4436
        %v4644 = vpop.f32.mrf.mxu0
        %v4645 = vadd.f32 0.0, %v4644
        %v4646 = vpop.f32.mrf.mxu0
        %v4647 = vadd.f32 0.0, %v4646
        %4648 = vmatmul.bf16.gmra.mxu0 %v4438
        %v4649 = vpop.f32.mrf.mxu0
        %v4650 = vadd.f32 0.0, %v4649
        %v4651 = vpop.f32.mrf.mxu0
        %v4652 = vadd.f32 0.0, %v4651
        %4653 = vdwg.mxu0
        %4654 = vmatpush.bf16.msra.mxu0 0
        %4655 = vmatpush.bf16.msra.mxu0 0
        %4656 = vmatpush.bf16.msra.mxu0 0
        %4657 = vmatpush.bf16.msra.mxu0 0
        %4658 = vmatpush.bf16.msra.mxu0 0
        %4659 = vmatpush.bf16.msra.mxu0 0
        %4660 = vmatpush.bf16.msra.mxu0 %v4505
        %4661 = vmatpush.bf16.msra.mxu0 %v4504
        %4662 = vmatmul.bf16.gmra.mxu0 %v4518
        %v4663 = vpop.f32.mrf.mxu0
        %v4664 = vadd.f32 %v4575, %v4663
        %v4665 = vpop.f32.mrf.mxu0
        %v4666 = vadd.f32 %v4577, %v4665
        %4667 = vmatmul.bf16.gmra.mxu0 %v4521
        %v4668 = vpop.f32.mrf.mxu0
        %v4669 = vadd.f32 %v4580, %v4668
        %v4670 = vpop.f32.mrf.mxu0
        %v4671 = vadd.f32 %v4582, %v4670
        %4672 = vmatmul.bf16.gmra.mxu0 %v4524
        %v4673 = vpop.f32.mrf.mxu0
        %v4674 = vadd.f32 %v4585, %v4673
        %v4675 = vpop.f32.mrf.mxu0
        %v4676 = vadd.f32 %v4587, %v4675
        %4677 = vmatmul.bf16.gmra.mxu0 %v4527
        %v4678 = vpop.f32.mrf.mxu0
        %v4679 = vadd.f32 %v4590, %v4678
        %v4680 = vpop.f32.mrf.mxu0
        %v4681 = vadd.f32 %v4592, %v4680
        %4682 = vmatmul.bf16.gmra.mxu0 %v4530
        %v4683 = vpop.f32.mrf.mxu0
        %v4684 = vadd.f32 %v4595, %v4683
        %v4685 = vpop.f32.mrf.mxu0
        %v4686 = vadd.f32 %v4597, %v4685
        %4687 = vmatmul.bf16.gmra.mxu0 %v4533
        %v4688 = vpop.f32.mrf.mxu0
        %v4689 = vadd.f32 %v4600, %v4688
        %v4690 = vpop.f32.mrf.mxu0
        %v4691 = vadd.f32 %v4602, %v4690
        %4692 = vmatmul.bf16.gmra.mxu0 %v4536
        %v4693 = vpop.f32.mrf.mxu0
        %v4694 = vadd.f32 %v4605, %v4693
        %v4695 = vpop.f32.mrf.mxu0
        %v4696 = vadd.f32 %v4607, %v4695
        %4697 = vmatmul.bf16.gmra.mxu0 %v4539
        %v4698 = vpop.f32.mrf.mxu0
        %v4699 = vadd.f32 %v4610, %v4698
        %v4700 = vpop.f32.mrf.mxu0
        %v4701 = vadd.f32 %v4612, %v4700
        %4702 = vmatmul.bf16.gmra.mxu0 %v4542
        %v4703 = vpop.f32.mrf.mxu0
        %v4704 = vadd.f32 %v4615, %v4703
        %v4705 = vpop.f32.mrf.mxu0
        %v4706 = vadd.f32 %v4617, %v4705
        %4707 = vmatmul.bf16.gmra.mxu0 %v4545
        %v4708 = vpop.f32.mrf.mxu0
        %v4709 = vadd.f32 %v4620, %v4708
        %v4710 = vpop.f32.mrf.mxu0
        %v4711 = vadd.f32 %v4622, %v4710
        %4712 = vmatmul.bf16.gmra.mxu0 %v4548
        %v4713 = vpop.f32.mrf.mxu0
        %v4714 = vadd.f32 %v4625, %v4713
        %v4715 = vpop.f32.mrf.mxu0
        %v4716 = vadd.f32 %v4627, %v4715
        %4717 = vmatmul.bf16.gmra.mxu0 %v4551
        %v4718 = vpop.f32.mrf.mxu0
        %v4719 = vadd.f32 %v4630, %v4718
        %v4720 = vpop.f32.mrf.mxu0
        %v4721 = vadd.f32 %v4632, %v4720
        %4722 = vmatmul.bf16.gmra.mxu0 %v4554
        %v4723 = vpop.f32.mrf.mxu0
        %v4724 = vadd.f32 %v4635, %v4723
        %v4725 = vpop.f32.mrf.mxu0
        %v4726 = vadd.f32 %v4637, %v4725
        %4727 = vmatmul.bf16.gmra.mxu0 %v4557
        %v4728 = vpop.f32.mrf.mxu0
        %v4729 = vadd.f32 %v4640, %v4728
        %v4730 = vpop.f32.mrf.mxu0
        %v4731 = vadd.f32 %v4642, %v4730
        %4732 = vmatmul.bf16.gmra.mxu0 %v4560
        %v4733 = vpop.f32.mrf.mxu0
        %v4734 = vadd.f32 %v4645, %v4733
        %v4735 = vpop.f32.mrf.mxu0
        %v4736 = vadd.f32 %v4647, %v4735
        %4737 = vmatmul.bf16.gmra.mxu0 %v4563
        %v4738 = vpop.f32.mrf.mxu0
        %v4739 = vadd.f32 %v4650, %v4738
        %v4740 = vpop.f32.mrf.mxu0
        %v4741 = vadd.f32 %v4652, %v4740
        %4742 = vdwg.mxu0
        %v4745 = vunpack.c.l.b16 %v4237
        %v4746 = vunpack.c.h.b16 %v4237
        %v4747 = vunpack.c.l.b16 %v4238
        %v4748 = vunpack.c.h.b16 %v4238
        %v4749 = vpack.c.b16 %v4747, %v4745
        %v4750 = vpack.c.b16 %v4748, %v4746
        %v4772 = vunpack.c.l.b16 %v4269
        %v4773 = vunpack.c.l.b16 %v4270
        %v4774 = vunpack.c.l.b16 %v4271
        %v4775 = vunpack.c.l.b16 %v4272
        %v4776 = vunpack.c.l.b16 %v4273
        %v4777 = vunpack.c.l.b16 %v4274
        %v4778 = vunpack.c.l.b16 %v4275
        %v4779 = vunpack.c.l.b16 %v4276
        %v4780 = vunpack.c.l.b16 %v4277
        %v4781 = vunpack.c.l.b16 %v4278
        %v4782 = vunpack.c.l.b16 %v4279
        %v4783 = vunpack.c.l.b16 %v4280
        %v4784 = vunpack.c.l.b16 %v4281
        %v4785 = vunpack.c.l.b16 %v4282
        %v4786 = vunpack.c.l.b16 %v4283
        %v4787 = vunpack.c.l.b16 %v4284
        %v4788 = vunpack.c.l.b16 %v4285
        %v4789 = vunpack.c.l.b16 %v4286
        %v4790 = vunpack.c.l.b16 %v4287
        %v4791 = vunpack.c.l.b16 %v4288
        %v4792 = vpack.c.b16 %v4773, %v4772
        %v4793 = vpack.c.b16 %v4775, %v4774
        %v4794 = vpack.c.b16 %v4777, %v4776
        %v4795 = vpack.c.b16 %v4779, %v4778
        %v4796 = vpack.c.b16 %v4781, %v4780
        %v4797 = vpack.c.b16 %v4783, %v4782
        %v4798 = vpack.c.b16 %v4785, %v4784
        %v4799 = vpack.c.b16 %v4787, %v4786
        %v4800 = vpack.c.b16 %v4789, %v4788
        %v4801 = vpack.c.b16 %v4791, %v4790
        %v4813 = vsel %vm4516, %v4750, 0
        %4815 = vmatpush.bf16.msra.mxu0 %v4799
        %4816 = vmatpush.bf16.msra.mxu0 %v4798
        %4817 = vmatpush.bf16.msra.mxu0 %v4797
        %4818 = vmatpush.bf16.msra.mxu0 %v4796
        %4819 = vmatpush.bf16.msra.mxu0 %v4795
        %4820 = vmatpush.bf16.msra.mxu0 %v4794
        %4821 = vmatpush.bf16.msra.mxu0 %v4793
        %4822 = vmatpush.bf16.msra.mxu0 %v4792
        %4823 = vmatmul.bf16.gmra.mxu0 %v4749
        %v4824 = vpop.f32.mrf.mxu0
        %v4825 = vadd.f32 %v4664, %v4824
        %v4826 = vpop.f32.mrf.mxu0
        %v4827 = vadd.f32 %v4666, %v4826
        %4828 = vmatmul.bf16.gmra.mxu0 %v4408
        %v4829 = vpop.f32.mrf.mxu0
        %v4830 = vadd.f32 %v4669, %v4829
        %v4831 = vpop.f32.mrf.mxu0
        %v4832 = vadd.f32 %v4671, %v4831
        %4833 = vmatmul.bf16.gmra.mxu0 %v4410
        %v4834 = vpop.f32.mrf.mxu0
        %v4835 = vadd.f32 %v4674, %v4834
        %v4836 = vpop.f32.mrf.mxu0
        %v4837 = vadd.f32 %v4676, %v4836
        %4838 = vmatmul.bf16.gmra.mxu0 %v4412
        %v4839 = vpop.f32.mrf.mxu0
        %v4840 = vadd.f32 %v4679, %v4839
        %v4841 = vpop.f32.mrf.mxu0
        %v4842 = vadd.f32 %v4681, %v4841
        %4843 = vmatmul.bf16.gmra.mxu0 %v4414
        %v4844 = vpop.f32.mrf.mxu0
        %v4845 = vadd.f32 %v4684, %v4844
        %v4846 = vpop.f32.mrf.mxu0
        %v4847 = vadd.f32 %v4686, %v4846
        %4848 = vmatmul.bf16.gmra.mxu0 %v4416
        %v4849 = vpop.f32.mrf.mxu0
        %v4850 = vadd.f32 %v4689, %v4849
        %v4851 = vpop.f32.mrf.mxu0
        %v4852 = vadd.f32 %v4691, %v4851
        %4853 = vmatmul.bf16.gmra.mxu0 %v4418
        %v4854 = vpop.f32.mrf.mxu0
        %v4855 = vadd.f32 %v4694, %v4854
        %v4856 = vpop.f32.mrf.mxu0
        %v4857 = vadd.f32 %v4696, %v4856
        %4858 = vmatmul.bf16.gmra.mxu0 %v4420
        %v4859 = vpop.f32.mrf.mxu0
        %v4860 = vadd.f32 %v4699, %v4859
        %v4861 = vpop.f32.mrf.mxu0
        %v4862 = vadd.f32 %v4701, %v4861
        %4863 = vmatmul.bf16.gmra.mxu0 %v4422
        %v4864 = vpop.f32.mrf.mxu0
        %v4865 = vadd.f32 %v4704, %v4864
        %v4866 = vpop.f32.mrf.mxu0
        %v4867 = vadd.f32 %v4706, %v4866
        %4868 = vmatmul.bf16.gmra.mxu0 %v4424
        %v4869 = vpop.f32.mrf.mxu0
        %v4870 = vadd.f32 %v4709, %v4869
        %v4871 = vpop.f32.mrf.mxu0
        %v4872 = vadd.f32 %v4711, %v4871
        %4873 = vmatmul.bf16.gmra.mxu0 %v4426
        %v4874 = vpop.f32.mrf.mxu0
        %v4875 = vadd.f32 %v4714, %v4874
        %v4876 = vpop.f32.mrf.mxu0
        %v4877 = vadd.f32 %v4716, %v4876
        %4878 = vmatmul.bf16.gmra.mxu0 %v4428
        %v4879 = vpop.f32.mrf.mxu0
        %v4880 = vadd.f32 %v4719, %v4879
        %v4881 = vpop.f32.mrf.mxu0
        %v4882 = vadd.f32 %v4721, %v4881
        %4883 = vmatmul.bf16.gmra.mxu0 %v4430
        %v4884 = vpop.f32.mrf.mxu0
        %v4885 = vadd.f32 %v4724, %v4884
        %v4886 = vpop.f32.mrf.mxu0
        %v4887 = vadd.f32 %v4726, %v4886
        %4888 = vmatmul.bf16.gmra.mxu0 %v4432
        %v4889 = vpop.f32.mrf.mxu0
        %v4890 = vadd.f32 %v4729, %v4889
        %v4891 = vpop.f32.mrf.mxu0
        %v4892 = vadd.f32 %v4731, %v4891
        %4893 = vmatmul.bf16.gmra.mxu0 %v4434
        %v4894 = vpop.f32.mrf.mxu0
        %v4895 = vadd.f32 %v4734, %v4894
        %v4896 = vpop.f32.mrf.mxu0
        %v4897 = vadd.f32 %v4736, %v4896
        %4898 = vmatmul.bf16.gmra.mxu0 %v4436
        %v4899 = vpop.f32.mrf.mxu0
        %v4900 = vadd.f32 %v4739, %v4899
        %v4901 = vpop.f32.mrf.mxu0
        %v4902 = vadd.f32 %v4741, %v4901
        %4903 = vdwg.mxu0
        %4904 = vmatpush.bf16.msra.mxu0 0
        %4905 = vmatpush.bf16.msra.mxu0 0
        %4906 = vmatpush.bf16.msra.mxu0 0
        %4907 = vmatpush.bf16.msra.mxu0 0
        %4908 = vmatpush.bf16.msra.mxu0 0
        %4909 = vmatpush.bf16.msra.mxu0 0
        %4910 = vmatpush.bf16.msra.mxu0 %v4801
        %4911 = vmatpush.bf16.msra.mxu0 %v4800
        %4912 = vmatmul.bf16.gmra.mxu0 %v4813
        %v4913 = vpop.f32.mrf.mxu0
        %v4914 = vadd.f32 %v4825, %v4913
        %v4915 = vpop.f32.mrf.mxu0
        %v4916 = vadd.f32 %v4827, %v4915
        %4917 = vmatmul.bf16.gmra.mxu0 %v4518
        %v4918 = vpop.f32.mrf.mxu0
        %v4919 = vadd.f32 %v4830, %v4918
        %v4920 = vpop.f32.mrf.mxu0
        %v4921 = vadd.f32 %v4832, %v4920
        %4922 = vmatmul.bf16.gmra.mxu0 %v4521
        %v4923 = vpop.f32.mrf.mxu0
        %v4924 = vadd.f32 %v4835, %v4923
        %v4925 = vpop.f32.mrf.mxu0
        %v4926 = vadd.f32 %v4837, %v4925
        %4927 = vmatmul.bf16.gmra.mxu0 %v4524
        %v4928 = vpop.f32.mrf.mxu0
        %v4929 = vadd.f32 %v4840, %v4928
        %v4930 = vpop.f32.mrf.mxu0
        %v4931 = vadd.f32 %v4842, %v4930
        %4932 = vmatmul.bf16.gmra.mxu0 %v4527
        %v4933 = vpop.f32.mrf.mxu0
        %v4934 = vadd.f32 %v4845, %v4933
        %v4935 = vpop.f32.mrf.mxu0
        %v4936 = vadd.f32 %v4847, %v4935
        %4937 = vmatmul.bf16.gmra.mxu0 %v4530
        %v4938 = vpop.f32.mrf.mxu0
        %v4939 = vadd.f32 %v4850, %v4938
        %v4940 = vpop.f32.mrf.mxu0
        %v4941 = vadd.f32 %v4852, %v4940
        %4942 = vmatmul.bf16.gmra.mxu0 %v4533
        %v4943 = vpop.f32.mrf.mxu0
        %v4944 = vadd.f32 %v4855, %v4943
        %v4945 = vpop.f32.mrf.mxu0
        %v4946 = vadd.f32 %v4857, %v4945
        %4947 = vmatmul.bf16.gmra.mxu0 %v4536
        %v4948 = vpop.f32.mrf.mxu0
        %v4949 = vadd.f32 %v4860, %v4948
        %v4950 = vpop.f32.mrf.mxu0
        %v4951 = vadd.f32 %v4862, %v4950
        %4952 = vmatmul.bf16.gmra.mxu0 %v4539
        %v4953 = vpop.f32.mrf.mxu0
        %v4954 = vadd.f32 %v4865, %v4953
        %v4955 = vpop.f32.mrf.mxu0
        %v4956 = vadd.f32 %v4867, %v4955
        %4957 = vmatmul.bf16.gmra.mxu0 %v4542
        %v4958 = vpop.f32.mrf.mxu0
        %v4959 = vadd.f32 %v4870, %v4958
        %v4960 = vpop.f32.mrf.mxu0
        %v4961 = vadd.f32 %v4872, %v4960
        %4962 = vmatmul.bf16.gmra.mxu0 %v4545
        %v4963 = vpop.f32.mrf.mxu0
        %v4964 = vadd.f32 %v4875, %v4963
        %v4965 = vpop.f32.mrf.mxu0
        %v4966 = vadd.f32 %v4877, %v4965
        %4967 = vmatmul.bf16.gmra.mxu0 %v4548
        %v4968 = vpop.f32.mrf.mxu0
        %v4969 = vadd.f32 %v4880, %v4968
        %v4970 = vpop.f32.mrf.mxu0
        %v4971 = vadd.f32 %v4882, %v4970
        %4972 = vmatmul.bf16.gmra.mxu0 %v4551
        %v4973 = vpop.f32.mrf.mxu0
        %v4974 = vadd.f32 %v4885, %v4973
        %v4975 = vpop.f32.mrf.mxu0
        %v4976 = vadd.f32 %v4887, %v4975
        %4977 = vmatmul.bf16.gmra.mxu0 %v4554
        %v4978 = vpop.f32.mrf.mxu0
        %v4979 = vadd.f32 %v4890, %v4978
        %v4980 = vpop.f32.mrf.mxu0
        %v4981 = vadd.f32 %v4892, %v4980
        %4982 = vmatmul.bf16.gmra.mxu0 %v4557
        %v4983 = vpop.f32.mrf.mxu0
        %v4984 = vadd.f32 %v4895, %v4983
        %v4985 = vpop.f32.mrf.mxu0
        %v4986 = vadd.f32 %v4897, %v4985
        %4987 = vmatmul.bf16.gmra.mxu0 %v4560
        %v4988 = vpop.f32.mrf.mxu0
        %v4989 = vadd.f32 %v4900, %v4988
        %v4990 = vpop.f32.mrf.mxu0
        %v4991 = vadd.f32 %v4902, %v4990
        %4992 = vdwg.mxu0
        %v4993 = vld [vmem:[#allocation2 + $0x30] sm:$0xff]
        %v4994 = vld [vmem:[#allocation2 + $0x38] sm:$0xff]
        %v4995 = vld [vmem:[#allocation2 + $0x40] sm:$0xff]
        %v4996 = vld [vmem:[#allocation2 + $0x48] sm:$0xff]
        %v4997 = vld [vmem:[#allocation2 + $0x50] sm:$0xff]
        %v4998 = vld [vmem:[#allocation2 + $0x58] sm:$0xff]
        %v4999 = vld [vmem:[#allocation2 + $0x60] sm:$0xff]
        %v5000 = vld [vmem:[#allocation2 + $0x68] sm:$0xff]
        %v5001 = vld [vmem:[#allocation2 + $0x70] sm:$0xff]
        %v5002 = vld [vmem:[#allocation2 + $0x78] sm:$0xff]
        %v5003 = vld [vmem:[#allocation2 + $0x80] sm:$0xff]
        %v5004 = vld [vmem:[#allocation2 + $0x88] sm:$0xff]
        %v5005 = vld [vmem:[#allocation2 + $0x90] sm:$0xff]
        %v5006 = vld [vmem:[#allocation2 + $0x98] sm:$0xff]
        %v5007 = vld [vmem:[#allocation2 + $0xa0] sm:$0xff]
        %v5008 = vld [vmem:[#allocation2 + $0xa8] sm:$0xff]
        %v5009 = vld [vmem:[#allocation2 + $0xb0] sm:$0xff]
        %v5010 = vld [vmem:[#allocation2 + $0xb8] sm:$0xff]
        %v5011 = vld [vmem:[#allocation2 + $0xc0] sm:$0xff]
        %v5012 = vld [vmem:[#allocation2 + $0xc8] sm:$0xff]
        %v5013 = vld [vmem:[#allocation2 + $0xd0] sm:$0xff]
        %v5014 = vld [vmem:[#allocation2 + $0xd8] sm:$0xff]
        %v5015 = vld [vmem:[#allocation2 + $0xe0] sm:$0xff]
        %v5016 = vld [vmem:[#allocation2 + $0xe8] sm:$0xff]
        %v5017 = vld [vmem:[#allocation2 + $0xf0] sm:$0xff]
        %v5018 = vld [vmem:[#allocation2 + $0xf8] sm:$0xff]
        %v5019 = vld [vmem:[#allocation2 + $0x100] sm:$0xff]
        %v5020 = vld [vmem:[#allocation2 + $0x108] sm:$0xff]
        %v5021 = vld [vmem:[#allocation2 + $0x110] sm:$0xff]
        %v5022 = vld [vmem:[#allocation2 + $0x118] sm:$0xff]
        %v5023 = vld [vmem:[#allocation2 + $0x120] sm:$0xff]
        %v5024 = vld [vmem:[#allocation2 + $0x128] sm:$0xff]
        %s5025 = scalar_lea.vmem %s1, 160
        %v5026 = vld [vmem:[%s5025] sm:$0xf]
        %v5027 = vld [vmem:[%s5025 + $0x4] sm:$0xf]
        %v5028 = vld [vmem:[%s5025 + $0x8] sm:$0xf]
        %v5029 = vld [vmem:[%s5025 + $0xc] sm:$0xf]
        %v5030 = vld [vmem:[%s5025 + $0x10] sm:$0xf]
        %v5031 = vld [vmem:[%s5025 + $0x14] sm:$0xf]
        %v5032 = vld [vmem:[%s5025 + $0x18] sm:$0xf]
        %v5033 = vld [vmem:[%s5025 + $0x1c] sm:$0xf]
        %v5034 = vld [vmem:[%s5025 + $0x20] sm:$0xf]
        %v5035 = vld [vmem:[%s5025 + $0x24] sm:$0xf]
        %v5036 = vld [vmem:[%s5025 + $0x28] sm:$0xf]
        %v5037 = vld [vmem:[%s5025 + $0x2c] sm:$0xf]
        %v5038 = vld [vmem:[%s5025 + $0x30] sm:$0xf]
        %v5039 = vld [vmem:[%s5025 + $0x34] sm:$0xf]
        %v5040 = vld [vmem:[%s5025 + $0x38] sm:$0xf]
        %v5041 = vld [vmem:[%s5025 + $0x3c] sm:$0xf]
        %v5042 = vld [vmem:[%s5025 + $0x40] sm:$0xf]
        %v5043 = vld [vmem:[%s5025 + $0x44] sm:$0xf]
        %v5044 = vld [vmem:[%s5025 + $0x48] sm:$0xf]
        %v5045 = vld [vmem:[%s5025 + $0x4c] sm:$0xf]
        %v5078 = vunpack.c.l.b16 %v4993
        %v5079 = vunpack.c.h.b16 %v4993
        %v5080 = vunpack.c.l.b16 %v4994
        %v5081 = vunpack.c.h.b16 %v4994
        %v5082 = vunpack.c.l.b16 %v4995
        %v5083 = vunpack.c.h.b16 %v4995
        %v5084 = vunpack.c.l.b16 %v4996
        %v5085 = vunpack.c.h.b16 %v4996
        %v5086 = vunpack.c.l.b16 %v4997
        %v5087 = vunpack.c.h.b16 %v4997
        %v5088 = vunpack.c.l.b16 %v4998
        %v5089 = vunpack.c.h.b16 %v4998
        %v5090 = vunpack.c.l.b16 %v4999
        %v5091 = vunpack.c.h.b16 %v4999
        %v5092 = vunpack.c.l.b16 %v5000
        %v5093 = vunpack.c.h.b16 %v5000
        %v5094 = vunpack.c.l.b16 %v5001
        %v5095 = vunpack.c.h.b16 %v5001
        %v5096 = vunpack.c.l.b16 %v5002
        %v5097 = vunpack.c.h.b16 %v5002
        %v5098 = vunpack.c.l.b16 %v5003
        %v5099 = vunpack.c.h.b16 %v5003
        %v5100 = vunpack.c.l.b16 %v5004
        %v5101 = vunpack.c.h.b16 %v5004
        %v5102 = vunpack.c.l.b16 %v5005
        %v5103 = vunpack.c.h.b16 %v5005
        %v5104 = vunpack.c.l.b16 %v5006
        %v5105 = vunpack.c.h.b16 %v5006
        %v5106 = vunpack.c.l.b16 %v5007
        %v5107 = vunpack.c.h.b16 %v5007
        %v5108 = vunpack.c.l.b16 %v5008
        %v5109 = vunpack.c.h.b16 %v5008
        %v5110 = vunpack.c.l.b16 %v5009
        %v5111 = vunpack.c.h.b16 %v5009
        %v5112 = vunpack.c.l.b16 %v5010
        %v5113 = vunpack.c.h.b16 %v5010
        %v5114 = vunpack.c.l.b16 %v5011
        %v5115 = vunpack.c.h.b16 %v5011
        %v5116 = vunpack.c.l.b16 %v5012
        %v5117 = vunpack.c.h.b16 %v5012
        %v5118 = vunpack.c.l.b16 %v5013
        %v5119 = vunpack.c.h.b16 %v5013
        %v5120 = vunpack.c.l.b16 %v5014
        %v5121 = vunpack.c.h.b16 %v5014
        %v5122 = vunpack.c.l.b16 %v5015
        %v5123 = vunpack.c.h.b16 %v5015
        %v5124 = vunpack.c.l.b16 %v5016
        %v5125 = vunpack.c.h.b16 %v5016
        %v5126 = vunpack.c.l.b16 %v5017
        %v5127 = vunpack.c.h.b16 %v5017
        %v5128 = vunpack.c.l.b16 %v5018
        %v5129 = vunpack.c.h.b16 %v5018
        %v5130 = vunpack.c.l.b16 %v5019
        %v5131 = vunpack.c.h.b16 %v5019
        %v5132 = vunpack.c.l.b16 %v5020
        %v5133 = vunpack.c.h.b16 %v5020
        %v5134 = vunpack.c.l.b16 %v5021
        %v5135 = vunpack.c.h.b16 %v5021
        %v5136 = vunpack.c.l.b16 %v5022
        %v5137 = vunpack.c.h.b16 %v5022
        %v5138 = vunpack.c.l.b16 %v5023
        %v5139 = vunpack.c.h.b16 %v5023
        %v5140 = vunpack.c.l.b16 %v5024
        %v5141 = vunpack.c.h.b16 %v5024
        %v5142 = vpack.c.b16 %v5080, %v5078
        %v5143 = vpack.c.b16 %v5081, %v5079
        %v5144 = vpack.c.b16 %v5084, %v5082
        %v5145 = vpack.c.b16 %v5085, %v5083
        %v5146 = vpack.c.b16 %v5088, %v5086
        %v5147 = vpack.c.b16 %v5089, %v5087
        %v5148 = vpack.c.b16 %v5092, %v5090
        %v5149 = vpack.c.b16 %v5093, %v5091
        %v5150 = vpack.c.b16 %v5096, %v5094
        %v5151 = vpack.c.b16 %v5097, %v5095
        %v5152 = vpack.c.b16 %v5100, %v5098
        %v5153 = vpack.c.b16 %v5101, %v5099
        %v5154 = vpack.c.b16 %v5104, %v5102
        %v5155 = vpack.c.b16 %v5105, %v5103
        %v5156 = vpack.c.b16 %v5108, %v5106
        %v5157 = vpack.c.b16 %v5109, %v5107
        %v5158 = vpack.c.b16 %v5112, %v5110
        %v5159 = vpack.c.b16 %v5113, %v5111
        %v5160 = vpack.c.b16 %v5116, %v5114
        %v5161 = vpack.c.b16 %v5117, %v5115
        %v5162 = vpack.c.b16 %v5120, %v5118
        %v5163 = vpack.c.b16 %v5121, %v5119
        %v5164 = vpack.c.b16 %v5124, %v5122
        %v5165 = vpack.c.b16 %v5125, %v5123
        %v5166 = vpack.c.b16 %v5128, %v5126
        %v5167 = vpack.c.b16 %v5129, %v5127
        %v5168 = vpack.c.b16 %v5132, %v5130
        %v5169 = vpack.c.b16 %v5133, %v5131
        %v5170 = vpack.c.b16 %v5136, %v5134
        %v5171 = vpack.c.b16 %v5137, %v5135
        %v5172 = vpack.c.b16 %v5140, %v5138
        %v5173 = vpack.c.b16 %v5141, %v5139
        %v5210 = vunpack.c.l.b16 %v5026
        %v5211 = vunpack.c.l.b16 %v5027
        %v5212 = vunpack.c.l.b16 %v5028
        %v5213 = vunpack.c.l.b16 %v5029
        %v5214 = vunpack.c.l.b16 %v5030
        %v5215 = vunpack.c.l.b16 %v5031
        %v5216 = vunpack.c.l.b16 %v5032
        %v5217 = vunpack.c.l.b16 %v5033
        %v5218 = vunpack.c.l.b16 %v5034
        %v5219 = vunpack.c.l.b16 %v5035
        %v5220 = vunpack.c.l.b16 %v5036
        %v5221 = vunpack.c.l.b16 %v5037
        %v5222 = vunpack.c.l.b16 %v5038
        %v5223 = vunpack.c.l.b16 %v5039
        %v5224 = vunpack.c.l.b16 %v5040
        %v5225 = vunpack.c.l.b16 %v5041
        %v5226 = vunpack.c.l.b16 %v5042
        %v5227 = vunpack.c.l.b16 %v5043
        %v5228 = vunpack.c.l.b16 %v5044
        %v5229 = vunpack.c.l.b16 %v5045
        %v5230 = vpack.c.b16 %v5211, %v5210
        %v5231 = vpack.c.b16 %v5213, %v5212
        %v5232 = vpack.c.b16 %v5215, %v5214
        %v5233 = vpack.c.b16 %v5217, %v5216
        %v5234 = vpack.c.b16 %v5219, %v5218
        %v5235 = vpack.c.b16 %v5221, %v5220
        %v5236 = vpack.c.b16 %v5223, %v5222
        %v5237 = vpack.c.b16 %v5225, %v5224
        %v5238 = vpack.c.b16 %v5227, %v5226
        %v5239 = vpack.c.b16 %v5229, %v5228
        %v5251 = vsel %vm4516, %v5143, 0
        %v5254 = vsel %vm4516, %v5145, 0
        %v5257 = vsel %vm4516, %v5147, 0
        %v5260 = vsel %vm4516, %v5149, 0
        %v5263 = vsel %vm4516, %v5151, 0
        %v5266 = vsel %vm4516, %v5153, 0
        %v5269 = vsel %vm4516, %v5155, 0
        %v5272 = vsel %vm4516, %v5157, 0
        %v5275 = vsel %vm4516, %v5159, 0
        %v5278 = vsel %vm4516, %v5161, 0
        %v5281 = vsel %vm4516, %v5163, 0
        %v5284 = vsel %vm4516, %v5165, 0
        %v5287 = vsel %vm4516, %v5167, 0
        %v5290 = vsel %vm4516, %v5169, 0
        %v5293 = vsel %vm4516, %v5171, 0
        %v5296 = vsel %vm4516, %v5173, 0
        %5298 = vmatpush.bf16.msra.mxu0 %v5237
        %5299 = vmatpush.bf16.msra.mxu0 %v5236
        %5300 = vmatpush.bf16.msra.mxu0 %v5235
        %5301 = vmatpush.bf16.msra.mxu0 %v5234
        %5302 = vmatpush.bf16.msra.mxu0 %v5233
        %5303 = vmatpush.bf16.msra.mxu0 %v5232
        %5304 = vmatpush.bf16.msra.mxu0 %v5231
        %5305 = vmatpush.bf16.msra.mxu0 %v5230
        %5306 = vmatmul.bf16.gmra.mxu0 %v5142
        %v5307 = vpop.f32.mrf.mxu0
        %v5308 = vadd.f32 0.0, %v5307
        %v5309 = vpop.f32.mrf.mxu0
        %v5310 = vadd.f32 0.0, %v5309
        %5311 = vmatmul.bf16.gmra.mxu0 %v5144
        %v5312 = vpop.f32.mrf.mxu0
        %v5313 = vadd.f32 0.0, %v5312
        %v5314 = vpop.f32.mrf.mxu0
        %v5315 = vadd.f32 0.0, %v5314
        %5316 = vmatmul.bf16.gmra.mxu0 %v5146
        %v5317 = vpop.f32.mrf.mxu0
        %v5318 = vadd.f32 0.0, %v5317
        %v5319 = vpop.f32.mrf.mxu0
        %v5320 = vadd.f32 0.0, %v5319
        %5321 = vmatmul.bf16.gmra.mxu0 %v5148
        %v5322 = vpop.f32.mrf.mxu0
        %v5323 = vadd.f32 0.0, %v5322
        %v5324 = vpop.f32.mrf.mxu0
        %v5325 = vadd.f32 0.0, %v5324
        %5326 = vmatmul.bf16.gmra.mxu0 %v5150
        %v5327 = vpop.f32.mrf.mxu0
        %v5328 = vadd.f32 0.0, %v5327
        %v5329 = vpop.f32.mrf.mxu0
        %v5330 = vadd.f32 0.0, %v5329
        %5331 = vmatmul.bf16.gmra.mxu0 %v5152
        %v5332 = vpop.f32.mrf.mxu0
        %v5333 = vadd.f32 0.0, %v5332
        %v5334 = vpop.f32.mrf.mxu0
        %v5335 = vadd.f32 0.0, %v5334
        %5336 = vmatmul.bf16.gmra.mxu0 %v5154
        %v5337 = vpop.f32.mrf.mxu0
        %v5338 = vadd.f32 0.0, %v5337
        %v5339 = vpop.f32.mrf.mxu0
        %v5340 = vadd.f32 0.0, %v5339
        %5341 = vmatmul.bf16.gmra.mxu0 %v5156
        %v5342 = vpop.f32.mrf.mxu0
        %v5343 = vadd.f32 0.0, %v5342
        %v5344 = vpop.f32.mrf.mxu0
        %v5345 = vadd.f32 0.0, %v5344
        %5346 = vmatmul.bf16.gmra.mxu0 %v5158
        %v5347 = vpop.f32.mrf.mxu0
        %v5348 = vadd.f32 0.0, %v5347
        %v5349 = vpop.f32.mrf.mxu0
        %v5350 = vadd.f32 0.0, %v5349
        %5351 = vmatmul.bf16.gmra.mxu0 %v5160
        %v5352 = vpop.f32.mrf.mxu0
        %v5353 = vadd.f32 0.0, %v5352
        %v5354 = vpop.f32.mrf.mxu0
        %v5355 = vadd.f32 0.0, %v5354
        %5356 = vmatmul.bf16.gmra.mxu0 %v5162
        %v5357 = vpop.f32.mrf.mxu0
        %v5358 = vadd.f32 0.0, %v5357
        %v5359 = vpop.f32.mrf.mxu0
        %v5360 = vadd.f32 0.0, %v5359
        %5361 = vmatmul.bf16.gmra.mxu0 %v5164
        %v5362 = vpop.f32.mrf.mxu0
        %v5363 = vadd.f32 0.0, %v5362
        %v5364 = vpop.f32.mrf.mxu0
        %v5365 = vadd.f32 0.0, %v5364
        %5366 = vmatmul.bf16.gmra.mxu0 %v5166
        %v5367 = vpop.f32.mrf.mxu0
        %v5368 = vadd.f32 0.0, %v5367
        %v5369 = vpop.f32.mrf.mxu0
        %v5370 = vadd.f32 0.0, %v5369
        %5371 = vmatmul.bf16.gmra.mxu0 %v5168
        %v5372 = vpop.f32.mrf.mxu0
        %v5373 = vadd.f32 0.0, %v5372
        %v5374 = vpop.f32.mrf.mxu0
        %v5375 = vadd.f32 0.0, %v5374
        %5376 = vmatmul.bf16.gmra.mxu0 %v5170
        %v5377 = vpop.f32.mrf.mxu0
        %v5378 = vadd.f32 0.0, %v5377
        %v5379 = vpop.f32.mrf.mxu0
        %v5380 = vadd.f32 0.0, %v5379
        %5381 = vmatmul.bf16.gmra.mxu0 %v5172
        %v5382 = vpop.f32.mrf.mxu0
        %v5383 = vadd.f32 0.0, %v5382
        %v5384 = vpop.f32.mrf.mxu0
        %v5385 = vadd.f32 0.0, %v5384
        %5386 = vdwg.mxu0
        %5387 = vmatpush.bf16.msra.mxu0 0
        %5388 = vmatpush.bf16.msra.mxu0 0
        %5389 = vmatpush.bf16.msra.mxu0 0
        %5390 = vmatpush.bf16.msra.mxu0 0
        %5391 = vmatpush.bf16.msra.mxu0 0
        %5392 = vmatpush.bf16.msra.mxu0 0
        %5393 = vmatpush.bf16.msra.mxu0 %v5239
        %5394 = vmatpush.bf16.msra.mxu0 %v5238
        %5395 = vmatmul.bf16.gmra.mxu0 %v5251
        %v5396 = vpop.f32.mrf.mxu0
        %v5397 = vadd.f32 %v5308, %v5396
        %v5398 = vpop.f32.mrf.mxu0
        %v5399 = vadd.f32 %v5310, %v5398
        %5400 = vmatmul.bf16.gmra.mxu0 %v5254
        %v5401 = vpop.f32.mrf.mxu0
        %v5402 = vadd.f32 %v5313, %v5401
        %v5403 = vpop.f32.mrf.mxu0
        %v5404 = vadd.f32 %v5315, %v5403
        %5405 = vmatmul.bf16.gmra.mxu0 %v5257
        %v5406 = vpop.f32.mrf.mxu0
        %v5407 = vadd.f32 %v5318, %v5406
        %v5408 = vpop.f32.mrf.mxu0
        %v5409 = vadd.f32 %v5320, %v5408
        %5410 = vmatmul.bf16.gmra.mxu0 %v5260
        %v5411 = vpop.f32.mrf.mxu0
        %v5412 = vadd.f32 %v5323, %v5411
        %v5413 = vpop.f32.mrf.mxu0
        %v5414 = vadd.f32 %v5325, %v5413
        %5415 = vmatmul.bf16.gmra.mxu0 %v5263
        %v5416 = vpop.f32.mrf.mxu0
        %v5417 = vadd.f32 %v5328, %v5416
        %v5418 = vpop.f32.mrf.mxu0
        %v5419 = vadd.f32 %v5330, %v5418
        %5420 = vmatmul.bf16.gmra.mxu0 %v5266
        %v5421 = vpop.f32.mrf.mxu0
        %v5422 = vadd.f32 %v5333, %v5421
        %v5423 = vpop.f32.mrf.mxu0
        %v5424 = vadd.f32 %v5335, %v5423
        %5425 = vmatmul.bf16.gmra.mxu0 %v5269
        %v5426 = vpop.f32.mrf.mxu0
        %v5427 = vadd.f32 %v5338, %v5426
        %v5428 = vpop.f32.mrf.mxu0
        %v5429 = vadd.f32 %v5340, %v5428
        %5430 = vmatmul.bf16.gmra.mxu0 %v5272
        %v5431 = vpop.f32.mrf.mxu0
        %v5432 = vadd.f32 %v5343, %v5431
        %v5433 = vpop.f32.mrf.mxu0
        %v5434 = vadd.f32 %v5345, %v5433
        %5435 = vmatmul.bf16.gmra.mxu0 %v5275
        %v5436 = vpop.f32.mrf.mxu0
        %v5437 = vadd.f32 %v5348, %v5436
        %v5438 = vpop.f32.mrf.mxu0
        %v5439 = vadd.f32 %v5350, %v5438
        %5440 = vmatmul.bf16.gmra.mxu0 %v5278
        %v5441 = vpop.f32.mrf.mxu0
        %v5442 = vadd.f32 %v5353, %v5441
        %v5443 = vpop.f32.mrf.mxu0
        %v5444 = vadd.f32 %v5355, %v5443
        %5445 = vmatmul.bf16.gmra.mxu0 %v5281
        %v5446 = vpop.f32.mrf.mxu0
        %v5447 = vadd.f32 %v5358, %v5446
        %v5448 = vpop.f32.mrf.mxu0
        %v5449 = vadd.f32 %v5360, %v5448
        %5450 = vmatmul.bf16.gmra.mxu0 %v5284
        %v5451 = vpop.f32.mrf.mxu0
        %v5452 = vadd.f32 %v5363, %v5451
        %v5453 = vpop.f32.mrf.mxu0
        %v5454 = vadd.f32 %v5365, %v5453
        %5455 = vmatmul.bf16.gmra.mxu0 %v5287
        %v5456 = vpop.f32.mrf.mxu0
        %v5457 = vadd.f32 %v5368, %v5456
        %v5458 = vpop.f32.mrf.mxu0
        %v5459 = vadd.f32 %v5370, %v5458
        %5460 = vmatmul.bf16.gmra.mxu0 %v5290
        %v5461 = vpop.f32.mrf.mxu0
        %v5462 = vadd.f32 %v5373, %v5461
        %v5463 = vpop.f32.mrf.mxu0
        %v5464 = vadd.f32 %v5375, %v5463
        %5465 = vmatmul.bf16.gmra.mxu0 %v5293
        %v5466 = vpop.f32.mrf.mxu0
        %v5467 = vadd.f32 %v5378, %v5466
        %v5468 = vpop.f32.mrf.mxu0
        %v5469 = vadd.f32 %v5380, %v5468
        %5470 = vmatmul.bf16.gmra.mxu0 %v5296
        %v5471 = vpop.f32.mrf.mxu0
        %v5472 = vadd.f32 %v5383, %v5471
        %v5473 = vpop.f32.mrf.mxu0
        %v5474 = vadd.f32 %v5385, %v5473
        %5475 = vdwg.mxu0
        %v5476 = vadd.f32 %v4914, %v5397
        %v5477 = vadd.f32 %v4916, %v5399
        %v5478 = vadd.f32 %v4919, %v5402
        %v5479 = vadd.f32 %v4921, %v5404
        %v5480 = vadd.f32 %v4924, %v5407
        %v5481 = vadd.f32 %v4926, %v5409
        %v5482 = vadd.f32 %v4929, %v5412
        %v5483 = vadd.f32 %v4931, %v5414
        %v5484 = vadd.f32 %v4934, %v5417
        %v5485 = vadd.f32 %v4936, %v5419
        %v5486 = vadd.f32 %v4939, %v5422
        %v5487 = vadd.f32 %v4941, %v5424
        %v5488 = vadd.f32 %v4944, %v5427
        %v5489 = vadd.f32 %v4946, %v5429
        %v5490 = vadd.f32 %v4949, %v5432
        %v5491 = vadd.f32 %v4951, %v5434
        %v5492 = vadd.f32 %v4954, %v5437
        %v5493 = vadd.f32 %v4956, %v5439
        %v5494 = vadd.f32 %v4959, %v5442
        %v5495 = vadd.f32 %v4961, %v5444
        %v5496 = vadd.f32 %v4964, %v5447
        %v5497 = vadd.f32 %v4966, %v5449
        %v5498 = vadd.f32 %v4969, %v5452
        %v5499 = vadd.f32 %v4971, %v5454
        %v5500 = vadd.f32 %v4974, %v5457
        %v5501 = vadd.f32 %v4976, %v5459
        %v5502 = vadd.f32 %v4979, %v5462
        %v5503 = vadd.f32 %v4981, %v5464
        %v5504 = vadd.f32 %v4984, %v5467
        %v5505 = vadd.f32 %v4986, %v5469
        %v5506 = vadd.f32 %v4989, %v5472
        %v5507 = vadd.f32 %v4991, %v5474
        %v5508 = vld [vmem:[#allocation2 + $0x40] sm:$0xff]
        %v5509 = vld [vmem:[#allocation2 + $0x48] sm:$0xff]
        %v5510 = vld [vmem:[#allocation2 + $0x50] sm:$0xff]
        %v5511 = vld [vmem:[#allocation2 + $0x58] sm:$0xff]
        %v5512 = vld [vmem:[#allocation2 + $0x60] sm:$0xff]
        %v5513 = vld [vmem:[#allocation2 + $0x68] sm:$0xff]
        %v5514 = vld [vmem:[#allocation2 + $0x70] sm:$0xff]
        %v5515 = vld [vmem:[#allocation2 + $0x78] sm:$0xff]
        %v5516 = vld [vmem:[#allocation2 + $0x80] sm:$0xff]
        %v5517 = vld [vmem:[#allocation2 + $0x88] sm:$0xff]
        %v5518 = vld [vmem:[#allocation2 + $0x90] sm:$0xff]
        %v5519 = vld [vmem:[#allocation2 + $0x98] sm:$0xff]
        %v5520 = vld [vmem:[#allocation2 + $0xa0] sm:$0xff]
        %v5521 = vld [vmem:[#allocation2 + $0xa8] sm:$0xff]
        %v5522 = vld [vmem:[#allocation2 + $0xb0] sm:$0xff]
        %v5523 = vld [vmem:[#allocation2 + $0xb8] sm:$0xff]
        %v5524 = vld [vmem:[#allocation2 + $0xc0] sm:$0xff]
        %v5525 = vld [vmem:[#allocation2 + $0xc8] sm:$0xff]
        %v5526 = vld [vmem:[#allocation2 + $0xd0] sm:$0xff]
        %v5527 = vld [vmem:[#allocation2 + $0xd8] sm:$0xff]
        %v5528 = vld [vmem:[#allocation2 + $0xe0] sm:$0xff]
        %v5529 = vld [vmem:[#allocation2 + $0xe8] sm:$0xff]
        %v5530 = vld [vmem:[#allocation2 + $0xf0] sm:$0xff]
        %v5531 = vld [vmem:[#allocation2 + $0xf8] sm:$0xff]
        %v5532 = vld [vmem:[#allocation2 + $0x100] sm:$0xff]
        %v5533 = vld [vmem:[#allocation2 + $0x108] sm:$0xff]
        %v5534 = vld [vmem:[#allocation2 + $0x110] sm:$0xff]
        %v5535 = vld [vmem:[#allocation2 + $0x118] sm:$0xff]
        %v5536 = vld [vmem:[#allocation2 + $0x120] sm:$0xff]
        %v5537 = vld [vmem:[#allocation2 + $0x128] sm:$0xff]
        %v5538 = vld [vmem:[#allocation2 + $0x130] sm:$0xff]
        %v5539 = vld [vmem:[#allocation2 + $0x138] sm:$0xff]
        %s5540 = scalar_lea.vmem %s1, 240
        %v5541 = vld [vmem:[%s5540] sm:$0xf]
        %v5542 = vld [vmem:[%s5540 + $0x4] sm:$0xf]
        %v5543 = vld [vmem:[%s5540 + $0x8] sm:$0xf]
        %v5544 = vld [vmem:[%s5540 + $0xc] sm:$0xf]
        %v5545 = vld [vmem:[%s5540 + $0x10] sm:$0xf]
        %v5546 = vld [vmem:[%s5540 + $0x14] sm:$0xf]
        %v5547 = vld [vmem:[%s5540 + $0x18] sm:$0xf]
        %v5548 = vld [vmem:[%s5540 + $0x1c] sm:$0xf]
        %v5549 = vld [vmem:[%s5540 + $0x20] sm:$0xf]
        %v5550 = vld [vmem:[%s5540 + $0x24] sm:$0xf]
        %v5551 = vld [vmem:[%s5540 + $0x28] sm:$0xf]
        %v5552 = vld [vmem:[%s5540 + $0x2c] sm:$0xf]
        %v5553 = vld [vmem:[%s5540 + $0x30] sm:$0xf]
        %v5554 = vld [vmem:[%s5540 + $0x34] sm:$0xf]
        %v5555 = vld [vmem:[%s5540 + $0x38] sm:$0xf]
        %v5556 = vld [vmem:[%s5540 + $0x3c] sm:$0xf]
        %v5557 = vld [vmem:[%s5540 + $0x40] sm:$0xf]
        %v5558 = vld [vmem:[%s5540 + $0x44] sm:$0xf]
        %v5559 = vld [vmem:[%s5540 + $0x48] sm:$0xf]
        %v5560 = vld [vmem:[%s5540 + $0x4c] sm:$0xf]
        %v5593 = vunpack.c.l.b16 %v5508
        %v5594 = vunpack.c.h.b16 %v5508
        %v5595 = vunpack.c.l.b16 %v5509
        %v5596 = vunpack.c.h.b16 %v5509
        %v5597 = vunpack.c.l.b16 %v5510
        %v5598 = vunpack.c.h.b16 %v5510
        %v5599 = vunpack.c.l.b16 %v5511
        %v5600 = vunpack.c.h.b16 %v5511
        %v5601 = vunpack.c.l.b16 %v5512
        %v5602 = vunpack.c.h.b16 %v5512
        %v5603 = vunpack.c.l.b16 %v5513
        %v5604 = vunpack.c.h.b16 %v5513
        %v5605 = vunpack.c.l.b16 %v5514
        %v5606 = vunpack.c.h.b16 %v5514
        %v5607 = vunpack.c.l.b16 %v5515
        %v5608 = vunpack.c.h.b16 %v5515
        %v5609 = vunpack.c.l.b16 %v5516
        %v5610 = vunpack.c.h.b16 %v5516
        %v5611 = vunpack.c.l.b16 %v5517
        %v5612 = vunpack.c.h.b16 %v5517
        %v5613 = vunpack.c.l.b16 %v5518
        %v5614 = vunpack.c.h.b16 %v5518
        %v5615 = vunpack.c.l.b16 %v5519
        %v5616 = vunpack.c.h.b16 %v5519
        %v5617 = vunpack.c.l.b16 %v5520
        %v5618 = vunpack.c.h.b16 %v5520
        %v5619 = vunpack.c.l.b16 %v5521
        %v5620 = vunpack.c.h.b16 %v5521
        %v5621 = vunpack.c.l.b16 %v5522
        %v5622 = vunpack.c.h.b16 %v5522
        %v5623 = vunpack.c.l.b16 %v5523
        %v5624 = vunpack.c.h.b16 %v5523
        %v5625 = vunpack.c.l.b16 %v5524
        %v5626 = vunpack.c.h.b16 %v5524
        %v5627 = vunpack.c.l.b16 %v5525
        %v5628 = vunpack.c.h.b16 %v5525
        %v5629 = vunpack.c.l.b16 %v5526
        %v5630 = vunpack.c.h.b16 %v5526
        %v5631 = vunpack.c.l.b16 %v5527
        %v5632 = vunpack.c.h.b16 %v5527
        %v5633 = vunpack.c.l.b16 %v5528
        %v5634 = vunpack.c.h.b16 %v5528
        %v5635 = vunpack.c.l.b16 %v5529
        %v5636 = vunpack.c.h.b16 %v5529
        %v5637 = vunpack.c.l.b16 %v5530
        %v5638 = vunpack.c.h.b16 %v5530
        %v5639 = vunpack.c.l.b16 %v5531
        %v5640 = vunpack.c.h.b16 %v5531
        %v5641 = vunpack.c.l.b16 %v5532
        %v5642 = vunpack.c.h.b16 %v5532
        %v5643 = vunpack.c.l.b16 %v5533
        %v5644 = vunpack.c.h.b16 %v5533
        %v5645 = vunpack.c.l.b16 %v5534
        %v5646 = vunpack.c.h.b16 %v5534
        %v5647 = vunpack.c.l.b16 %v5535
        %v5648 = vunpack.c.h.b16 %v5535
        %v5649 = vunpack.c.l.b16 %v5536
        %v5650 = vunpack.c.h.b16 %v5536
        %v5651 = vunpack.c.l.b16 %v5537
        %v5652 = vunpack.c.h.b16 %v5537
        %v5653 = vunpack.c.l.b16 %v5538
        %v5654 = vunpack.c.h.b16 %v5538
        %v5655 = vunpack.c.l.b16 %v5539
        %v5656 = vunpack.c.h.b16 %v5539
        %v5657 = vpack.c.b16 %v5595, %v5593
        %v5658 = vpack.c.b16 %v5596, %v5594
        %v5659 = vpack.c.b16 %v5599, %v5597
        %v5660 = vpack.c.b16 %v5600, %v5598
        %v5661 = vpack.c.b16 %v5603, %v5601
        %v5662 = vpack.c.b16 %v5604, %v5602
        %v5663 = vpack.c.b16 %v5607, %v5605
        %v5664 = vpack.c.b16 %v5608, %v5606
        %v5665 = vpack.c.b16 %v5611, %v5609
        %v5666 = vpack.c.b16 %v5612, %v5610
        %v5667 = vpack.c.b16 %v5615, %v5613
        %v5668 = vpack.c.b16 %v5616, %v5614
        %v5669 = vpack.c.b16 %v5619, %v5617
        %v5670 = vpack.c.b16 %v5620, %v5618
        %v5671 = vpack.c.b16 %v5623, %v5621
        %v5672 = vpack.c.b16 %v5624, %v5622
        %v5673 = vpack.c.b16 %v5627, %v5625
        %v5674 = vpack.c.b16 %v5628, %v5626
        %v5675 = vpack.c.b16 %v5631, %v5629
        %v5676 = vpack.c.b16 %v5632, %v5630
        %v5677 = vpack.c.b16 %v5635, %v5633
        %v5678 = vpack.c.b16 %v5636, %v5634
        %v5679 = vpack.c.b16 %v5639, %v5637
        %v5680 = vpack.c.b16 %v5640, %v5638
        %v5681 = vpack.c.b16 %v5643, %v5641
        %v5682 = vpack.c.b16 %v5644, %v5642
        %v5683 = vpack.c.b16 %v5647, %v5645
        %v5684 = vpack.c.b16 %v5648, %v5646
        %v5685 = vpack.c.b16 %v5651, %v5649
        %v5686 = vpack.c.b16 %v5652, %v5650
        %v5687 = vpack.c.b16 %v5655, %v5653
        %v5688 = vpack.c.b16 %v5656, %v5654
        %v5725 = vunpack.c.l.b16 %v5541
        %v5726 = vunpack.c.l.b16 %v5542
        %v5727 = vunpack.c.l.b16 %v5543
        %v5728 = vunpack.c.l.b16 %v5544
        %v5729 = vunpack.c.l.b16 %v5545
        %v5730 = vunpack.c.l.b16 %v5546
        %v5731 = vunpack.c.l.b16 %v5547
        %v5732 = vunpack.c.l.b16 %v5548
        %v5733 = vunpack.c.l.b16 %v5549
        %v5734 = vunpack.c.l.b16 %v5550
        %v5735 = vunpack.c.l.b16 %v5551
        %v5736 = vunpack.c.l.b16 %v5552
        %v5737 = vunpack.c.l.b16 %v5553
        %v5738 = vunpack.c.l.b16 %v5554
        %v5739 = vunpack.c.l.b16 %v5555
        %v5740 = vunpack.c.l.b16 %v5556
        %v5741 = vunpack.c.l.b16 %v5557
        %v5742 = vunpack.c.l.b16 %v5558
        %v5743 = vunpack.c.l.b16 %v5559
        %v5744 = vunpack.c.l.b16 %v5560
        %v5745 = vpack.c.b16 %v5726, %v5725
        %v5746 = vpack.c.b16 %v5728, %v5727
        %v5747 = vpack.c.b16 %v5730, %v5729
        %v5748 = vpack.c.b16 %v5732, %v5731
        %v5749 = vpack.c.b16 %v5734, %v5733
        %v5750 = vpack.c.b16 %v5736, %v5735
        %v5751 = vpack.c.b16 %v5738, %v5737
        %v5752 = vpack.c.b16 %v5740, %v5739
        %v5753 = vpack.c.b16 %v5742, %v5741
        %v5754 = vpack.c.b16 %v5744, %v5743
        %v5766 = vsel %vm4516, %v5658, 0
        %v5769 = vsel %vm4516, %v5660, 0
        %v5772 = vsel %vm4516, %v5662, 0
        %v5775 = vsel %vm4516, %v5664, 0
        %v5778 = vsel %vm4516, %v5666, 0
        %v5781 = vsel %vm4516, %v5668, 0
        %v5784 = vsel %vm4516, %v5670, 0
        %v5787 = vsel %vm4516, %v5672, 0
        %v5790 = vsel %vm4516, %v5674, 0
        %v5793 = vsel %vm4516, %v5676, 0
        %v5796 = vsel %vm4516, %v5678, 0
        %v5799 = vsel %vm4516, %v5680, 0
        %v5802 = vsel %vm4516, %v5682, 0
        %v5805 = vsel %vm4516, %v5684, 0
        %v5808 = vsel %vm4516, %v5686, 0
        %v5811 = vsel %vm4516, %v5688, 0
        %5813 = vmatpush.bf16.msra.mxu0 %v5752
        %5814 = vmatpush.bf16.msra.mxu0 %v5751
        %5815 = vmatpush.bf16.msra.mxu0 %v5750
        %5816 = vmatpush.bf16.msra.mxu0 %v5749
        %5817 = vmatpush.bf16.msra.mxu0 %v5748
        %5818 = vmatpush.bf16.msra.mxu0 %v5747
        %5819 = vmatpush.bf16.msra.mxu0 %v5746
        %5820 = vmatpush.bf16.msra.mxu0 %v5745
        %5821 = vmatmul.bf16.gmra.mxu0 %v5657
        %v5822 = vpop.f32.mrf.mxu0
        %v5823 = vadd.f32 0.0, %v5822
        %v5824 = vpop.f32.mrf.mxu0
        %v5825 = vadd.f32 0.0, %v5824
        %5826 = vmatmul.bf16.gmra.mxu0 %v5659
        %v5827 = vpop.f32.mrf.mxu0
        %v5828 = vadd.f32 0.0, %v5827
        %v5829 = vpop.f32.mrf.mxu0
        %v5830 = vadd.f32 0.0, %v5829
        %5831 = vmatmul.bf16.gmra.mxu0 %v5661
        %v5832 = vpop.f32.mrf.mxu0
        %v5833 = vadd.f32 0.0, %v5832
        %v5834 = vpop.f32.mrf.mxu0
        %v5835 = vadd.f32 0.0, %v5834
        %5836 = vmatmul.bf16.gmra.mxu0 %v5663
        %v5837 = vpop.f32.mrf.mxu0
        %v5838 = vadd.f32 0.0, %v5837
        %v5839 = vpop.f32.mrf.mxu0
        %v5840 = vadd.f32 0.0, %v5839
        %5841 = vmatmul.bf16.gmra.mxu0 %v5665
        %v5842 = vpop.f32.mrf.mxu0
        %v5843 = vadd.f32 0.0, %v5842
        %v5844 = vpop.f32.mrf.mxu0
        %v5845 = vadd.f32 0.0, %v5844
        %5846 = vmatmul.bf16.gmra.mxu0 %v5667
        %v5847 = vpop.f32.mrf.mxu0
        %v5848 = vadd.f32 0.0, %v5847
        %v5849 = vpop.f32.mrf.mxu0
        %v5850 = vadd.f32 0.0, %v5849
        %5851 = vmatmul.bf16.gmra.mxu0 %v5669
        %v5852 = vpop.f32.mrf.mxu0
        %v5853 = vadd.f32 0.0, %v5852
        %v5854 = vpop.f32.mrf.mxu0
        %v5855 = vadd.f32 0.0, %v5854
        %5856 = vmatmul.bf16.gmra.mxu0 %v5671
        %v5857 = vpop.f32.mrf.mxu0
        %v5858 = vadd.f32 0.0, %v5857
        %v5859 = vpop.f32.mrf.mxu0
        %v5860 = vadd.f32 0.0, %v5859
        %5861 = vmatmul.bf16.gmra.mxu0 %v5673
        %v5862 = vpop.f32.mrf.mxu0
        %v5863 = vadd.f32 0.0, %v5862
        %v5864 = vpop.f32.mrf.mxu0
        %v5865 = vadd.f32 0.0, %v5864
        %5866 = vmatmul.bf16.gmra.mxu0 %v5675
        %v5867 = vpop.f32.mrf.mxu0
        %v5868 = vadd.f32 0.0, %v5867
        %v5869 = vpop.f32.mrf.mxu0
        %v5870 = vadd.f32 0.0, %v5869
        %5871 = vmatmul.bf16.gmra.mxu0 %v5677
        %v5872 = vpop.f32.mrf.mxu0
        %v5873 = vadd.f32 0.0, %v5872
        %v5874 = vpop.f32.mrf.mxu0
        %v5875 = vadd.f32 0.0, %v5874
        %5876 = vmatmul.bf16.gmra.mxu0 %v5679
        %v5877 = vpop.f32.mrf.mxu0
        %v5878 = vadd.f32 0.0, %v5877
        %v5879 = vpop.f32.mrf.mxu0
        %v5880 = vadd.f32 0.0, %v5879
        %5881 = vmatmul.bf16.gmra.mxu0 %v5681
        %v5882 = vpop.f32.mrf.mxu0
        %v5883 = vadd.f32 0.0, %v5882
        %v5884 = vpop.f32.mrf.mxu0
        %v5885 = vadd.f32 0.0, %v5884
        %5886 = vmatmul.bf16.gmra.mxu0 %v5683
        %v5887 = vpop.f32.mrf.mxu0
        %v5888 = vadd.f32 0.0, %v5887
        %v5889 = vpop.f32.mrf.mxu0
        %v5890 = vadd.f32 0.0, %v5889
        %5891 = vmatmul.bf16.gmra.mxu0 %v5685
        %v5892 = vpop.f32.mrf.mxu0
        %v5893 = vadd.f32 0.0, %v5892
        %v5894 = vpop.f32.mrf.mxu0
        %v5895 = vadd.f32 0.0, %v5894
        %5896 = vmatmul.bf16.gmra.mxu0 %v5687
        %v5897 = vpop.f32.mrf.mxu0
        %v5898 = vadd.f32 0.0, %v5897
        %v5899 = vpop.f32.mrf.mxu0
        %v5900 = vadd.f32 0.0, %v5899
        %5901 = vdwg.mxu0
        %5902 = vmatpush.bf16.msra.mxu0 0
        %5903 = vmatpush.bf16.msra.mxu0 0
        %5904 = vmatpush.bf16.msra.mxu0 0
        %5905 = vmatpush.bf16.msra.mxu0 0
        %5906 = vmatpush.bf16.msra.mxu0 0
        %5907 = vmatpush.bf16.msra.mxu0 0
        %5908 = vmatpush.bf16.msra.mxu0 %v5754
        %5909 = vmatpush.bf16.msra.mxu0 %v5753
        %5910 = vmatmul.bf16.gmra.mxu0 %v5766
        %v5911 = vpop.f32.mrf.mxu0
        %v5912 = vadd.f32 %v5823, %v5911
        %v5913 = vpop.f32.mrf.mxu0
        %v5914 = vadd.f32 %v5825, %v5913
        %5915 = vmatmul.bf16.gmra.mxu0 %v5769
        %v5916 = vpop.f32.mrf.mxu0
        %v5917 = vadd.f32 %v5828, %v5916
        %v5918 = vpop.f32.mrf.mxu0
        %v5919 = vadd.f32 %v5830, %v5918
        %5920 = vmatmul.bf16.gmra.mxu0 %v5772
        %v5921 = vpop.f32.mrf.mxu0
        %v5922 = vadd.f32 %v5833, %v5921
        %v5923 = vpop.f32.mrf.mxu0
        %v5924 = vadd.f32 %v5835, %v5923
        %5925 = vmatmul.bf16.gmra.mxu0 %v5775
        %v5926 = vpop.f32.mrf.mxu0
        %v5927 = vadd.f32 %v5838, %v5926
        %v5928 = vpop.f32.mrf.mxu0
        %v5929 = vadd.f32 %v5840, %v5928
        %5930 = vmatmul.bf16.gmra.mxu0 %v5778
        %v5931 = vpop.f32.mrf.mxu0
        %v5932 = vadd.f32 %v5843, %v5931
        %v5933 = vpop.f32.mrf.mxu0
        %v5934 = vadd.f32 %v5845, %v5933
        %5935 = vmatmul.bf16.gmra.mxu0 %v5781
        %v5936 = vpop.f32.mrf.mxu0
        %v5937 = vadd.f32 %v5848, %v5936
        %v5938 = vpop.f32.mrf.mxu0
        %v5939 = vadd.f32 %v5850, %v5938
        %5940 = vmatmul.bf16.gmra.mxu0 %v5784
        %v5941 = vpop.f32.mrf.mxu0
        %v5942 = vadd.f32 %v5853, %v5941
        %v5943 = vpop.f32.mrf.mxu0
        %v5944 = vadd.f32 %v5855, %v5943
        %5945 = vmatmul.bf16.gmra.mxu0 %v5787
        %v5946 = vpop.f32.mrf.mxu0
        %v5947 = vadd.f32 %v5858, %v5946
        %v5948 = vpop.f32.mrf.mxu0
        %v5949 = vadd.f32 %v5860, %v5948
        %5950 = vmatmul.bf16.gmra.mxu0 %v5790
        %v5951 = vpop.f32.mrf.mxu0
        %v5952 = vadd.f32 %v5863, %v5951
        %v5953 = vpop.f32.mrf.mxu0
        %v5954 = vadd.f32 %v5865, %v5953
        %5955 = vmatmul.bf16.gmra.mxu0 %v5793
        %v5956 = vpop.f32.mrf.mxu0
        %v5957 = vadd.f32 %v5868, %v5956
        %v5958 = vpop.f32.mrf.mxu0
        %v5959 = vadd.f32 %v5870, %v5958
        %5960 = vmatmul.bf16.gmra.mxu0 %v5796
        %v5961 = vpop.f32.mrf.mxu0
        %v5962 = vadd.f32 %v5873, %v5961
        %v5963 = vpop.f32.mrf.mxu0
        %v5964 = vadd.f32 %v5875, %v5963
        %5965 = vmatmul.bf16.gmra.mxu0 %v5799
        %v5966 = vpop.f32.mrf.mxu0
        %v5967 = vadd.f32 %v5878, %v5966
        %v5968 = vpop.f32.mrf.mxu0
        %v5969 = vadd.f32 %v5880, %v5968
        %5970 = vmatmul.bf16.gmra.mxu0 %v5802
        %v5971 = vpop.f32.mrf.mxu0
        %v5972 = vadd.f32 %v5883, %v5971
        %v5973 = vpop.f32.mrf.mxu0
        %v5974 = vadd.f32 %v5885, %v5973
        %5975 = vmatmul.bf16.gmra.mxu0 %v5805
        %v5976 = vpop.f32.mrf.mxu0
        %v5977 = vadd.f32 %v5888, %v5976
        %v5978 = vpop.f32.mrf.mxu0
        %v5979 = vadd.f32 %v5890, %v5978
        %5980 = vmatmul.bf16.gmra.mxu0 %v5808
        %v5981 = vpop.f32.mrf.mxu0
        %v5982 = vadd.f32 %v5893, %v5981
        %v5983 = vpop.f32.mrf.mxu0
        %v5984 = vadd.f32 %v5895, %v5983
        %5985 = vmatmul.bf16.gmra.mxu0 %v5811
        %v5986 = vpop.f32.mrf.mxu0
        %v5987 = vadd.f32 %v5898, %v5986
        %v5988 = vpop.f32.mrf.mxu0
        %v5989 = vadd.f32 %v5900, %v5988
        %5990 = vdwg.mxu0
        %v5991 = vadd.f32 %v5476, %v5912
        %v5992 = vadd.f32 %v5477, %v5914
        %v5993 = vadd.f32 %v5478, %v5917
        %v5994 = vadd.f32 %v5479, %v5919
        %v5995 = vadd.f32 %v5480, %v5922
        %v5996 = vadd.f32 %v5481, %v5924
        %v5997 = vadd.f32 %v5482, %v5927
        %v5998 = vadd.f32 %v5483, %v5929
        %v5999 = vadd.f32 %v5484, %v5932
        %v6000 = vadd.f32 %v5485, %v5934
        %v6001 = vadd.f32 %v5486, %v5937
        %v6002 = vadd.f32 %v5487, %v5939
        %v6003 = vadd.f32 %v5488, %v5942
        %v6004 = vadd.f32 %v5489, %v5944
        %v6005 = vadd.f32 %v5490, %v5947
        %v6006 = vadd.f32 %v5491, %v5949
        %v6007 = vadd.f32 %v5492, %v5952
        %v6008 = vadd.f32 %v5493, %v5954
        %v6009 = vadd.f32 %v5494, %v5957
        %v6010 = vadd.f32 %v5495, %v5959
        %v6011 = vadd.f32 %v5496, %v5962
        %v6012 = vadd.f32 %v5497, %v5964
        %v6013 = vadd.f32 %v5498, %v5967
        %v6014 = vadd.f32 %v5499, %v5969
        %v6015 = vadd.f32 %v5500, %v5972
        %v6016 = vadd.f32 %v5501, %v5974
        %v6017 = vadd.f32 %v5502, %v5977
        %v6018 = vadd.f32 %v5503, %v5979
        %v6019 = vadd.f32 %v5504, %v5982
        %v6020 = vadd.f32 %v5505, %v5984
        %v6021 = vadd.f32 %v5506, %v5987
        %v6022 = vadd.f32 %v5507, %v5989
        %v6023 = vld [vmem:[#allocation2 + $0x50] sm:$0xff]
        %v6024 = vld [vmem:[#allocation2 + $0x58] sm:$0xff]
        %v6025 = vld [vmem:[#allocation2 + $0x60] sm:$0xff]
        %v6026 = vld [vmem:[#allocation2 + $0x68] sm:$0xff]
        %v6027 = vld [vmem:[#allocation2 + $0x70] sm:$0xff]
        %v6028 = vld [vmem:[#allocation2 + $0x78] sm:$0xff]
        %v6029 = vld [vmem:[#allocation2 + $0x80] sm:$0xff]
        %v6030 = vld [vmem:[#allocation2 + $0x88] sm:$0xff]
        %v6031 = vld [vmem:[#allocation2 + $0x90] sm:$0xff]
        %v6032 = vld [vmem:[#allocation2 + $0x98] sm:$0xff]
        %v6033 = vld [vmem:[#allocation2 + $0xa0] sm:$0xff]
        %v6034 = vld [vmem:[#allocation2 + $0xa8] sm:$0xff]
        %v6035 = vld [vmem:[#allocation2 + $0xb0] sm:$0xff]
        %v6036 = vld [vmem:[#allocation2 + $0xb8] sm:$0xff]
        %v6037 = vld [vmem:[#allocation2 + $0xc0] sm:$0xff]
        %v6038 = vld [vmem:[#allocation2 + $0xc8] sm:$0xff]
        %v6039 = vld [vmem:[#allocation2 + $0xd0] sm:$0xff]
        %v6040 = vld [vmem:[#allocation2 + $0xd8] sm:$0xff]
        %v6041 = vld [vmem:[#allocation2 + $0xe0] sm:$0xff]
        %v6042 = vld [vmem:[#allocation2 + $0xe8] sm:$0xff]
        %v6043 = vld [vmem:[#allocation2 + $0xf0] sm:$0xff]
        %v6044 = vld [vmem:[#allocation2 + $0xf8] sm:$0xff]
        %v6045 = vld [vmem:[#allocation2 + $0x100] sm:$0xff]
        %v6046 = vld [vmem:[#allocation2 + $0x108] sm:$0xff]
        %v6047 = vld [vmem:[#allocation2 + $0x110] sm:$0xff]
        %v6048 = vld [vmem:[#allocation2 + $0x118] sm:$0xff]
        %v6049 = vld [vmem:[#allocation2 + $0x120] sm:$0xff]
        %v6050 = vld [vmem:[#allocation2 + $0x128] sm:$0xff]
        %v6051 = vld [vmem:[#allocation2 + $0x130] sm:$0xff]
        %v6052 = vld [vmem:[#allocation2 + $0x138] sm:$0xff]
        %v6053 = vld [vmem:[#allocation2 + $0x140] sm:$0xff]
        %v6054 = vld [vmem:[#allocation2 + $0x148] sm:$0xff]
        %s6055 = scalar_lea.vmem %s1, 320
        %v6056 = vld [vmem:[%s6055] sm:$0xf]
        %v6057 = vld [vmem:[%s6055 + $0x4] sm:$0xf]
        %v6058 = vld [vmem:[%s6055 + $0x8] sm:$0xf]
        %v6059 = vld [vmem:[%s6055 + $0xc] sm:$0xf]
        %v6060 = vld [vmem:[%s6055 + $0x10] sm:$0xf]
        %v6061 = vld [vmem:[%s6055 + $0x14] sm:$0xf]
        %v6062 = vld [vmem:[%s6055 + $0x18] sm:$0xf]
        %v6063 = vld [vmem:[%s6055 + $0x1c] sm:$0xf]
        %v6064 = vld [vmem:[%s6055 + $0x20] sm:$0xf]
        %v6065 = vld [vmem:[%s6055 + $0x24] sm:$0xf]
        %v6066 = vld [vmem:[%s6055 + $0x28] sm:$0xf]
        %v6067 = vld [vmem:[%s6055 + $0x2c] sm:$0xf]
        %v6068 = vld [vmem:[%s6055 + $0x30] sm:$0xf]
        %v6069 = vld [vmem:[%s6055 + $0x34] sm:$0xf]
        %v6070 = vld [vmem:[%s6055 + $0x38] sm:$0xf]
        %v6071 = vld [vmem:[%s6055 + $0x3c] sm:$0xf]
        %v6072 = vld [vmem:[%s6055 + $0x40] sm:$0xf]
        %v6073 = vld [vmem:[%s6055 + $0x44] sm:$0xf]
        %v6074 = vld [vmem:[%s6055 + $0x48] sm:$0xf]
        %v6075 = vld [vmem:[%s6055 + $0x4c] sm:$0xf]
        %v6108 = vunpack.c.l.b16 %v6023
        %v6109 = vunpack.c.h.b16 %v6023
        %v6110 = vunpack.c.l.b16 %v6024
        %v6111 = vunpack.c.h.b16 %v6024
        %v6112 = vunpack.c.l.b16 %v6025
        %v6113 = vunpack.c.h.b16 %v6025
        %v6114 = vunpack.c.l.b16 %v6026
        %v6115 = vunpack.c.h.b16 %v6026
        %v6116 = vunpack.c.l.b16 %v6027
        %v6117 = vunpack.c.h.b16 %v6027
        %v6118 = vunpack.c.l.b16 %v6028
        %v6119 = vunpack.c.h.b16 %v6028
        %v6120 = vunpack.c.l.b16 %v6029
        %v6121 = vunpack.c.h.b16 %v6029
        %v6122 = vunpack.c.l.b16 %v6030
        %v6123 = vunpack.c.h.b16 %v6030
        %v6124 = vunpack.c.l.b16 %v6031
        %v6125 = vunpack.c.h.b16 %v6031
        %v6126 = vunpack.c.l.b16 %v6032
        %v6127 = vunpack.c.h.b16 %v6032
        %v6128 = vunpack.c.l.b16 %v6033
        %v6129 = vunpack.c.h.b16 %v6033
        %v6130 = vunpack.c.l.b16 %v6034
        %v6131 = vunpack.c.h.b16 %v6034
        %v6132 = vunpack.c.l.b16 %v6035
        %v6133 = vunpack.c.h.b16 %v6035
        %v6134 = vunpack.c.l.b16 %v6036
        %v6135 = vunpack.c.h.b16 %v6036
        %v6136 = vunpack.c.l.b16 %v6037
        %v6137 = vunpack.c.h.b16 %v6037
        %v6138 = vunpack.c.l.b16 %v6038
        %v6139 = vunpack.c.h.b16 %v6038
        %v6140 = vunpack.c.l.b16 %v6039
        %v6141 = vunpack.c.h.b16 %v6039
        %v6142 = vunpack.c.l.b16 %v6040
        %v6143 = vunpack.c.h.b16 %v6040
        %v6144 = vunpack.c.l.b16 %v6041
        %v6145 = vunpack.c.h.b16 %v6041
        %v6146 = vunpack.c.l.b16 %v6042
        %v6147 = vunpack.c.h.b16 %v6042
        %v6148 = vunpack.c.l.b16 %v6043
        %v6149 = vunpack.c.h.b16 %v6043
        %v6150 = vunpack.c.l.b16 %v6044
        %v6151 = vunpack.c.h.b16 %v6044
        %v6152 = vunpack.c.l.b16 %v6045
        %v6153 = vunpack.c.h.b16 %v6045
        %v6154 = vunpack.c.l.b16 %v6046
        %v6155 = vunpack.c.h.b16 %v6046
        %v6156 = vunpack.c.l.b16 %v6047
        %v6157 = vunpack.c.h.b16 %v6047
        %v6158 = vunpack.c.l.b16 %v6048
        %v6159 = vunpack.c.h.b16 %v6048
        %v6160 = vunpack.c.l.b16 %v6049
        %v6161 = vunpack.c.h.b16 %v6049
        %v6162 = vunpack.c.l.b16 %v6050
        %v6163 = vunpack.c.h.b16 %v6050
        %v6164 = vunpack.c.l.b16 %v6051
        %v6165 = vunpack.c.h.b16 %v6051
        %v6166 = vunpack.c.l.b16 %v6052
        %v6167 = vunpack.c.h.b16 %v6052
        %v6168 = vunpack.c.l.b16 %v6053
        %v6169 = vunpack.c.h.b16 %v6053
        %v6170 = vunpack.c.l.b16 %v6054
        %v6171 = vunpack.c.h.b16 %v6054
        %v6172 = vpack.c.b16 %v6110, %v6108
        %v6173 = vpack.c.b16 %v6111, %v6109
        %v6174 = vpack.c.b16 %v6114, %v6112
        %v6175 = vpack.c.b16 %v6115, %v6113
        %v6176 = vpack.c.b16 %v6118, %v6116
        %v6177 = vpack.c.b16 %v6119, %v6117
        %v6178 = vpack.c.b16 %v6122, %v6120
        %v6179 = vpack.c.b16 %v6123, %v6121
        %v6180 = vpack.c.b16 %v6126, %v6124
        %v6181 = vpack.c.b16 %v6127, %v6125
        %v6182 = vpack.c.b16 %v6130, %v6128
        %v6183 = vpack.c.b16 %v6131, %v6129
        %v6184 = vpack.c.b16 %v6134, %v6132
        %v6185 = vpack.c.b16 %v6135, %v6133
        %v6186 = vpack.c.b16 %v6138, %v6136
        %v6187 = vpack.c.b16 %v6139, %v6137
        %v6188 = vpack.c.b16 %v6142, %v6140
        %v6189 = vpack.c.b16 %v6143, %v6141
        %v6190 = vpack.c.b16 %v6146, %v6144
        %v6191 = vpack.c.b16 %v6147, %v6145
        %v6192 = vpack.c.b16 %v6150, %v6148
        %v6193 = vpack.c.b16 %v6151, %v6149
        %v6194 = vpack.c.b16 %v6154, %v6152
        %v6195 = vpack.c.b16 %v6155, %v6153
        %v6196 = vpack.c.b16 %v6158, %v6156
        %v6197 = vpack.c.b16 %v6159, %v6157
        %v6198 = vpack.c.b16 %v6162, %v6160
        %v6199 = vpack.c.b16 %v6163, %v6161
        %v6200 = vpack.c.b16 %v6166, %v6164
        %v6201 = vpack.c.b16 %v6167, %v6165
        %v6202 = vpack.c.b16 %v6170, %v6168
        %v6203 = vpack.c.b16 %v6171, %v6169
        %v6240 = vunpack.c.l.b16 %v6056
        %v6241 = vunpack.c.l.b16 %v6057
        %v6242 = vunpack.c.l.b16 %v6058
        %v6243 = vunpack.c.l.b16 %v6059
        %v6244 = vunpack.c.l.b16 %v6060
        %v6245 = vunpack.c.l.b16 %v6061
        %v6246 = vunpack.c.l.b16 %v6062
        %v6247 = vunpack.c.l.b16 %v6063
        %v6248 = vunpack.c.l.b16 %v6064
        %v6249 = vunpack.c.l.b16 %v6065
        %v6250 = vunpack.c.l.b16 %v6066
        %v6251 = vunpack.c.l.b16 %v6067
        %v6252 = vunpack.c.l.b16 %v6068
        %v6253 = vunpack.c.l.b16 %v6069
        %v6254 = vunpack.c.l.b16 %v6070
        %v6255 = vunpack.c.l.b16 %v6071
        %v6256 = vunpack.c.l.b16 %v6072
        %v6257 = vunpack.c.l.b16 %v6073
        %v6258 = vunpack.c.l.b16 %v6074
        %v6259 = vunpack.c.l.b16 %v6075
        %v6260 = vpack.c.b16 %v6241, %v6240
        %v6261 = vpack.c.b16 %v6243, %v6242
        %v6262 = vpack.c.b16 %v6245, %v6244
        %v6263 = vpack.c.b16 %v6247, %v6246
        %v6264 = vpack.c.b16 %v6249, %v6248
        %v6265 = vpack.c.b16 %v6251, %v6250
        %v6266 = vpack.c.b16 %v6253, %v6252
        %v6267 = vpack.c.b16 %v6255, %v6254
        %v6268 = vpack.c.b16 %v6257, %v6256
        %v6269 = vpack.c.b16 %v6259, %v6258
        %v6281 = vsel %vm4516, %v6173, 0
        %v6284 = vsel %vm4516, %v6175, 0
        %v6287 = vsel %vm4516, %v6177, 0
        %v6290 = vsel %vm4516, %v6179, 0
        %v6293 = vsel %vm4516, %v6181, 0
        %v6296 = vsel %vm4516, %v6183, 0
        %v6299 = vsel %vm4516, %v6185, 0
        %v6302 = vsel %vm4516, %v6187, 0
        %v6305 = vsel %vm4516, %v6189, 0
        %v6308 = vsel %vm4516, %v6191, 0
        %v6311 = vsel %vm4516, %v6193, 0
        %v6314 = vsel %vm4516, %v6195, 0
        %v6317 = vsel %vm4516, %v6197, 0
        %v6320 = vsel %vm4516, %v6199, 0
        %v6323 = vsel %vm4516, %v6201, 0
        %v6326 = vsel %vm4516, %v6203, 0
        %6328 = vmatpush.bf16.msra.mxu0 %v6267
        %6329 = vmatpush.bf16.msra.mxu0 %v6266
        %6330 = vmatpush.bf16.msra.mxu0 %v6265
        %6331 = vmatpush.bf16.msra.mxu0 %v6264
        %6332 = vmatpush.bf16.msra.mxu0 %v6263
        %6333 = vmatpush.bf16.msra.mxu0 %v6262
        %6334 = vmatpush.bf16.msra.mxu0 %v6261
        %6335 = vmatpush.bf16.msra.mxu0 %v6260
        %6336 = vmatmul.bf16.gmra.mxu0 %v6172
        %v6337 = vpop.f32.mrf.mxu0
        %v6338 = vadd.f32 0.0, %v6337
        %v6339 = vpop.f32.mrf.mxu0
        %v6340 = vadd.f32 0.0, %v6339
        %6341 = vmatmul.bf16.gmra.mxu0 %v6174
        %v6342 = vpop.f32.mrf.mxu0
        %v6343 = vadd.f32 0.0, %v6342
        %v6344 = vpop.f32.mrf.mxu0
        %v6345 = vadd.f32 0.0, %v6344
        %6346 = vmatmul.bf16.gmra.mxu0 %v6176
        %v6347 = vpop.f32.mrf.mxu0
        %v6348 = vadd.f32 0.0, %v6347
        %v6349 = vpop.f32.mrf.mxu0
        %v6350 = vadd.f32 0.0, %v6349
        %6351 = vmatmul.bf16.gmra.mxu0 %v6178
        %v6352 = vpop.f32.mrf.mxu0
        %v6353 = vadd.f32 0.0, %v6352
        %v6354 = vpop.f32.mrf.mxu0
        %v6355 = vadd.f32 0.0, %v6354
        %6356 = vmatmul.bf16.gmra.mxu0 %v6180
        %v6357 = vpop.f32.mrf.mxu0
        %v6358 = vadd.f32 0.0, %v6357
        %v6359 = vpop.f32.mrf.mxu0
        %v6360 = vadd.f32 0.0, %v6359
        %6361 = vmatmul.bf16.gmra.mxu0 %v6182
        %v6362 = vpop.f32.mrf.mxu0
        %v6363 = vadd.f32 0.0, %v6362
        %v6364 = vpop.f32.mrf.mxu0
        %v6365 = vadd.f32 0.0, %v6364
        %6366 = vmatmul.bf16.gmra.mxu0 %v6184
        %v6367 = vpop.f32.mrf.mxu0
        %v6368 = vadd.f32 0.0, %v6367
        %v6369 = vpop.f32.mrf.mxu0
        %v6370 = vadd.f32 0.0, %v6369
        %6371 = vmatmul.bf16.gmra.mxu0 %v6186
        %v6372 = vpop.f32.mrf.mxu0
        %v6373 = vadd.f32 0.0, %v6372
        %v6374 = vpop.f32.mrf.mxu0
        %v6375 = vadd.f32 0.0, %v6374
        %6376 = vmatmul.bf16.gmra.mxu0 %v6188
        %v6377 = vpop.f32.mrf.mxu0
        %v6378 = vadd.f32 0.0, %v6377
        %v6379 = vpop.f32.mrf.mxu0
        %v6380 = vadd.f32 0.0, %v6379
        %6381 = vmatmul.bf16.gmra.mxu0 %v6190
        %v6382 = vpop.f32.mrf.mxu0
        %v6383 = vadd.f32 0.0, %v6382
        %v6384 = vpop.f32.mrf.mxu0
        %v6385 = vadd.f32 0.0, %v6384
        %6386 = vmatmul.bf16.gmra.mxu0 %v6192
        %v6387 = vpop.f32.mrf.mxu0
        %v6388 = vadd.f32 0.0, %v6387
        %v6389 = vpop.f32.mrf.mxu0
        %v6390 = vadd.f32 0.0, %v6389
        %6391 = vmatmul.bf16.gmra.mxu0 %v6194
        %v6392 = vpop.f32.mrf.mxu0
        %v6393 = vadd.f32 0.0, %v6392
        %v6394 = vpop.f32.mrf.mxu0
        %v6395 = vadd.f32 0.0, %v6394
        %6396 = vmatmul.bf16.gmra.mxu0 %v6196
        %v6397 = vpop.f32.mrf.mxu0
        %v6398 = vadd.f32 0.0, %v6397
        %v6399 = vpop.f32.mrf.mxu0
        %v6400 = vadd.f32 0.0, %v6399
        %6401 = vmatmul.bf16.gmra.mxu0 %v6198
        %v6402 = vpop.f32.mrf.mxu0
        %v6403 = vadd.f32 0.0, %v6402
        %v6404 = vpop.f32.mrf.mxu0
        %v6405 = vadd.f32 0.0, %v6404
        %6406 = vmatmul.bf16.gmra.mxu0 %v6200
        %v6407 = vpop.f32.mrf.mxu0
        %v6408 = vadd.f32 0.0, %v6407
        %v6409 = vpop.f32.mrf.mxu0
        %v6410 = vadd.f32 0.0, %v6409
        %6411 = vmatmul.bf16.gmra.mxu0 %v6202
        %v6412 = vpop.f32.mrf.mxu0
        %v6413 = vadd.f32 0.0, %v6412
        %v6414 = vpop.f32.mrf.mxu0
        %v6415 = vadd.f32 0.0, %v6414
        %6416 = vdwg.mxu0
        %6417 = vmatpush.bf16.msra.mxu0 0
        %6418 = vmatpush.bf16.msra.mxu0 0
        %6419 = vmatpush.bf16.msra.mxu0 0
        %6420 = vmatpush.bf16.msra.mxu0 0
        %6421 = vmatpush.bf16.msra.mxu0 0
        %6422 = vmatpush.bf16.msra.mxu0 0
        %6423 = vmatpush.bf16.msra.mxu0 %v6269
        %6424 = vmatpush.bf16.msra.mxu0 %v6268
        %6425 = vmatmul.bf16.gmra.mxu0 %v6281
        %v6426 = vpop.f32.mrf.mxu0
        %v6427 = vadd.f32 %v6338, %v6426
        %v6428 = vpop.f32.mrf.mxu0
        %v6429 = vadd.f32 %v6340, %v6428
        %6430 = vmatmul.bf16.gmra.mxu0 %v6284
        %v6431 = vpop.f32.mrf.mxu0
        %v6432 = vadd.f32 %v6343, %v6431
        %v6433 = vpop.f32.mrf.mxu0
        %v6434 = vadd.f32 %v6345, %v6433
        %6435 = vmatmul.bf16.gmra.mxu0 %v6287
        %v6436 = vpop.f32.mrf.mxu0
        %v6437 = vadd.f32 %v6348, %v6436
        %v6438 = vpop.f32.mrf.mxu0
        %v6439 = vadd.f32 %v6350, %v6438
        %6440 = vmatmul.bf16.gmra.mxu0 %v6290
        %v6441 = vpop.f32.mrf.mxu0
        %v6442 = vadd.f32 %v6353, %v6441
        %v6443 = vpop.f32.mrf.mxu0
        %v6444 = vadd.f32 %v6355, %v6443
        %6445 = vmatmul.bf16.gmra.mxu0 %v6293
        %v6446 = vpop.f32.mrf.mxu0
        %v6447 = vadd.f32 %v6358, %v6446
        %v6448 = vpop.f32.mrf.mxu0
        %v6449 = vadd.f32 %v6360, %v6448
        %6450 = vmatmul.bf16.gmra.mxu0 %v6296
        %v6451 = vpop.f32.mrf.mxu0
        %v6452 = vadd.f32 %v6363, %v6451
        %v6453 = vpop.f32.mrf.mxu0
        %v6454 = vadd.f32 %v6365, %v6453
        %6455 = vmatmul.bf16.gmra.mxu0 %v6299
        %v6456 = vpop.f32.mrf.mxu0
        %v6457 = vadd.f32 %v6368, %v6456
        %v6458 = vpop.f32.mrf.mxu0
        %v6459 = vadd.f32 %v6370, %v6458
        %6460 = vmatmul.bf16.gmra.mxu0 %v6302
        %v6461 = vpop.f32.mrf.mxu0
        %v6462 = vadd.f32 %v6373, %v6461
        %v6463 = vpop.f32.mrf.mxu0
        %v6464 = vadd.f32 %v6375, %v6463
        %6465 = vmatmul.bf16.gmra.mxu0 %v6305
        %v6466 = vpop.f32.mrf.mxu0
        %v6467 = vadd.f32 %v6378, %v6466
        %v6468 = vpop.f32.mrf.mxu0
        %v6469 = vadd.f32 %v6380, %v6468
        %6470 = vmatmul.bf16.gmra.mxu0 %v6308
        %v6471 = vpop.f32.mrf.mxu0
        %v6472 = vadd.f32 %v6383, %v6471
        %v6473 = vpop.f32.mrf.mxu0
        %v6474 = vadd.f32 %v6385, %v6473
        %6475 = vmatmul.bf16.gmra.mxu0 %v6311
        %v6476 = vpop.f32.mrf.mxu0
        %v6477 = vadd.f32 %v6388, %v6476
        %v6478 = vpop.f32.mrf.mxu0
        %v6479 = vadd.f32 %v6390, %v6478
        %6480 = vmatmul.bf16.gmra.mxu0 %v6314
        %v6481 = vpop.f32.mrf.mxu0
        %v6482 = vadd.f32 %v6393, %v6481
        %v6483 = vpop.f32.mrf.mxu0
        %v6484 = vadd.f32 %v6395, %v6483
        %6485 = vmatmul.bf16.gmra.mxu0 %v6317
        %v6486 = vpop.f32.mrf.mxu0
        %v6487 = vadd.f32 %v6398, %v6486
        %v6488 = vpop.f32.mrf.mxu0
        %v6489 = vadd.f32 %v6400, %v6488
        %6490 = vmatmul.bf16.gmra.mxu0 %v6320
        %v6491 = vpop.f32.mrf.mxu0
        %v6492 = vadd.f32 %v6403, %v6491
        %v6493 = vpop.f32.mrf.mxu0
        %v6494 = vadd.f32 %v6405, %v6493
        %6495 = vmatmul.bf16.gmra.mxu0 %v6323
        %v6496 = vpop.f32.mrf.mxu0
        %v6497 = vadd.f32 %v6408, %v6496
        %v6498 = vpop.f32.mrf.mxu0
        %v6499 = vadd.f32 %v6410, %v6498
        %6500 = vmatmul.bf16.gmra.mxu0 %v6326
        %v6501 = vpop.f32.mrf.mxu0
        %v6502 = vadd.f32 %v6413, %v6501
        %v6503 = vpop.f32.mrf.mxu0
        %v6504 = vadd.f32 %v6415, %v6503
        %6505 = vdwg.mxu0
        %v6506 = vadd.f32 %v5991, %v6427
        %v6507 = vadd.f32 %v5992, %v6429
        %v6508 = vadd.f32 %v5993, %v6432
        %v6509 = vadd.f32 %v5994, %v6434
        %v6510 = vadd.f32 %v5995, %v6437
        %v6511 = vadd.f32 %v5996, %v6439
        %v6512 = vadd.f32 %v5997, %v6442
        %v6513 = vadd.f32 %v5998, %v6444
        %v6514 = vadd.f32 %v5999, %v6447
        %v6515 = vadd.f32 %v6000, %v6449
        %v6516 = vadd.f32 %v6001, %v6452
        %v6517 = vadd.f32 %v6002, %v6454
        %v6518 = vadd.f32 %v6003, %v6457
        %v6519 = vadd.f32 %v6004, %v6459
        %v6520 = vadd.f32 %v6005, %v6462
        %v6521 = vadd.f32 %v6006, %v6464
        %v6522 = vadd.f32 %v6007, %v6467
        %v6523 = vadd.f32 %v6008, %v6469
        %v6524 = vadd.f32 %v6009, %v6472
        %v6525 = vadd.f32 %v6010, %v6474
        %v6526 = vadd.f32 %v6011, %v6477
        %v6527 = vadd.f32 %v6012, %v6479
        %v6528 = vadd.f32 %v6013, %v6482
        %v6529 = vadd.f32 %v6014, %v6484
        %v6530 = vadd.f32 %v6015, %v6487
        %v6531 = vadd.f32 %v6016, %v6489
        %v6532 = vadd.f32 %v6017, %v6492
        %v6533 = vadd.f32 %v6018, %v6494
        %v6534 = vadd.f32 %v6019, %v6497
        %v6535 = vadd.f32 %v6020, %v6499
        %v6536 = vadd.f32 %v6021, %v6502
        %v6537 = vadd.f32 %v6022, %v6504
        %v6538 = vld [vmem:[%s2] sm:$0x1]
        %v6540 = vperm.slane %v6538, 0
        %v6542 = vadd.f32 %v6506, %v6540
        %v6543 = vadd.f32 %v6507, %v6540
        %v6544 = vadd.f32 %v6508, %v6540
        %v6545 = vadd.f32 %v6509, %v6540
        %v6546 = vadd.f32 %v6510, %v6540
        %v6547 = vadd.f32 %v6511, %v6540
        %v6548 = vadd.f32 %v6512, %v6540
        %v6549 = vadd.f32 %v6513, %v6540
        %v6550 = vadd.f32 %v6514, %v6540
        %v6551 = vadd.f32 %v6515, %v6540
        %v6552 = vadd.f32 %v6516, %v6540
        %v6553 = vadd.f32 %v6517, %v6540
        %v6554 = vadd.f32 %v6518, %v6540
        %v6555 = vadd.f32 %v6519, %v6540
        %v6556 = vadd.f32 %v6520, %v6540
        %v6557 = vadd.f32 %v6521, %v6540
        %v6558 = vadd.f32 %v6522, %v6540
        %v6559 = vadd.f32 %v6523, %v6540
        %v6560 = vadd.f32 %v6524, %v6540
        %v6561 = vadd.f32 %v6525, %v6540
        %v6562 = vadd.f32 %v6526, %v6540
        %v6563 = vadd.f32 %v6527, %v6540
        %v6564 = vadd.f32 %v6528, %v6540
        %v6565 = vadd.f32 %v6529, %v6540
        %v6566 = vadd.f32 %v6530, %v6540
        %v6567 = vadd.f32 %v6531, %v6540
        %v6568 = vadd.f32 %v6532, %v6540
        %v6569 = vadd.f32 %v6533, %v6540
        %v6570 = vadd.f32 %v6534, %v6540
        %v6571 = vadd.f32 %v6535, %v6540
        %v6572 = vadd.f32 %v6536, %v6540
        %v6573 = vadd.f32 %v6537, %v6540
        %v6574 = vxor.u32 %v6542, 2147483648
        %v6575 = vxor.u32 %v6543, 2147483648
        %v6576 = vxor.u32 %v6544, 2147483648
        %v6577 = vxor.u32 %v6545, 2147483648
        %v6578 = vxor.u32 %v6546, 2147483648
        %v6579 = vxor.u32 %v6547, 2147483648
        %v6580 = vxor.u32 %v6548, 2147483648
        %v6581 = vxor.u32 %v6549, 2147483648
        %v6582 = vxor.u32 %v6550, 2147483648
        %v6583 = vxor.u32 %v6551, 2147483648
        %v6584 = vxor.u32 %v6552, 2147483648
        %v6585 = vxor.u32 %v6553, 2147483648
        %v6586 = vxor.u32 %v6554, 2147483648
        %v6587 = vxor.u32 %v6555, 2147483648
        %v6588 = vxor.u32 %v6556, 2147483648
        %v6589 = vxor.u32 %v6557, 2147483648
        %v6590 = vxor.u32 %v6558, 2147483648
        %v6591 = vxor.u32 %v6559, 2147483648
        %v6592 = vxor.u32 %v6560, 2147483648
        %v6593 = vxor.u32 %v6561, 2147483648
        %v6594 = vxor.u32 %v6562, 2147483648
        %v6595 = vxor.u32 %v6563, 2147483648
        %v6596 = vxor.u32 %v6564, 2147483648
        %v6597 = vxor.u32 %v6565, 2147483648
        %v6598 = vxor.u32 %v6566, 2147483648
        %v6599 = vxor.u32 %v6567, 2147483648
        %v6600 = vxor.u32 %v6568, 2147483648
        %v6601 = vxor.u32 %v6569, 2147483648
        %v6602 = vxor.u32 %v6570, 2147483648
        %v6603 = vxor.u32 %v6571, 2147483648
        %v6604 = vxor.u32 %v6572, 2147483648
        %v6605 = vxor.u32 %v6573, 2147483648
        %v6606 = vmul.f32 %v6574, 1.442695
        %v6607 = vpow.pop %v6606
        %v6608 = vmul.f32 %v6575, 1.442695
        %v6609 = vpow.pop %v6608
        %v6610 = vmul.f32 %v6576, 1.442695
        %v6611 = vpow.pop %v6610
        %v6612 = vmul.f32 %v6577, 1.442695
        %v6613 = vpow.pop %v6612
        %v6614 = vmul.f32 %v6578, 1.442695
        %v6615 = vpow.pop %v6614
        %v6616 = vmul.f32 %v6579, 1.442695
        %v6617 = vpow.pop %v6616
        %v6618 = vmul.f32 %v6580, 1.442695
        %v6619 = vpow.pop %v6618
        %v6620 = vmul.f32 %v6581, 1.442695
        %v6621 = vpow.pop %v6620
        %v6622 = vmul.f32 %v6582, 1.442695
        %v6623 = vpow.pop %v6622
        %v6624 = vmul.f32 %v6583, 1.442695
        %v6625 = vpow.pop %v6624
        %v6626 = vmul.f32 %v6584, 1.442695
        %v6627 = vpow.pop %v6626
        %v6628 = vmul.f32 %v6585, 1.442695
        %v6629 = vpow.pop %v6628
        %v6630 = vmul.f32 %v6586, 1.442695
        %v6631 = vpow.pop %v6630
        %v6632 = vmul.f32 %v6587, 1.442695
        %v6633 = vpow.pop %v6632
        %v6634 = vmul.f32 %v6588, 1.442695
        %v6635 = vpow.pop %v6634
        %v6636 = vmul.f32 %v6589, 1.442695
        %v6637 = vpow.pop %v6636
        %v6638 = vmul.f32 %v6590, 1.442695
        %v6639 = vpow.pop %v6638
        %v6640 = vmul.f32 %v6591, 1.442695
        %v6641 = vpow.pop %v6640
        %v6642 = vmul.f32 %v6592, 1.442695
        %v6643 = vpow.pop %v6642
        %v6644 = vmul.f32 %v6593, 1.442695
        %v6645 = vpow.pop %v6644
        %v6646 = vmul.f32 %v6594, 1.442695
        %v6647 = vpow.pop %v6646
        %v6648 = vmul.f32 %v6595, 1.442695
        %v6649 = vpow.pop %v6648
        %v6650 = vmul.f32 %v6596, 1.442695
        %v6651 = vpow.pop %v6650
        %v6652 = vmul.f32 %v6597, 1.442695
        %v6653 = vpow.pop %v6652
        %v6654 = vmul.f32 %v6598, 1.442695
        %v6655 = vpow.pop %v6654
        %v6656 = vmul.f32 %v6599, 1.442695
        %v6657 = vpow.pop %v6656
        %v6658 = vmul.f32 %v6600, 1.442695
        %v6659 = vpow.pop %v6658
        %v6660 = vmul.f32 %v6601, 1.442695
        %v6661 = vpow.pop %v6660
        %v6662 = vmul.f32 %v6602, 1.442695
        %v6663 = vpow.pop %v6662
        %v6664 = vmul.f32 %v6603, 1.442695
        %v6665 = vpow.pop %v6664
        %v6666 = vmul.f32 %v6604, 1.442695
        %v6667 = vpow.pop %v6666
        %v6668 = vmul.f32 %v6605, 1.442695
        %v6669 = vpow.pop %v6668
        %v6670 = vadd.f32 %v6607, 1.0
        %v6671 = vadd.f32 %v6609, 1.0
        %v6672 = vadd.f32 %v6611, 1.0
        %v6673 = vadd.f32 %v6613, 1.0
        %v6674 = vadd.f32 %v6615, 1.0
        %v6675 = vadd.f32 %v6617, 1.0
        %v6676 = vadd.f32 %v6619, 1.0
        %v6677 = vadd.f32 %v6621, 1.0
        %v6678 = vadd.f32 %v6623, 1.0
        %v6679 = vadd.f32 %v6625, 1.0
        %v6680 = vadd.f32 %v6627, 1.0
        %v6681 = vadd.f32 %v6629, 1.0
        %v6682 = vadd.f32 %v6631, 1.0
        %v6683 = vadd.f32 %v6633, 1.0
        %v6684 = vadd.f32 %v6635, 1.0
        %v6685 = vadd.f32 %v6637, 1.0
        %v6686 = vadd.f32 %v6639, 1.0
        %v6687 = vadd.f32 %v6641, 1.0
        %v6688 = vadd.f32 %v6643, 1.0
        %v6689 = vadd.f32 %v6645, 1.0
        %v6690 = vadd.f32 %v6647, 1.0
        %v6691 = vadd.f32 %v6649, 1.0
        %v6692 = vadd.f32 %v6651, 1.0
        %v6693 = vadd.f32 %v6653, 1.0
        %v6694 = vadd.f32 %v6655, 1.0
        %v6695 = vadd.f32 %v6657, 1.0
        %v6696 = vadd.f32 %v6659, 1.0
        %v6697 = vadd.f32 %v6661, 1.0
        %v6698 = vadd.f32 %v6663, 1.0
        %v6699 = vadd.f32 %v6665, 1.0
        %v6700 = vadd.f32 %v6667, 1.0
        %v6701 = vadd.f32 %v6669, 1.0
        %v6702 = vrcp.pop %v6670
        %v6703 = vmul.f32 %v6670, %v6702
        %v6704 = vsub.f32 1.0, %v6703
        %v6705 = vmul.f32 %v6702, %v6704
        %v6706 = vadd.f32 %v6702, %v6705
        %vm6707 = vweird.f32 %v6670
        %vm6708 = vweird.f32 %v6702
        %vm6709 = vmor %vm6707, %vm6708
        %v6710 = vsel %vm6709, %v6702, %v6706
        %v6711 = vand.u32 2147483647, %v6670
        %vm6712 = vcmp.eq.f32.partialorder %v6711, 8.507059e+37
        %v6713 = vand.u32 %v6670, 2147483648
        %v6714 = vor.u32 1.1754944e-38, %v6713
        %v6715 = vsel %vm6712, %v6714, %v6710
        %v6716 = vmul.f32 1.0, %v6715
        %v6717 = vrcp.pop %v6671
        %v6718 = vmul.f32 %v6671, %v6717
        %v6719 = vsub.f32 1.0, %v6718
        %v6720 = vmul.f32 %v6717, %v6719
        %v6721 = vadd.f32 %v6717, %v6720
        %vm6722 = vweird.f32 %v6671
        %vm6723 = vweird.f32 %v6717
        %vm6724 = vmor %vm6722, %vm6723
        %v6725 = vsel %vm6724, %v6717, %v6721
        %v6726 = vand.u32 2147483647, %v6671
        %vm6727 = vcmp.eq.f32.partialorder %v6726, 8.507059e+37
        %v6728 = vand.u32 %v6671, 2147483648
        %v6729 = vor.u32 1.1754944e-38, %v6728
        %v6730 = vsel %vm6727, %v6729, %v6725
        %v6731 = vmul.f32 1.0, %v6730
        %v6732 = vrcp.pop %v6672
        %v6733 = vmul.f32 %v6672, %v6732
        %v6734 = vsub.f32 1.0, %v6733
        %v6735 = vmul.f32 %v6732, %v6734
        %v6736 = vadd.f32 %v6732, %v6735
        %vm6737 = vweird.f32 %v6672
        %vm6738 = vweird.f32 %v6732
        %vm6739 = vmor %vm6737, %vm6738
        %v6740 = vsel %vm6739, %v6732, %v6736
        %v6741 = vand.u32 2147483647, %v6672
        %vm6742 = vcmp.eq.f32.partialorder %v6741, 8.507059e+37
        %v6743 = vand.u32 %v6672, 2147483648
        %v6744 = vor.u32 1.1754944e-38, %v6743
        %v6745 = vsel %vm6742, %v6744, %v6740
        %v6746 = vmul.f32 1.0, %v6745
        %v6747 = vrcp.pop %v6673
        %v6748 = vmul.f32 %v6673, %v6747
        %v6749 = vsub.f32 1.0, %v6748
        %v6750 = vmul.f32 %v6747, %v6749
        %v6751 = vadd.f32 %v6747, %v6750
        %vm6752 = vweird.f32 %v6673
        %vm6753 = vweird.f32 %v6747
        %vm6754 = vmor %vm6752, %vm6753
        %v6755 = vsel %vm6754, %v6747, %v6751
        %v6756 = vand.u32 2147483647, %v6673
        %vm6757 = vcmp.eq.f32.partialorder %v6756, 8.507059e+37
        %v6758 = vand.u32 %v6673, 2147483648
        %v6759 = vor.u32 1.1754944e-38, %v6758
        %v6760 = vsel %vm6757, %v6759, %v6755
        %v6761 = vmul.f32 1.0, %v6760
        %v6762 = vrcp.pop %v6674
        %v6763 = vmul.f32 %v6674, %v6762
        %v6764 = vsub.f32 1.0, %v6763
        %v6765 = vmul.f32 %v6762, %v6764
        %v6766 = vadd.f32 %v6762, %v6765
        %vm6767 = vweird.f32 %v6674
        %vm6768 = vweird.f32 %v6762
        %vm6769 = vmor %vm6767, %vm6768
        %v6770 = vsel %vm6769, %v6762, %v6766
        %v6771 = vand.u32 2147483647, %v6674
        %vm6772 = vcmp.eq.f32.partialorder %v6771, 8.507059e+37
        %v6773 = vand.u32 %v6674, 2147483648
        %v6774 = vor.u32 1.1754944e-38, %v6773
        %v6775 = vsel %vm6772, %v6774, %v6770
        %v6776 = vmul.f32 1.0, %v6775
        %v6777 = vrcp.pop %v6675
        %v6778 = vmul.f32 %v6675, %v6777
        %v6779 = vsub.f32 1.0, %v6778
        %v6780 = vmul.f32 %v6777, %v6779
        %v6781 = vadd.f32 %v6777, %v6780
        %vm6782 = vweird.f32 %v6675
        %vm6783 = vweird.f32 %v6777
        %vm6784 = vmor %vm6782, %vm6783
        %v6785 = vsel %vm6784, %v6777, %v6781
        %v6786 = vand.u32 2147483647, %v6675
        %vm6787 = vcmp.eq.f32.partialorder %v6786, 8.507059e+37
        %v6788 = vand.u32 %v6675, 2147483648
        %v6789 = vor.u32 1.1754944e-38, %v6788
        %v6790 = vsel %vm6787, %v6789, %v6785
        %v6791 = vmul.f32 1.0, %v6790
        %v6792 = vrcp.pop %v6676
        %v6793 = vmul.f32 %v6676, %v6792
        %v6794 = vsub.f32 1.0, %v6793
        %v6795 = vmul.f32 %v6792, %v6794
        %v6796 = vadd.f32 %v6792, %v6795
        %vm6797 = vweird.f32 %v6676
        %vm6798 = vweird.f32 %v6792
        %vm6799 = vmor %vm6797, %vm6798
        %v6800 = vsel %vm6799, %v6792, %v6796
        %v6801 = vand.u32 2147483647, %v6676
        %vm6802 = vcmp.eq.f32.partialorder %v6801, 8.507059e+37
        %v6803 = vand.u32 %v6676, 2147483648
        %v6804 = vor.u32 1.1754944e-38, %v6803
        %v6805 = vsel %vm6802, %v6804, %v6800
        %v6806 = vmul.f32 1.0, %v6805
        %v6807 = vrcp.pop %v6677
        %v6808 = vmul.f32 %v6677, %v6807
        %v6809 = vsub.f32 1.0, %v6808
        %v6810 = vmul.f32 %v6807, %v6809
        %v6811 = vadd.f32 %v6807, %v6810
        %vm6812 = vweird.f32 %v6677
        %vm6813 = vweird.f32 %v6807
        %vm6814 = vmor %vm6812, %vm6813
        %v6815 = vsel %vm6814, %v6807, %v6811
        %v6816 = vand.u32 2147483647, %v6677
        %vm6817 = vcmp.eq.f32.partialorder %v6816, 8.507059e+37
        %v6818 = vand.u32 %v6677, 2147483648
        %v6819 = vor.u32 1.1754944e-38, %v6818
        %v6820 = vsel %vm6817, %v6819, %v6815
        %v6821 = vmul.f32 1.0, %v6820
        %v6822 = vrcp.pop %v6678
        %v6823 = vmul.f32 %v6678, %v6822
        %v6824 = vsub.f32 1.0, %v6823
        %v6825 = vmul.f32 %v6822, %v6824
        %v6826 = vadd.f32 %v6822, %v6825
        %vm6827 = vweird.f32 %v6678
        %vm6828 = vweird.f32 %v6822
        %vm6829 = vmor %vm6827, %vm6828
        %v6830 = vsel %vm6829, %v6822, %v6826
        %v6831 = vand.u32 2147483647, %v6678
        %vm6832 = vcmp.eq.f32.partialorder %v6831, 8.507059e+37
        %v6833 = vand.u32 %v6678, 2147483648
        %v6834 = vor.u32 1.1754944e-38, %v6833
        %v6835 = vsel %vm6832, %v6834, %v6830
        %v6836 = vmul.f32 1.0, %v6835
        %v6837 = vrcp.pop %v6679
        %v6838 = vmul.f32 %v6679, %v6837
        %v6839 = vsub.f32 1.0, %v6838
        %v6840 = vmul.f32 %v6837, %v6839
        %v6841 = vadd.f32 %v6837, %v6840
        %vm6842 = vweird.f32 %v6679
        %vm6843 = vweird.f32 %v6837
        %vm6844 = vmor %vm6842, %vm6843
        %v6845 = vsel %vm6844, %v6837, %v6841
        %v6846 = vand.u32 2147483647, %v6679
        %vm6847 = vcmp.eq.f32.partialorder %v6846, 8.507059e+37
        %v6848 = vand.u32 %v6679, 2147483648
        %v6849 = vor.u32 1.1754944e-38, %v6848
        %v6850 = vsel %vm6847, %v6849, %v6845
        %v6851 = vmul.f32 1.0, %v6850
        %v6852 = vrcp.pop %v6680
        %v6853 = vmul.f32 %v6680, %v6852
        %v6854 = vsub.f32 1.0, %v6853
        %v6855 = vmul.f32 %v6852, %v6854
        %v6856 = vadd.f32 %v6852, %v6855
        %vm6857 = vweird.f32 %v6680
        %vm6858 = vweird.f32 %v6852
        %vm6859 = vmor %vm6857, %vm6858
        %v6860 = vsel %vm6859, %v6852, %v6856
        %v6861 = vand.u32 2147483647, %v6680
        %vm6862 = vcmp.eq.f32.partialorder %v6861, 8.507059e+37
        %v6863 = vand.u32 %v6680, 2147483648
        %v6864 = vor.u32 1.1754944e-38, %v6863
        %v6865 = vsel %vm6862, %v6864, %v6860
        %v6866 = vmul.f32 1.0, %v6865
        %v6867 = vrcp.pop %v6681
        %v6868 = vmul.f32 %v6681, %v6867
        %v6869 = vsub.f32 1.0, %v6868
        %v6870 = vmul.f32 %v6867, %v6869
        %v6871 = vadd.f32 %v6867, %v6870
        %vm6872 = vweird.f32 %v6681
        %vm6873 = vweird.f32 %v6867
        %vm6874 = vmor %vm6872, %vm6873
        %v6875 = vsel %vm6874, %v6867, %v6871
        %v6876 = vand.u32 2147483647, %v6681
        %vm6877 = vcmp.eq.f32.partialorder %v6876, 8.507059e+37
        %v6878 = vand.u32 %v6681, 2147483648
        %v6879 = vor.u32 1.1754944e-38, %v6878
        %v6880 = vsel %vm6877, %v6879, %v6875
        %v6881 = vmul.f32 1.0, %v6880
        %v6882 = vrcp.pop %v6682
        %v6883 = vmul.f32 %v6682, %v6882
        %v6884 = vsub.f32 1.0, %v6883
        %v6885 = vmul.f32 %v6882, %v6884
        %v6886 = vadd.f32 %v6882, %v6885
        %vm6887 = vweird.f32 %v6682
        %vm6888 = vweird.f32 %v6882
        %vm6889 = vmor %vm6887, %vm6888
        %v6890 = vsel %vm6889, %v6882, %v6886
        %v6891 = vand.u32 2147483647, %v6682
        %vm6892 = vcmp.eq.f32.partialorder %v6891, 8.507059e+37
        %v6893 = vand.u32 %v6682, 2147483648
        %v6894 = vor.u32 1.1754944e-38, %v6893
        %v6895 = vsel %vm6892, %v6894, %v6890
        %v6896 = vmul.f32 1.0, %v6895
        %v6897 = vrcp.pop %v6683
        %v6898 = vmul.f32 %v6683, %v6897
        %v6899 = vsub.f32 1.0, %v6898
        %v6900 = vmul.f32 %v6897, %v6899
        %v6901 = vadd.f32 %v6897, %v6900
        %vm6902 = vweird.f32 %v6683
        %vm6903 = vweird.f32 %v6897
        %vm6904 = vmor %vm6902, %vm6903
        %v6905 = vsel %vm6904, %v6897, %v6901
        %v6906 = vand.u32 2147483647, %v6683
        %vm6907 = vcmp.eq.f32.partialorder %v6906, 8.507059e+37
        %v6908 = vand.u32 %v6683, 2147483648
        %v6909 = vor.u32 1.1754944e-38, %v6908
        %v6910 = vsel %vm6907, %v6909, %v6905
        %v6911 = vmul.f32 1.0, %v6910
        %v6912 = vrcp.pop %v6684
        %v6913 = vmul.f32 %v6684, %v6912
        %v6914 = vsub.f32 1.0, %v6913
        %v6915 = vmul.f32 %v6912, %v6914
        %v6916 = vadd.f32 %v6912, %v6915
        %vm6917 = vweird.f32 %v6684
        %vm6918 = vweird.f32 %v6912
        %vm6919 = vmor %vm6917, %vm6918
        %v6920 = vsel %vm6919, %v6912, %v6916
        %v6921 = vand.u32 2147483647, %v6684
        %vm6922 = vcmp.eq.f32.partialorder %v6921, 8.507059e+37
        %v6923 = vand.u32 %v6684, 2147483648
        %v6924 = vor.u32 1.1754944e-38, %v6923
        %v6925 = vsel %vm6922, %v6924, %v6920
        %v6926 = vmul.f32 1.0, %v6925
        %v6927 = vrcp.pop %v6685
        %v6928 = vmul.f32 %v6685, %v6927
        %v6929 = vsub.f32 1.0, %v6928
        %v6930 = vmul.f32 %v6927, %v6929
        %v6931 = vadd.f32 %v6927, %v6930
        %vm6932 = vweird.f32 %v6685
        %vm6933 = vweird.f32 %v6927
        %vm6934 = vmor %vm6932, %vm6933
        %v6935 = vsel %vm6934, %v6927, %v6931
        %v6936 = vand.u32 2147483647, %v6685
        %vm6937 = vcmp.eq.f32.partialorder %v6936, 8.507059e+37
        %v6938 = vand.u32 %v6685, 2147483648
        %v6939 = vor.u32 1.1754944e-38, %v6938
        %v6940 = vsel %vm6937, %v6939, %v6935
        %v6941 = vmul.f32 1.0, %v6940
        %v6942 = vrcp.pop %v6686
        %v6943 = vmul.f32 %v6686, %v6942
        %v6944 = vsub.f32 1.0, %v6943
        %v6945 = vmul.f32 %v6942, %v6944
        %v6946 = vadd.f32 %v6942, %v6945
        %vm6947 = vweird.f32 %v6686
        %vm6948 = vweird.f32 %v6942
        %vm6949 = vmor %vm6947, %vm6948
        %v6950 = vsel %vm6949, %v6942, %v6946
        %v6951 = vand.u32 2147483647, %v6686
        %vm6952 = vcmp.eq.f32.partialorder %v6951, 8.507059e+37
        %v6953 = vand.u32 %v6686, 2147483648
        %v6954 = vor.u32 1.1754944e-38, %v6953
        %v6955 = vsel %vm6952, %v6954, %v6950
        %v6956 = vmul.f32 1.0, %v6955
        %v6957 = vrcp.pop %v6687
        %v6958 = vmul.f32 %v6687, %v6957
        %v6959 = vsub.f32 1.0, %v6958
        %v6960 = vmul.f32 %v6957, %v6959
        %v6961 = vadd.f32 %v6957, %v6960
        %vm6962 = vweird.f32 %v6687
        %vm6963 = vweird.f32 %v6957
        %vm6964 = vmor %vm6962, %vm6963
        %v6965 = vsel %vm6964, %v6957, %v6961
        %v6966 = vand.u32 2147483647, %v6687
        %vm6967 = vcmp.eq.f32.partialorder %v6966, 8.507059e+37
        %v6968 = vand.u32 %v6687, 2147483648
        %v6969 = vor.u32 1.1754944e-38, %v6968
        %v6970 = vsel %vm6967, %v6969, %v6965
        %v6971 = vmul.f32 1.0, %v6970
        %v6972 = vrcp.pop %v6688
        %v6973 = vmul.f32 %v6688, %v6972
        %v6974 = vsub.f32 1.0, %v6973
        %v6975 = vmul.f32 %v6972, %v6974
        %v6976 = vadd.f32 %v6972, %v6975
        %vm6977 = vweird.f32 %v6688
        %vm6978 = vweird.f32 %v6972
        %vm6979 = vmor %vm6977, %vm6978
        %v6980 = vsel %vm6979, %v6972, %v6976
        %v6981 = vand.u32 2147483647, %v6688
        %vm6982 = vcmp.eq.f32.partialorder %v6981, 8.507059e+37
        %v6983 = vand.u32 %v6688, 2147483648
        %v6984 = vor.u32 1.1754944e-38, %v6983
        %v6985 = vsel %vm6982, %v6984, %v6980
        %v6986 = vmul.f32 1.0, %v6985
        %v6987 = vrcp.pop %v6689
        %v6988 = vmul.f32 %v6689, %v6987
        %v6989 = vsub.f32 1.0, %v6988
        %v6990 = vmul.f32 %v6987, %v6989
        %v6991 = vadd.f32 %v6987, %v6990
        %vm6992 = vweird.f32 %v6689
        %vm6993 = vweird.f32 %v6987
        %vm6994 = vmor %vm6992, %vm6993
        %v6995 = vsel %vm6994, %v6987, %v6991
        %v6996 = vand.u32 2147483647, %v6689
        %vm6997 = vcmp.eq.f32.partialorder %v6996, 8.507059e+37
        %v6998 = vand.u32 %v6689, 2147483648
        %v6999 = vor.u32 1.1754944e-38, %v6998
        %v7000 = vsel %vm6997, %v6999, %v6995
        %v7001 = vmul.f32 1.0, %v7000
        %v7002 = vrcp.pop %v6690
        %v7003 = vmul.f32 %v6690, %v7002
        %v7004 = vsub.f32 1.0, %v7003
        %v7005 = vmul.f32 %v7002, %v7004
        %v7006 = vadd.f32 %v7002, %v7005
        %vm7007 = vweird.f32 %v6690
        %vm7008 = vweird.f32 %v7002
        %vm7009 = vmor %vm7007, %vm7008
        %v7010 = vsel %vm7009, %v7002, %v7006
        %v7011 = vand.u32 2147483647, %v6690
        %vm7012 = vcmp.eq.f32.partialorder %v7011, 8.507059e+37
        %v7013 = vand.u32 %v6690, 2147483648
        %v7014 = vor.u32 1.1754944e-38, %v7013
        %v7015 = vsel %vm7012, %v7014, %v7010
        %v7016 = vmul.f32 1.0, %v7015
        %v7017 = vrcp.pop %v6691
        %v7018 = vmul.f32 %v6691, %v7017
        %v7019 = vsub.f32 1.0, %v7018
        %v7020 = vmul.f32 %v7017, %v7019
        %v7021 = vadd.f32 %v7017, %v7020
        %vm7022 = vweird.f32 %v6691
        %vm7023 = vweird.f32 %v7017
        %vm7024 = vmor %vm7022, %vm7023
        %v7025 = vsel %vm7024, %v7017, %v7021
        %v7026 = vand.u32 2147483647, %v6691
        %vm7027 = vcmp.eq.f32.partialorder %v7026, 8.507059e+37
        %v7028 = vand.u32 %v6691, 2147483648
        %v7029 = vor.u32 1.1754944e-38, %v7028
        %v7030 = vsel %vm7027, %v7029, %v7025
        %v7031 = vmul.f32 1.0, %v7030
        %v7032 = vrcp.pop %v6692
        %v7033 = vmul.f32 %v6692, %v7032
        %v7034 = vsub.f32 1.0, %v7033
        %v7035 = vmul.f32 %v7032, %v7034
        %v7036 = vadd.f32 %v7032, %v7035
        %vm7037 = vweird.f32 %v6692
        %vm7038 = vweird.f32 %v7032
        %vm7039 = vmor %vm7037, %vm7038
        %v7040 = vsel %vm7039, %v7032, %v7036
        %v7041 = vand.u32 2147483647, %v6692
        %vm7042 = vcmp.eq.f32.partialorder %v7041, 8.507059e+37
        %v7043 = vand.u32 %v6692, 2147483648
        %v7044 = vor.u32 1.1754944e-38, %v7043
        %v7045 = vsel %vm7042, %v7044, %v7040
        %v7046 = vmul.f32 1.0, %v7045
        %v7047 = vrcp.pop %v6693
        %v7048 = vmul.f32 %v6693, %v7047
        %v7049 = vsub.f32 1.0, %v7048
        %v7050 = vmul.f32 %v7047, %v7049
        %v7051 = vadd.f32 %v7047, %v7050
        %vm7052 = vweird.f32 %v6693
        %vm7053 = vweird.f32 %v7047
        %vm7054 = vmor %vm7052, %vm7053
        %v7055 = vsel %vm7054, %v7047, %v7051
        %v7056 = vand.u32 2147483647, %v6693
        %vm7057 = vcmp.eq.f32.partialorder %v7056, 8.507059e+37
        %v7058 = vand.u32 %v6693, 2147483648
        %v7059 = vor.u32 1.1754944e-38, %v7058
        %v7060 = vsel %vm7057, %v7059, %v7055
        %v7061 = vmul.f32 1.0, %v7060
        %v7062 = vrcp.pop %v6694
        %v7063 = vmul.f32 %v6694, %v7062
        %v7064 = vsub.f32 1.0, %v7063
        %v7065 = vmul.f32 %v7062, %v7064
        %v7066 = vadd.f32 %v7062, %v7065
        %vm7067 = vweird.f32 %v6694
        %vm7068 = vweird.f32 %v7062
        %vm7069 = vmor %vm7067, %vm7068
        %v7070 = vsel %vm7069, %v7062, %v7066
        %v7071 = vand.u32 2147483647, %v6694
        %vm7072 = vcmp.eq.f32.partialorder %v7071, 8.507059e+37
        %v7073 = vand.u32 %v6694, 2147483648
        %v7074 = vor.u32 1.1754944e-38, %v7073
        %v7075 = vsel %vm7072, %v7074, %v7070
        %v7076 = vmul.f32 1.0, %v7075
        %v7077 = vrcp.pop %v6695
        %v7078 = vmul.f32 %v6695, %v7077
        %v7079 = vsub.f32 1.0, %v7078
        %v7080 = vmul.f32 %v7077, %v7079
        %v7081 = vadd.f32 %v7077, %v7080
        %vm7082 = vweird.f32 %v6695
        %vm7083 = vweird.f32 %v7077
        %vm7084 = vmor %vm7082, %vm7083
        %v7085 = vsel %vm7084, %v7077, %v7081
        %v7086 = vand.u32 2147483647, %v6695
        %vm7087 = vcmp.eq.f32.partialorder %v7086, 8.507059e+37
        %v7088 = vand.u32 %v6695, 2147483648
        %v7089 = vor.u32 1.1754944e-38, %v7088
        %v7090 = vsel %vm7087, %v7089, %v7085
        %v7091 = vmul.f32 1.0, %v7090
        %v7092 = vrcp.pop %v6696
        %v7093 = vmul.f32 %v6696, %v7092
        %v7094 = vsub.f32 1.0, %v7093
        %v7095 = vmul.f32 %v7092, %v7094
        %v7096 = vadd.f32 %v7092, %v7095
        %vm7097 = vweird.f32 %v6696
        %vm7098 = vweird.f32 %v7092
        %vm7099 = vmor %vm7097, %vm7098
        %v7100 = vsel %vm7099, %v7092, %v7096
        %v7101 = vand.u32 2147483647, %v6696
        %vm7102 = vcmp.eq.f32.partialorder %v7101, 8.507059e+37
        %v7103 = vand.u32 %v6696, 2147483648
        %v7104 = vor.u32 1.1754944e-38, %v7103
        %v7105 = vsel %vm7102, %v7104, %v7100
        %v7106 = vmul.f32 1.0, %v7105
        %v7107 = vrcp.pop %v6697
        %v7108 = vmul.f32 %v6697, %v7107
        %v7109 = vsub.f32 1.0, %v7108
        %v7110 = vmul.f32 %v7107, %v7109
        %v7111 = vadd.f32 %v7107, %v7110
        %vm7112 = vweird.f32 %v6697
        %vm7113 = vweird.f32 %v7107
        %vm7114 = vmor %vm7112, %vm7113
        %v7115 = vsel %vm7114, %v7107, %v7111
        %v7116 = vand.u32 2147483647, %v6697
        %vm7117 = vcmp.eq.f32.partialorder %v7116, 8.507059e+37
        %v7118 = vand.u32 %v6697, 2147483648
        %v7119 = vor.u32 1.1754944e-38, %v7118
        %v7120 = vsel %vm7117, %v7119, %v7115
        %v7121 = vmul.f32 1.0, %v7120
        %v7122 = vrcp.pop %v6698
        %v7123 = vmul.f32 %v6698, %v7122
        %v7124 = vsub.f32 1.0, %v7123
        %v7125 = vmul.f32 %v7122, %v7124
        %v7126 = vadd.f32 %v7122, %v7125
        %vm7127 = vweird.f32 %v6698
        %vm7128 = vweird.f32 %v7122
        %vm7129 = vmor %vm7127, %vm7128
        %v7130 = vsel %vm7129, %v7122, %v7126
        %v7131 = vand.u32 2147483647, %v6698
        %vm7132 = vcmp.eq.f32.partialorder %v7131, 8.507059e+37
        %v7133 = vand.u32 %v6698, 2147483648
        %v7134 = vor.u32 1.1754944e-38, %v7133
        %v7135 = vsel %vm7132, %v7134, %v7130
        %v7136 = vmul.f32 1.0, %v7135
        %v7137 = vrcp.pop %v6699
        %v7138 = vmul.f32 %v6699, %v7137
        %v7139 = vsub.f32 1.0, %v7138
        %v7140 = vmul.f32 %v7137, %v7139
        %v7141 = vadd.f32 %v7137, %v7140
        %vm7142 = vweird.f32 %v6699
        %vm7143 = vweird.f32 %v7137
        %vm7144 = vmor %vm7142, %vm7143
        %v7145 = vsel %vm7144, %v7137, %v7141
        %v7146 = vand.u32 2147483647, %v6699
        %vm7147 = vcmp.eq.f32.partialorder %v7146, 8.507059e+37
        %v7148 = vand.u32 %v6699, 2147483648
        %v7149 = vor.u32 1.1754944e-38, %v7148
        %v7150 = vsel %vm7147, %v7149, %v7145
        %v7151 = vmul.f32 1.0, %v7150
        %v7152 = vrcp.pop %v6700
        %v7153 = vmul.f32 %v6700, %v7152
        %v7154 = vsub.f32 1.0, %v7153
        %v7155 = vmul.f32 %v7152, %v7154
        %v7156 = vadd.f32 %v7152, %v7155
        %vm7157 = vweird.f32 %v6700
        %vm7158 = vweird.f32 %v7152
        %vm7159 = vmor %vm7157, %vm7158
        %v7160 = vsel %vm7159, %v7152, %v7156
        %v7161 = vand.u32 2147483647, %v6700
        %vm7162 = vcmp.eq.f32.partialorder %v7161, 8.507059e+37
        %v7163 = vand.u32 %v6700, 2147483648
        %v7164 = vor.u32 1.1754944e-38, %v7163
        %v7165 = vsel %vm7162, %v7164, %v7160
        %v7166 = vmul.f32 1.0, %v7165
        %v7167 = vrcp.pop %v6701
        %v7168 = vmul.f32 %v6701, %v7167
        %v7169 = vsub.f32 1.0, %v7168
        %v7170 = vmul.f32 %v7167, %v7169
        %v7171 = vadd.f32 %v7167, %v7170
        %vm7172 = vweird.f32 %v6701
        %vm7173 = vweird.f32 %v7167
        %vm7174 = vmor %vm7172, %vm7173
        %v7175 = vsel %vm7174, %v7167, %v7171
        %v7176 = vand.u32 2147483647, %v6701
        %vm7177 = vcmp.eq.f32.partialorder %v7176, 8.507059e+37
        %v7178 = vand.u32 %v6701, 2147483648
        %v7179 = vor.u32 1.1754944e-38, %v7178
        %v7180 = vsel %vm7177, %v7179, %v7175
        %v7181 = vmul.f32 1.0, %v7180
        %v7182 = vmul.f32 %v6542, %v6716
        %v7183 = vmul.f32 %v6543, %v6731
        %v7184 = vmul.f32 %v6544, %v6746
        %v7185 = vmul.f32 %v6545, %v6761
        %v7186 = vmul.f32 %v6546, %v6776
        %v7187 = vmul.f32 %v6547, %v6791
        %v7188 = vmul.f32 %v6548, %v6806
        %v7189 = vmul.f32 %v6549, %v6821
        %v7190 = vmul.f32 %v6550, %v6836
        %v7191 = vmul.f32 %v6551, %v6851
        %v7192 = vmul.f32 %v6552, %v6866
        %v7193 = vmul.f32 %v6553, %v6881
        %v7194 = vmul.f32 %v6554, %v6896
        %v7195 = vmul.f32 %v6555, %v6911
        %v7196 = vmul.f32 %v6556, %v6926
        %v7197 = vmul.f32 %v6557, %v6941
        %v7198 = vmul.f32 %v6558, %v6956
        %v7199 = vmul.f32 %v6559, %v6971
        %v7200 = vmul.f32 %v6560, %v6986
        %v7201 = vmul.f32 %v6561, %v7001
        %v7202 = vmul.f32 %v6562, %v7016
        %v7203 = vmul.f32 %v6563, %v7031
        %v7204 = vmul.f32 %v6564, %v7046
        %v7205 = vmul.f32 %v6565, %v7061
        %v7206 = vmul.f32 %v6566, %v7076
        %v7207 = vmul.f32 %v6567, %v7091
        %v7208 = vmul.f32 %v6568, %v7106
        %v7209 = vmul.f32 %v6569, %v7121
        %v7210 = vmul.f32 %v6570, %v7136
        %v7211 = vmul.f32 %v6571, %v7151
        %v7212 = vmul.f32 %v6572, %v7166
        %v7213 = vmul.f32 %v6573, %v7181
        %v7214 = vpack.c.bf16 %v7182, %v7182
        %v7215 = vpack.c.bf16 %v7183, %v7183
        %v7216 = vpack.c.bf16 %v7184, %v7184
        %v7217 = vpack.c.bf16 %v7185, %v7185
        %v7218 = vpack.c.bf16 %v7186, %v7186
        %v7219 = vpack.c.bf16 %v7187, %v7187
        %v7220 = vpack.c.bf16 %v7188, %v7188
        %v7221 = vpack.c.bf16 %v7189, %v7189
        %v7222 = vpack.c.bf16 %v7190, %v7190
        %v7223 = vpack.c.bf16 %v7191, %v7191
        %v7224 = vpack.c.bf16 %v7192, %v7192
        %v7225 = vpack.c.bf16 %v7193, %v7193
        %v7226 = vpack.c.bf16 %v7194, %v7194
        %v7227 = vpack.c.bf16 %v7195, %v7195
        %v7228 = vpack.c.bf16 %v7196, %v7196
        %v7229 = vpack.c.bf16 %v7197, %v7197
        %v7230 = vpack.c.bf16 %v7198, %v7198
        %v7231 = vpack.c.bf16 %v7199, %v7199
        %v7232 = vpack.c.bf16 %v7200, %v7200
        %v7233 = vpack.c.bf16 %v7201, %v7201
        %v7234 = vpack.c.bf16 %v7202, %v7202
        %v7235 = vpack.c.bf16 %v7203, %v7203
        %v7236 = vpack.c.bf16 %v7204, %v7204
        %v7237 = vpack.c.bf16 %v7205, %v7205
        %v7238 = vpack.c.bf16 %v7206, %v7206
        %v7239 = vpack.c.bf16 %v7207, %v7207
        %v7240 = vpack.c.bf16 %v7208, %v7208
        %v7241 = vpack.c.bf16 %v7209, %v7209
        %v7242 = vpack.c.bf16 %v7210, %v7210
        %v7243 = vpack.c.bf16 %v7211, %v7211
        %v7244 = vpack.c.bf16 %v7212, %v7212
        %v7245 = vpack.c.bf16 %v7213, %v7213
        %7246 = vst.msk [vmem:[#allocation2] sm:$0xf] %vm2329, 0
        %7247 = vst.msk [vmem:[#allocation2 + $0x8] sm:$0xf] %vm2329, 0
        %7248 = vst.msk [vmem:[#allocation2 + $0x10] sm:$0xf] %vm2329, 0
        %7249 = vst.msk [vmem:[#allocation2 + $0x18] sm:$0xf] %vm2329, 0
        %7250 = vst.msk [vmem:[#allocation2 + $0x20] sm:$0xf] %vm2329, 0
        %7251 = vst.msk [vmem:[#allocation2 + $0x28] sm:$0xf] %vm2329, 0
        %7252 = vst.msk [vmem:[#allocation2 + $0x130] sm:$0xf] %vm2329, 0
        %7253 = vst.msk [vmem:[#allocation2 + $0x138] sm:$0xf] %vm2329, 0
        %7254 = vst.msk [vmem:[#allocation2 + $0x140] sm:$0xf] %vm2329, 0
        %7255 = vst.msk [vmem:[#allocation2 + $0x148] sm:$0xf] %vm2329, 0
        %7256 = vst.msk [vmem:[#allocation2 + $0x150] sm:$0xf] %vm2329, 0
        %7257 = vst.msk [vmem:[#allocation2 + $0x158] sm:$0xf] %vm2329, 0
        %7290 = vrot.lane.b32.xlu0 %v7214, 32
        %v7291 = vpop.permute.xlu0 %7290
        %7292 = vrot.lane.b32.xlu0 %v7215, 32
        %v7293 = vpop.permute.xlu0 %7292
        %7294 = vrot.lane.b32.xlu0 %v7216, 32
        %v7295 = vpop.permute.xlu0 %7294
        %7296 = vrot.lane.b32.xlu0 %v7217, 32
        %v7297 = vpop.permute.xlu0 %7296
        %7298 = vrot.lane.b32.xlu0 %v7218, 32
        %v7299 = vpop.permute.xlu0 %7298
        %7300 = vrot.lane.b32.xlu0 %v7219, 32
        %v7301 = vpop.permute.xlu0 %7300
        %7302 = vrot.lane.b32.xlu0 %v7220, 32
        %v7303 = vpop.permute.xlu0 %7302
        %7304 = vrot.lane.b32.xlu0 %v7221, 32
        %v7305 = vpop.permute.xlu0 %7304
        %7306 = vrot.lane.b32.xlu0 %v7222, 32
        %v7307 = vpop.permute.xlu0 %7306
        %7308 = vrot.lane.b32.xlu0 %v7223, 32
        %v7309 = vpop.permute.xlu0 %7308
        %7310 = vrot.lane.b32.xlu0 %v7224, 32
        %v7311 = vpop.permute.xlu0 %7310
        %7312 = vrot.lane.b32.xlu0 %v7225, 32
        %v7313 = vpop.permute.xlu0 %7312
        %7314 = vrot.lane.b32.xlu0 %v7226, 32
        %v7315 = vpop.permute.xlu0 %7314
        %7316 = vrot.lane.b32.xlu0 %v7227, 32
        %v7317 = vpop.permute.xlu0 %7316
        %7318 = vrot.lane.b32.xlu0 %v7228, 32
        %v7319 = vpop.permute.xlu0 %7318
        %7320 = vrot.lane.b32.xlu0 %v7229, 32
        %v7321 = vpop.permute.xlu0 %7320
        %7322 = vrot.lane.b32.xlu0 %v7230, 32
        %v7323 = vpop.permute.xlu0 %7322
        %7324 = vrot.lane.b32.xlu0 %v7231, 32
        %v7325 = vpop.permute.xlu0 %7324
        %7326 = vrot.lane.b32.xlu0 %v7232, 32
        %v7327 = vpop.permute.xlu0 %7326
        %7328 = vrot.lane.b32.xlu0 %v7233, 32
        %v7329 = vpop.permute.xlu0 %7328
        %7330 = vrot.lane.b32.xlu0 %v7234, 32
        %v7331 = vpop.permute.xlu0 %7330
        %7332 = vrot.lane.b32.xlu0 %v7235, 32
        %v7333 = vpop.permute.xlu0 %7332
        %7334 = vrot.lane.b32.xlu0 %v7236, 32
        %v7335 = vpop.permute.xlu0 %7334
        %7336 = vrot.lane.b32.xlu0 %v7237, 32
        %v7337 = vpop.permute.xlu0 %7336
        %7338 = vrot.lane.b32.xlu0 %v7238, 32
        %v7339 = vpop.permute.xlu0 %7338
        %7340 = vrot.lane.b32.xlu0 %v7239, 32
        %v7341 = vpop.permute.xlu0 %7340
        %7342 = vrot.lane.b32.xlu0 %v7240, 32
        %v7343 = vpop.permute.xlu0 %7342
        %7344 = vrot.lane.b32.xlu0 %v7241, 32
        %v7345 = vpop.permute.xlu0 %7344
        %7346 = vrot.lane.b32.xlu0 %v7242, 32
        %v7347 = vpop.permute.xlu0 %7346
        %7348 = vrot.lane.b32.xlu0 %v7243, 32
        %v7349 = vpop.permute.xlu0 %7348
        %7350 = vrot.lane.b32.xlu0 %v7244, 32
        %v7351 = vpop.permute.xlu0 %7350
        %7352 = vrot.lane.b32.xlu0 %v7245, 32
        %v7353 = vpop.permute.xlu0 %7352
        %7386 = vst.msk [vmem:[#allocation2 + $0x30] sm:$0xf] %vm2329, %v7291
        %7387 = vst.msk [vmem:[#allocation2 + $0x38] sm:$0xf] %vm2329, %v7293
        %7388 = vst.msk [vmem:[#allocation2 + $0x40] sm:$0xf] %vm2329, %v7295
        %7389 = vst.msk [vmem:[#allocation2 + $0x48] sm:$0xf] %vm2329, %v7297
        %7390 = vst.msk [vmem:[#allocation2 + $0x50] sm:$0xf] %vm2329, %v7299
        %7391 = vst.msk [vmem:[#allocation2 + $0x58] sm:$0xf] %vm2329, %v7301
        %7392 = vst.msk [vmem:[#allocation2 + $0x60] sm:$0xf] %vm2329, %v7303
        %7393 = vst.msk [vmem:[#allocation2 + $0x68] sm:$0xf] %vm2329, %v7305
        %7394 = vst.msk [vmem:[#allocation2 + $0x70] sm:$0xf] %vm2329, %v7307
        %7395 = vst.msk [vmem:[#allocation2 + $0x78] sm:$0xf] %vm2329, %v7309
        %7396 = vst.msk [vmem:[#allocation2 + $0x80] sm:$0xf] %vm2329, %v7311
        %7397 = vst.msk [vmem:[#allocation2 + $0x88] sm:$0xf] %vm2329, %v7313
        %7398 = vst.msk [vmem:[#allocation2 + $0x90] sm:$0xf] %vm2329, %v7315
        %7399 = vst.msk [vmem:[#allocation2 + $0x98] sm:$0xf] %vm2329, %v7317
        %7400 = vst.msk [vmem:[#allocation2 + $0xa0] sm:$0xf] %vm2329, %v7319
        %7401 = vst.msk [vmem:[#allocation2 + $0xa8] sm:$0xf] %vm2329, %v7321
        %7402 = vst.msk [vmem:[#allocation2 + $0xb0] sm:$0xf] %vm2329, %v7323
        %7403 = vst.msk [vmem:[#allocation2 + $0xb8] sm:$0xf] %vm2329, %v7325
        %7404 = vst.msk [vmem:[#allocation2 + $0xc0] sm:$0xf] %vm2329, %v7327
        %7405 = vst.msk [vmem:[#allocation2 + $0xc8] sm:$0xf] %vm2329, %v7329
        %7406 = vst.msk [vmem:[#allocation2 + $0xd0] sm:$0xf] %vm2329, %v7331
        %7407 = vst.msk [vmem:[#allocation2 + $0xd8] sm:$0xf] %vm2329, %v7333
        %7408 = vst.msk [vmem:[#allocation2 + $0xe0] sm:$0xf] %vm2329, %v7335
        %7409 = vst.msk [vmem:[#allocation2 + $0xe8] sm:$0xf] %vm2329, %v7337
        %7410 = vst.msk [vmem:[#allocation2 + $0xf0] sm:$0xf] %vm2329, %v7339
        %7411 = vst.msk [vmem:[#allocation2 + $0xf8] sm:$0xf] %vm2329, %v7341
        %7412 = vst.msk [vmem:[#allocation2 + $0x100] sm:$0xf] %vm2329, %v7343
        %7413 = vst.msk [vmem:[#allocation2 + $0x108] sm:$0xf] %vm2329, %v7345
        %7414 = vst.msk [vmem:[#allocation2 + $0x110] sm:$0xf] %vm2329, %v7347
        %7415 = vst.msk [vmem:[#allocation2 + $0x118] sm:$0xf] %vm2329, %v7349
        %7416 = vst.msk [vmem:[#allocation2 + $0x120] sm:$0xf] %vm2329, %v7351
        %7417 = vst.msk [vmem:[#allocation2 + $0x128] sm:$0xf] %vm2329, %v7353
        %v7418 = vld [vmem:[#allocation2 + $0x8] sm:$0x8]
        %v7419 = vld [vmem:[#allocation2 + $0x10] sm:$0xf]
        %v7420 = vld [vmem:[#allocation2 + $0x18] sm:$0xf]
        %v7421 = vld [vmem:[#allocation2 + $0x20] sm:$0xf]
        %v7422 = vld [vmem:[#allocation2 + $0x28] sm:$0xf]
        %v7423 = vld [vmem:[#allocation2 + $0x30] sm:$0xf]
        %v7424 = vld [vmem:[#allocation2 + $0x38] sm:$0xf]
        %v7425 = vld [vmem:[#allocation2 + $0x40] sm:$0xf]
        %v7426 = vld [vmem:[#allocation2 + $0x48] sm:$0xf]
        %v7427 = vld [vmem:[#allocation2 + $0x50] sm:$0xf]
        %v7428 = vld [vmem:[#allocation2 + $0x58] sm:$0xf]
        %v7429 = vld [vmem:[#allocation2 + $0x60] sm:$0xf]
        %v7430 = vld [vmem:[#allocation2 + $0x68] sm:$0xf]
        %v7431 = vld [vmem:[#allocation2 + $0x70] sm:$0xf]
        %v7432 = vld [vmem:[#allocation2 + $0x78] sm:$0xf]
        %v7433 = vld [vmem:[#allocation2 + $0x80] sm:$0xf]
        %v7434 = vld [vmem:[#allocation2 + $0x88] sm:$0xf]
        %v7435 = vld [vmem:[#allocation2 + $0x90] sm:$0xf]
        %v7436 = vld [vmem:[#allocation2 + $0x98] sm:$0xf]
        %v7437 = vld [vmem:[#allocation2 + $0xa0] sm:$0xf]
        %v7438 = vld [vmem:[#allocation2 + $0xa8] sm:$0xf]
        %v7439 = vld [vmem:[#allocation2 + $0xb0] sm:$0xf]
        %v7440 = vld [vmem:[#allocation2 + $0xb8] sm:$0xf]
        %v7441 = vld [vmem:[#allocation2 + $0xc0] sm:$0xf]
        %v7442 = vld [vmem:[#allocation2 + $0xc8] sm:$0xf]
        %v7443 = vld [vmem:[#allocation2 + $0xd0] sm:$0xf]
        %v7444 = vld [vmem:[#allocation2 + $0xd8] sm:$0xf]
        %v7445 = vld [vmem:[#allocation2 + $0xe0] sm:$0xf]
        %v7446 = vld [vmem:[#allocation2 + $0xe8] sm:$0xf]
        %v7447 = vld [vmem:[#allocation2 + $0xf0] sm:$0xf]
        %v7448 = vld [vmem:[#allocation2 + $0xf8] sm:$0xf]
        %v7449 = vld [vmem:[#allocation2 + $0x100] sm:$0xf]
        %v7450 = vld [vmem:[#allocation2 + $0x108] sm:$0xf]
        %v7451 = vld [vmem:[#allocation2 + $0x110] sm:$0xf]
        %v7452 = vld [vmem:[#allocation2 + $0x118] sm:$0xf]
        %v7453 = vld [vmem:[#allocation2 + $0x120] sm:$0xf]
        %v7454 = vld [vmem:[#allocation2 + $0x128] sm:$0xf]
        %v7455 = vld [vmem:[#allocation2 + $0x130] sm:$0xf]
        %v7456 = vld [vmem:[#allocation2 + $0x138] sm:$0xf]
        %v7457 = vld [vmem:[#allocation2 + $0x140] sm:$0xf]
        %v7458 = vld [vmem:[#allocation2 + $0x148] sm:$0xf]
        %v7459 = vld [vmem:[%s7 + $0x10] sm:$0xf]
        %v7460 = vld [vmem:[%s7 + $0x18] sm:$0xf]
        %v7461 = vld [vmem:[%s7 + $0x20] sm:$0xf]
        %v7462 = vld [vmem:[%s7 + $0x28] sm:$0xf]
        %v7463 = vld [vmem:[%s7 + $0x30] sm:$0xf]
        %v7464 = vld [vmem:[%s7 + $0x38] sm:$0xf]
        %v7465 = vld [vmem:[%s7 + $0x40] sm:$0xf]
        %v7466 = vld [vmem:[%s7 + $0x48] sm:$0xf]
        %v7467 = vld [vmem:[%s7 + $0x50] sm:$0xf]
        %v7468 = vld [vmem:[%s7 + $0x58] sm:$0xf]
        %v7469 = vld [vmem:[%s7 + $0x60] sm:$0xf]
        %v7470 = vld [vmem:[%s7 + $0x68] sm:$0xf]
        %v7471 = vld [vmem:[%s7 + $0x70] sm:$0xf]
        %v7472 = vld [vmem:[%s7 + $0x78] sm:$0xf]
        %v7473 = vld [vmem:[%s7 + $0x80] sm:$0xf]
        %v7474 = vld [vmem:[%s7 + $0x88] sm:$0xf]
        %v7475 = vld [vmem:[%s7 + $0x90] sm:$0xf]
        %v7476 = vld [vmem:[%s7 + $0x98] sm:$0xf]
        %v7477 = vld [vmem:[%s7 + $0xa0] sm:$0xf]
        %v7478 = vld [vmem:[%s7 + $0xa8] sm:$0xf]
        %v7479 = vld [vmem:[%s7 + $0xb0] sm:$0xf]
        %v7480 = vld [vmem:[%s7 + $0xb8] sm:$0xf]
        %v7481 = vld [vmem:[%s7 + $0xc0] sm:$0xf]
        %v7482 = vld [vmem:[%s7 + $0xc8] sm:$0xf]
        %v7483 = vld [vmem:[%s7 + $0xd0] sm:$0xf]
        %v7484 = vld [vmem:[%s7 + $0xd8] sm:$0xf]
        %v7485 = vld [vmem:[%s7 + $0xe0] sm:$0xf]
        %v7486 = vld [vmem:[%s7 + $0xe8] sm:$0xf]
        %v7487 = vld [vmem:[%s7 + $0xf0] sm:$0xf]
        %v7488 = vld [vmem:[%s7 + $0xf8] sm:$0xf]
        %v7489 = vld [vmem:[%s7 + $0x100] sm:$0xf]
        %v7490 = vld [vmem:[%s7 + $0x108] sm:$0xf]
        %v7491 = vld [vmem:[%s7 + $0x110] sm:$0xf]
        %v7492 = vld [vmem:[%s7 + $0x118] sm:$0xf]
        %v7493 = vld [vmem:[%s7 + $0x120] sm:$0xf]
        %v7494 = vld [vmem:[%s7 + $0x128] sm:$0xf]
        %v7495 = vld [vmem:[%s7 + $0x130] sm:$0xf]
        %v7496 = vld [vmem:[%s7 + $0x138] sm:$0xf]
        %v7497 = vld [vmem:[%s7 + $0x140] sm:$0xf]
        %v7498 = vld [vmem:[%s7 + $0x148] sm:$0xf]
        %v7499 = vunpack.c.l.bf16 %v7418
        %v7500 = vunpack.c.l.bf16 %v7419
        %v7501 = vunpack.c.l.bf16 %v7420
        %v7502 = vunpack.c.l.bf16 %v7421
        %v7503 = vunpack.c.l.bf16 %v7422
        %v7504 = vunpack.c.l.bf16 %v7423
        %v7505 = vunpack.c.l.bf16 %v7424
        %v7506 = vunpack.c.l.bf16 %v7425
        %v7507 = vunpack.c.l.bf16 %v7426
        %v7508 = vunpack.c.l.bf16 %v7427
        %v7509 = vunpack.c.l.bf16 %v7428
        %v7510 = vunpack.c.l.bf16 %v7429
        %v7511 = vunpack.c.l.bf16 %v7430
        %v7512 = vunpack.c.l.bf16 %v7431
        %v7513 = vunpack.c.l.bf16 %v7432
        %v7514 = vunpack.c.l.bf16 %v7433
        %v7515 = vunpack.c.l.bf16 %v7434
        %v7516 = vunpack.c.l.bf16 %v7435
        %v7517 = vunpack.c.l.bf16 %v7436
        %v7518 = vunpack.c.l.bf16 %v7437
        %v7519 = vunpack.c.l.bf16 %v7438
        %v7520 = vunpack.c.l.bf16 %v7439
        %v7521 = vunpack.c.l.bf16 %v7440
        %v7522 = vunpack.c.l.bf16 %v7441
        %v7523 = vunpack.c.l.bf16 %v7442
        %v7524 = vunpack.c.l.bf16 %v7443
        %v7525 = vunpack.c.l.bf16 %v7444
        %v7526 = vunpack.c.l.bf16 %v7445
        %v7527 = vunpack.c.l.bf16 %v7446
        %v7528 = vunpack.c.l.bf16 %v7447
        %v7529 = vunpack.c.l.bf16 %v7448
        %v7530 = vunpack.c.l.bf16 %v7449
        %v7531 = vunpack.c.l.bf16 %v7450
        %v7532 = vunpack.c.l.bf16 %v7451
        %v7533 = vunpack.c.l.bf16 %v7452
        %v7534 = vunpack.c.l.bf16 %v7453
        %v7535 = vunpack.c.l.bf16 %v7454
        %v7536 = vunpack.c.l.bf16 %v7455
        %v7537 = vunpack.c.l.bf16 %v7456
        %v7538 = vunpack.c.l.bf16 %v7457
        %v7539 = vunpack.c.l.bf16 %v7458
        %v7540 = vunpack.c.l.bf16 %v7459
        %v7541 = vunpack.c.l.bf16 %v7460
        %v7542 = vunpack.c.l.bf16 %v7461
        %v7543 = vunpack.c.l.bf16 %v7462
        %v7544 = vunpack.c.l.bf16 %v7463
        %v7545 = vunpack.c.l.bf16 %v7464
        %v7546 = vunpack.c.l.bf16 %v7465
        %v7547 = vunpack.c.l.bf16 %v7466
        %v7548 = vunpack.c.l.bf16 %v7467
        %v7549 = vunpack.c.l.bf16 %v7468
        %v7550 = vunpack.c.l.bf16 %v7469
        %v7551 = vunpack.c.l.bf16 %v7470
        %v7552 = vunpack.c.l.bf16 %v7471
        %v7553 = vunpack.c.l.bf16 %v7472
        %v7554 = vunpack.c.l.bf16 %v7473
        %v7555 = vunpack.c.l.bf16 %v7474
        %v7556 = vunpack.c.l.bf16 %v7475
        %v7557 = vunpack.c.l.bf16 %v7476
        %v7558 = vunpack.c.l.bf16 %v7477
        %v7559 = vunpack.c.l.bf16 %v7478
        %v7560 = vunpack.c.l.bf16 %v7479
        %v7561 = vunpack.c.l.bf16 %v7480
        %v7562 = vunpack.c.l.bf16 %v7481
        %v7563 = vunpack.c.l.bf16 %v7482
        %v7564 = vunpack.c.l.bf16 %v7483
        %v7565 = vunpack.c.l.bf16 %v7484
        %v7566 = vunpack.c.l.bf16 %v7485
        %v7567 = vunpack.c.l.bf16 %v7486
        %v7568 = vunpack.c.l.bf16 %v7487
        %v7569 = vunpack.c.l.bf16 %v7488
        %v7570 = vunpack.c.l.bf16 %v7489
        %v7571 = vunpack.c.l.bf16 %v7490
        %v7572 = vunpack.c.l.bf16 %v7491
        %v7573 = vunpack.c.l.bf16 %v7492
        %v7574 = vunpack.c.l.bf16 %v7493
        %v7575 = vunpack.c.l.bf16 %v7494
        %v7576 = vunpack.c.l.bf16 %v7495
        %v7577 = vunpack.c.l.bf16 %v7496
        %v7578 = vunpack.c.l.bf16 %v7497
        %v7579 = vunpack.c.l.bf16 %v7498
        %v7620 = vrot.slane %v7540, 1
        %v7621 = vrot.slane %v7541, 1
        %v7622 = vsel %vm1557, %v7620, %v7621
        %v7623 = vrot.slane %v7542, 1
        %v7624 = vsel %vm1557, %v7621, %v7623
        %v7625 = vrot.slane %v7543, 1
        %v7626 = vsel %vm1557, %v7623, %v7625
        %v7627 = vrot.slane %v7544, 1
        %v7628 = vsel %vm1557, %v7625, %v7627
        %v7629 = vrot.slane %v7545, 1
        %v7630 = vsel %vm1557, %v7627, %v7629
        %v7631 = vrot.slane %v7546, 1
        %v7632 = vsel %vm1557, %v7629, %v7631
        %v7633 = vrot.slane %v7547, 1
        %v7634 = vsel %vm1557, %v7631, %v7633
        %v7635 = vrot.slane %v7548, 1
        %v7636 = vsel %vm1557, %v7633, %v7635
        %v7637 = vrot.slane %v7549, 1
        %v7638 = vsel %vm1557, %v7635, %v7637
        %v7639 = vrot.slane %v7550, 1
        %v7640 = vsel %vm1557, %v7637, %v7639
        %v7641 = vrot.slane %v7551, 1
        %v7642 = vsel %vm1557, %v7639, %v7641
        %v7643 = vrot.slane %v7552, 1
        %v7644 = vsel %vm1557, %v7641, %v7643
        %v7645 = vrot.slane %v7553, 1
        %v7646 = vsel %vm1557, %v7643, %v7645
        %v7647 = vrot.slane %v7554, 1
        %v7648 = vsel %vm1557, %v7645, %v7647
        %v7649 = vrot.slane %v7555, 1
        %v7650 = vsel %vm1557, %v7647, %v7649
        %v7651 = vrot.slane %v7556, 1
        %v7652 = vsel %vm1557, %v7649, %v7651
        %v7653 = vrot.slane %v7557, 1
        %v7654 = vsel %vm1557, %v7651, %v7653
        %v7655 = vrot.slane %v7558, 1
        %v7656 = vsel %vm1557, %v7653, %v7655
        %v7657 = vrot.slane %v7559, 1
        %v7658 = vsel %vm1557, %v7655, %v7657
        %v7659 = vrot.slane %v7560, 1
        %v7660 = vsel %vm1557, %v7657, %v7659
        %v7661 = vrot.slane %v7561, 1
        %v7662 = vsel %vm1557, %v7659, %v7661
        %v7663 = vrot.slane %v7562, 1
        %v7664 = vsel %vm1557, %v7661, %v7663
        %v7665 = vrot.slane %v7563, 1
        %v7666 = vsel %vm1557, %v7663, %v7665
        %v7667 = vrot.slane %v7564, 1
        %v7668 = vsel %vm1557, %v7665, %v7667
        %v7669 = vrot.slane %v7565, 1
        %v7670 = vsel %vm1557, %v7667, %v7669
        %v7671 = vrot.slane %v7566, 1
        %v7672 = vsel %vm1557, %v7669, %v7671
        %v7673 = vrot.slane %v7567, 1
        %v7674 = vsel %vm1557, %v7671, %v7673
        %v7675 = vrot.slane %v7568, 1
        %v7676 = vsel %vm1557, %v7673, %v7675
        %v7677 = vrot.slane %v7569, 1
        %v7678 = vsel %vm1557, %v7675, %v7677
        %v7679 = vrot.slane %v7570, 1
        %v7680 = vsel %vm1557, %v7677, %v7679
        %v7681 = vrot.slane %v7571, 1
        %v7682 = vsel %vm1557, %v7679, %v7681
        %v7683 = vrot.slane %v7572, 1
        %v7684 = vsel %vm1557, %v7681, %v7683
        %v7685 = vrot.slane %v7573, 1
        %v7686 = vsel %vm1557, %v7683, %v7685
        %v7687 = vrot.slane %v7574, 1
        %v7688 = vsel %vm1557, %v7685, %v7687
        %v7689 = vrot.slane %v7575, 1
        %v7690 = vsel %vm1557, %v7687, %v7689
        %v7691 = vrot.slane %v7576, 1
        %v7692 = vsel %vm1557, %v7689, %v7691
        %v7693 = vrot.slane %v7577, 1
        %v7694 = vsel %vm1557, %v7691, %v7693
        %v7695 = vrot.slane %v7578, 1
        %v7696 = vsel %vm1557, %v7693, %v7695
        %v7697 = vrot.slane %v7579, 1
        %v7698 = vsel %vm1557, %v7695, %v7697
        %v7740 = vmul.f32 %v7499, %v7620
        %v7741 = vmul.f32 %v7500, %v7622
        %v7742 = vmul.f32 %v7501, %v7624
        %v7743 = vmul.f32 %v7502, %v7626
        %v7744 = vmul.f32 %v7503, %v7628
        %v7745 = vmul.f32 %v7504, %v7630
        %v7746 = vmul.f32 %v7505, %v7632
        %v7747 = vmul.f32 %v7506, %v7634
        %v7748 = vmul.f32 %v7507, %v7636
        %v7749 = vmul.f32 %v7508, %v7638
        %v7750 = vmul.f32 %v7509, %v7640
        %v7751 = vmul.f32 %v7510, %v7642
        %v7752 = vmul.f32 %v7511, %v7644
        %v7753 = vmul.f32 %v7512, %v7646
        %v7754 = vmul.f32 %v7513, %v7648
        %v7755 = vmul.f32 %v7514, %v7650
        %v7756 = vmul.f32 %v7515, %v7652
        %v7757 = vmul.f32 %v7516, %v7654
        %v7758 = vmul.f32 %v7517, %v7656
        %v7759 = vmul.f32 %v7518, %v7658
        %v7760 = vmul.f32 %v7519, %v7660
        %v7761 = vmul.f32 %v7520, %v7662
        %v7762 = vmul.f32 %v7521, %v7664
        %v7763 = vmul.f32 %v7522, %v7666
        %v7764 = vmul.f32 %v7523, %v7668
        %v7765 = vmul.f32 %v7524, %v7670
        %v7766 = vmul.f32 %v7525, %v7672
        %v7767 = vmul.f32 %v7526, %v7674
        %v7768 = vmul.f32 %v7527, %v7676
        %v7769 = vmul.f32 %v7528, %v7678
        %v7770 = vmul.f32 %v7529, %v7680
        %v7771 = vmul.f32 %v7530, %v7682
        %v7772 = vmul.f32 %v7531, %v7684
        %v7773 = vmul.f32 %v7532, %v7686
        %v7774 = vmul.f32 %v7533, %v7688
        %v7775 = vmul.f32 %v7534, %v7690
        %v7776 = vmul.f32 %v7535, %v7692
        %v7777 = vmul.f32 %v7536, %v7694
        %v7778 = vmul.f32 %v7537, %v7696
        %v7779 = vmul.f32 %v7538, %v7698
        %v7780 = vmul.f32 %v7539, %v7697
        %v7781 = vpack.c.bf16 %v7740, %v7740
        %v7782 = vpack.c.bf16 %v7741, %v7741
        %v7783 = vpack.c.bf16 %v7742, %v7742
        %v7784 = vpack.c.bf16 %v7743, %v7743
        %v7785 = vpack.c.bf16 %v7744, %v7744
        %v7786 = vpack.c.bf16 %v7745, %v7745
        %v7787 = vpack.c.bf16 %v7746, %v7746
        %v7788 = vpack.c.bf16 %v7747, %v7747
        %v7789 = vpack.c.bf16 %v7748, %v7748
        %v7790 = vpack.c.bf16 %v7749, %v7749
        %v7791 = vpack.c.bf16 %v7750, %v7750
        %v7792 = vpack.c.bf16 %v7751, %v7751
        %v7793 = vpack.c.bf16 %v7752, %v7752
        %v7794 = vpack.c.bf16 %v7753, %v7753
        %v7795 = vpack.c.bf16 %v7754, %v7754
        %v7796 = vpack.c.bf16 %v7755, %v7755
        %v7797 = vpack.c.bf16 %v7756, %v7756
        %v7798 = vpack.c.bf16 %v7757, %v7757
        %v7799 = vpack.c.bf16 %v7758, %v7758
        %v7800 = vpack.c.bf16 %v7759, %v7759
        %v7801 = vpack.c.bf16 %v7760, %v7760
        %v7802 = vpack.c.bf16 %v7761, %v7761
        %v7803 = vpack.c.bf16 %v7762, %v7762
        %v7804 = vpack.c.bf16 %v7763, %v7763
        %v7805 = vpack.c.bf16 %v7764, %v7764
        %v7806 = vpack.c.bf16 %v7765, %v7765
        %v7807 = vpack.c.bf16 %v7766, %v7766
        %v7808 = vpack.c.bf16 %v7767, %v7767
        %v7809 = vpack.c.bf16 %v7768, %v7768
        %v7810 = vpack.c.bf16 %v7769, %v7769
        %v7811 = vpack.c.bf16 %v7770, %v7770
        %v7812 = vpack.c.bf16 %v7771, %v7771
        %v7813 = vpack.c.bf16 %v7772, %v7772
        %v7814 = vpack.c.bf16 %v7773, %v7773
        %v7815 = vpack.c.bf16 %v7774, %v7774
        %v7816 = vpack.c.bf16 %v7775, %v7775
        %v7817 = vpack.c.bf16 %v7776, %v7776
        %v7818 = vpack.c.bf16 %v7777, %v7777
        %v7819 = vpack.c.bf16 %v7778, %v7778
        %v7820 = vpack.c.bf16 %v7779, %v7779
        %v7821 = vpack.c.bf16 %v7780, %v7780
        %v7823 = vshrl.u32 %v7781, 16
        %v7825 = vrot.slane %v7823, 7
        %v7826 = vrot.slane %v7825, 4
        %v7828 = vshrl.u32 %v7782, 16
        %v7830 = vrot.slane %v7828, 7
        %v7831 = vshll.u32 %v7782, 16
        %v7833 = vor.u32 %v7830, %v7831
        %v7834 = vsel %vm1844, %v7826, %v7833
        %v7835 = vrot.slane %v7830, 4
        %v7837 = vshrl.u32 %v7783, 16
        %v7839 = vrot.slane %v7837, 7
        %v7840 = vshll.u32 %v7783, 16
        %v7842 = vor.u32 %v7839, %v7840
        %v7843 = vsel %vm1844, %v7835, %v7842
        %v7844 = vrot.slane %v7839, 4
        %v7846 = vshrl.u32 %v7784, 16
        %v7848 = vrot.slane %v7846, 7
        %v7849 = vshll.u32 %v7784, 16
        %v7851 = vor.u32 %v7848, %v7849
        %v7852 = vsel %vm1844, %v7844, %v7851
        %v7853 = vrot.slane %v7848, 4
        %v7855 = vshrl.u32 %v7785, 16
        %v7857 = vrot.slane %v7855, 7
        %v7858 = vshll.u32 %v7785, 16
        %v7860 = vor.u32 %v7857, %v7858
        %v7861 = vsel %vm1844, %v7853, %v7860
        %v7862 = vrot.slane %v7857, 4
        %v7864 = vshrl.u32 %v7786, 16
        %v7866 = vrot.slane %v7864, 7
        %v7867 = vshll.u32 %v7786, 16
        %v7869 = vor.u32 %v7866, %v7867
        %v7870 = vsel %vm1844, %v7862, %v7869
        %v7871 = vrot.slane %v7866, 4
        %v7873 = vshrl.u32 %v7787, 16
        %v7875 = vrot.slane %v7873, 7
        %v7876 = vshll.u32 %v7787, 16
        %v7878 = vor.u32 %v7875, %v7876
        %v7879 = vsel %vm1844, %v7871, %v7878
        %v7880 = vrot.slane %v7875, 4
        %v7882 = vshrl.u32 %v7788, 16
        %v7884 = vrot.slane %v7882, 7
        %v7885 = vshll.u32 %v7788, 16
        %v7887 = vor.u32 %v7884, %v7885
        %v7888 = vsel %vm1844, %v7880, %v7887
        %v7889 = vrot.slane %v7884, 4
        %v7891 = vshrl.u32 %v7789, 16
        %v7893 = vrot.slane %v7891, 7
        %v7894 = vshll.u32 %v7789, 16
        %v7896 = vor.u32 %v7893, %v7894
        %v7897 = vsel %vm1844, %v7889, %v7896
        %v7898 = vrot.slane %v7893, 4
        %v7900 = vshrl.u32 %v7790, 16
        %v7902 = vrot.slane %v7900, 7
        %v7903 = vshll.u32 %v7790, 16
        %v7905 = vor.u32 %v7902, %v7903
        %v7906 = vsel %vm1844, %v7898, %v7905
        %v7907 = vrot.slane %v7902, 4
        %v7909 = vshrl.u32 %v7791, 16
        %v7911 = vrot.slane %v7909, 7
        %v7912 = vshll.u32 %v7791, 16
        %v7914 = vor.u32 %v7911, %v7912
        %v7915 = vsel %vm1844, %v7907, %v7914
        %v7916 = vrot.slane %v7911, 4
        %v7918 = vshrl.u32 %v7792, 16
        %v7920 = vrot.slane %v7918, 7
        %v7921 = vshll.u32 %v7792, 16
        %v7923 = vor.u32 %v7920, %v7921
        %v7924 = vsel %vm1844, %v7916, %v7923
        %v7925 = vrot.slane %v7920, 4
        %v7927 = vshrl.u32 %v7793, 16
        %v7929 = vrot.slane %v7927, 7
        %v7930 = vshll.u32 %v7793, 16
        %v7932 = vor.u32 %v7929, %v7930
        %v7933 = vsel %vm1844, %v7925, %v7932
        %v7934 = vrot.slane %v7929, 4
        %v7936 = vshrl.u32 %v7794, 16
        %v7938 = vrot.slane %v7936, 7
        %v7939 = vshll.u32 %v7794, 16
        %v7941 = vor.u32 %v7938, %v7939
        %v7942 = vsel %vm1844, %v7934, %v7941
        %v7943 = vrot.slane %v7938, 4
        %v7945 = vshrl.u32 %v7795, 16
        %v7947 = vrot.slane %v7945, 7
        %v7948 = vshll.u32 %v7795, 16
        %v7950 = vor.u32 %v7947, %v7948
        %v7951 = vsel %vm1844, %v7943, %v7950
        %v7952 = vrot.slane %v7947, 4
        %v7954 = vshrl.u32 %v7796, 16
        %v7956 = vrot.slane %v7954, 7
        %v7957 = vshll.u32 %v7796, 16
        %v7959 = vor.u32 %v7956, %v7957
        %v7960 = vsel %vm1844, %v7952, %v7959
        %v7961 = vrot.slane %v7956, 4
        %v7963 = vshrl.u32 %v7797, 16
        %v7965 = vrot.slane %v7963, 7
        %v7966 = vshll.u32 %v7797, 16
        %v7968 = vor.u32 %v7965, %v7966
        %v7969 = vsel %vm1844, %v7961, %v7968
        %v7970 = vrot.slane %v7965, 4
        %v7972 = vshrl.u32 %v7798, 16
        %v7974 = vrot.slane %v7972, 7
        %v7975 = vshll.u32 %v7798, 16
        %v7977 = vor.u32 %v7974, %v7975
        %v7978 = vsel %vm1844, %v7970, %v7977
        %v7979 = vrot.slane %v7974, 4
        %v7981 = vshrl.u32 %v7799, 16
        %v7983 = vrot.slane %v7981, 7
        %v7984 = vshll.u32 %v7799, 16
        %v7986 = vor.u32 %v7983, %v7984
        %v7987 = vsel %vm1844, %v7979, %v7986
        %v7988 = vrot.slane %v7983, 4
        %v7990 = vshrl.u32 %v7800, 16
        %v7992 = vrot.slane %v7990, 7
        %v7993 = vshll.u32 %v7800, 16
        %v7995 = vor.u32 %v7992, %v7993
        %v7996 = vsel %vm1844, %v7988, %v7995
        %v7997 = vrot.slane %v7992, 4
        %v7999 = vshrl.u32 %v7801, 16
        %v8001 = vrot.slane %v7999, 7
        %v8002 = vshll.u32 %v7801, 16
        %v8004 = vor.u32 %v8001, %v8002
        %v8005 = vsel %vm1844, %v7997, %v8004
        %v8006 = vrot.slane %v8001, 4
        %v8008 = vshrl.u32 %v7802, 16
        %v8010 = vrot.slane %v8008, 7
        %v8011 = vshll.u32 %v7802, 16
        %v8013 = vor.u32 %v8010, %v8011
        %v8014 = vsel %vm1844, %v8006, %v8013
        %v8015 = vrot.slane %v8010, 4
        %v8017 = vshrl.u32 %v7803, 16
        %v8019 = vrot.slane %v8017, 7
        %v8020 = vshll.u32 %v7803, 16
        %v8022 = vor.u32 %v8019, %v8020
        %v8023 = vsel %vm1844, %v8015, %v8022
        %v8024 = vrot.slane %v8019, 4
        %v8026 = vshrl.u32 %v7804, 16
        %v8028 = vrot.slane %v8026, 7
        %v8029 = vshll.u32 %v7804, 16
        %v8031 = vor.u32 %v8028, %v8029
        %v8032 = vsel %vm1844, %v8024, %v8031
        %v8033 = vrot.slane %v8028, 4
        %v8035 = vshrl.u32 %v7805, 16
        %v8037 = vrot.slane %v8035, 7
        %v8038 = vshll.u32 %v7805, 16
        %v8040 = vor.u32 %v8037, %v8038
        %v8041 = vsel %vm1844, %v8033, %v8040
        %v8042 = vrot.slane %v8037, 4
        %v8044 = vshrl.u32 %v7806, 16
        %v8046 = vrot.slane %v8044, 7
        %v8047 = vshll.u32 %v7806, 16
        %v8049 = vor.u32 %v8046, %v8047
        %v8050 = vsel %vm1844, %v8042, %v8049
        %v8051 = vrot.slane %v8046, 4
        %v8053 = vshrl.u32 %v7807, 16
        %v8055 = vrot.slane %v8053, 7
        %v8056 = vshll.u32 %v7807, 16
        %v8058 = vor.u32 %v8055, %v8056
        %v8059 = vsel %vm1844, %v8051, %v8058
        %v8060 = vrot.slane %v8055, 4
        %v8062 = vshrl.u32 %v7808, 16
        %v8064 = vrot.slane %v8062, 7
        %v8065 = vshll.u32 %v7808, 16
        %v8067 = vor.u32 %v8064, %v8065
        %v8068 = vsel %vm1844, %v8060, %v8067
        %v8069 = vrot.slane %v8064, 4
        %v8071 = vshrl.u32 %v7809, 16
        %v8073 = vrot.slane %v8071, 7
        %v8074 = vshll.u32 %v7809, 16
        %v8076 = vor.u32 %v8073, %v8074
        %v8077 = vsel %vm1844, %v8069, %v8076
        %v8078 = vrot.slane %v8073, 4
        %v8080 = vshrl.u32 %v7810, 16
        %v8082 = vrot.slane %v8080, 7
        %v8083 = vshll.u32 %v7810, 16
        %v8085 = vor.u32 %v8082, %v8083
        %v8086 = vsel %vm1844, %v8078, %v8085
        %v8087 = vrot.slane %v8082, 4
        %v8089 = vshrl.u32 %v7811, 16
        %v8091 = vrot.slane %v8089, 7
        %v8092 = vshll.u32 %v7811, 16
        %v8094 = vor.u32 %v8091, %v8092
        %v8095 = vsel %vm1844, %v8087, %v8094
        %v8096 = vrot.slane %v8091, 4
        %v8098 = vshrl.u32 %v7812, 16
        %v8100 = vrot.slane %v8098, 7
        %v8101 = vshll.u32 %v7812, 16
        %v8103 = vor.u32 %v8100, %v8101
        %v8104 = vsel %vm1844, %v8096, %v8103
        %v8105 = vrot.slane %v8100, 4
        %v8107 = vshrl.u32 %v7813, 16
        %v8109 = vrot.slane %v8107, 7
        %v8110 = vshll.u32 %v7813, 16
        %v8112 = vor.u32 %v8109, %v8110
        %v8113 = vsel %vm1844, %v8105, %v8112
        %v8114 = vrot.slane %v8109, 4
        %v8116 = vshrl.u32 %v7814, 16
        %v8118 = vrot.slane %v8116, 7
        %v8119 = vshll.u32 %v7814, 16
        %v8121 = vor.u32 %v8118, %v8119
        %v8122 = vsel %vm1844, %v8114, %v8121
        %v8123 = vrot.slane %v8118, 4
        %v8125 = vshrl.u32 %v7815, 16
        %v8127 = vrot.slane %v8125, 7
        %v8128 = vshll.u32 %v7815, 16
        %v8130 = vor.u32 %v8127, %v8128
        %v8131 = vsel %vm1844, %v8123, %v8130
        %v8132 = vrot.slane %v8127, 4
        %v8134 = vshrl.u32 %v7816, 16
        %v8136 = vrot.slane %v8134, 7
        %v8137 = vshll.u32 %v7816, 16
        %v8139 = vor.u32 %v8136, %v8137
        %v8140 = vsel %vm1844, %v8132, %v8139
        %v8141 = vrot.slane %v8136, 4
        %v8143 = vshrl.u32 %v7817, 16
        %v8145 = vrot.slane %v8143, 7
        %v8146 = vshll.u32 %v7817, 16
        %v8148 = vor.u32 %v8145, %v8146
        %v8149 = vsel %vm1844, %v8141, %v8148
        %v8150 = vrot.slane %v8145, 4
        %v8152 = vshrl.u32 %v7818, 16
        %v8154 = vrot.slane %v8152, 7
        %v8155 = vshll.u32 %v7818, 16
        %v8157 = vor.u32 %v8154, %v8155
        %v8158 = vsel %vm1844, %v8150, %v8157
        %v8159 = vrot.slane %v8154, 4
        %v8161 = vshrl.u32 %v7819, 16
        %v8163 = vrot.slane %v8161, 7
        %v8164 = vshll.u32 %v7819, 16
        %v8166 = vor.u32 %v8163, %v8164
        %v8167 = vsel %vm1844, %v8159, %v8166
        %v8168 = vrot.slane %v8163, 4
        %v8170 = vshrl.u32 %v7820, 16
        %v8172 = vrot.slane %v8170, 7
        %v8173 = vshll.u32 %v7820, 16
        %v8175 = vor.u32 %v8172, %v8173
        %v8176 = vsel %vm1844, %v8168, %v8175
        %v8177 = vrot.slane %v8172, 4
        %v8179 = vshrl.u32 %v7821, 16
        %v8181 = vrot.slane %v8179, 7
        %v8182 = vshll.u32 %v7821, 16
        %v8184 = vor.u32 %v8181, %v8182
        %v8185 = vsel %vm1844, %v8177, %v8184
        %8186 = vrot.lane.b32.xlu0 %v7834, 96
        %v8187 = vpop.permute.xlu0 %8186
        %8188 = vrot.lane.b32.xlu0 %v7843, 96
        %v8189 = vpop.permute.xlu0 %8188
        %8190 = vrot.lane.b32.xlu0 %v7852, 96
        %v8191 = vpop.permute.xlu0 %8190
        %8192 = vrot.lane.b32.xlu0 %v7861, 96
        %v8193 = vpop.permute.xlu0 %8192
        %8194 = vrot.lane.b32.xlu0 %v7870, 96
        %v8195 = vpop.permute.xlu0 %8194
        %8196 = vrot.lane.b32.xlu0 %v7879, 96
        %v8197 = vpop.permute.xlu0 %8196
        %8198 = vrot.lane.b32.xlu0 %v7888, 96
        %v8199 = vpop.permute.xlu0 %8198
        %8200 = vrot.lane.b32.xlu0 %v7897, 96
        %v8201 = vpop.permute.xlu0 %8200
        %8202 = vrot.lane.b32.xlu0 %v7906, 96
        %v8203 = vpop.permute.xlu0 %8202
        %8204 = vrot.lane.b32.xlu0 %v7915, 96
        %v8205 = vpop.permute.xlu0 %8204
        %8206 = vrot.lane.b32.xlu0 %v7924, 96
        %v8207 = vpop.permute.xlu0 %8206
        %8208 = vrot.lane.b32.xlu0 %v7933, 96
        %v8209 = vpop.permute.xlu0 %8208
        %8210 = vrot.lane.b32.xlu0 %v7942, 96
        %v8211 = vpop.permute.xlu0 %8210
        %8212 = vrot.lane.b32.xlu0 %v7951, 96
        %v8213 = vpop.permute.xlu0 %8212
        %8214 = vrot.lane.b32.xlu0 %v7960, 96
        %v8215 = vpop.permute.xlu0 %8214
        %8216 = vrot.lane.b32.xlu0 %v7969, 96
        %v8217 = vpop.permute.xlu0 %8216
        %8218 = vrot.lane.b32.xlu0 %v7978, 96
        %v8219 = vpop.permute.xlu0 %8218
        %8220 = vrot.lane.b32.xlu0 %v7987, 96
        %v8221 = vpop.permute.xlu0 %8220
        %8222 = vrot.lane.b32.xlu0 %v7996, 96
        %v8223 = vpop.permute.xlu0 %8222
        %8224 = vrot.lane.b32.xlu0 %v8005, 96
        %v8225 = vpop.permute.xlu0 %8224
        %8226 = vrot.lane.b32.xlu0 %v8014, 96
        %v8227 = vpop.permute.xlu0 %8226
        %8228 = vrot.lane.b32.xlu0 %v8023, 96
        %v8229 = vpop.permute.xlu0 %8228
        %8230 = vrot.lane.b32.xlu0 %v8032, 96
        %v8231 = vpop.permute.xlu0 %8230
        %8232 = vrot.lane.b32.xlu0 %v8041, 96
        %v8233 = vpop.permute.xlu0 %8232
        %8234 = vrot.lane.b32.xlu0 %v8050, 96
        %v8235 = vpop.permute.xlu0 %8234
        %8236 = vrot.lane.b32.xlu0 %v8059, 96
        %v8237 = vpop.permute.xlu0 %8236
        %8238 = vrot.lane.b32.xlu0 %v8068, 96
        %v8239 = vpop.permute.xlu0 %8238
        %8240 = vrot.lane.b32.xlu0 %v8077, 96
        %v8241 = vpop.permute.xlu0 %8240
        %8242 = vrot.lane.b32.xlu0 %v8086, 96
        %v8243 = vpop.permute.xlu0 %8242
        %8244 = vrot.lane.b32.xlu0 %v8095, 96
        %v8245 = vpop.permute.xlu0 %8244
        %8246 = vrot.lane.b32.xlu0 %v8104, 96
        %v8247 = vpop.permute.xlu0 %8246
        %8248 = vrot.lane.b32.xlu0 %v8113, 96
        %v8249 = vpop.permute.xlu0 %8248
        %8250 = vrot.lane.b32.xlu0 %v8122, 96
        %v8251 = vpop.permute.xlu0 %8250
        %8252 = vrot.lane.b32.xlu0 %v8131, 96
        %v8253 = vpop.permute.xlu0 %8252
        %8254 = vrot.lane.b32.xlu0 %v8140, 96
        %v8255 = vpop.permute.xlu0 %8254
        %8256 = vrot.lane.b32.xlu0 %v8149, 96
        %v8257 = vpop.permute.xlu0 %8256
        %8258 = vrot.lane.b32.xlu0 %v8158, 96
        %v8259 = vpop.permute.xlu0 %8258
        %8260 = vrot.lane.b32.xlu0 %v8167, 96
        %v8261 = vpop.permute.xlu0 %8260
        %8262 = vrot.lane.b32.xlu0 %v8176, 96
        %v8263 = vpop.permute.xlu0 %8262
        %8264 = vrot.lane.b32.xlu0 %v8185, 96
        %v8265 = vpop.permute.xlu0 %8264
        %8306 = vst.msk [vmem:[#allocation2 + $0x10] sm:$0xf] %vm1314, %v8187
        %8307 = vst.msk [vmem:[#allocation2 + $0x18] sm:$0xf] %vm1314, %v8189
        %8308 = vst.msk [vmem:[#allocation2 + $0x20] sm:$0xf] %vm1314, %v8191
        %8309 = vst.msk [vmem:[#allocation2 + $0x28] sm:$0xf] %vm1314, %v8193
        %8310 = vst.msk [vmem:[#allocation2 + $0x30] sm:$0xf] %vm1314, %v8195
        %8311 = vst.msk [vmem:[#allocation2 + $0x38] sm:$0xf] %vm1314, %v8197
        %8312 = vst.msk [vmem:[#allocation2 + $0x40] sm:$0xf] %vm1314, %v8199
        %8313 = vst.msk [vmem:[#allocation2 + $0x48] sm:$0xf] %vm1314, %v8201
        %8314 = vst.msk [vmem:[#allocation2 + $0x50] sm:$0xf] %vm1314, %v8203
        %8315 = vst.msk [vmem:[#allocation2 + $0x58] sm:$0xf] %vm1314, %v8205
        %8316 = vst.msk [vmem:[#allocation2 + $0x60] sm:$0xf] %vm1314, %v8207
        %8317 = vst.msk [vmem:[#allocation2 + $0x68] sm:$0xf] %vm1314, %v8209
        %8318 = vst.msk [vmem:[#allocation2 + $0x70] sm:$0xf] %vm1314, %v8211
        %8319 = vst.msk [vmem:[#allocation2 + $0x78] sm:$0xf] %vm1314, %v8213
        %8320 = vst.msk [vmem:[#allocation2 + $0x80] sm:$0xf] %vm1314, %v8215
        %8321 = vst.msk [vmem:[#allocation2 + $0x88] sm:$0xf] %vm1314, %v8217
        %8322 = vst.msk [vmem:[#allocation2 + $0x90] sm:$0xf] %vm1314, %v8219
        %8323 = vst.msk [vmem:[#allocation2 + $0x98] sm:$0xf] %vm1314, %v8221
        %8324 = vst.msk [vmem:[#allocation2 + $0xa0] sm:$0xf] %vm1314, %v8223
        %8325 = vst.msk [vmem:[#allocation2 + $0xa8] sm:$0xf] %vm1314, %v8225
        %8326 = vst.msk [vmem:[#allocation2 + $0xb0] sm:$0xf] %vm1314, %v8227
        %8327 = vst.msk [vmem:[#allocation2 + $0xb8] sm:$0xf] %vm1314, %v8229
        %8328 = vst.msk [vmem:[#allocation2 + $0xc0] sm:$0xf] %vm1314, %v8231
        %8329 = vst.msk [vmem:[#allocation2 + $0xc8] sm:$0xf] %vm1314, %v8233
        %8330 = vst.msk [vmem:[#allocation2 + $0xd0] sm:$0xf] %vm1314, %v8235
        %8331 = vst.msk [vmem:[#allocation2 + $0xd8] sm:$0xf] %vm1314, %v8237
        %8332 = vst.msk [vmem:[#allocation2 + $0xe0] sm:$0xf] %vm1314, %v8239
        %8333 = vst.msk [vmem:[#allocation2 + $0xe8] sm:$0xf] %vm1314, %v8241
        %8334 = vst.msk [vmem:[#allocation2 + $0xf0] sm:$0xf] %vm1314, %v8243
        %8335 = vst.msk [vmem:[#allocation2 + $0xf8] sm:$0xf] %vm1314, %v8245
        %8336 = vst.msk [vmem:[#allocation2 + $0x100] sm:$0xf] %vm1314, %v8247
        %8337 = vst.msk [vmem:[#allocation2 + $0x108] sm:$0xf] %vm1314, %v8249
        %8338 = vst.msk [vmem:[#allocation2 + $0x110] sm:$0xf] %vm1314, %v8251
        %8339 = vst.msk [vmem:[#allocation2 + $0x118] sm:$0xf] %vm1314, %v8253
        %8340 = vst.msk [vmem:[#allocation2 + $0x120] sm:$0xf] %vm1314, %v8255
        %8341 = vst.msk [vmem:[#allocation2 + $0x128] sm:$0xf] %vm1314, %v8257
        %8342 = vst.msk [vmem:[#allocation2 + $0x130] sm:$0xf] %vm1314, %v8259
        %8343 = vst.msk [vmem:[#allocation2 + $0x138] sm:$0xf] %vm1314, %v8261
        %8344 = vst.msk [vmem:[#allocation2 + $0x140] sm:$0xf] %vm1314, %v8263
        %8345 = vst.msk [vmem:[#allocation2 + $0x148] sm:$0xf] %vm1314, %v8265
        %v8346 = vld [vmem:[#allocation2 + $0x10] sm:$0xf]
        %v8347 = vld [vmem:[#allocation2 + $0x18] sm:$0xf]
        %v8348 = vld [vmem:[#allocation2 + $0x20] sm:$0xf]
        %v8349 = vld [vmem:[#allocation2 + $0x28] sm:$0xf]
        %v8350 = vld [vmem:[#allocation2 + $0x30] sm:$0xf]
        %v8351 = vld [vmem:[#allocation2 + $0x38] sm:$0xf]
        %v8352 = vld [vmem:[#allocation2 + $0x40] sm:$0xf]
        %v8353 = vld [vmem:[#allocation2 + $0x48] sm:$0xf]
        %v8354 = vld [vmem:[#allocation2 + $0x50] sm:$0xf]
        %v8355 = vld [vmem:[#allocation2 + $0x58] sm:$0xf]
        %v8356 = vld [vmem:[#allocation2 + $0x60] sm:$0xf]
        %v8357 = vld [vmem:[#allocation2 + $0x68] sm:$0xf]
        %v8358 = vld [vmem:[#allocation2 + $0x70] sm:$0xf]
        %v8359 = vld [vmem:[#allocation2 + $0x78] sm:$0xf]
        %v8360 = vld [vmem:[#allocation2 + $0x80] sm:$0xf]
        %v8361 = vld [vmem:[#allocation2 + $0x88] sm:$0xf]
        %v8362 = vld [vmem:[#allocation2 + $0x90] sm:$0xf]
        %v8363 = vld [vmem:[#allocation2 + $0x98] sm:$0xf]
        %v8364 = vld [vmem:[#allocation2 + $0xa0] sm:$0xf]
        %v8365 = vld [vmem:[#allocation2 + $0xa8] sm:$0xf]
        %v8366 = vld [vmem:[#allocation2 + $0xb0] sm:$0xf]
        %v8367 = vld [vmem:[#allocation2 + $0xb8] sm:$0xf]
        %v8368 = vld [vmem:[#allocation2 + $0xc0] sm:$0xf]
        %v8369 = vld [vmem:[#allocation2 + $0xc8] sm:$0xf]
        %v8370 = vld [vmem:[#allocation2 + $0xd0] sm:$0xf]
        %v8371 = vld [vmem:[#allocation2 + $0xd8] sm:$0xf]
        %v8372 = vld [vmem:[#allocation2 + $0xe0] sm:$0xf]
        %v8373 = vld [vmem:[#allocation2 + $0xe8] sm:$0xf]
        %v8374 = vld [vmem:[#allocation2 + $0xf0] sm:$0xf]
        %v8375 = vld [vmem:[#allocation2 + $0xf8] sm:$0xf]
        %v8376 = vld [vmem:[#allocation2 + $0x100] sm:$0xf]
        %v8377 = vld [vmem:[#allocation2 + $0x108] sm:$0xf]
        %v8378 = vld [vmem:[#allocation2 + $0x110] sm:$0xf]
        %v8379 = vld [vmem:[#allocation2 + $0x118] sm:$0xf]
        %v8380 = vld [vmem:[#allocation2 + $0x120] sm:$0xf]
        %v8381 = vld [vmem:[#allocation2 + $0x128] sm:$0xf]
        %v8382 = vld [vmem:[#allocation2 + $0x130] sm:$0xf]
        %v8383 = vld [vmem:[#allocation2 + $0x138] sm:$0xf]
        %v8384 = vld [vmem:[#allocation2 + $0x140] sm:$0xf]
        %v8385 = vld [vmem:[#allocation2 + $0x148] sm:$0xf]
        %v8386 = vld [vmem:[#allocation2 + $0x150] sm:$0x1]
        %v8387 = vld [vmem:[%s7 + $0x10] sm:$0xf]
        %v8388 = vld [vmem:[%s7 + $0x18] sm:$0xf]
        %v8389 = vld [vmem:[%s7 + $0x20] sm:$0xf]
        %v8390 = vld [vmem:[%s7 + $0x28] sm:$0xf]
        %v8391 = vld [vmem:[%s7 + $0x30] sm:$0xf]
        %v8392 = vld [vmem:[%s7 + $0x38] sm:$0xf]
        %v8393 = vld [vmem:[%s7 + $0x40] sm:$0xf]
        %v8394 = vld [vmem:[%s7 + $0x48] sm:$0xf]
        %v8395 = vld [vmem:[%s7 + $0x50] sm:$0xf]
        %v8396 = vld [vmem:[%s7 + $0x58] sm:$0xf]
        %v8397 = vld [vmem:[%s7 + $0x60] sm:$0xf]
        %v8398 = vld [vmem:[%s7 + $0x68] sm:$0xf]
        %v8399 = vld [vmem:[%s7 + $0x70] sm:$0xf]
        %v8400 = vld [vmem:[%s7 + $0x78] sm:$0xf]
        %v8401 = vld [vmem:[%s7 + $0x80] sm:$0xf]
        %v8402 = vld [vmem:[%s7 + $0x88] sm:$0xf]
        %v8403 = vld [vmem:[%s7 + $0x90] sm:$0xf]
        %v8404 = vld [vmem:[%s7 + $0x98] sm:$0xf]
        %v8405 = vld [vmem:[%s7 + $0xa0] sm:$0xf]
        %v8406 = vld [vmem:[%s7 + $0xa8] sm:$0xf]
        %v8407 = vld [vmem:[%s7 + $0xb0] sm:$0xf]
        %v8408 = vld [vmem:[%s7 + $0xb8] sm:$0xf]
        %v8409 = vld [vmem:[%s7 + $0xc0] sm:$0xf]
        %v8410 = vld [vmem:[%s7 + $0xc8] sm:$0xf]
        %v8411 = vld [vmem:[%s7 + $0xd0] sm:$0xf]
        %v8412 = vld [vmem:[%s7 + $0xd8] sm:$0xf]
        %v8413 = vld [vmem:[%s7 + $0xe0] sm:$0xf]
        %v8414 = vld [vmem:[%s7 + $0xe8] sm:$0xf]
        %v8415 = vld [vmem:[%s7 + $0xf0] sm:$0xf]
        %v8416 = vld [vmem:[%s7 + $0xf8] sm:$0xf]
        %v8417 = vld [vmem:[%s7 + $0x100] sm:$0xf]
        %v8418 = vld [vmem:[%s7 + $0x108] sm:$0xf]
        %v8419 = vld [vmem:[%s7 + $0x110] sm:$0xf]
        %v8420 = vld [vmem:[%s7 + $0x118] sm:$0xf]
        %v8421 = vld [vmem:[%s7 + $0x120] sm:$0xf]
        %v8422 = vld [vmem:[%s7 + $0x128] sm:$0xf]
        %v8423 = vld [vmem:[%s7 + $0x130] sm:$0xf]
        %v8424 = vld [vmem:[%s7 + $0x138] sm:$0xf]
        %v8425 = vld [vmem:[%s7 + $0x140] sm:$0xf]
        %v8426 = vld [vmem:[%s7 + $0x148] sm:$0xf]
        %v8427 = vunpack.c.l.bf16 %v8346
        %v8428 = vunpack.c.l.bf16 %v8347
        %v8429 = vunpack.c.l.bf16 %v8348
        %v8430 = vunpack.c.l.bf16 %v8349
        %v8431 = vunpack.c.l.bf16 %v8350
        %v8432 = vunpack.c.l.bf16 %v8351
        %v8433 = vunpack.c.l.bf16 %v8352
        %v8434 = vunpack.c.l.bf16 %v8353
        %v8435 = vunpack.c.l.bf16 %v8354
        %v8436 = vunpack.c.l.bf16 %v8355
        %v8437 = vunpack.c.l.bf16 %v8356
        %v8438 = vunpack.c.l.bf16 %v8357
        %v8439 = vunpack.c.l.bf16 %v8358
        %v8440 = vunpack.c.l.bf16 %v8359
        %v8441 = vunpack.c.l.bf16 %v8360
        %v8442 = vunpack.c.l.bf16 %v8361
        %v8443 = vunpack.c.l.bf16 %v8362
        %v8444 = vunpack.c.l.bf16 %v8363
        %v8445 = vunpack.c.l.bf16 %v8364
        %v8446 = vunpack.c.l.bf16 %v8365
        %v8447 = vunpack.c.l.bf16 %v8366
        %v8448 = vunpack.c.l.bf16 %v8367
        %v8449 = vunpack.c.l.bf16 %v8368
        %v8450 = vunpack.c.l.bf16 %v8369
        %v8451 = vunpack.c.l.bf16 %v8370
        %v8452 = vunpack.c.l.bf16 %v8371
        %v8453 = vunpack.c.l.bf16 %v8372
        %v8454 = vunpack.c.l.bf16 %v8373
        %v8455 = vunpack.c.l.bf16 %v8374
        %v8456 = vunpack.c.l.bf16 %v8375
        %v8457 = vunpack.c.l.bf16 %v8376
        %v8458 = vunpack.c.l.bf16 %v8377
        %v8459 = vunpack.c.l.bf16 %v8378
        %v8460 = vunpack.c.l.bf16 %v8379
        %v8461 = vunpack.c.l.bf16 %v8380
        %v8462 = vunpack.c.l.bf16 %v8381
        %v8463 = vunpack.c.l.bf16 %v8382
        %v8464 = vunpack.c.l.bf16 %v8383
        %v8465 = vunpack.c.l.bf16 %v8384
        %v8466 = vunpack.c.l.bf16 %v8385
        %v8467 = vunpack.c.l.bf16 %v8386
        %v8468 = vunpack.c.l.bf16 %v8387
        %v8469 = vunpack.c.l.bf16 %v8388
        %v8470 = vunpack.c.l.bf16 %v8389
        %v8471 = vunpack.c.l.bf16 %v8390
        %v8472 = vunpack.c.l.bf16 %v8391
        %v8473 = vunpack.c.l.bf16 %v8392
        %v8474 = vunpack.c.l.bf16 %v8393
        %v8475 = vunpack.c.l.bf16 %v8394
        %v8476 = vunpack.c.l.bf16 %v8395
        %v8477 = vunpack.c.l.bf16 %v8396
        %v8478 = vunpack.c.l.bf16 %v8397
        %v8479 = vunpack.c.l.bf16 %v8398
        %v8480 = vunpack.c.l.bf16 %v8399
        %v8481 = vunpack.c.l.bf16 %v8400
        %v8482 = vunpack.c.l.bf16 %v8401
        %v8483 = vunpack.c.l.bf16 %v8402
        %v8484 = vunpack.c.l.bf16 %v8403
        %v8485 = vunpack.c.l.bf16 %v8404
        %v8486 = vunpack.c.l.bf16 %v8405
        %v8487 = vunpack.c.l.bf16 %v8406
        %v8488 = vunpack.c.l.bf16 %v8407
        %v8489 = vunpack.c.l.bf16 %v8408
        %v8490 = vunpack.c.l.bf16 %v8409
        %v8491 = vunpack.c.l.bf16 %v8410
        %v8492 = vunpack.c.l.bf16 %v8411
        %v8493 = vunpack.c.l.bf16 %v8412
        %v8494 = vunpack.c.l.bf16 %v8413
        %v8495 = vunpack.c.l.bf16 %v8414
        %v8496 = vunpack.c.l.bf16 %v8415
        %v8497 = vunpack.c.l.bf16 %v8416
        %v8498 = vunpack.c.l.bf16 %v8417
        %v8499 = vunpack.c.l.bf16 %v8418
        %v8500 = vunpack.c.l.bf16 %v8419
        %v8501 = vunpack.c.l.bf16 %v8420
        %v8502 = vunpack.c.l.bf16 %v8421
        %v8503 = vunpack.c.l.bf16 %v8422
        %v8504 = vunpack.c.l.bf16 %v8423
        %v8505 = vunpack.c.l.bf16 %v8424
        %v8506 = vunpack.c.l.bf16 %v8425
        %v8507 = vunpack.c.l.bf16 %v8426
        %v8548 = vrot.slane %v8468, 7
        %v8549 = vrot.slane %v8469, 7
        %v8550 = vsel %vm2572, %v8548, %v8549
        %v8551 = vrot.slane %v8470, 7
        %v8552 = vsel %vm2572, %v8549, %v8551
        %v8553 = vrot.slane %v8471, 7
        %v8554 = vsel %vm2572, %v8551, %v8553
        %v8555 = vrot.slane %v8472, 7
        %v8556 = vsel %vm2572, %v8553, %v8555
        %v8557 = vrot.slane %v8473, 7
        %v8558 = vsel %vm2572, %v8555, %v8557
        %v8559 = vrot.slane %v8474, 7
        %v8560 = vsel %vm2572, %v8557, %v8559
        %v8561 = vrot.slane %v8475, 7
        %v8562 = vsel %vm2572, %v8559, %v8561
        %v8563 = vrot.slane %v8476, 7
        %v8564 = vsel %vm2572, %v8561, %v8563
        %v8565 = vrot.slane %v8477, 7
        %v8566 = vsel %vm2572, %v8563, %v8565
        %v8567 = vrot.slane %v8478, 7
        %v8568 = vsel %vm2572, %v8565, %v8567
        %v8569 = vrot.slane %v8479, 7
        %v8570 = vsel %vm2572, %v8567, %v8569
        %v8571 = vrot.slane %v8480, 7
        %v8572 = vsel %vm2572, %v8569, %v8571
        %v8573 = vrot.slane %v8481, 7
        %v8574 = vsel %vm2572, %v8571, %v8573
        %v8575 = vrot.slane %v8482, 7
        %v8576 = vsel %vm2572, %v8573, %v8575
        %v8577 = vrot.slane %v8483, 7
        %v8578 = vsel %vm2572, %v8575, %v8577
        %v8579 = vrot.slane %v8484, 7
        %v8580 = vsel %vm2572, %v8577, %v8579
        %v8581 = vrot.slane %v8485, 7
        %v8582 = vsel %vm2572, %v8579, %v8581
        %v8583 = vrot.slane %v8486, 7
        %v8584 = vsel %vm2572, %v8581, %v8583
        %v8585 = vrot.slane %v8487, 7
        %v8586 = vsel %vm2572, %v8583, %v8585
        %v8587 = vrot.slane %v8488, 7
        %v8588 = vsel %vm2572, %v8585, %v8587
        %v8589 = vrot.slane %v8489, 7
        %v8590 = vsel %vm2572, %v8587, %v8589
        %v8591 = vrot.slane %v8490, 7
        %v8592 = vsel %vm2572, %v8589, %v8591
        %v8593 = vrot.slane %v8491, 7
        %v8594 = vsel %vm2572, %v8591, %v8593
        %v8595 = vrot.slane %v8492, 7
        %v8596 = vsel %vm2572, %v8593, %v8595
        %v8597 = vrot.slane %v8493, 7
        %v8598 = vsel %vm2572, %v8595, %v8597
        %v8599 = vrot.slane %v8494, 7
        %v8600 = vsel %vm2572, %v8597, %v8599
        %v8601 = vrot.slane %v8495, 7
        %v8602 = vsel %vm2572, %v8599, %v8601
        %v8603 = vrot.slane %v8496, 7
        %v8604 = vsel %vm2572, %v8601, %v8603
        %v8605 = vrot.slane %v8497, 7
        %v8606 = vsel %vm2572, %v8603, %v8605
        %v8607 = vrot.slane %v8498, 7
        %v8608 = vsel %vm2572, %v8605, %v8607
        %v8609 = vrot.slane %v8499, 7
        %v8610 = vsel %vm2572, %v8607, %v8609
        %v8611 = vrot.slane %v8500, 7
        %v8612 = vsel %vm2572, %v8609, %v8611
        %v8613 = vrot.slane %v8501, 7
        %v8614 = vsel %vm2572, %v8611, %v8613
        %v8615 = vrot.slane %v8502, 7
        %v8616 = vsel %vm2572, %v8613, %v8615
        %v8617 = vrot.slane %v8503, 7
        %v8618 = vsel %vm2572, %v8615, %v8617
        %v8619 = vrot.slane %v8504, 7
        %v8620 = vsel %vm2572, %v8617, %v8619
        %v8621 = vrot.slane %v8505, 7
        %v8622 = vsel %vm2572, %v8619, %v8621
        %v8623 = vrot.slane %v8506, 7
        %v8624 = vsel %vm2572, %v8621, %v8623
        %v8625 = vrot.slane %v8507, 7
        %v8626 = vsel %vm2572, %v8623, %v8625
        %8627 = vrot.lane.b32.xlu0 %v8548, 64
        %v8628 = vpop.permute.xlu0 %8627
        %8629 = vrot.lane.b32.xlu0 %v8550, 64
        %v8630 = vpop.permute.xlu0 %8629
        %8631 = vrot.lane.b32.xlu0 %v8552, 64
        %v8632 = vpop.permute.xlu0 %8631
        %8633 = vrot.lane.b32.xlu0 %v8554, 64
        %v8634 = vpop.permute.xlu0 %8633
        %8635 = vrot.lane.b32.xlu0 %v8556, 64
        %v8636 = vpop.permute.xlu0 %8635
        %8637 = vrot.lane.b32.xlu0 %v8558, 64
        %v8638 = vpop.permute.xlu0 %8637
        %8639 = vrot.lane.b32.xlu0 %v8560, 64
        %v8640 = vpop.permute.xlu0 %8639
        %8641 = vrot.lane.b32.xlu0 %v8562, 64
        %v8642 = vpop.permute.xlu0 %8641
        %8643 = vrot.lane.b32.xlu0 %v8564, 64
        %v8644 = vpop.permute.xlu0 %8643
        %8645 = vrot.lane.b32.xlu0 %v8566, 64
        %v8646 = vpop.permute.xlu0 %8645
        %8647 = vrot.lane.b32.xlu0 %v8568, 64
        %v8648 = vpop.permute.xlu0 %8647
        %8649 = vrot.lane.b32.xlu0 %v8570, 64
        %v8650 = vpop.permute.xlu0 %8649
        %8651 = vrot.lane.b32.xlu0 %v8572, 64
        %v8652 = vpop.permute.xlu0 %8651
        %8653 = vrot.lane.b32.xlu0 %v8574, 64
        %v8654 = vpop.permute.xlu0 %8653
        %8655 = vrot.lane.b32.xlu0 %v8576, 64
        %v8656 = vpop.permute.xlu0 %8655
        %8657 = vrot.lane.b32.xlu0 %v8578, 64
        %v8658 = vpop.permute.xlu0 %8657
        %8659 = vrot.lane.b32.xlu0 %v8580, 64
        %v8660 = vpop.permute.xlu0 %8659
        %8661 = vrot.lane.b32.xlu0 %v8582, 64
        %v8662 = vpop.permute.xlu0 %8661
        %8663 = vrot.lane.b32.xlu0 %v8584, 64
        %v8664 = vpop.permute.xlu0 %8663
        %8665 = vrot.lane.b32.xlu0 %v8586, 64
        %v8666 = vpop.permute.xlu0 %8665
        %8667 = vrot.lane.b32.xlu0 %v8588, 64
        %v8668 = vpop.permute.xlu0 %8667
        %8669 = vrot.lane.b32.xlu0 %v8590, 64
        %v8670 = vpop.permute.xlu0 %8669
        %8671 = vrot.lane.b32.xlu0 %v8592, 64
        %v8672 = vpop.permute.xlu0 %8671
        %8673 = vrot.lane.b32.xlu0 %v8594, 64
        %v8674 = vpop.permute.xlu0 %8673
        %8675 = vrot.lane.b32.xlu0 %v8596, 64
        %v8676 = vpop.permute.xlu0 %8675
        %8677 = vrot.lane.b32.xlu0 %v8598, 64
        %v8678 = vpop.permute.xlu0 %8677
        %8679 = vrot.lane.b32.xlu0 %v8600, 64
        %v8680 = vpop.permute.xlu0 %8679
        %8681 = vrot.lane.b32.xlu0 %v8602, 64
        %v8682 = vpop.permute.xlu0 %8681
        %8683 = vrot.lane.b32.xlu0 %v8604, 64
        %v8684 = vpop.permute.xlu0 %8683
        %8685 = vrot.lane.b32.xlu0 %v8606, 64
        %v8686 = vpop.permute.xlu0 %8685
        %8687 = vrot.lane.b32.xlu0 %v8608, 64
        %v8688 = vpop.permute.xlu0 %8687
        %8689 = vrot.lane.b32.xlu0 %v8610, 64
        %v8690 = vpop.permute.xlu0 %8689
        %8691 = vrot.lane.b32.xlu0 %v8612, 64
        %v8692 = vpop.permute.xlu0 %8691
        %8693 = vrot.lane.b32.xlu0 %v8614, 64
        %v8694 = vpop.permute.xlu0 %8693
        %8695 = vrot.lane.b32.xlu0 %v8616, 64
        %v8696 = vpop.permute.xlu0 %8695
        %8697 = vrot.lane.b32.xlu0 %v8618, 64
        %v8698 = vpop.permute.xlu0 %8697
        %8699 = vrot.lane.b32.xlu0 %v8620, 64
        %v8700 = vpop.permute.xlu0 %8699
        %8701 = vrot.lane.b32.xlu0 %v8622, 64
        %v8702 = vpop.permute.xlu0 %8701
        %8703 = vrot.lane.b32.xlu0 %v8624, 64
        %v8704 = vpop.permute.xlu0 %8703
        %8705 = vrot.lane.b32.xlu0 %v8626, 64
        %v8706 = vpop.permute.xlu0 %8705
        %8707 = vrot.lane.b32.xlu0 %v8625, 64
        %v8708 = vpop.permute.xlu0 %8707
        %v8750 = vmul.f32 %v8427, %v8628
        %v8751 = vmul.f32 %v8428, %v8630
        %v8752 = vmul.f32 %v8429, %v8632
        %v8753 = vmul.f32 %v8430, %v8634
        %v8754 = vmul.f32 %v8431, %v8636
        %v8755 = vmul.f32 %v8432, %v8638
        %v8756 = vmul.f32 %v8433, %v8640
        %v8757 = vmul.f32 %v8434, %v8642
        %v8758 = vmul.f32 %v8435, %v8644
        %v8759 = vmul.f32 %v8436, %v8646
        %v8760 = vmul.f32 %v8437, %v8648
        %v8761 = vmul.f32 %v8438, %v8650
        %v8762 = vmul.f32 %v8439, %v8652
        %v8763 = vmul.f32 %v8440, %v8654
        %v8764 = vmul.f32 %v8441, %v8656
        %v8765 = vmul.f32 %v8442, %v8658
        %v8766 = vmul.f32 %v8443, %v8660
        %v8767 = vmul.f32 %v8444, %v8662
        %v8768 = vmul.f32 %v8445, %v8664
        %v8769 = vmul.f32 %v8446, %v8666
        %v8770 = vmul.f32 %v8447, %v8668
        %v8771 = vmul.f32 %v8448, %v8670
        %v8772 = vmul.f32 %v8449, %v8672
        %v8773 = vmul.f32 %v8450, %v8674
        %v8774 = vmul.f32 %v8451, %v8676
        %v8775 = vmul.f32 %v8452, %v8678
        %v8776 = vmul.f32 %v8453, %v8680
        %v8777 = vmul.f32 %v8454, %v8682
        %v8778 = vmul.f32 %v8455, %v8684
        %v8779 = vmul.f32 %v8456, %v8686
        %v8780 = vmul.f32 %v8457, %v8688
        %v8781 = vmul.f32 %v8458, %v8690
        %v8782 = vmul.f32 %v8459, %v8692
        %v8783 = vmul.f32 %v8460, %v8694
        %v8784 = vmul.f32 %v8461, %v8696
        %v8785 = vmul.f32 %v8462, %v8698
        %v8786 = vmul.f32 %v8463, %v8700
        %v8787 = vmul.f32 %v8464, %v8702
        %v8788 = vmul.f32 %v8465, %v8704
        %v8789 = vmul.f32 %v8466, %v8706
        %v8790 = vmul.f32 %v8467, %v8708
        %v8791 = vpack.c.bf16 %v8750, %v8750
        %v8792 = vpack.c.bf16 %v8751, %v8751
        %v8793 = vpack.c.bf16 %v8752, %v8752
        %v8794 = vpack.c.bf16 %v8753, %v8753
        %v8795 = vpack.c.bf16 %v8754, %v8754
        %v8796 = vpack.c.bf16 %v8755, %v8755
        %v8797 = vpack.c.bf16 %v8756, %v8756
        %v8798 = vpack.c.bf16 %v8757, %v8757
        %v8799 = vpack.c.bf16 %v8758, %v8758
        %v8800 = vpack.c.bf16 %v8759, %v8759
        %v8801 = vpack.c.bf16 %v8760, %v8760
        %v8802 = vpack.c.bf16 %v8761, %v8761
        %v8803 = vpack.c.bf16 %v8762, %v8762
        %v8804 = vpack.c.bf16 %v8763, %v8763
        %v8805 = vpack.c.bf16 %v8764, %v8764
        %v8806 = vpack.c.bf16 %v8765, %v8765
        %v8807 = vpack.c.bf16 %v8766, %v8766
        %v8808 = vpack.c.bf16 %v8767, %v8767
        %v8809 = vpack.c.bf16 %v8768, %v8768
        %v8810 = vpack.c.bf16 %v8769, %v8769
        %v8811 = vpack.c.bf16 %v8770, %v8770
        %v8812 = vpack.c.bf16 %v8771, %v8771
        %v8813 = vpack.c.bf16 %v8772, %v8772
        %v8814 = vpack.c.bf16 %v8773, %v8773
        %v8815 = vpack.c.bf16 %v8774, %v8774
        %v8816 = vpack.c.bf16 %v8775, %v8775
        %v8817 = vpack.c.bf16 %v8776, %v8776
        %v8818 = vpack.c.bf16 %v8777, %v8777
        %v8819 = vpack.c.bf16 %v8778, %v8778
        %v8820 = vpack.c.bf16 %v8779, %v8779
        %v8821 = vpack.c.bf16 %v8780, %v8780
        %v8822 = vpack.c.bf16 %v8781, %v8781
        %v8823 = vpack.c.bf16 %v8782, %v8782
        %v8824 = vpack.c.bf16 %v8783, %v8783
        %v8825 = vpack.c.bf16 %v8784, %v8784
        %v8826 = vpack.c.bf16 %v8785, %v8785
        %v8827 = vpack.c.bf16 %v8786, %v8786
        %v8828 = vpack.c.bf16 %v8787, %v8787
        %v8829 = vpack.c.bf16 %v8788, %v8788
        %v8830 = vpack.c.bf16 %v8789, %v8789
        %v8831 = vpack.c.bf16 %v8790, %v8790
        %v8833 = vshrl.u32 %v8791, 16
        %v8835 = vrot.slane %v8833, 4
        %v8836 = vshll.u32 %v8791, 16
        %v8838 = vrot.slane %v8836, 5
        %v8839 = vor.u32 %v8835, %v8838
        %v8840 = vrot.slane %v8839, 4
        %v8842 = vshll.u32 %v8792, 16
        %v8844 = vrot.slane %v8842, 5
        %v8845 = vsel %vm2859, %v8840, %v8844
        %v8846 = vshrl.u32 %v8792, 16
        %v8848 = vrot.slane %v8846, 4
        %v8849 = vor.u32 %v8848, %v8844
        %v8850 = vrot.slane %v8849, 4
        %v8852 = vshll.u32 %v8793, 16
        %v8854 = vrot.slane %v8852, 5
        %v8855 = vsel %vm2859, %v8850, %v8854
        %v8856 = vshrl.u32 %v8793, 16
        %v8858 = vrot.slane %v8856, 4
        %v8859 = vor.u32 %v8858, %v8854
        %v8860 = vrot.slane %v8859, 4
        %v8862 = vshll.u32 %v8794, 16
        %v8864 = vrot.slane %v8862, 5
        %v8865 = vsel %vm2859, %v8860, %v8864
        %v8866 = vshrl.u32 %v8794, 16
        %v8868 = vrot.slane %v8866, 4
        %v8869 = vor.u32 %v8868, %v8864
        %v8870 = vrot.slane %v8869, 4
        %v8872 = vshll.u32 %v8795, 16
        %v8874 = vrot.slane %v8872, 5
        %v8875 = vsel %vm2859, %v8870, %v8874
        %v8876 = vshrl.u32 %v8795, 16
        %v8878 = vrot.slane %v8876, 4
        %v8879 = vor.u32 %v8878, %v8874
        %v8880 = vrot.slane %v8879, 4
        %v8882 = vshll.u32 %v8796, 16
        %v8884 = vrot.slane %v8882, 5
        %v8885 = vsel %vm2859, %v8880, %v8884
        %v8886 = vshrl.u32 %v8796, 16
        %v8888 = vrot.slane %v8886, 4
        %v8889 = vor.u32 %v8888, %v8884
        %v8890 = vrot.slane %v8889, 4
        %v8892 = vshll.u32 %v8797, 16
        %v8894 = vrot.slane %v8892, 5
        %v8895 = vsel %vm2859, %v8890, %v8894
        %v8896 = vshrl.u32 %v8797, 16
        %v8898 = vrot.slane %v8896, 4
        %v8899 = vor.u32 %v8898, %v8894
        %v8900 = vrot.slane %v8899, 4
        %v8902 = vshll.u32 %v8798, 16
        %v8904 = vrot.slane %v8902, 5
        %v8905 = vsel %vm2859, %v8900, %v8904
        %v8906 = vshrl.u32 %v8798, 16
        %v8908 = vrot.slane %v8906, 4
        %v8909 = vor.u32 %v8908, %v8904
        %v8910 = vrot.slane %v8909, 4
        %v8912 = vshll.u32 %v8799, 16
        %v8914 = vrot.slane %v8912, 5
        %v8915 = vsel %vm2859, %v8910, %v8914
        %v8916 = vshrl.u32 %v8799, 16
        %v8918 = vrot.slane %v8916, 4
        %v8919 = vor.u32 %v8918, %v8914
        %v8920 = vrot.slane %v8919, 4
        %v8922 = vshll.u32 %v8800, 16
        %v8924 = vrot.slane %v8922, 5
        %v8925 = vsel %vm2859, %v8920, %v8924
        %v8926 = vshrl.u32 %v8800, 16
        %v8928 = vrot.slane %v8926, 4
        %v8929 = vor.u32 %v8928, %v8924
        %v8930 = vrot.slane %v8929, 4
        %v8932 = vshll.u32 %v8801, 16
        %v8934 = vrot.slane %v8932, 5
        %v8935 = vsel %vm2859, %v8930, %v8934
        %v8936 = vshrl.u32 %v8801, 16
        %v8938 = vrot.slane %v8936, 4
        %v8939 = vor.u32 %v8938, %v8934
        %v8940 = vrot.slane %v8939, 4
        %v8942 = vshll.u32 %v8802, 16
        %v8944 = vrot.slane %v8942, 5
        %v8945 = vsel %vm2859, %v8940, %v8944
        %v8946 = vshrl.u32 %v8802, 16
        %v8948 = vrot.slane %v8946, 4
        %v8949 = vor.u32 %v8948, %v8944
        %v8950 = vrot.slane %v8949, 4
        %v8952 = vshll.u32 %v8803, 16
        %v8954 = vrot.slane %v8952, 5
        %v8955 = vsel %vm2859, %v8950, %v8954
        %v8956 = vshrl.u32 %v8803, 16
        %v8958 = vrot.slane %v8956, 4
        %v8959 = vor.u32 %v8958, %v8954
        %v8960 = vrot.slane %v8959, 4
        %v8962 = vshll.u32 %v8804, 16
        %v8964 = vrot.slane %v8962, 5
        %v8965 = vsel %vm2859, %v8960, %v8964
        %v8966 = vshrl.u32 %v8804, 16
        %v8968 = vrot.slane %v8966, 4
        %v8969 = vor.u32 %v8968, %v8964
        %v8970 = vrot.slane %v8969, 4
        %v8972 = vshll.u32 %v8805, 16
        %v8974 = vrot.slane %v8972, 5
        %v8975 = vsel %vm2859, %v8970, %v8974
        %v8976 = vshrl.u32 %v8805, 16
        %v8978 = vrot.slane %v8976, 4
        %v8979 = vor.u32 %v8978, %v8974
        %v8980 = vrot.slane %v8979, 4
        %v8982 = vshll.u32 %v8806, 16
        %v8984 = vrot.slane %v8982, 5
        %v8985 = vsel %vm2859, %v8980, %v8984
        %v8986 = vshrl.u32 %v8806, 16
        %v8988 = vrot.slane %v8986, 4
        %v8989 = vor.u32 %v8988, %v8984
        %v8990 = vrot.slane %v8989, 4
        %v8992 = vshll.u32 %v8807, 16
        %v8994 = vrot.slane %v8992, 5
        %v8995 = vsel %vm2859, %v8990, %v8994
        %v8996 = vshrl.u32 %v8807, 16
        %v8998 = vrot.slane %v8996, 4
        %v8999 = vor.u32 %v8998, %v8994
        %v9000 = vrot.slane %v8999, 4
        %v9002 = vshll.u32 %v8808, 16
        %v9004 = vrot.slane %v9002, 5
        %v9005 = vsel %vm2859, %v9000, %v9004
        %v9006 = vshrl.u32 %v8808, 16
        %v9008 = vrot.slane %v9006, 4
        %v9009 = vor.u32 %v9008, %v9004
        %v9010 = vrot.slane %v9009, 4
        %v9012 = vshll.u32 %v8809, 16
        %v9014 = vrot.slane %v9012, 5
        %v9015 = vsel %vm2859, %v9010, %v9014
        %v9016 = vshrl.u32 %v8809, 16
        %v9018 = vrot.slane %v9016, 4
        %v9019 = vor.u32 %v9018, %v9014
        %v9020 = vrot.slane %v9019, 4
        %v9022 = vshll.u32 %v8810, 16
        %v9024 = vrot.slane %v9022, 5
        %v9025 = vsel %vm2859, %v9020, %v9024
        %v9026 = vshrl.u32 %v8810, 16
        %v9028 = vrot.slane %v9026, 4
        %v9029 = vor.u32 %v9028, %v9024
        %v9030 = vrot.slane %v9029, 4
        %v9032 = vshll.u32 %v8811, 16
        %v9034 = vrot.slane %v9032, 5
        %v9035 = vsel %vm2859, %v9030, %v9034
        %v9036 = vshrl.u32 %v8811, 16
        %v9038 = vrot.slane %v9036, 4
        %v9039 = vor.u32 %v9038, %v9034
        %v9040 = vrot.slane %v9039, 4
        %v9042 = vshll.u32 %v8812, 16
        %v9044 = vrot.slane %v9042, 5
        %v9045 = vsel %vm2859, %v9040, %v9044
        %v9046 = vshrl.u32 %v8812, 16
        %v9048 = vrot.slane %v9046, 4
        %v9049 = vor.u32 %v9048, %v9044
        %v9050 = vrot.slane %v9049, 4
        %v9052 = vshll.u32 %v8813, 16
        %v9054 = vrot.slane %v9052, 5
        %v9055 = vsel %vm2859, %v9050, %v9054
        %v9056 = vshrl.u32 %v8813, 16
        %v9058 = vrot.slane %v9056, 4
        %v9059 = vor.u32 %v9058, %v9054
        %v9060 = vrot.slane %v9059, 4
        %v9062 = vshll.u32 %v8814, 16
        %v9064 = vrot.slane %v9062, 5
        %v9065 = vsel %vm2859, %v9060, %v9064
        %v9066 = vshrl.u32 %v8814, 16
        %v9068 = vrot.slane %v9066, 4
        %v9069 = vor.u32 %v9068, %v9064
        %v9070 = vrot.slane %v9069, 4
        %v9072 = vshll.u32 %v8815, 16
        %v9074 = vrot.slane %v9072, 5
        %v9075 = vsel %vm2859, %v9070, %v9074
        %v9076 = vshrl.u32 %v8815, 16
        %v9078 = vrot.slane %v9076, 4
        %v9079 = vor.u32 %v9078, %v9074
        %v9080 = vrot.slane %v9079, 4
        %v9082 = vshll.u32 %v8816, 16
        %v9084 = vrot.slane %v9082, 5
        %v9085 = vsel %vm2859, %v9080, %v9084
        %v9086 = vshrl.u32 %v8816, 16
        %v9088 = vrot.slane %v9086, 4
        %v9089 = vor.u32 %v9088, %v9084
        %v9090 = vrot.slane %v9089, 4
        %v9092 = vshll.u32 %v8817, 16
        %v9094 = vrot.slane %v9092, 5
        %v9095 = vsel %vm2859, %v9090, %v9094
        %v9096 = vshrl.u32 %v8817, 16
        %v9098 = vrot.slane %v9096, 4
        %v9099 = vor.u32 %v9098, %v9094
        %v9100 = vrot.slane %v9099, 4
        %v9102 = vshll.u32 %v8818, 16
        %v9104 = vrot.slane %v9102, 5
        %v9105 = vsel %vm2859, %v9100, %v9104
        %v9106 = vshrl.u32 %v8818, 16
        %v9108 = vrot.slane %v9106, 4
        %v9109 = vor.u32 %v9108, %v9104
        %v9110 = vrot.slane %v9109, 4
        %v9112 = vshll.u32 %v8819, 16
        %v9114 = vrot.slane %v9112, 5
        %v9115 = vsel %vm2859, %v9110, %v9114
        %v9116 = vshrl.u32 %v8819, 16
        %v9118 = vrot.slane %v9116, 4
        %v9119 = vor.u32 %v9118, %v9114
        %v9120 = vrot.slane %v9119, 4
        %v9122 = vshll.u32 %v8820, 16
        %v9124 = vrot.slane %v9122, 5
        %v9125 = vsel %vm2859, %v9120, %v9124
        %v9126 = vshrl.u32 %v8820, 16
        %v9128 = vrot.slane %v9126, 4
        %v9129 = vor.u32 %v9128, %v9124
        %v9130 = vrot.slane %v9129, 4
        %v9132 = vshll.u32 %v8821, 16
        %v9134 = vrot.slane %v9132, 5
        %v9135 = vsel %vm2859, %v9130, %v9134
        %v9136 = vshrl.u32 %v8821, 16
        %v9138 = vrot.slane %v9136, 4
        %v9139 = vor.u32 %v9138, %v9134
        %v9140 = vrot.slane %v9139, 4
        %v9142 = vshll.u32 %v8822, 16
        %v9144 = vrot.slane %v9142, 5
        %v9145 = vsel %vm2859, %v9140, %v9144
        %v9146 = vshrl.u32 %v8822, 16
        %v9148 = vrot.slane %v9146, 4
        %v9149 = vor.u32 %v9148, %v9144
        %v9150 = vrot.slane %v9149, 4
        %v9152 = vshll.u32 %v8823, 16
        %v9154 = vrot.slane %v9152, 5
        %v9155 = vsel %vm2859, %v9150, %v9154
        %v9156 = vshrl.u32 %v8823, 16
        %v9158 = vrot.slane %v9156, 4
        %v9159 = vor.u32 %v9158, %v9154
        %v9160 = vrot.slane %v9159, 4
        %v9162 = vshll.u32 %v8824, 16
        %v9164 = vrot.slane %v9162, 5
        %v9165 = vsel %vm2859, %v9160, %v9164
        %v9166 = vshrl.u32 %v8824, 16
        %v9168 = vrot.slane %v9166, 4
        %v9169 = vor.u32 %v9168, %v9164
        %v9170 = vrot.slane %v9169, 4
        %v9172 = vshll.u32 %v8825, 16
        %v9174 = vrot.slane %v9172, 5
        %v9175 = vsel %vm2859, %v9170, %v9174
        %v9176 = vshrl.u32 %v8825, 16
        %v9178 = vrot.slane %v9176, 4
        %v9179 = vor.u32 %v9178, %v9174
        %v9180 = vrot.slane %v9179, 4
        %v9182 = vshll.u32 %v8826, 16
        %v9184 = vrot.slane %v9182, 5
        %v9185 = vsel %vm2859, %v9180, %v9184
        %v9186 = vshrl.u32 %v8826, 16
        %v9188 = vrot.slane %v9186, 4
        %v9189 = vor.u32 %v9188, %v9184
        %v9190 = vrot.slane %v9189, 4
        %v9192 = vshll.u32 %v8827, 16
        %v9194 = vrot.slane %v9192, 5
        %v9195 = vsel %vm2859, %v9190, %v9194
        %v9196 = vshrl.u32 %v8827, 16
        %v9198 = vrot.slane %v9196, 4
        %v9199 = vor.u32 %v9198, %v9194
        %v9200 = vrot.slane %v9199, 4
        %v9202 = vshll.u32 %v8828, 16
        %v9204 = vrot.slane %v9202, 5
        %v9205 = vsel %vm2859, %v9200, %v9204
        %v9206 = vshrl.u32 %v8828, 16
        %v9208 = vrot.slane %v9206, 4
        %v9209 = vor.u32 %v9208, %v9204
        %v9210 = vrot.slane %v9209, 4
        %v9212 = vshll.u32 %v8829, 16
        %v9214 = vrot.slane %v9212, 5
        %v9215 = vsel %vm2859, %v9210, %v9214
        %v9216 = vshrl.u32 %v8829, 16
        %v9218 = vrot.slane %v9216, 4
        %v9219 = vor.u32 %v9218, %v9214
        %v9220 = vrot.slane %v9219, 4
        %v9222 = vshll.u32 %v8830, 16
        %v9224 = vrot.slane %v9222, 5
        %v9225 = vsel %vm2859, %v9220, %v9224
        %v9226 = vshrl.u32 %v8830, 16
        %v9228 = vrot.slane %v9226, 4
        %v9229 = vor.u32 %v9228, %v9224
        %v9230 = vrot.slane %v9229, 4
        %v9232 = vshll.u32 %v8831, 16
        %v9234 = vrot.slane %v9232, 5
        %v9235 = vsel %vm2859, %v9230, %v9234
        %9236 = vrot.lane.b32.xlu0 %v8845, 32
        %v9237 = vpop.permute.xlu0 %9236
        %9238 = vrot.lane.b32.xlu0 %v8855, 32
        %v9239 = vpop.permute.xlu0 %9238
        %9240 = vrot.lane.b32.xlu0 %v8865, 32
        %v9241 = vpop.permute.xlu0 %9240
        %9242 = vrot.lane.b32.xlu0 %v8875, 32
        %v9243 = vpop.permute.xlu0 %9242
        %9244 = vrot.lane.b32.xlu0 %v8885, 32
        %v9245 = vpop.permute.xlu0 %9244
        %9246 = vrot.lane.b32.xlu0 %v8895, 32
        %v9247 = vpop.permute.xlu0 %9246
        %9248 = vrot.lane.b32.xlu0 %v8905, 32
        %v9249 = vpop.permute.xlu0 %9248
        %9250 = vrot.lane.b32.xlu0 %v8915, 32
        %v9251 = vpop.permute.xlu0 %9250
        %9252 = vrot.lane.b32.xlu0 %v8925, 32
        %v9253 = vpop.permute.xlu0 %9252
        %9254 = vrot.lane.b32.xlu0 %v8935, 32
        %v9255 = vpop.permute.xlu0 %9254
        %9256 = vrot.lane.b32.xlu0 %v8945, 32
        %v9257 = vpop.permute.xlu0 %9256
        %9258 = vrot.lane.b32.xlu0 %v8955, 32
        %v9259 = vpop.permute.xlu0 %9258
        %9260 = vrot.lane.b32.xlu0 %v8965, 32
        %v9261 = vpop.permute.xlu0 %9260
        %9262 = vrot.lane.b32.xlu0 %v8975, 32
        %v9263 = vpop.permute.xlu0 %9262
        %9264 = vrot.lane.b32.xlu0 %v8985, 32
        %v9265 = vpop.permute.xlu0 %9264
        %9266 = vrot.lane.b32.xlu0 %v8995, 32
        %v9267 = vpop.permute.xlu0 %9266
        %9268 = vrot.lane.b32.xlu0 %v9005, 32
        %v9269 = vpop.permute.xlu0 %9268
        %9270 = vrot.lane.b32.xlu0 %v9015, 32
        %v9271 = vpop.permute.xlu0 %9270
        %9272 = vrot.lane.b32.xlu0 %v9025, 32
        %v9273 = vpop.permute.xlu0 %9272
        %9274 = vrot.lane.b32.xlu0 %v9035, 32
        %v9275 = vpop.permute.xlu0 %9274
        %9276 = vrot.lane.b32.xlu0 %v9045, 32
        %v9277 = vpop.permute.xlu0 %9276
        %9278 = vrot.lane.b32.xlu0 %v9055, 32
        %v9279 = vpop.permute.xlu0 %9278
        %9280 = vrot.lane.b32.xlu0 %v9065, 32
        %v9281 = vpop.permute.xlu0 %9280
        %9282 = vrot.lane.b32.xlu0 %v9075, 32
        %v9283 = vpop.permute.xlu0 %9282
        %9284 = vrot.lane.b32.xlu0 %v9085, 32
        %v9285 = vpop.permute.xlu0 %9284
        %9286 = vrot.lane.b32.xlu0 %v9095, 32
        %v9287 = vpop.permute.xlu0 %9286
        %9288 = vrot.lane.b32.xlu0 %v9105, 32
        %v9289 = vpop.permute.xlu0 %9288
        %9290 = vrot.lane.b32.xlu0 %v9115, 32
        %v9291 = vpop.permute.xlu0 %9290
        %9292 = vrot.lane.b32.xlu0 %v9125, 32
        %v9293 = vpop.permute.xlu0 %9292
        %9294 = vrot.lane.b32.xlu0 %v9135, 32
        %v9295 = vpop.permute.xlu0 %9294
        %9296 = vrot.lane.b32.xlu0 %v9145, 32
        %v9297 = vpop.permute.xlu0 %9296
        %9298 = vrot.lane.b32.xlu0 %v9155, 32
        %v9299 = vpop.permute.xlu0 %9298
        %9300 = vrot.lane.b32.xlu0 %v9165, 32
        %v9301 = vpop.permute.xlu0 %9300
        %9302 = vrot.lane.b32.xlu0 %v9175, 32
        %v9303 = vpop.permute.xlu0 %9302
        %9304 = vrot.lane.b32.xlu0 %v9185, 32
        %v9305 = vpop.permute.xlu0 %9304
        %9306 = vrot.lane.b32.xlu0 %v9195, 32
        %v9307 = vpop.permute.xlu0 %9306
        %9308 = vrot.lane.b32.xlu0 %v9205, 32
        %v9309 = vpop.permute.xlu0 %9308
        %9310 = vrot.lane.b32.xlu0 %v9215, 32
        %v9311 = vpop.permute.xlu0 %9310
        %9312 = vrot.lane.b32.xlu0 %v9225, 32
        %v9313 = vpop.permute.xlu0 %9312
        %9314 = vrot.lane.b32.xlu0 %v9235, 32
        %v9315 = vpop.permute.xlu0 %9314
        %9356 = vst.msk [vmem:[#allocation2 + $0x10] sm:$0xf] %vm369, %v9237
        %9357 = vst.msk [vmem:[#allocation2 + $0x18] sm:$0xf] %vm369, %v9239
        %9358 = vst.msk [vmem:[#allocation2 + $0x20] sm:$0xf] %vm369, %v9241
        %9359 = vst.msk [vmem:[#allocation2 + $0x28] sm:$0xf] %vm369, %v9243
        %9360 = vst.msk [vmem:[#allocation2 + $0x30] sm:$0xf] %vm369, %v9245
        %9361 = vst.msk [vmem:[#allocation2 + $0x38] sm:$0xf] %vm369, %v9247
        %9362 = vst.msk [vmem:[#allocation2 + $0x40] sm:$0xf] %vm369, %v9249
        %9363 = vst.msk [vmem:[#allocation2 + $0x48] sm:$0xf] %vm369, %v9251
        %9364 = vst.msk [vmem:[#allocation2 + $0x50] sm:$0xf] %vm369, %v9253
        %9365 = vst.msk [vmem:[#allocation2 + $0x58] sm:$0xf] %vm369, %v9255
        %9366 = vst.msk [vmem:[#allocation2 + $0x60] sm:$0xf] %vm369, %v9257
        %9367 = vst.msk [vmem:[#allocation2 + $0x68] sm:$0xf] %vm369, %v9259
        %9368 = vst.msk [vmem:[#allocation2 + $0x70] sm:$0xf] %vm369, %v9261
        %9369 = vst.msk [vmem:[#allocation2 + $0x78] sm:$0xf] %vm369, %v9263
        %9370 = vst.msk [vmem:[#allocation2 + $0x80] sm:$0xf] %vm369, %v9265
        %9371 = vst.msk [vmem:[#allocation2 + $0x88] sm:$0xf] %vm369, %v9267
        %9372 = vst.msk [vmem:[#allocation2 + $0x90] sm:$0xf] %vm369, %v9269
        %9373 = vst.msk [vmem:[#allocation2 + $0x98] sm:$0xf] %vm369, %v9271
        %9374 = vst.msk [vmem:[#allocation2 + $0xa0] sm:$0xf] %vm369, %v9273
        %9375 = vst.msk [vmem:[#allocation2 + $0xa8] sm:$0xf] %vm369, %v9275
        %9376 = vst.msk [vmem:[#allocation2 + $0xb0] sm:$0xf] %vm369, %v9277
        %9377 = vst.msk [vmem:[#allocation2 + $0xb8] sm:$0xf] %vm369, %v9279
        %9378 = vst.msk [vmem:[#allocation2 + $0xc0] sm:$0xf] %vm369, %v9281
        %9379 = vst.msk [vmem:[#allocation2 + $0xc8] sm:$0xf] %vm369, %v9283
        %9380 = vst.msk [vmem:[#allocation2 + $0xd0] sm:$0xf] %vm369, %v9285
        %9381 = vst.msk [vmem:[#allocation2 + $0xd8] sm:$0xf] %vm369, %v9287
        %9382 = vst.msk [vmem:[#allocation2 + $0xe0] sm:$0xf] %vm369, %v9289
        %9383 = vst.msk [vmem:[#allocation2 + $0xe8] sm:$0xf] %vm369, %v9291
        %9384 = vst.msk [vmem:[#allocation2 + $0xf0] sm:$0xf] %vm369, %v9293
        %9385 = vst.msk [vmem:[#allocation2 + $0xf8] sm:$0xf] %vm369, %v9295
        %9386 = vst.msk [vmem:[#allocation2 + $0x100] sm:$0xf] %vm369, %v9297
        %9387 = vst.msk [vmem:[#allocation2 + $0x108] sm:$0xf] %vm369, %v9299
        %9388 = vst.msk [vmem:[#allocation2 + $0x110] sm:$0xf] %vm369, %v9301
        %9389 = vst.msk [vmem:[#allocation2 + $0x118] sm:$0xf] %vm369, %v9303
        %9390 = vst.msk [vmem:[#allocation2 + $0x120] sm:$0xf] %vm369, %v9305
        %9391 = vst.msk [vmem:[#allocation2 + $0x128] sm:$0xf] %vm369, %v9307
        %9392 = vst.msk [vmem:[#allocation2 + $0x130] sm:$0xf] %vm369, %v9309
        %9393 = vst.msk [vmem:[#allocation2 + $0x138] sm:$0xf] %vm369, %v9311
        %9394 = vst.msk [vmem:[#allocation2 + $0x140] sm:$0xf] %vm369, %v9313
        %9395 = vst.msk [vmem:[#allocation2 + $0x148] sm:$0xf] %vm369, %v9315
        %v9396 = vld [vmem:[#allocation2 + $0x20] sm:$0xf]
        %v9397 = vld [vmem:[#allocation2 + $0x28] sm:$0xf]
        %v9398 = vld [vmem:[#allocation2 + $0x30] sm:$0xf]
        %v9399 = vld [vmem:[#allocation2 + $0x38] sm:$0xf]
        %v9400 = vld [vmem:[#allocation2 + $0x40] sm:$0xf]
        %v9401 = vld [vmem:[#allocation2 + $0x48] sm:$0xf]
        %v9402 = vld [vmem:[#allocation2 + $0x50] sm:$0xf]
        %v9403 = vld [vmem:[#allocation2 + $0x58] sm:$0xf]
        %v9404 = vld [vmem:[#allocation2 + $0x60] sm:$0xf]
        %v9405 = vld [vmem:[#allocation2 + $0x68] sm:$0xf]
        %v9406 = vld [vmem:[#allocation2 + $0x70] sm:$0xf]
        %v9407 = vld [vmem:[#allocation2 + $0x78] sm:$0xf]
        %v9408 = vld [vmem:[#allocation2 + $0x80] sm:$0xf]
        %v9409 = vld [vmem:[#allocation2 + $0x88] sm:$0xf]
        %v9410 = vld [vmem:[#allocation2 + $0x90] sm:$0xf]
        %v9411 = vld [vmem:[#allocation2 + $0x98] sm:$0xf]
        %v9412 = vld [vmem:[#allocation2 + $0xa0] sm:$0xf]
        %v9413 = vld [vmem:[#allocation2 + $0xa8] sm:$0xf]
        %v9414 = vld [vmem:[#allocation2 + $0xb0] sm:$0xf]
        %v9415 = vld [vmem:[#allocation2 + $0xb8] sm:$0xf]
        %v9416 = vld [vmem:[#allocation2 + $0xc0] sm:$0xf]
        %v9417 = vld [vmem:[#allocation2 + $0xc8] sm:$0xf]
        %v9418 = vld [vmem:[#allocation2 + $0xd0] sm:$0xf]
        %v9419 = vld [vmem:[#allocation2 + $0xd8] sm:$0xf]
        %v9420 = vld [vmem:[#allocation2 + $0xe0] sm:$0xf]
        %v9421 = vld [vmem:[#allocation2 + $0xe8] sm:$0xf]
        %v9422 = vld [vmem:[#allocation2 + $0xf0] sm:$0xf]
        %v9423 = vld [vmem:[#allocation2 + $0xf8] sm:$0xf]
        %v9424 = vld [vmem:[#allocation2 + $0x100] sm:$0xf]
        %v9425 = vld [vmem:[#allocation2 + $0x108] sm:$0xf]
        %v9426 = vld [vmem:[#allocation2 + $0x110] sm:$0xf]
        %v9427 = vld [vmem:[#allocation2 + $0x118] sm:$0xf]
        %v9428 = vld [vmem:[%s3] sm:$0xf]
        %v9429 = vld [vmem:[%s3 + $0x4] sm:$0xf]
        %v9430 = vld [vmem:[%s3 + $0x8] sm:$0xf]
        %v9431 = vld [vmem:[%s3 + $0xc] sm:$0xf]
        %v9432 = vld [vmem:[%s3 + $0x10] sm:$0xf]
        %v9433 = vld [vmem:[%s3 + $0x14] sm:$0xf]
        %v9434 = vld [vmem:[%s3 + $0x18] sm:$0xf]
        %v9435 = vld [vmem:[%s3 + $0x1c] sm:$0xf]
        %v9436 = vld [vmem:[%s3 + $0x20] sm:$0xf]
        %v9437 = vld [vmem:[%s3 + $0x24] sm:$0xf]
        %v9438 = vld [vmem:[%s3 + $0x28] sm:$0xf]
        %v9439 = vld [vmem:[%s3 + $0x2c] sm:$0xf]
        %v9440 = vld [vmem:[#allocation2 + $0x120] sm:$0xf]
        %v9441 = vld [vmem:[#allocation2 + $0x128] sm:$0xf]
        %s9442 = scalar_lea.vmem %s3, 48
        %v9443 = vld [vmem:[%s9442] sm:$0xf]
        %v9444 = vld [vmem:[%s9442 + $0x4] sm:$0xf]
        %v9445 = vld [vmem:[%s9442 + $0x8] sm:$0xf]
        %v9446 = vld [vmem:[%s9442 + $0xc] sm:$0xf]
        %v9447 = vld [vmem:[%s9442 + $0x10] sm:$0xf]
        %v9448 = vld [vmem:[%s9442 + $0x14] sm:$0xf]
        %v9449 = vld [vmem:[%s9442 + $0x18] sm:$0xf]
        %v9450 = vld [vmem:[%s9442 + $0x1c] sm:$0xf]
        %v9451 = vld [vmem:[%s9442 + $0x20] sm:$0xf]
        %v9452 = vld [vmem:[%s9442 + $0x24] sm:$0xf]
        %v9453 = vld [vmem:[%s9442 + $0x28] sm:$0xf]
        %v9454 = vld [vmem:[%s9442 + $0x2c] sm:$0xf]
        %v9487 = vunpack.c.l.b16 %v9398
        %v9488 = vunpack.c.l.b16 %v9399
        %v9489 = vunpack.c.l.b16 %v9400
        %v9490 = vunpack.c.l.b16 %v9401
        %v9491 = vunpack.c.l.b16 %v9402
        %v9492 = vunpack.c.l.b16 %v9403
        %v9493 = vunpack.c.l.b16 %v9404
        %v9494 = vunpack.c.l.b16 %v9405
        %v9495 = vunpack.c.l.b16 %v9406
        %v9496 = vunpack.c.l.b16 %v9407
        %v9497 = vunpack.c.l.b16 %v9408
        %v9498 = vunpack.c.l.b16 %v9409
        %v9499 = vunpack.c.l.b16 %v9410
        %v9500 = vunpack.c.l.b16 %v9411
        %v9501 = vunpack.c.l.b16 %v9412
        %v9502 = vunpack.c.l.b16 %v9413
        %v9503 = vunpack.c.l.b16 %v9414
        %v9504 = vunpack.c.l.b16 %v9415
        %v9505 = vunpack.c.l.b16 %v9416
        %v9506 = vunpack.c.l.b16 %v9417
        %v9507 = vunpack.c.l.b16 %v9418
        %v9508 = vunpack.c.l.b16 %v9419
        %v9509 = vunpack.c.l.b16 %v9420
        %v9510 = vunpack.c.l.b16 %v9421
        %v9511 = vunpack.c.l.b16 %v9422
        %v9512 = vunpack.c.l.b16 %v9423
        %v9513 = vunpack.c.l.b16 %v9424
        %v9514 = vunpack.c.l.b16 %v9425
        %v9515 = vunpack.c.l.b16 %v9426
        %v9516 = vunpack.c.l.b16 %v9427
        %v9517 = vunpack.c.l.b16 %v9440
        %v9518 = vunpack.c.l.b16 %v9441
        %v9519 = vpack.c.b16 %v9488, %v9487
        %v9520 = vpack.c.b16 %v9490, %v9489
        %v9521 = vpack.c.b16 %v9492, %v9491
        %v9522 = vpack.c.b16 %v9494, %v9493
        %v9523 = vpack.c.b16 %v9496, %v9495
        %v9524 = vpack.c.b16 %v9498, %v9497
        %v9525 = vpack.c.b16 %v9500, %v9499
        %v9526 = vpack.c.b16 %v9502, %v9501
        %v9527 = vpack.c.b16 %v9504, %v9503
        %v9528 = vpack.c.b16 %v9506, %v9505
        %v9529 = vpack.c.b16 %v9508, %v9507
        %v9530 = vpack.c.b16 %v9510, %v9509
        %v9531 = vpack.c.b16 %v9512, %v9511
        %v9532 = vpack.c.b16 %v9514, %v9513
        %v9533 = vpack.c.b16 %v9516, %v9515
        %v9534 = vpack.c.b16 %v9518, %v9517
        %v9547 = vunpack.c.l.b16 %v9443
        %v9548 = vunpack.c.l.b16 %v9444
        %v9549 = vunpack.c.l.b16 %v9445
        %v9550 = vunpack.c.l.b16 %v9446
        %v9551 = vunpack.c.l.b16 %v9447
        %v9552 = vunpack.c.l.b16 %v9448
        %v9553 = vunpack.c.l.b16 %v9449
        %v9554 = vunpack.c.l.b16 %v9450
        %v9555 = vunpack.c.l.b16 %v9451
        %v9556 = vunpack.c.l.b16 %v9452
        %v9557 = vunpack.c.l.b16 %v9453
        %v9558 = vunpack.c.l.b16 %v9454
        %v9559 = vpack.c.b16 %v9548, %v9547
        %v9560 = vpack.c.b16 %v9550, %v9549
        %v9561 = vpack.c.b16 %v9552, %v9551
        %v9562 = vpack.c.b16 %v9554, %v9553
        %v9563 = vpack.c.b16 %v9556, %v9555
        %v9564 = vpack.c.b16 %v9558, %v9557
        %vm9571 = vcmask 785408
        %v9573 = vsel %vm9571, %v9519, 0
        %v9576 = vsel %vm9571, %v9520, 0
        %v9579 = vsel %vm9571, %v9521, 0
        %v9582 = vsel %vm9571, %v9522, 0
        %v9585 = vsel %vm9571, %v9523, 0
        %v9588 = vsel %vm9571, %v9524, 0
        %v9591 = vsel %vm9571, %v9525, 0
        %v9594 = vsel %vm9571, %v9526, 0
        %v9597 = vsel %vm9571, %v9527, 0
        %v9600 = vsel %vm9571, %v9528, 0
        %v9603 = vsel %vm9571, %v9529, 0
        %v9606 = vsel %vm9571, %v9530, 0
        %v9609 = vsel %vm9571, %v9531, 0
        %v9612 = vsel %vm9571, %v9532, 0
        %v9615 = vsel %vm9571, %v9533, 0
        %v9618 = vsel %vm9571, %v9534, 0
        %9620 = vmatpush.bf16.msra.mxu0 0
        %9621 = vmatpush.bf16.msra.mxu0 0
        %9622 = vmatpush.bf16.msra.mxu0 %v9564
        %9623 = vmatpush.bf16.msra.mxu0 %v9563
        %9624 = vmatpush.bf16.msra.mxu0 %v9562
        %9625 = vmatpush.bf16.msra.mxu0 %v9561
        %9626 = vmatpush.bf16.msra.mxu0 %v9560
        %9627 = vmatpush.bf16.msra.mxu0 %v9559
        %9628 = vmatmul.bf16.gmra.mxu0 %v9573
        %v9629 = vpop.f32.mrf.mxu0
        %v9630 = vadd.f32 0.0, %v9629
        %v9631 = vpop.f32.mrf.mxu0
        %v9632 = vadd.f32 0.0, %v9631
        %9633 = vmatmul.bf16.gmra.mxu0 %v9576
        %v9634 = vpop.f32.mrf.mxu0
        %v9635 = vadd.f32 0.0, %v9634
        %v9636 = vpop.f32.mrf.mxu0
        %v9637 = vadd.f32 0.0, %v9636
        %9638 = vmatmul.bf16.gmra.mxu0 %v9579
        %v9639 = vpop.f32.mrf.mxu0
        %v9640 = vadd.f32 0.0, %v9639
        %v9641 = vpop.f32.mrf.mxu0
        %v9642 = vadd.f32 0.0, %v9641
        %9643 = vmatmul.bf16.gmra.mxu0 %v9582
        %v9644 = vpop.f32.mrf.mxu0
        %v9645 = vadd.f32 0.0, %v9644
        %v9646 = vpop.f32.mrf.mxu0
        %v9647 = vadd.f32 0.0, %v9646
        %9648 = vmatmul.bf16.gmra.mxu0 %v9585
        %v9649 = vpop.f32.mrf.mxu0
        %v9650 = vadd.f32 0.0, %v9649
        %v9651 = vpop.f32.mrf.mxu0
        %v9652 = vadd.f32 0.0, %v9651
        %9653 = vmatmul.bf16.gmra.mxu0 %v9588
        %v9654 = vpop.f32.mrf.mxu0
        %v9655 = vadd.f32 0.0, %v9654
        %v9656 = vpop.f32.mrf.mxu0
        %v9657 = vadd.f32 0.0, %v9656
        %9658 = vmatmul.bf16.gmra.mxu0 %v9591
        %v9659 = vpop.f32.mrf.mxu0
        %v9660 = vadd.f32 0.0, %v9659
        %v9661 = vpop.f32.mrf.mxu0
        %v9662 = vadd.f32 0.0, %v9661
        %9663 = vmatmul.bf16.gmra.mxu0 %v9594
        %v9664 = vpop.f32.mrf.mxu0
        %v9665 = vadd.f32 0.0, %v9664
        %v9666 = vpop.f32.mrf.mxu0
        %v9667 = vadd.f32 0.0, %v9666
        %9668 = vmatmul.bf16.gmra.mxu0 %v9597
        %v9669 = vpop.f32.mrf.mxu0
        %v9670 = vadd.f32 0.0, %v9669
        %v9671 = vpop.f32.mrf.mxu0
        %v9672 = vadd.f32 0.0, %v9671
        %9673 = vmatmul.bf16.gmra.mxu0 %v9600
        %v9674 = vpop.f32.mrf.mxu0
        %v9675 = vadd.f32 0.0, %v9674
        %v9676 = vpop.f32.mrf.mxu0
        %v9677 = vadd.f32 0.0, %v9676
        %9678 = vmatmul.bf16.gmra.mxu0 %v9603
        %v9679 = vpop.f32.mrf.mxu0
        %v9680 = vadd.f32 0.0, %v9679
        %v9681 = vpop.f32.mrf.mxu0
        %v9682 = vadd.f32 0.0, %v9681
        %9683 = vmatmul.bf16.gmra.mxu0 %v9606
        %v9684 = vpop.f32.mrf.mxu0
        %v9685 = vadd.f32 0.0, %v9684
        %v9686 = vpop.f32.mrf.mxu0
        %v9687 = vadd.f32 0.0, %v9686
        %9688 = vmatmul.bf16.gmra.mxu0 %v9609
        %v9689 = vpop.f32.mrf.mxu0
        %v9690 = vadd.f32 0.0, %v9689
        %v9691 = vpop.f32.mrf.mxu0
        %v9692 = vadd.f32 0.0, %v9691
        %9693 = vmatmul.bf16.gmra.mxu0 %v9612
        %v9694 = vpop.f32.mrf.mxu0
        %v9695 = vadd.f32 0.0, %v9694
        %v9696 = vpop.f32.mrf.mxu0
        %v9697 = vadd.f32 0.0, %v9696
        %9698 = vmatmul.bf16.gmra.mxu0 %v9615
        %v9699 = vpop.f32.mrf.mxu0
        %v9700 = vadd.f32 0.0, %v9699
        %v9701 = vpop.f32.mrf.mxu0
        %v9702 = vadd.f32 0.0, %v9701
        %9703 = vmatmul.bf16.gmra.mxu0 %v9618
        %v9704 = vpop.f32.mrf.mxu0
        %v9705 = vadd.f32 0.0, %v9704
        %v9706 = vpop.f32.mrf.mxu0
        %v9707 = vadd.f32 0.0, %v9706
        %9708 = vdwg.mxu0
        %v9711 = vunpack.c.l.b16 %v9396
        %v9712 = vunpack.c.l.b16 %v9397
        %v9713 = vpack.c.b16 %v9712, %v9711
        %v9726 = vunpack.c.l.b16 %v9428
        %v9727 = vunpack.c.l.b16 %v9429
        %v9728 = vunpack.c.l.b16 %v9430
        %v9729 = vunpack.c.l.b16 %v9431
        %v9730 = vunpack.c.l.b16 %v9432
        %v9731 = vunpack.c.l.b16 %v9433
        %v9732 = vunpack.c.l.b16 %v9434
        %v9733 = vunpack.c.l.b16 %v9435
        %v9734 = vunpack.c.l.b16 %v9436
        %v9735 = vunpack.c.l.b16 %v9437
        %v9736 = vunpack.c.l.b16 %v9438
        %v9737 = vunpack.c.l.b16 %v9439
        %v9738 = vpack.c.b16 %v9727, %v9726
        %v9739 = vpack.c.b16 %v9729, %v9728
        %v9740 = vpack.c.b16 %v9731, %v9730
        %v9741 = vpack.c.b16 %v9733, %v9732
        %v9742 = vpack.c.b16 %v9735, %v9734
        %v9743 = vpack.c.b16 %v9737, %v9736
        %v9751 = vsel %vm9571, %v9713, 0
        %9753 = vmatpush.bf16.msra.mxu0 0
        %9754 = vmatpush.bf16.msra.mxu0 0
        %9755 = vmatpush.bf16.msra.mxu0 %v9743
        %9756 = vmatpush.bf16.msra.mxu0 %v9742
        %9757 = vmatpush.bf16.msra.mxu0 %v9741
        %9758 = vmatpush.bf16.msra.mxu0 %v9740
        %9759 = vmatpush.bf16.msra.mxu0 %v9739
        %9760 = vmatpush.bf16.msra.mxu0 %v9738
        %9761 = vmatmul.bf16.gmra.mxu0 %v9751
        %v9762 = vpop.f32.mrf.mxu0
        %v9763 = vadd.f32 %v9630, %v9762
        %v9764 = vpop.f32.mrf.mxu0
        %v9765 = vadd.f32 %v9632, %v9764
        %9766 = vmatmul.bf16.gmra.mxu0 %v9573
        %v9767 = vpop.f32.mrf.mxu0
        %v9768 = vadd.f32 %v9635, %v9767
        %v9769 = vpop.f32.mrf.mxu0
        %v9770 = vadd.f32 %v9637, %v9769
        %9771 = vmatmul.bf16.gmra.mxu0 %v9576
        %v9772 = vpop.f32.mrf.mxu0
        %v9773 = vadd.f32 %v9640, %v9772
        %v9774 = vpop.f32.mrf.mxu0
        %v9775 = vadd.f32 %v9642, %v9774
        %9776 = vmatmul.bf16.gmra.mxu0 %v9579
        %v9777 = vpop.f32.mrf.mxu0
        %v9778 = vadd.f32 %v9645, %v9777
        %v9779 = vpop.f32.mrf.mxu0
        %v9780 = vadd.f32 %v9647, %v9779
        %9781 = vmatmul.bf16.gmra.mxu0 %v9582
        %v9782 = vpop.f32.mrf.mxu0
        %v9783 = vadd.f32 %v9650, %v9782
        %v9784 = vpop.f32.mrf.mxu0
        %v9785 = vadd.f32 %v9652, %v9784
        %9786 = vmatmul.bf16.gmra.mxu0 %v9585
        %v9787 = vpop.f32.mrf.mxu0
        %v9788 = vadd.f32 %v9655, %v9787
        %v9789 = vpop.f32.mrf.mxu0
        %v9790 = vadd.f32 %v9657, %v9789
        %9791 = vmatmul.bf16.gmra.mxu0 %v9588
        %v9792 = vpop.f32.mrf.mxu0
        %v9793 = vadd.f32 %v9660, %v9792
        %v9794 = vpop.f32.mrf.mxu0
        %v9795 = vadd.f32 %v9662, %v9794
        %9796 = vmatmul.bf16.gmra.mxu0 %v9591
        %v9797 = vpop.f32.mrf.mxu0
        %v9798 = vadd.f32 %v9665, %v9797
        %v9799 = vpop.f32.mrf.mxu0
        %v9800 = vadd.f32 %v9667, %v9799
        %9801 = vmatmul.bf16.gmra.mxu0 %v9594
        %v9802 = vpop.f32.mrf.mxu0
        %v9803 = vadd.f32 %v9670, %v9802
        %v9804 = vpop.f32.mrf.mxu0
        %v9805 = vadd.f32 %v9672, %v9804
        %9806 = vmatmul.bf16.gmra.mxu0 %v9597
        %v9807 = vpop.f32.mrf.mxu0
        %v9808 = vadd.f32 %v9675, %v9807
        %v9809 = vpop.f32.mrf.mxu0
        %v9810 = vadd.f32 %v9677, %v9809
        %9811 = vmatmul.bf16.gmra.mxu0 %v9600
        %v9812 = vpop.f32.mrf.mxu0
        %v9813 = vadd.f32 %v9680, %v9812
        %v9814 = vpop.f32.mrf.mxu0
        %v9815 = vadd.f32 %v9682, %v9814
        %9816 = vmatmul.bf16.gmra.mxu0 %v9603
        %v9817 = vpop.f32.mrf.mxu0
        %v9818 = vadd.f32 %v9685, %v9817
        %v9819 = vpop.f32.mrf.mxu0
        %v9820 = vadd.f32 %v9687, %v9819
        %9821 = vmatmul.bf16.gmra.mxu0 %v9606
        %v9822 = vpop.f32.mrf.mxu0
        %v9823 = vadd.f32 %v9690, %v9822
        %v9824 = vpop.f32.mrf.mxu0
        %v9825 = vadd.f32 %v9692, %v9824
        %9826 = vmatmul.bf16.gmra.mxu0 %v9609
        %v9827 = vpop.f32.mrf.mxu0
        %v9828 = vadd.f32 %v9695, %v9827
        %v9829 = vpop.f32.mrf.mxu0
        %v9830 = vadd.f32 %v9697, %v9829
        %9831 = vmatmul.bf16.gmra.mxu0 %v9612
        %v9832 = vpop.f32.mrf.mxu0
        %v9833 = vadd.f32 %v9700, %v9832
        %v9834 = vpop.f32.mrf.mxu0
        %v9835 = vadd.f32 %v9702, %v9834
        %9836 = vmatmul.bf16.gmra.mxu0 %v9615
        %v9837 = vpop.f32.mrf.mxu0
        %v9838 = vadd.f32 %v9705, %v9837
        %v9839 = vpop.f32.mrf.mxu0
        %v9840 = vadd.f32 %v9707, %v9839
        %9841 = vdwg.mxu0
        %v9842 = vld [vmem:[#allocation2 + $0x40] sm:$0xf]
        %v9843 = vld [vmem:[#allocation2 + $0x48] sm:$0xf]
        %v9844 = vld [vmem:[#allocation2 + $0x50] sm:$0xf]
        %v9845 = vld [vmem:[#allocation2 + $0x58] sm:$0xf]
        %v9846 = vld [vmem:[#allocation2 + $0x60] sm:$0xf]
        %v9847 = vld [vmem:[#allocation2 + $0x68] sm:$0xf]
        %v9848 = vld [vmem:[#allocation2 + $0x70] sm:$0xf]
        %v9849 = vld [vmem:[#allocation2 + $0x78] sm:$0xf]
        %v9850 = vld [vmem:[#allocation2 + $0x80] sm:$0xf]
        %v9851 = vld [vmem:[#allocation2 + $0x88] sm:$0xf]
        %v9852 = vld [vmem:[#allocation2 + $0x90] sm:$0xf]
        %v9853 = vld [vmem:[#allocation2 + $0x98] sm:$0xf]
        %v9854 = vld [vmem:[#allocation2 + $0xa0] sm:$0xf]
        %v9855 = vld [vmem:[#allocation2 + $0xa8] sm:$0xf]
        %v9856 = vld [vmem:[#allocation2 + $0xb0] sm:$0xf]
        %v9857 = vld [vmem:[#allocation2 + $0xb8] sm:$0xf]
        %v9858 = vld [vmem:[#allocation2 + $0xc0] sm:$0xf]
        %v9859 = vld [vmem:[#allocation2 + $0xc8] sm:$0xf]
        %v9860 = vld [vmem:[#allocation2 + $0xd0] sm:$0xf]
        %v9861 = vld [vmem:[#allocation2 + $0xd8] sm:$0xf]
        %v9862 = vld [vmem:[#allocation2 + $0xe0] sm:$0xf]
        %v9863 = vld [vmem:[#allocation2 + $0xe8] sm:$0xf]
        %v9864 = vld [vmem:[#allocation2 + $0xf0] sm:$0xf]
        %v9865 = vld [vmem:[#allocation2 + $0xf8] sm:$0xf]
        %v9866 = vld [vmem:[#allocation2 + $0x100] sm:$0xf]
        %v9867 = vld [vmem:[#allocation2 + $0x108] sm:$0xf]
        %v9868 = vld [vmem:[#allocation2 + $0x110] sm:$0xf]
        %v9869 = vld [vmem:[#allocation2 + $0x118] sm:$0xf]
        %v9870 = vld [vmem:[#allocation2 + $0x120] sm:$0xf]
        %v9871 = vld [vmem:[#allocation2 + $0x128] sm:$0xf]
        %v9872 = vld [vmem:[#allocation2 + $0x130] sm:$0xf]
        %v9873 = vld [vmem:[#allocation2 + $0x138] sm:$0xf]
        %s9874 = scalar_lea.vmem %s3, 96
        %v9875 = vld [vmem:[%s9874] sm:$0xf]
        %v9876 = vld [vmem:[%s9874 + $0x4] sm:$0xf]
        %v9877 = vld [vmem:[%s9874 + $0x8] sm:$0xf]
        %v9878 = vld [vmem:[%s9874 + $0xc] sm:$0xf]
        %v9879 = vld [vmem:[%s9874 + $0x10] sm:$0xf]
        %v9880 = vld [vmem:[%s9874 + $0x14] sm:$0xf]
        %v9881 = vld [vmem:[%s9874 + $0x18] sm:$0xf]
        %v9882 = vld [vmem:[%s9874 + $0x1c] sm:$0xf]
        %v9883 = vld [vmem:[%s9874 + $0x20] sm:$0xf]
        %v9884 = vld [vmem:[%s9874 + $0x24] sm:$0xf]
        %v9885 = vld [vmem:[%s9874 + $0x28] sm:$0xf]
        %v9886 = vld [vmem:[%s9874 + $0x2c] sm:$0xf]
        %v9919 = vunpack.c.l.b16 %v9842
        %v9920 = vunpack.c.l.b16 %v9843
        %v9921 = vunpack.c.l.b16 %v9844
        %v9922 = vunpack.c.l.b16 %v9845
        %v9923 = vunpack.c.l.b16 %v9846
        %v9924 = vunpack.c.l.b16 %v9847
        %v9925 = vunpack.c.l.b16 %v9848
        %v9926 = vunpack.c.l.b16 %v9849
        %v9927 = vunpack.c.l.b16 %v9850
        %v9928 = vunpack.c.l.b16 %v9851
        %v9929 = vunpack.c.l.b16 %v9852
        %v9930 = vunpack.c.l.b16 %v9853
        %v9931 = vunpack.c.l.b16 %v9854
        %v9932 = vunpack.c.l.b16 %v9855
        %v9933 = vunpack.c.l.b16 %v9856
        %v9934 = vunpack.c.l.b16 %v9857
        %v9935 = vunpack.c.l.b16 %v9858
        %v9936 = vunpack.c.l.b16 %v9859
        %v9937 = vunpack.c.l.b16 %v9860
        %v9938 = vunpack.c.l.b16 %v9861
        %v9939 = vunpack.c.l.b16 %v9862
        %v9940 = vunpack.c.l.b16 %v9863
        %v9941 = vunpack.c.l.b16 %v9864
        %v9942 = vunpack.c.l.b16 %v9865
        %v9943 = vunpack.c.l.b16 %v9866
        %v9944 = vunpack.c.l.b16 %v9867
        %v9945 = vunpack.c.l.b16 %v9868
        %v9946 = vunpack.c.l.b16 %v9869
        %v9947 = vunpack.c.l.b16 %v9870
        %v9948 = vunpack.c.l.b16 %v9871
        %v9949 = vunpack.c.l.b16 %v9872
        %v9950 = vunpack.c.l.b16 %v9873
        %v9951 = vpack.c.b16 %v9920, %v9919
        %v9952 = vpack.c.b16 %v9922, %v9921
        %v9953 = vpack.c.b16 %v9924, %v9923
        %v9954 = vpack.c.b16 %v9926, %v9925
        %v9955 = vpack.c.b16 %v9928, %v9927
        %v9956 = vpack.c.b16 %v9930, %v9929
        %v9957 = vpack.c.b16 %v9932, %v9931
        %v9958 = vpack.c.b16 %v9934, %v9933
        %v9959 = vpack.c.b16 %v9936, %v9935
        %v9960 = vpack.c.b16 %v9938, %v9937
        %v9961 = vpack.c.b16 %v9940, %v9939
        %v9962 = vpack.c.b16 %v9942, %v9941
        %v9963 = vpack.c.b16 %v9944, %v9943
        %v9964 = vpack.c.b16 %v9946, %v9945
        %v9965 = vpack.c.b16 %v9948, %v9947
        %v9966 = vpack.c.b16 %v9950, %v9949
        %v9979 = vunpack.c.l.b16 %v9875
        %v9980 = vunpack.c.l.b16 %v9876
        %v9981 = vunpack.c.l.b16 %v9877
        %v9982 = vunpack.c.l.b16 %v9878
        %v9983 = vunpack.c.l.b16 %v9879
        %v9984 = vunpack.c.l.b16 %v9880
        %v9985 = vunpack.c.l.b16 %v9881
        %v9986 = vunpack.c.l.b16 %v9882
        %v9987 = vunpack.c.l.b16 %v9883
        %v9988 = vunpack.c.l.b16 %v9884
        %v9989 = vunpack.c.l.b16 %v9885
        %v9990 = vunpack.c.l.b16 %v9886
        %v9991 = vpack.c.b16 %v9980, %v9979
        %v9992 = vpack.c.b16 %v9982, %v9981
        %v9993 = vpack.c.b16 %v9984, %v9983
        %v9994 = vpack.c.b16 %v9986, %v9985
        %v9995 = vpack.c.b16 %v9988, %v9987
        %v9996 = vpack.c.b16 %v9990, %v9989
        %v10004 = vsel %vm9571, %v9951, 0
        %v10007 = vsel %vm9571, %v9952, 0
        %v10010 = vsel %vm9571, %v9953, 0
        %v10013 = vsel %vm9571, %v9954, 0
        %v10016 = vsel %vm9571, %v9955, 0
        %v10019 = vsel %vm9571, %v9956, 0
        %v10022 = vsel %vm9571, %v9957, 0
        %v10025 = vsel %vm9571, %v9958, 0
        %v10028 = vsel %vm9571, %v9959, 0
        %v10031 = vsel %vm9571, %v9960, 0
        %v10034 = vsel %vm9571, %v9961, 0
        %v10037 = vsel %vm9571, %v9962, 0
        %v10040 = vsel %vm9571, %v9963, 0
        %v10043 = vsel %vm9571, %v9964, 0
        %v10046 = vsel %vm9571, %v9965, 0
        %v10049 = vsel %vm9571, %v9966, 0
        %10051 = vmatpush.bf16.msra.mxu0 0
        %10052 = vmatpush.bf16.msra.mxu0 0
        %10053 = vmatpush.bf16.msra.mxu0 %v9996
        %10054 = vmatpush.bf16.msra.mxu0 %v9995
        %10055 = vmatpush.bf16.msra.mxu0 %v9994
        %10056 = vmatpush.bf16.msra.mxu0 %v9993
        %10057 = vmatpush.bf16.msra.mxu0 %v9992
        %10058 = vmatpush.bf16.msra.mxu0 %v9991
        %10059 = vmatmul.bf16.gmra.mxu0 %v10004
        %v10060 = vpop.f32.mrf.mxu0
        %v10061 = vadd.f32 0.0, %v10060
        %v10062 = vpop.f32.mrf.mxu0
        %v10063 = vadd.f32 0.0, %v10062
        %10064 = vmatmul.bf16.gmra.mxu0 %v10007
        %v10065 = vpop.f32.mrf.mxu0
        %v10066 = vadd.f32 0.0, %v10065
        %v10067 = vpop.f32.mrf.mxu0
        %v10068 = vadd.f32 0.0, %v10067
        %10069 = vmatmul.bf16.gmra.mxu0 %v10010
        %v10070 = vpop.f32.mrf.mxu0
        %v10071 = vadd.f32 0.0, %v10070
        %v10072 = vpop.f32.mrf.mxu0
        %v10073 = vadd.f32 0.0, %v10072
        %10074 = vmatmul.bf16.gmra.mxu0 %v10013
        %v10075 = vpop.f32.mrf.mxu0
        %v10076 = vadd.f32 0.0, %v10075
        %v10077 = vpop.f32.mrf.mxu0
        %v10078 = vadd.f32 0.0, %v10077
        %10079 = vmatmul.bf16.gmra.mxu0 %v10016
        %v10080 = vpop.f32.mrf.mxu0
        %v10081 = vadd.f32 0.0, %v10080
        %v10082 = vpop.f32.mrf.mxu0
        %v10083 = vadd.f32 0.0, %v10082
        %10084 = vmatmul.bf16.gmra.mxu0 %v10019
        %v10085 = vpop.f32.mrf.mxu0
        %v10086 = vadd.f32 0.0, %v10085
        %v10087 = vpop.f32.mrf.mxu0
        %v10088 = vadd.f32 0.0, %v10087
        %10089 = vmatmul.bf16.gmra.mxu0 %v10022
        %v10090 = vpop.f32.mrf.mxu0
        %v10091 = vadd.f32 0.0, %v10090
        %v10092 = vpop.f32.mrf.mxu0
        %v10093 = vadd.f32 0.0, %v10092
        %10094 = vmatmul.bf16.gmra.mxu0 %v10025
        %v10095 = vpop.f32.mrf.mxu0
        %v10096 = vadd.f32 0.0, %v10095
        %v10097 = vpop.f32.mrf.mxu0
        %v10098 = vadd.f32 0.0, %v10097
        %10099 = vmatmul.bf16.gmra.mxu0 %v10028
        %v10100 = vpop.f32.mrf.mxu0
        %v10101 = vadd.f32 0.0, %v10100
        %v10102 = vpop.f32.mrf.mxu0
        %v10103 = vadd.f32 0.0, %v10102
        %10104 = vmatmul.bf16.gmra.mxu0 %v10031
        %v10105 = vpop.f32.mrf.mxu0
        %v10106 = vadd.f32 0.0, %v10105
        %v10107 = vpop.f32.mrf.mxu0
        %v10108 = vadd.f32 0.0, %v10107
        %10109 = vmatmul.bf16.gmra.mxu0 %v10034
        %v10110 = vpop.f32.mrf.mxu0
        %v10111 = vadd.f32 0.0, %v10110
        %v10112 = vpop.f32.mrf.mxu0
        %v10113 = vadd.f32 0.0, %v10112
        %10114 = vmatmul.bf16.gmra.mxu0 %v10037
        %v10115 = vpop.f32.mrf.mxu0
        %v10116 = vadd.f32 0.0, %v10115
        %v10117 = vpop.f32.mrf.mxu0
        %v10118 = vadd.f32 0.0, %v10117
        %10119 = vmatmul.bf16.gmra.mxu0 %v10040
        %v10120 = vpop.f32.mrf.mxu0
        %v10121 = vadd.f32 0.0, %v10120
        %v10122 = vpop.f32.mrf.mxu0
        %v10123 = vadd.f32 0.0, %v10122
        %10124 = vmatmul.bf16.gmra.mxu0 %v10043
        %v10125 = vpop.f32.mrf.mxu0
        %v10126 = vadd.f32 0.0, %v10125
        %v10127 = vpop.f32.mrf.mxu0
        %v10128 = vadd.f32 0.0, %v10127
        %10129 = vmatmul.bf16.gmra.mxu0 %v10046
        %v10130 = vpop.f32.mrf.mxu0
        %v10131 = vadd.f32 0.0, %v10130
        %v10132 = vpop.f32.mrf.mxu0
        %v10133 = vadd.f32 0.0, %v10132
        %10134 = vmatmul.bf16.gmra.mxu0 %v10049
        %v10135 = vpop.f32.mrf.mxu0
        %v10136 = vadd.f32 0.0, %v10135
        %v10137 = vpop.f32.mrf.mxu0
        %v10138 = vadd.f32 0.0, %v10137
        %10139 = vdwg.mxu0
        %v10140 = vadd.f32 %v9763, %v10061
        %v10141 = vadd.f32 %v9765, %v10063
        %v10142 = vadd.f32 %v9768, %v10066
        %v10143 = vadd.f32 %v9770, %v10068
        %v10144 = vadd.f32 %v9773, %v10071
        %v10145 = vadd.f32 %v9775, %v10073
        %v10146 = vadd.f32 %v9778, %v10076
        %v10147 = vadd.f32 %v9780, %v10078
        %v10148 = vadd.f32 %v9783, %v10081
        %v10149 = vadd.f32 %v9785, %v10083
        %v10150 = vadd.f32 %v9788, %v10086
        %v10151 = vadd.f32 %v9790, %v10088
        %v10152 = vadd.f32 %v9793, %v10091
        %v10153 = vadd.f32 %v9795, %v10093
        %v10154 = vadd.f32 %v9798, %v10096
        %v10155 = vadd.f32 %v9800, %v10098
        %v10156 = vadd.f32 %v9803, %v10101
        %v10157 = vadd.f32 %v9805, %v10103
        %v10158 = vadd.f32 %v9808, %v10106
        %v10159 = vadd.f32 %v9810, %v10108
        %v10160 = vadd.f32 %v9813, %v10111
        %v10161 = vadd.f32 %v9815, %v10113
        %v10162 = vadd.f32 %v9818, %v10116
        %v10163 = vadd.f32 %v9820, %v10118
        %v10164 = vadd.f32 %v9823, %v10121
        %v10165 = vadd.f32 %v9825, %v10123
        %v10166 = vadd.f32 %v9828, %v10126
        %v10167 = vadd.f32 %v9830, %v10128
        %v10168 = vadd.f32 %v9833, %v10131
        %v10169 = vadd.f32 %v9835, %v10133
        %v10170 = vadd.f32 %v9838, %v10136
        %v10171 = vadd.f32 %v9840, %v10138
        %v10172 = vld [vmem:[%s4] sm:$0x1]
        %v10174 = vperm.slane %v10172, 0
        %v10176 = vadd.f32 %v10140, %v10174
        %v10177 = vadd.f32 %v10141, %v10174
        %v10178 = vadd.f32 %v10142, %v10174
        %v10179 = vadd.f32 %v10143, %v10174
        %v10180 = vadd.f32 %v10144, %v10174
        %v10181 = vadd.f32 %v10145, %v10174
        %v10182 = vadd.f32 %v10146, %v10174
        %v10183 = vadd.f32 %v10147, %v10174
        %v10184 = vadd.f32 %v10148, %v10174
        %v10185 = vadd.f32 %v10149, %v10174
        %v10186 = vadd.f32 %v10150, %v10174
        %v10187 = vadd.f32 %v10151, %v10174
        %v10188 = vadd.f32 %v10152, %v10174
        %v10189 = vadd.f32 %v10153, %v10174
        %v10190 = vadd.f32 %v10154, %v10174
        %v10191 = vadd.f32 %v10155, %v10174
        %v10192 = vadd.f32 %v10156, %v10174
        %v10193 = vadd.f32 %v10157, %v10174
        %v10194 = vadd.f32 %v10158, %v10174
        %v10195 = vadd.f32 %v10159, %v10174
        %v10196 = vadd.f32 %v10160, %v10174
        %v10197 = vadd.f32 %v10161, %v10174
        %v10198 = vadd.f32 %v10162, %v10174
        %v10199 = vadd.f32 %v10163, %v10174
        %v10200 = vadd.f32 %v10164, %v10174
        %v10201 = vadd.f32 %v10165, %v10174
        %v10202 = vadd.f32 %v10166, %v10174
        %v10203 = vadd.f32 %v10167, %v10174
        %v10204 = vadd.f32 %v10168, %v10174
        %v10205 = vadd.f32 %v10169, %v10174
        %v10206 = vadd.f32 %v10170, %v10174
        %v10207 = vadd.f32 %v10171, %v10174
        %v10208 = vsel %vm4516, %v10176, 0.0
        %v10209 = vsel %vm4516, %v10177, 0.0
        %v10210 = vadd.f32 %v10208, %v10209
        %v10211 = vsel %vm4516, %v10178, 0.0
        %v10212 = vadd.f32 %v10210, %v10211
        %v10213 = vsel %vm4516, %v10179, 0.0
        %v10214 = vadd.f32 %v10212, %v10213
        %v10215 = vsel %vm4516, %v10180, 0.0
        %v10216 = vadd.f32 %v10214, %v10215
        %v10217 = vsel %vm4516, %v10181, 0.0
        %v10218 = vadd.f32 %v10216, %v10217
        %v10219 = vsel %vm4516, %v10182, 0.0
        %v10220 = vadd.f32 %v10218, %v10219
        %v10221 = vsel %vm4516, %v10183, 0.0
        %v10222 = vadd.f32 %v10220, %v10221
        %v10223 = vsel %vm4516, %v10184, 0.0
        %v10224 = vadd.f32 %v10222, %v10223
        %v10225 = vsel %vm4516, %v10185, 0.0
        %v10226 = vadd.f32 %v10224, %v10225
        %v10227 = vsel %vm4516, %v10186, 0.0
        %v10228 = vadd.f32 %v10226, %v10227
        %v10229 = vsel %vm4516, %v10187, 0.0
        %v10230 = vadd.f32 %v10228, %v10229
        %v10231 = vsel %vm4516, %v10188, 0.0
        %v10232 = vadd.f32 %v10230, %v10231
        %v10233 = vsel %vm4516, %v10189, 0.0
        %v10234 = vadd.f32 %v10232, %v10233
        %v10235 = vsel %vm4516, %v10190, 0.0
        %v10236 = vadd.f32 %v10234, %v10235
        %v10237 = vsel %vm4516, %v10191, 0.0
        %v10238 = vadd.f32 %v10236, %v10237
        %v10239 = vsel %vm4516, %v10192, 0.0
        %v10240 = vadd.f32 %v10238, %v10239
        %v10241 = vsel %vm4516, %v10193, 0.0
        %v10242 = vadd.f32 %v10240, %v10241
        %v10243 = vsel %vm4516, %v10194, 0.0
        %v10244 = vadd.f32 %v10242, %v10243
        %v10245 = vsel %vm4516, %v10195, 0.0
        %v10246 = vadd.f32 %v10244, %v10245
        %v10247 = vsel %vm4516, %v10196, 0.0
        %v10248 = vadd.f32 %v10246, %v10247
        %v10249 = vsel %vm4516, %v10197, 0.0
        %v10250 = vadd.f32 %v10248, %v10249
        %v10251 = vsel %vm4516, %v10198, 0.0
        %v10252 = vadd.f32 %v10250, %v10251
        %v10253 = vsel %vm4516, %v10199, 0.0
        %v10254 = vadd.f32 %v10252, %v10253
        %v10255 = vsel %vm4516, %v10200, 0.0
        %v10256 = vadd.f32 %v10254, %v10255
        %v10257 = vsel %vm4516, %v10201, 0.0
        %v10258 = vadd.f32 %v10256, %v10257
        %v10259 = vsel %vm4516, %v10202, 0.0
        %v10260 = vadd.f32 %v10258, %v10259
        %v10261 = vsel %vm4516, %v10203, 0.0
        %v10262 = vadd.f32 %v10260, %v10261
        %v10263 = vsel %vm4516, %v10204, 0.0
        %v10264 = vadd.f32 %v10262, %v10263
        %v10265 = vsel %vm4516, %v10205, 0.0
        %v10266 = vadd.f32 %v10264, %v10265
        %v10267 = vsel %vm4516, %v10206, 0.0
        %v10268 = vadd.f32 %v10266, %v10267
        %v10269 = vsel %vm4516, %v10207, 0.0
        %v10270 = vadd.f32 %v10268, %v10269
        %v10271 = vrot.slane %v10270, 4
        %v10272 = vadd.f32 %v10270, %v10271
        %v10273 = vrot.slane %v10272, 2
        %v10274 = vadd.f32 %v10272, %v10273
        %v10275 = vrot.slane %v10274, 1
        %v10276 = vadd.f32 %v10274, %v10275
        %v10277 = vrcp.pop 256.0
        %v10278 = vmul.f32 256.0, %v10277
        %v10279 = vsub.f32 1.0, %v10278
        %v10280 = vmul.f32 %v10277, %v10279
        %v10281 = vadd.f32 %v10277, %v10280
        %vm10282 = vweird.f32 %v10277
        %v10283 = vsel %vm10282, %v10277, %v10281
        %v10284 = vmul.f32 %v10276, %v10283
        %v10285 = vld [vmem:[%s5] sm:$0xff]
        %v10286 = vld [vmem:[%s5 + $0x8] sm:$0xff]
        %v10287 = vld [vmem:[%s5 + $0x10] sm:$0xff]
        %v10288 = vld [vmem:[%s5 + $0x18] sm:$0xff]
        %v10290 = vsel %vm4516, %v10284, 0
        %10292 = vmatpush.msra.mxu0 0.0
        %10293 = vmatpush.msra.mxu0 0.0
        %10294 = vmatpush.msra.mxu0 0.0
        %10295 = vmatpush.msra.mxu0 0.0
        %10296 = vmatpush.msra.mxu0 0.0
        %10297 = vmatpush.msra.mxu0 0.0
        %10298 = vmatpush.msra.mxu0 0.0
        %10299 = vmatpush.msra.mxu0 0.0
        %10300 = vmatpush.msra.mxu0 0.0
        %10301 = vmatpush.msra.mxu0 0.0
        %10302 = vmatpush.msra.mxu0 0.0
        %10303 = vmatpush.msra.mxu0 0.0
        %10304 = vmatpush.msra.mxu0 %v10288
        %10305 = vmatpush.msra.mxu0 %v10287
        %10306 = vmatpush.msra.mxu0 %v10286
        %10307 = vmatpush.msra.mxu0 %v10285
        %10308 = vmatmul.f32.gmra.mxu0 %v10290
        %v10309 = vpop.f32.mrf.mxu0
        %v10310 = vadd.f32 0.0, %v10309
        %10311 = vdwg.mxu0
        %v10312 = vmax.f32 %v10310, 0.0
        %v10313 = vld [vmem:[%s6] sm:$0xff]
        %vm10314 = vcmask 64512
        %v10316 = vsel %vm10314, %v10312, 0
        %10318 = vmatpush.msra.mxu0 0.0
        %10319 = vmatpush.msra.mxu0 0.0
        %10320 = vmatpush.msra.mxu0 0.0
        %10321 = vmatpush.msra.mxu0 0.0
        %10322 = vmatpush.msra.mxu0 0.0
        %10323 = vmatpush.msra.mxu0 0.0
        %10324 = vmatpush.msra.mxu0 0.0
        %10325 = vmatpush.msra.mxu0 0.0
        %10326 = vmatpush.msra.mxu0 0.0
        %10327 = vmatpush.msra.mxu0 0.0
        %10328 = vmatpush.msra.mxu0 0.0
        %10329 = vmatpush.msra.mxu0 0.0
        %10330 = vmatpush.msra.mxu0 0.0
        %10331 = vmatpush.msra.mxu0 0.0
        %10332 = vmatpush.msra.mxu0 0.0
        %10333 = vmatpush.msra.mxu0 %v10313
        %10334 = vmatmul.f32.gmra.mxu0 %v10316
        %v10335 = vpop.f32.mrf.mxu0
        %v10336 = vadd.f32 0.0, %v10335
        %10337 = vdwg.mxu0
        %v10338 = vxor.u32 %v10336, 2147483648
        %v10339 = vmul.f32 %v10338, 1.442695
        %v10340 = vpow.pop %v10339
        %v10341 = vadd.f32 %v10340, 1.0
        %v10342 = vrcp.pop %v10341
        %v10343 = vmul.f32 %v10341, %v10342
        %v10344 = vsub.f32 1.0, %v10343
        %v10345 = vmul.f32 %v10342, %v10344
        %v10346 = vadd.f32 %v10342, %v10345
        %vm10347 = vweird.f32 %v10341
        %vm10348 = vweird.f32 %v10342
        %vm10349 = vmor %vm10347, %vm10348
        %v10350 = vsel %vm10349, %v10342, %v10346
        %v10351 = vand.u32 2147483647, %v10341
        %vm10352 = vcmp.eq.f32.partialorder %v10351, 8.507059e+37
        %v10353 = vand.u32 %v10341, 2147483648
        %v10354 = vor.u32 1.1754944e-38, %v10353
        %v10355 = vsel %vm10352, %v10354, %v10350
        %v10356 = vmul.f32 1.0, %v10355
        %v10357 = vperm.slane %v10356, 0
        %v10358 = vmul.f32 %v10176, %v10357
        %v10359 = vmul.f32 %v10177, %v10357
        %v10360 = vmul.f32 %v10178, %v10357
        %v10361 = vmul.f32 %v10179, %v10357
        %v10362 = vmul.f32 %v10180, %v10357
        %v10363 = vmul.f32 %v10181, %v10357
        %v10364 = vmul.f32 %v10182, %v10357
        %v10365 = vmul.f32 %v10183, %v10357
        %v10366 = vmul.f32 %v10184, %v10357
        %v10367 = vmul.f32 %v10185, %v10357
        %v10368 = vmul.f32 %v10186, %v10357
        %v10369 = vmul.f32 %v10187, %v10357
        %v10370 = vmul.f32 %v10188, %v10357
        %v10371 = vmul.f32 %v10189, %v10357
        %v10372 = vmul.f32 %v10190, %v10357
        %v10373 = vmul.f32 %v10191, %v10357
        %v10374 = vmul.f32 %v10192, %v10357
        %v10375 = vmul.f32 %v10193, %v10357
        %v10376 = vmul.f32 %v10194, %v10357
        %v10377 = vmul.f32 %v10195, %v10357
        %v10378 = vmul.f32 %v10196, %v10357
        %v10379 = vmul.f32 %v10197, %v10357
        %v10380 = vmul.f32 %v10198, %v10357
        %v10381 = vmul.f32 %v10199, %v10357
        %v10382 = vmul.f32 %v10200, %v10357
        %v10383 = vmul.f32 %v10201, %v10357
        %v10384 = vmul.f32 %v10202, %v10357
        %v10385 = vmul.f32 %v10203, %v10357
        %v10386 = vmul.f32 %v10204, %v10357
        %v10387 = vmul.f32 %v10205, %v10357
        %v10388 = vmul.f32 %v10206, %v10357
        %v10389 = vmul.f32 %v10207, %v10357
        %v10390 = vmul.f32 %v10358, 0.1
        %v10391 = vmul.f32 %v10359, 0.1
        %v10392 = vmul.f32 %v10360, 0.1
        %v10393 = vmul.f32 %v10361, 0.1
        %v10394 = vmul.f32 %v10362, 0.1
        %v10395 = vmul.f32 %v10363, 0.1
        %v10396 = vmul.f32 %v10364, 0.1
        %v10397 = vmul.f32 %v10365, 0.1
        %v10398 = vmul.f32 %v10366, 0.1
        %v10399 = vmul.f32 %v10367, 0.1
        %v10400 = vmul.f32 %v10368, 0.1
        %v10401 = vmul.f32 %v10369, 0.1
        %v10402 = vmul.f32 %v10370, 0.1
        %v10403 = vmul.f32 %v10371, 0.1
        %v10404 = vmul.f32 %v10372, 0.1
        %v10405 = vmul.f32 %v10373, 0.1
        %v10406 = vmul.f32 %v10374, 0.1
        %v10407 = vmul.f32 %v10375, 0.1
        %v10408 = vmul.f32 %v10376, 0.1
        %v10409 = vmul.f32 %v10377, 0.1
        %v10410 = vmul.f32 %v10378, 0.1
        %v10411 = vmul.f32 %v10379, 0.1
        %v10412 = vmul.f32 %v10380, 0.1
        %v10413 = vmul.f32 %v10381, 0.1
        %v10414 = vmul.f32 %v10382, 0.1
        %v10415 = vmul.f32 %v10383, 0.1
        %v10416 = vmul.f32 %v10384, 0.1
        %v10417 = vmul.f32 %v10385, 0.1
        %v10418 = vmul.f32 %v10386, 0.1
        %v10419 = vmul.f32 %v10387, 0.1
        %v10420 = vmul.f32 %v10388, 0.1
        %v10421 = vmul.f32 %v10389, 0.1
        %v10422 = vadd.f32 %v305, %v10390
        %v10423 = vadd.f32 %v306, %v10391
        %v10424 = vadd.f32 %v307, %v10392
        %v10425 = vadd.f32 %v308, %v10393
        %v10426 = vadd.f32 %v309, %v10394
        %v10427 = vadd.f32 %v310, %v10395
        %v10428 = vadd.f32 %v311, %v10396
        %v10429 = vadd.f32 %v312, %v10397
        %v10430 = vadd.f32 %v313, %v10398
        %v10431 = vadd.f32 %v314, %v10399
        %v10432 = vadd.f32 %v315, %v10400
        %v10433 = vadd.f32 %v316, %v10401
        %v10434 = vadd.f32 %v317, %v10402
        %v10435 = vadd.f32 %v318, %v10403
        %v10436 = vadd.f32 %v319, %v10404
        %v10437 = vadd.f32 %v320, %v10405
        %v10438 = vadd.f32 %v321, %v10406
        %v10439 = vadd.f32 %v322, %v10407
        %v10440 = vadd.f32 %v323, %v10408
        %v10441 = vadd.f32 %v324, %v10409
        %v10442 = vadd.f32 %v325, %v10410
        %v10443 = vadd.f32 %v326, %v10411
        %v10444 = vadd.f32 %v327, %v10412
        %v10445 = vadd.f32 %v328, %v10413
        %v10446 = vadd.f32 %v329, %v10414
        %v10447 = vadd.f32 %v330, %v10415
        %v10448 = vadd.f32 %v331, %v10416
        %v10449 = vadd.f32 %v332, %v10417
        %v10450 = vadd.f32 %v333, %v10418
        %v10451 = vadd.f32 %v334, %v10419
        %v10452 = vadd.f32 %v335, %v10420
        %v10453 = vadd.f32 %v336, %v10421
        %10454 = vst.msk [vmem:[%s298] sm:$0xff] %vm4516, %v10422
        %10455 = vst.msk [vmem:[%s298 + $0x8] sm:$0xff] %vm4516, %v10423
        %10456 = vst.msk [vmem:[%s298 + $0x10] sm:$0xff] %vm4516, %v10424
        %10457 = vst.msk [vmem:[%s298 + $0x18] sm:$0xff] %vm4516, %v10425
        %10458 = vst.msk [vmem:[%s298 + $0x20] sm:$0xff] %vm4516, %v10426
        %10459 = vst.msk [vmem:[%s298 + $0x28] sm:$0xff] %vm4516, %v10427
        %10460 = vst.msk [vmem:[%s298 + $0x30] sm:$0xff] %vm4516, %v10428
        %10461 = vst.msk [vmem:[%s298 + $0x38] sm:$0xff] %vm4516, %v10429
        %10462 = vst.msk [vmem:[%s298 + $0x40] sm:$0xff] %vm4516, %v10430
        %10463 = vst.msk [vmem:[%s298 + $0x48] sm:$0xff] %vm4516, %v10431
        %10464 = vst.msk [vmem:[%s298 + $0x50] sm:$0xff] %vm4516, %v10432
        %10465 = vst.msk [vmem:[%s298 + $0x58] sm:$0xff] %vm4516, %v10433
        %10466 = vst.msk [vmem:[%s298 + $0x60] sm:$0xff] %vm4516, %v10434
        %10467 = vst.msk [vmem:[%s298 + $0x68] sm:$0xff] %vm4516, %v10435
        %10468 = vst.msk [vmem:[%s298 + $0x70] sm:$0xff] %vm4516, %v10436
        %10469 = vst.msk [vmem:[%s298 + $0x78] sm:$0xff] %vm4516, %v10437
        %10470 = vst.msk [vmem:[%s298 + $0x80] sm:$0xff] %vm4516, %v10438
        %10471 = vst.msk [vmem:[%s298 + $0x88] sm:$0xff] %vm4516, %v10439
        %10472 = vst.msk [vmem:[%s298 + $0x90] sm:$0xff] %vm4516, %v10440
        %10473 = vst.msk [vmem:[%s298 + $0x98] sm:$0xff] %vm4516, %v10441
        %10474 = vst.msk [vmem:[%s298 + $0xa0] sm:$0xff] %vm4516, %v10442
        %10475 = vst.msk [vmem:[%s298 + $0xa8] sm:$0xff] %vm4516, %v10443
        %10476 = vst.msk [vmem:[%s298 + $0xb0] sm:$0xff] %vm4516, %v10444
        %10477 = vst.msk [vmem:[%s298 + $0xb8] sm:$0xff] %vm4516, %v10445
        %10478 = vst.msk [vmem:[%s298 + $0xc0] sm:$0xff] %vm4516, %v10446
        %10479 = vst.msk [vmem:[%s298 + $0xc8] sm:$0xff] %vm4516, %v10447
        %10480 = vst.msk [vmem:[%s298 + $0xd0] sm:$0xff] %vm4516, %v10448
        %10481 = vst.msk [vmem:[%s298 + $0xd8] sm:$0xff] %vm4516, %v10449
        %10482 = vst.msk [vmem:[%s298 + $0xe0] sm:$0xff] %vm4516, %v10450
        %10483 = vst.msk [vmem:[%s298 + $0xe8] sm:$0xff] %vm4516, %v10451
        %10484 = vst.msk [vmem:[%s298 + $0xf0] sm:$0xff] %vm4516, %v10452
        %10485 = vst.msk [vmem:[%s298 + $0xf8] sm:$0xff] %vm4516, %v10453
        %s10486 = sand.u32 %s203, 1
        %s10487 = scalar_lea.sflag [#allocation4], %s10486
        %s10488 = sand.u32 %s203, 1
        %s10489 = smul.addr %s10488, 256
        %s10490 = scalar_lea.vmem [#allocation3], %s10489
        // Predicated region
        $region53: #{tpu_custom_call.1} parent=51 // pred_check
          %p10491 = pneg %p213
        $region54: #{tpu_custom_call.1} parent=51 // pred_check_branch
          %10493 = sbr.rel (%p10491) target = $region56
        $region55: #{tpu_custom_call.1} parent=51 // pred_region
          %10495 = vsyncadd %s10487, 0
          %s10496 = smul.addr %s22, 32
          %s10497 = smul.addr %s10496, 8
          %s10498 = scalar_lea.hbm %s8, %s10497
          %s10499 = sshll.u32 %s10490, 4
          %s10500 = int_to_ptr.vmem [resolvable:$true] %s10499
          %s10501 = sshll.u32 %s10498, 4
          %s10502 = int_to_ptr.hbm [resolvable:$true] %s10501
          %10507 = dma.vmem_to_hbm [thread:$0]  %s10500, 4096, %s10502, %s10487, 128, 128, 8
        $region56: #{tpu_custom_call.1} parent=51 // pred_fallthru
          _
      $region52: #{tpu_custom_call.1} parent=5 // pred_fallthru
        _
      %p10508 = scmp.le.s32.totalorder 2, %s17
      // Predicated region
      $region57: #{tpu_custom_call.1} parent=5 // pred_check
        %p10509 = pneg %p10508
      $region58: #{tpu_custom_call.1} parent=5 // pred_check_branch
        %10511 = sbr.rel (%p10509) target = $region60
      $region59: #{tpu_custom_call.1} parent=5 // pred_region
        %s10512 = ssub.s32 %s17, 2
        // Predicated region
        $region61: #{tpu_custom_call.1} parent=59 // pred_check
          %p10513 = pneg %p219
        $region62: #{tpu_custom_call.1} parent=59 // pred_check_branch
          %10515 = sbr.rel (%p10513) target = $region64
        $region63: #{tpu_custom_call.1} parent=59 // pred_region
          %s10516 = sand.u32 %s204, 1
          %s10517 = scalar_lea.sflag [#allocation4], %s10516
          %s10518 = sand.u32 %s204, 1
          %s10519 = smul.addr %s10518, 256
          %s10520 = scalar_lea.vmem [#allocation3], %s10519
          %10522 = dma.done %s10517, 4096
        $region64: #{tpu_custom_call.1} parent=59 // pred_fallthru
          _
      $region60: #{tpu_custom_call.1} parent=5 // pred_fallthru
        _
    $region6: #{tpu_custom_call.1} parent=1 // loop_footer
      %s21 = sadd.s32 1, %s17
    $region7: #{tpu_custom_call.1} parent=1 // loop_footer_branch
      %16 = sbr.rel target = $region3
    $region8: #{tpu_custom_call.1} parent=1 // loop_exit
      _
    %10523 = vsyncpa [#allocation4], 1
    %s10524 = scalar_lea.sflag [#allocation4], 1
    %10525 = vsyncpa %s10524, 1

</llo_original>
